<compile_context>
chip_gen: v7x
topology: tpu7x:2x2x1
jax: 0.10.0
libtpu: 0.0.40
codegen_flags: <defaults>
</compile_context>

<pallas_src>
import numpy as np
import jax
import jax.numpy as jnp
from jax import lax
from jax.experimental import pallas as pl
from jax.experimental.pallas import tpu as pltpu

# ----------------------------- problem sizes (synthetic, small) -----------------
N = 2              # batch
CIN = 4            # in_channels
COUT = 8           # out_channels
H = W = 16         # spatial
H2, W2 = H // 2, W // 2          # stride-2 output spatial (8, 8)
HP, WP = H + 2, W + 2            # zero-padded spatial (padding=1) -> (18, 18)
L = HP * WP                      # flattened padded grid per image = 324
NL = N * L                       # batch folded along rows = 648 (multiple of 8)
GPAD = 24                        # shared front/back margin rows (>= max |tap| = 19)
NT = GPAD + NL + GPAD            # margined row count = 696
NSEL = H2 * W2                   # stride-2 outputs per image = 64
K9 = 9 * CIN                     # folded contraction depth = 36
SQRT2 = float(np.sqrt(2.0))
INV_SQRT2 = float(1.0 / np.sqrt(2.0))

# tap order k = kh*3 + kw ; row offset of tap (kh, kw) in the flattened padded grid
DELTAS = [(kh - 1) * WP + (kw - 1) for kh in range(3) for kw in range(3)]

# interior mask over the packed rows: 1.0 at real pixels, 0.0 on each image's padding ring
_g = np.arange(NL)
_rho = _g % L
_hp, _wp = _rho // WP, _rho % WP
_MASK = (((_hp >= 1) & (_hp <= H) & (_wp >= 1) & (_wp <= W))
         .astype(np.float32).reshape(NL, 1))


# ----------------------------------- kernel -------------------------------------
def resblock_kernel(x_ref, w1_ref, b1_ref, w2_ref, b2_ref, wsk_ref, mask_ref,
                    o_ref, a1_ref, tap_ref, m_ref):
    # x_ref  : (NT, CIN)       packed + margined input rows (channels in lanes)
    # w1_ref : (36, CIN)       conv1 folded per-tap weights    b1_ref: (1, CIN)
    # w2_ref : (36, COUT)      conv2 folded per-tap weights    b2_ref: (1, COUT)
    # wsk_ref: (CIN, COUT)     1x1 skip weights
    # mask_ref: (NL, 1)        per-image interior mask
    # o_ref  : (N*NSEL, COUT)  stride-2 output rows
    # a1_ref : (NT, CIN)       conv1 activation staged behind zero margins (scratch)
    # tap_ref: (NL, 36)        shared 9-tap im2col slab (scratch)
    # m_ref  : (NL, COUT)      dense conv2+skip result before selection (scratch)
    mask = mask_ref[...]

    def lrelu_sqrt2(v):
        return jnp.where(v >= 0, v, 0.2 * v) * SQRT2

    # ---- conv1: gather 9 shifted tap slabs into one (NL, 36) operand, single K=36
    #      MXU matmul (replaces nine K=4 matmuls + 8 VALU accumulation adds) ----
    for k, d in enumerate(DELTAS):
        tap_ref[:, pl.ds(k * CIN, CIN)] = x_ref[pl.ds(GPAD + d, NL), :]
    a1 = lrelu_sqrt2(
        jnp.dot(tap_ref[...], w1_ref[...], preferred_element_type=jnp.float32)
        + b1_ref[...]) * mask        # mask re-imposes the zero padding ring

    # ---- stage a1 behind zero margins; only the small margins are zeroed ----
    a1_ref[pl.ds(0, GPAD), :] = jnp.zeros((GPAD, CIN), jnp.float32)
    a1_ref[pl.ds(GPAD + NL, GPAD), :] = jnp.zeros((GPAD, CIN), jnp.float32)
    a1_ref[pl.ds(GPAD, NL), :] = a1

    # ---- conv2 (dense rows) as one K=36 matmul; fold the 1x1/stride-2 skip and the
    #      final 1/sqrt(2) in BEFORE selection (sel @ (x @ Wsk) == (sel @ x) @ Wsk) ----
    for k, d in enumerate(DELTAS):
        tap_ref[:, pl.ds(k * CIN, CIN)] = a1_ref[pl.ds(GPAD + d, NL), :]
    a2 = lrelu_sqrt2(
        jnp.dot(tap_ref[...], w2_ref[...], preferred_element_type=jnp.float32)
        + b2_ref[...])
    skip = jnp.dot(x_ref[pl.ds(GPAD, NL), :], wsk_ref[...],
                   preferred_element_type=jnp.float32)
    m_ref[...] = (a2 + skip) * INV_SQRT2

    # ---- stride-2 selection: 16 static strided row reads replace the dense 0/1
    #      selector matmul; output writes are 8-row aligned full-row stores ----
    for i in range(N):
        for oh in range(H2):
            src = i * L + (2 * oh + 1) * WP + 1     # rows (2oh+1, 2ow+1), ow = 0..7
            dst = (i * H2 + oh) * W2
            o_ref[pl.ds(dst, W2), :] = m_ref[pl.ds(src, W2, stride=2), :]


# ----------------------------------- wrapper ------------------------------------
@jax.jit
def resblock_forward(x_nchw, w1, b1, w2, b2, wsk):
    # Layout plumbing only: NCHW -> packed padded rows with channels in lanes.
    x_nhwc = jnp.transpose(x_nchw, (0, 2, 3, 1)).astype(jnp.float32)
    x_p = jnp.pad(x_nhwc, ((0, 0), (1, 1), (1, 1), (0, 0)))          # (N, HP, WP, CIN)
    x_rows = x_p.reshape(NL, CIN)                                     # images at stride L
    xf = jnp.zeros((NT, CIN), jnp.float32).at[GPAD:GPAD + NL, :].set(x_rows)

    # folded per-tap weights: row index = (kh*3 + kw)*CIN + cin
    w1k = jnp.transpose(w1, (2, 3, 1, 0)).reshape(K9, CIN).astype(jnp.float32)
    w2k = jnp.transpose(w2, (2, 3, 1, 0)).reshape(K9, COUT).astype(jnp.float32)
    wskm = jnp.transpose(wsk[:, :, 0, 0], (1, 0)).astype(jnp.float32)  # (CIN, COUT)
    b1m = b1.reshape(1, CIN).astype(jnp.float32)
    b2m = b2.reshape(1, COUT).astype(jnp.float32)
    mask = jnp.asarray(_MASK)

    out_rows = pl.pallas_call(
        resblock_kernel,
        out_shape=jax.ShapeDtypeStruct((N * NSEL, COUT), jnp.float32),
        grid_spec=pltpu.PrefetchScalarGridSpec(
            num_scalar_prefetch=0,
            grid=(1,),                      # single invocation: batch folded into rows
            in_specs=[
                pl.BlockSpec((NT, CIN), lambda i: (0, 0)),
                pl.BlockSpec((K9, CIN), lambda i: (0, 0)),
                pl.BlockSpec((1, CIN), lambda i: (0, 0)),
                pl.BlockSpec((K9, COUT), lambda i: (0, 0)),
                pl.BlockSpec((1, COUT), lambda i: (0, 0)),
                pl.BlockSpec((CIN, COUT), lambda i: (0, 0)),
                pl.BlockSpec((NL, 1), lambda i: (0, 0)),
            ],
            out_specs=pl.BlockSpec((N * NSEL, COUT), lambda i: (0, 0)),
            scratch_shapes=[
                pltpu.VMEM((NT, CIN), jnp.float32),   # a1 (with margins)
                pltpu.VMEM((NL, K9), jnp.float32),    # shared im2col tap slab
                pltpu.VMEM((NL, COUT), jnp.float32),  # merged pre-selection result
            ],
        ),
        compiler_params=pltpu.CompilerParams(dimension_semantics=("arbitrary",)),
    )(xf, w1k, b1m, w2k, b2m, wskm, mask)

    # (N*NSEL, COUT) -> (N, H2, W2, COUT) -> NCHW
    return jnp.transpose(out_rows.reshape(N, H2, W2, COUT), (0, 3, 1, 2))


# ------------------------- pure-JAX reference (XLA convs) ------------------------
def resblock_ref(x, w1, b1, w2, b2, wsk):
    prec = lax.Precision.HIGHEST
    dn = ('NCHW', 'OIHW', 'NCHW')
    y = lax.conv_general_dilated(x, w1, (1, 1), ((1, 1), (1, 1)),
                                 dimension_numbers=dn, precision=prec)
    y = y + b1[None, :, None, None]
    y = jnp.where(y >= 0, y, 0.2 * y) * SQRT2
    y = lax.conv_general_dilated(y, w2, (2, 2), ((1, 1), (1, 1)),
                                 dimension_numbers=dn, precision=prec)
    y = y + b2[None, :, None, None]
    y = jnp.where(y >= 0, y, 0.2 * y) * SQRT2
    s = lax.conv_general_dilated(x, wsk, (2, 2), ((0, 0), (0, 0)),
                                 dimension_numbers=dn, precision=prec)
    return (y + s) / SQRT2


if __name__ == "__main__":
    key = jax.random.PRNGKey(0)
    kx, k1, kb1, k2, kb2, ks = jax.random.split(key, 6)
    x = jax.random.normal(kx, (N, CIN, H, W), jnp.float32)
    # deterministic synthetic parameters matching nn.Conv2d shapes (OIHW)
    w1 = jax.random.normal(k1, (CIN, CIN, 3, 3), jnp.float32) * 0.2
    b1 = jax.random.normal(kb1, (CIN,), jnp.float32) * 0.1
    w2 = jax.random.normal(k2, (COUT, CIN, 3, 3), jnp.float32) * 0.2
    b2 = jax.random.normal(kb2, (COUT,), jnp.float32) * 0.1
    wsk = jax.random.normal(ks, (COUT, CIN, 1, 1), jnp.float32) * 0.2  # skip has no bias

    out = resblock_forward(x, w1, b1, w2, b2, wsk)
    out = jax.block_until_ready(out)

    ref = resblock_ref(x, w1, b1, w2, b2, wsk)
    if out.shape != (N, COUT, H2, W2):
        raise SystemExit(f"shape mismatch: {out.shape}")
    if not bool(jnp.allclose(out, ref, rtol=2e-2, atol=2e-2)):
        raise SystemExit("numerical mismatch vs reference")
    print("KERNEL_OK")
</pallas_src>

<mosaic_0001>
module attributes {stable_mosaic.version = 11 : i64} {
  func.func @resblock_kernel(%arg0: i32, %arg1: memref<696x4xf32, #tpu.memory_space<vmem>>, %arg2: memref<36x4xf32, #tpu.memory_space<vmem>>, %arg3: memref<1x4xf32, #tpu.memory_space<vmem>>, %arg4: memref<36x8xf32, #tpu.memory_space<vmem>>, %arg5: memref<1x8xf32, #tpu.memory_space<vmem>>, %arg6: memref<4x8xf32, #tpu.memory_space<vmem>>, %arg7: memref<648x1xf32, #tpu.memory_space<vmem>>, %arg8: memref<128x8xf32, #tpu.memory_space<vmem>>, %arg9: memref<696x4xf32, #tpu.memory_space<vmem>>, %arg10: memref<648x36xf32, #tpu.memory_space<vmem>>, %arg11: memref<648x8xf32, #tpu.memory_space<vmem>>) attributes {dimension_semantics = [#tpu.dimension_semantics<arbitrary>], iteration_bounds = array<i64: 1>, scalar_prefetch = 0 : i64, scratch_operands = 3 : i64, tpu.core_type = #tpu.core_type<tc>, window_params = [{pipeline_mode = #tpu.pipeline_mode<synchronous>, transform_indices = @transform_0, window_bounds = array<i64: 696, 4>}, {pipeline_mode = #tpu.pipeline_mode<synchronous>, transform_indices = @transform_1, window_bounds = array<i64: 36, 4>}, {pipeline_mode = #tpu.pipeline_mode<synchronous>, transform_indices = @transform_2, window_bounds = array<i64: 1, 4>}, {pipeline_mode = #tpu.pipeline_mode<synchronous>, transform_indices = @transform_3, window_bounds = array<i64: 36, 8>}, {pipeline_mode = #tpu.pipeline_mode<synchronous>, transform_indices = @transform_4, window_bounds = array<i64: 1, 8>}, {pipeline_mode = #tpu.pipeline_mode<synchronous>, transform_indices = @transform_5, window_bounds = array<i64: 4, 8>}, {pipeline_mode = #tpu.pipeline_mode<synchronous>, transform_indices = @transform_6, window_bounds = array<i64: 648, 1>}, {pipeline_mode = #tpu.pipeline_mode<synchronous>, transform_indices = @transform_7, window_bounds = array<i64: 128, 8>}]} {
    %c0 = arith.constant 0 : index
    %c0_0 = arith.constant 0 : index
    %0 = vector.load %arg7[%c0, %c0_0] : memref<648x1xf32, #tpu.memory_space<vmem>>, vector<648x1xf32>
    %c5 = arith.constant 5 : index
    %c0_1 = arith.constant 0 : index
    %1 = vector.load %arg1[%c5, %c0_1] : memref<696x4xf32, #tpu.memory_space<vmem>>, vector<648x4xf32>
    %c0_2 = arith.constant 0 : index
    %c0_3 = arith.constant 0 : index
    %2 = vector.load %arg10[%c0_2, %c0_3] : memref<648x36xf32, #tpu.memory_space<vmem>>, vector<648x4xf32>
    tpu.vector_store %arg10[%c0_2, %c0_3], %1 {strides = array<i32>} : memref<648x36xf32, #tpu.memory_space<vmem>>, vector<648x4xf32>,
    %c6 = arith.constant 6 : index
    %c0_4 = arith.constant 0 : index
    %3 = vector.load %arg1[%c6, %c0_4] : memref<696x4xf32, #tpu.memory_space<vmem>>, vector<648x4xf32>
    %c0_5 = arith.constant 0 : index
    %c4 = arith.constant 4 : index
    %4 = vector.load %arg10[%c0_5, %c4] : memref<648x36xf32, #tpu.memory_space<vmem>>, vector<648x4xf32>
    tpu.vector_store %arg10[%c0_5, %c4], %3 {strides = array<i32>} : memref<648x36xf32, #tpu.memory_space<vmem>>, vector<648x4xf32>,
    %c7 = arith.constant 7 : index
    %c0_6 = arith.constant 0 : index
    %5 = vector.load %arg1[%c7, %c0_6] : memref<696x4xf32, #tpu.memory_space<vmem>>, vector<648x4xf32>
    %c0_7 = arith.constant 0 : index
    %c8 = arith.constant 8 : index
    %6 = vector.load %arg10[%c0_7, %c8] : memref<648x36xf32, #tpu.memory_space<vmem>>, vector<648x4xf32>
    tpu.vector_store %arg10[%c0_7, %c8], %5 {strides = array<i32>} : memref<648x36xf32, #tpu.memory_space<vmem>>, vector<648x4xf32>,
    %c23 = arith.constant 23 : index
    %c0_8 = arith.constant 0 : index
    %7 = vector.load %arg1[%c23, %c0_8] : memref<696x4xf32, #tpu.memory_space<vmem>>, vector<648x4xf32>
    %c0_9 = arith.constant 0 : index
    %c12 = arith.constant 12 : index
    %8 = vector.load %arg10[%c0_9, %c12] : memref<648x36xf32, #tpu.memory_space<vmem>>, vector<648x4xf32>
    tpu.vector_store %arg10[%c0_9, %c12], %7 {strides = array<i32>} : memref<648x36xf32, #tpu.memory_space<vmem>>, vector<648x4xf32>,
    %c24 = arith.constant 24 : index
    %c0_10 = arith.constant 0 : index
    %9 = vector.load %arg1[%c24, %c0_10] : memref<696x4xf32, #tpu.memory_space<vmem>>, vector<648x4xf32>
    %c0_11 = arith.constant 0 : index
    %c16 = arith.constant 16 : index
    %10 = vector.load %arg10[%c0_11, %c16] : memref<648x36xf32, #tpu.memory_space<vmem>>, vector<648x4xf32>
    tpu.vector_store %arg10[%c0_11, %c16], %9 {strides = array<i32>} : memref<648x36xf32, #tpu.memory_space<vmem>>, vector<648x4xf32>,
    %c25 = arith.constant 25 : index
    %c0_12 = arith.constant 0 : index
    %11 = vector.load %arg1[%c25, %c0_12] : memref<696x4xf32, #tpu.memory_space<vmem>>, vector<648x4xf32>
    %c0_13 = arith.constant 0 : index
    %c20 = arith.constant 20 : index
    %12 = vector.load %arg10[%c0_13, %c20] : memref<648x36xf32, #tpu.memory_space<vmem>>, vector<648x4xf32>
    tpu.vector_store %arg10[%c0_13, %c20], %11 {strides = array<i32>} : memref<648x36xf32, #tpu.memory_space<vmem>>, vector<648x4xf32>,
    %c41 = arith.constant 41 : index
    %c0_14 = arith.constant 0 : index
    %13 = vector.load %arg1[%c41, %c0_14] : memref<696x4xf32, #tpu.memory_space<vmem>>, vector<648x4xf32>
    %c0_15 = arith.constant 0 : index
    %c24_16 = arith.constant 24 : index
    %14 = vector.load %arg10[%c0_15, %c24_16] : memref<648x36xf32, #tpu.memory_space<vmem>>, vector<648x4xf32>
    tpu.vector_store %arg10[%c0_15, %c24_16], %13 {strides = array<i32>} : memref<648x36xf32, #tpu.memory_space<vmem>>, vector<648x4xf32>,
    %c42 = arith.constant 42 : index
    %c0_17 = arith.constant 0 : index
    %15 = vector.load %arg1[%c42, %c0_17] : memref<696x4xf32, #tpu.memory_space<vmem>>, vector<648x4xf32>
    %c0_18 = arith.constant 0 : index
    %c28 = arith.constant 28 : index
    %16 = vector.load %arg10[%c0_18, %c28] : memref<648x36xf32, #tpu.memory_space<vmem>>, vector<648x4xf32>
    tpu.vector_store %arg10[%c0_18, %c28], %15 {strides = array<i32>} : memref<648x36xf32, #tpu.memory_space<vmem>>, vector<648x4xf32>,
    %c43 = arith.constant 43 : index
    %c0_19 = arith.constant 0 : index
    %17 = vector.load %arg1[%c43, %c0_19] : memref<696x4xf32, #tpu.memory_space<vmem>>, vector<648x4xf32>
    %c0_20 = arith.constant 0 : index
    %c32 = arith.constant 32 : index
    %18 = vector.load %arg10[%c0_20, %c32] : memref<648x36xf32, #tpu.memory_space<vmem>>, vector<648x4xf32>
    tpu.vector_store %arg10[%c0_20, %c32], %17 {strides = array<i32>} : memref<648x36xf32, #tpu.memory_space<vmem>>, vector<648x4xf32>,
    %c0_21 = arith.constant 0 : index
    %c0_22 = arith.constant 0 : index
    %19 = vector.load %arg10[%c0_21, %c0_22] : memref<648x36xf32, #tpu.memory_space<vmem>>, vector<648x36xf32>
    %c0_23 = arith.constant 0 : index
    %c0_24 = arith.constant 0 : index
    %20 = vector.load %arg2[%c0_23, %c0_24] : memref<36x4xf32, #tpu.memory_space<vmem>>, vector<36x4xf32>
    %cst = arith.constant dense<0.000000e+00> : vector<648x4xf32>
    %21 = tpu.matmul %19, %20, %cst {dimension_numbers = #tpu.dot_dimension_numbers<[1], [0], [0], [1], [0, 0, 1, 1], [], []>} : vector<648x36xf32>, vector<36x4xf32>, vector<648x4xf32> -> vector<648x4xf32>
    %c0_25 = arith.constant 0 : index
    %c0_26 = arith.constant 0 : index
    %22 = vector.load %arg3[%c0_25, %c0_26] : memref<1x4xf32, #tpu.memory_space<vmem>>, vector<1x4xf32>
    %23 = vector.broadcast %22 : vector<1x4xf32> to vector<648x4xf32>
    %24 = arith.addf %21, %23 : vector<648x4xf32>
    %cst_27 = arith.constant 0.000000e+00 : f32
    %25 = vector.broadcast %cst_27 : f32 to vector<648x4xf32>
    %26 = arith.cmpf oge, %24, %25 : vector<648x4xf32>
    %cst_28 = arith.constant 2.000000e-01 : f32
    %27 = vector.broadcast %cst_28 : f32 to vector<648x4xf32>
    %28 = arith.mulf %27, %24 : vector<648x4xf32>
    %29 = arith.select %26, %24, %28 : vector<648x4xi1>, vector<648x4xf32>
    %cst_29 = arith.constant 1.41421354 : f32
    %30 = vector.broadcast %cst_29 : f32 to vector<648x4xf32>
    %31 = arith.mulf %29, %30 : vector<648x4xf32>
    %32 = vector.broadcast %0 : vector<648x1xf32> to vector<648x4xf32>
    %33 = arith.mulf %31, %32 : vector<648x4xf32>
    %cst_30 = arith.constant 0.000000e+00 : f32
    %34 = vector.broadcast %cst_30 : f32 to vector<24x4xf32>
    %c0_31 = arith.constant 0 : index
    %c0_32 = arith.constant 0 : index
    %35 = vector.load %arg9[%c0_31, %c0_32] : memref<696x4xf32, #tpu.memory_space<vmem>>, vector<24x4xf32>
    tpu.vector_store %arg9[%c0_31, %c0_32], %34 {strides = array<i32>} : memref<696x4xf32, #tpu.memory_space<vmem>>, vector<24x4xf32>,
    %cst_33 = arith.constant 0.000000e+00 : f32
    %36 = vector.broadcast %cst_33 : f32 to vector<24x4xf32>
    %c672 = arith.constant 672 : index
    %c0_34 = arith.constant 0 : index
    %37 = vector.load %arg9[%c672, %c0_34] : memref<696x4xf32, #tpu.memory_space<vmem>>, vector<24x4xf32>
    tpu.vector_store %arg9[%c672, %c0_34], %36 {strides = array<i32>} : memref<696x4xf32, #tpu.memory_space<vmem>>, vector<24x4xf32>,
    %c24_35 = arith.constant 24 : index
    %c0_36 = arith.constant 0 : index
    %38 = vector.load %arg9[%c24_35, %c0_36] : memref<696x4xf32, #tpu.memory_space<vmem>>, vector<648x4xf32>
    tpu.vector_store %arg9[%c24_35, %c0_36], %33 {strides = array<i32>} : memref<696x4xf32, #tpu.memory_space<vmem>>, vector<648x4xf32>,
    %c5_37 = arith.constant 5 : index
    %c0_38 = arith.constant 0 : index
    %39 = vector.load %arg9[%c5_37, %c0_38] : memref<696x4xf32, #tpu.memory_space<vmem>>, vector<648x4xf32>
    %c0_39 = arith.constant 0 : index
    %c0_40 = arith.constant 0 : index
    %40 = vector.load %arg10[%c0_39, %c0_40] : memref<648x36xf32, #tpu.memory_space<vmem>>, vector<648x4xf32>
    tpu.vector_store %arg10[%c0_39, %c0_40], %39 {strides = array<i32>} : memref<648x36xf32, #tpu.memory_space<vmem>>, vector<648x4xf32>,
    %c6_41 = arith.constant 6 : index
    %c0_42 = arith.constant 0 : index
    %41 = vector.load %arg9[%c6_41, %c0_42] : memref<696x4xf32, #tpu.memory_space<vmem>>, vector<648x4xf32>
    %c0_43 = arith.constant 0 : index
    %c4_44 = arith.constant 4 : index
    %42 = vector.load %arg10[%c0_43, %c4_44] : memref<648x36xf32, #tpu.memory_space<vmem>>, vector<648x4xf32>
    tpu.vector_store %arg10[%c0_43, %c4_44], %41 {strides = array<i32>} : memref<648x36xf32, #tpu.memory_space<vmem>>, vector<648x4xf32>,
    %c7_45 = arith.constant 7 : index
    %c0_46 = arith.constant 0 : index
    %43 = vector.load %arg9[%c7_45, %c0_46] : memref<696x4xf32, #tpu.memory_space<vmem>>, vector<648x4xf32>
    %c0_47 = arith.constant 0 : index
    %c8_48 = arith.constant 8 : index
    %44 = vector.load %arg10[%c0_47, %c8_48] : memref<648x36xf32, #tpu.memory_space<vmem>>, vector<648x4xf32>
    tpu.vector_store %arg10[%c0_47, %c8_48], %43 {strides = array<i32>} : memref<648x36xf32, #tpu.memory_space<vmem>>, vector<648x4xf32>,
    %c23_49 = arith.constant 23 : index
    %c0_50 = arith.constant 0 : index
    %45 = vector.load %arg9[%c23_49, %c0_50] : memref<696x4xf32, #tpu.memory_space<vmem>>, vector<648x4xf32>
    %c0_51 = arith.constant 0 : index
    %c12_52 = arith.constant 12 : index
    %46 = vector.load %arg10[%c0_51, %c12_52] : memref<648x36xf32, #tpu.memory_space<vmem>>, vector<648x4xf32>
    tpu.vector_store %arg10[%c0_51, %c12_52], %45 {strides = array<i32>} : memref<648x36xf32, #tpu.memory_space<vmem>>, vector<648x4xf32>,
    %c24_53 = arith.constant 24 : index
    %c0_54 = arith.constant 0 : index
    %47 = vector.load %arg9[%c24_53, %c0_54] : memref<696x4xf32, #tpu.memory_space<vmem>>, vector<648x4xf32>
    %c0_55 = arith.constant 0 : index
    %c16_56 = arith.constant 16 : index
    %48 = vector.load %arg10[%c0_55, %c16_56] : memref<648x36xf32, #tpu.memory_space<vmem>>, vector<648x4xf32>
    tpu.vector_store %arg10[%c0_55, %c16_56], %47 {strides = array<i32>} : memref<648x36xf32, #tpu.memory_space<vmem>>, vector<648x4xf32>,
    %c25_57 = arith.constant 25 : index
    %c0_58 = arith.constant 0 : index
    %49 = vector.load %arg9[%c25_57, %c0_58] : memref<696x4xf32, #tpu.memory_space<vmem>>, vector<648x4xf32>
    %c0_59 = arith.constant 0 : index
    %c20_60 = arith.constant 20 : index
    %50 = vector.load %arg10[%c0_59, %c20_60] : memref<648x36xf32, #tpu.memory_space<vmem>>, vector<648x4xf32>
    tpu.vector_store %arg10[%c0_59, %c20_60], %49 {strides = array<i32>} : memref<648x36xf32, #tpu.memory_space<vmem>>, vector<648x4xf32>,
    %c41_61 = arith.constant 41 : index
    %c0_62 = arith.constant 0 : index
    %51 = vector.load %arg9[%c41_61, %c0_62] : memref<696x4xf32, #tpu.memory_space<vmem>>, vector<648x4xf32>
    %c0_63 = arith.constant 0 : index
    %c24_64 = arith.constant 24 : index
    %52 = vector.load %arg10[%c0_63, %c24_64] : memref<648x36xf32, #tpu.memory_space<vmem>>, vector<648x4xf32>
    tpu.vector_store %arg10[%c0_63, %c24_64], %51 {strides = array<i32>} : memref<648x36xf32, #tpu.memory_space<vmem>>, vector<648x4xf32>,
    %c42_65 = arith.constant 42 : index
    %c0_66 = arith.constant 0 : index
    %53 = vector.load %arg9[%c42_65, %c0_66] : memref<696x4xf32, #tpu.memory_space<vmem>>, vector<648x4xf32>
    %c0_67 = arith.constant 0 : index
    %c28_68 = arith.constant 28 : index
    %54 = vector.load %arg10[%c0_67, %c28_68] : memref<648x36xf32, #tpu.memory_space<vmem>>, vector<648x4xf32>
    tpu.vector_store %arg10[%c0_67, %c28_68], %53 {strides = array<i32>} : memref<648x36xf32, #tpu.memory_space<vmem>>, vector<648x4xf32>,
    %c43_69 = arith.constant 43 : index
    %c0_70 = arith.constant 0 : index
    %55 = vector.load %arg9[%c43_69, %c0_70] : memref<696x4xf32, #tpu.memory_space<vmem>>, vector<648x4xf32>
    %c0_71 = arith.constant 0 : index
    %c32_72 = arith.constant 32 : index
    %56 = vector.load %arg10[%c0_71, %c32_72] : memref<648x36xf32, #tpu.memory_space<vmem>>, vector<648x4xf32>
    tpu.vector_store %arg10[%c0_71, %c32_72], %55 {strides = array<i32>} : memref<648x36xf32, #tpu.memory_space<vmem>>, vector<648x4xf32>,
    %c0_73 = arith.constant 0 : index
    %c0_74 = arith.constant 0 : index
    %57 = vector.load %arg10[%c0_73, %c0_74] : memref<648x36xf32, #tpu.memory_space<vmem>>, vector<648x36xf32>
    %c0_75 = arith.constant 0 : index
    %c0_76 = arith.constant 0 : index
    %58 = vector.load %arg4[%c0_75, %c0_76] : memref<36x8xf32, #tpu.memory_space<vmem>>, vector<36x8xf32>
    %cst_77 = arith.constant dense<0.000000e+00> : vector<648x8xf32>
    %59 = tpu.matmul %57, %58, %cst_77 {dimension_numbers = #tpu.dot_dimension_numbers<[1], [0], [0], [1], [0, 0, 1, 1], [], []>} : vector<648x36xf32>, vector<36x8xf32>, vector<648x8xf32> -> vector<648x8xf32>
    %c0_78 = arith.constant 0 : index
    %c0_79 = arith.constant 0 : index
    %60 = vector.load %arg5[%c0_78, %c0_79] : memref<1x8xf32, #tpu.memory_space<vmem>>, vector<1x8xf32>
    %61 = vector.broadcast %60 : vector<1x8xf32> to vector<648x8xf32>
    %62 = arith.addf %59, %61 : vector<648x8xf32>
    %cst_80 = arith.constant 0.000000e+00 : f32
    %63 = vector.broadcast %cst_80 : f32 to vector<648x8xf32>
    %64 = arith.cmpf oge, %62, %63 : vector<648x8xf32>
    %cst_81 = arith.constant 2.000000e-01 : f32
    %65 = vector.broadcast %cst_81 : f32 to vector<648x8xf32>
    %66 = arith.mulf %65, %62 : vector<648x8xf32>
    %67 = arith.select %64, %62, %66 : vector<648x8xi1>, vector<648x8xf32>
    %cst_82 = arith.constant 1.41421354 : f32
    %68 = vector.broadcast %cst_82 : f32 to vector<648x8xf32>
    %69 = arith.mulf %67, %68 : vector<648x8xf32>
    %c24_83 = arith.constant 24 : index
    %c0_84 = arith.constant 0 : index
    %70 = vector.load %arg1[%c24_83, %c0_84] : memref<696x4xf32, #tpu.memory_space<vmem>>, vector<648x4xf32>
    %c0_85 = arith.constant 0 : index
    %c0_86 = arith.constant 0 : index
    %71 = vector.load %arg6[%c0_85, %c0_86] : memref<4x8xf32, #tpu.memory_space<vmem>>, vector<4x8xf32>
    %cst_87 = arith.constant dense<0.000000e+00> : vector<648x8xf32>
    %72 = tpu.matmul %70, %71, %cst_87 {dimension_numbers = #tpu.dot_dimension_numbers<[1], [0], [0], [1], [0, 0, 1, 1], [], []>} : vector<648x4xf32>, vector<4x8xf32>, vector<648x8xf32> -> vector<648x8xf32>
    %73 = arith.addf %69, %72 : vector<648x8xf32>
    %cst_88 = arith.constant 0.707106769 : f32
    %74 = vector.broadcast %cst_88 : f32 to vector<648x8xf32>
    %75 = arith.mulf %73, %74 : vector<648x8xf32>
    %c0_89 = arith.constant 0 : index
    %c0_90 = arith.constant 0 : index
    %76 = vector.load %arg11[%c0_89, %c0_90] : memref<648x8xf32, #tpu.memory_space<vmem>>, vector<648x8xf32>
    tpu.vector_store %arg11[%c0_89, %c0_90], %75 {strides = array<i32>} : memref<648x8xf32, #tpu.memory_space<vmem>>, vector<648x8xf32>,
    %c19 = arith.constant 19 : index
    %c0_91 = arith.constant 0 : index
    %77 = tpu.strided_load %arg11[%c19, %c0_91] {strides = array<i32: 2, 1>} : memref<648x8xf32, #tpu.memory_space<vmem>>, vector<8x8xf32>
    %c0_92 = arith.constant 0 : index
    %c0_93 = arith.constant 0 : index
    %78 = vector.load %arg8[%c0_92, %c0_93] : memref<128x8xf32, #tpu.memory_space<vmem>>, vector<8x8xf32>
    tpu.vector_store %arg8[%c0_92, %c0_93], %77 {strides = array<i32>} : memref<128x8xf32, #tpu.memory_space<vmem>>, vector<8x8xf32>,
    %c55 = arith.constant 55 : index
    %c0_94 = arith.constant 0 : index
    %79 = tpu.strided_load %arg11[%c55, %c0_94] {strides = array<i32: 2, 1>} : memref<648x8xf32, #tpu.memory_space<vmem>>, vector<8x8xf32>
    %c8_95 = arith.constant 8 : index
    %c0_96 = arith.constant 0 : index
    %80 = vector.load %arg8[%c8_95, %c0_96] : memref<128x8xf32, #tpu.memory_space<vmem>>, vector<8x8xf32>
    tpu.vector_store %arg8[%c8_95, %c0_96], %79 {strides = array<i32>} : memref<128x8xf32, #tpu.memory_space<vmem>>, vector<8x8xf32>,
    %c91 = arith.constant 91 : index
    %c0_97 = arith.constant 0 : index
    %81 = tpu.strided_load %arg11[%c91, %c0_97] {strides = array<i32: 2, 1>} : memref<648x8xf32, #tpu.memory_space<vmem>>, vector<8x8xf32>
    %c16_98 = arith.constant 16 : index
    %c0_99 = arith.constant 0 : index
    %82 = vector.load %arg8[%c16_98, %c0_99] : memref<128x8xf32, #tpu.memory_space<vmem>>, vector<8x8xf32>
    tpu.vector_store %arg8[%c16_98, %c0_99], %81 {strides = array<i32>} : memref<128x8xf32, #tpu.memory_space<vmem>>, vector<8x8xf32>,
    %c127 = arith.constant 127 : index
    %c0_100 = arith.constant 0 : index
    %83 = tpu.strided_load %arg11[%c127, %c0_100] {strides = array<i32: 2, 1>} : memref<648x8xf32, #tpu.memory_space<vmem>>, vector<8x8xf32>
    %c24_101 = arith.constant 24 : index
    %c0_102 = arith.constant 0 : index
    %84 = vector.load %arg8[%c24_101, %c0_102] : memref<128x8xf32, #tpu.memory_space<vmem>>, vector<8x8xf32>
    tpu.vector_store %arg8[%c24_101, %c0_102], %83 {strides = array<i32>} : memref<128x8xf32, #tpu.memory_space<vmem>>, vector<8x8xf32>,
    %c163 = arith.constant 163 : index
    %c0_103 = arith.constant 0 : index
    %85 = tpu.strided_load %arg11[%c163, %c0_103] {strides = array<i32: 2, 1>} : memref<648x8xf32, #tpu.memory_space<vmem>>, vector<8x8xf32>
    %c32_104 = arith.constant 32 : index
    %c0_105 = arith.constant 0 : index
    %86 = vector.load %arg8[%c32_104, %c0_105] : memref<128x8xf32, #tpu.memory_space<vmem>>, vector<8x8xf32>
    tpu.vector_store %arg8[%c32_104, %c0_105], %85 {strides = array<i32>} : memref<128x8xf32, #tpu.memory_space<vmem>>, vector<8x8xf32>,
    %c199 = arith.constant 199 : index
    %c0_106 = arith.constant 0 : index
    %87 = tpu.strided_load %arg11[%c199, %c0_106] {strides = array<i32: 2, 1>} : memref<648x8xf32, #tpu.memory_space<vmem>>, vector<8x8xf32>
    %c40 = arith.constant 40 : index
    %c0_107 = arith.constant 0 : index
    %88 = vector.load %arg8[%c40, %c0_107] : memref<128x8xf32, #tpu.memory_space<vmem>>, vector<8x8xf32>
    tpu.vector_store %arg8[%c40, %c0_107], %87 {strides = array<i32>} : memref<128x8xf32, #tpu.memory_space<vmem>>, vector<8x8xf32>,
    %c235 = arith.constant 235 : index
    %c0_108 = arith.constant 0 : index
    %89 = tpu.strided_load %arg11[%c235, %c0_108] {strides = array<i32: 2, 1>} : memref<648x8xf32, #tpu.memory_space<vmem>>, vector<8x8xf32>
    %c48 = arith.constant 48 : index
    %c0_109 = arith.constant 0 : index
    %90 = vector.load %arg8[%c48, %c0_109] : memref<128x8xf32, #tpu.memory_space<vmem>>, vector<8x8xf32>
    tpu.vector_store %arg8[%c48, %c0_109], %89 {strides = array<i32>} : memref<128x8xf32, #tpu.memory_space<vmem>>, vector<8x8xf32>,
    %c271 = arith.constant 271 : index
    %c0_110 = arith.constant 0 : index
    %91 = tpu.strided_load %arg11[%c271, %c0_110] {strides = array<i32: 2, 1>} : memref<648x8xf32, #tpu.memory_space<vmem>>, vector<8x8xf32>
    %c56 = arith.constant 56 : index
    %c0_111 = arith.constant 0 : index
    %92 = vector.load %arg8[%c56, %c0_111] : memref<128x8xf32, #tpu.memory_space<vmem>>, vector<8x8xf32>
    tpu.vector_store %arg8[%c56, %c0_111], %91 {strides = array<i32>} : memref<128x8xf32, #tpu.memory_space<vmem>>, vector<8x8xf32>,
    %c343 = arith.constant 343 : index
    %c0_112 = arith.constant 0 : index
    %93 = tpu.strided_load %arg11[%c343, %c0_112] {strides = array<i32: 2, 1>} : memref<648x8xf32, #tpu.memory_space<vmem>>, vector<8x8xf32>
    %c64 = arith.constant 64 : index
    %c0_113 = arith.constant 0 : index
    %94 = vector.load %arg8[%c64, %c0_113] : memref<128x8xf32, #tpu.memory_space<vmem>>, vector<8x8xf32>
    tpu.vector_store %arg8[%c64, %c0_113], %93 {strides = array<i32>} : memref<128x8xf32, #tpu.memory_space<vmem>>, vector<8x8xf32>,
    %c379 = arith.constant 379 : index
    %c0_114 = arith.constant 0 : index
    %95 = tpu.strided_load %arg11[%c379, %c0_114] {strides = array<i32: 2, 1>} : memref<648x8xf32, #tpu.memory_space<vmem>>, vector<8x8xf32>
    %c72 = arith.constant 72 : index
    %c0_115 = arith.constant 0 : index
    %96 = vector.load %arg8[%c72, %c0_115] : memref<128x8xf32, #tpu.memory_space<vmem>>, vector<8x8xf32>
    tpu.vector_store %arg8[%c72, %c0_115], %95 {strides = array<i32>} : memref<128x8xf32, #tpu.memory_space<vmem>>, vector<8x8xf32>,
    %c415 = arith.constant 415 : index
    %c0_116 = arith.constant 0 : index
    %97 = tpu.strided_load %arg11[%c415, %c0_116] {strides = array<i32: 2, 1>} : memref<648x8xf32, #tpu.memory_space<vmem>>, vector<8x8xf32>
    %c80 = arith.constant 80 : index
    %c0_117 = arith.constant 0 : index
    %98 = vector.load %arg8[%c80, %c0_117] : memref<128x8xf32, #tpu.memory_space<vmem>>, vector<8x8xf32>
    tpu.vector_store %arg8[%c80, %c0_117], %97 {strides = array<i32>} : memref<128x8xf32, #tpu.memory_space<vmem>>, vector<8x8xf32>,
    %c451 = arith.constant 451 : index
    %c0_118 = arith.constant 0 : index
    %99 = tpu.strided_load %arg11[%c451, %c0_118] {strides = array<i32: 2, 1>} : memref<648x8xf32, #tpu.memory_space<vmem>>, vector<8x8xf32>
    %c88 = arith.constant 88 : index
    %c0_119 = arith.constant 0 : index
    %100 = vector.load %arg8[%c88, %c0_119] : memref<128x8xf32, #tpu.memory_space<vmem>>, vector<8x8xf32>
    tpu.vector_store %arg8[%c88, %c0_119], %99 {strides = array<i32>} : memref<128x8xf32, #tpu.memory_space<vmem>>, vector<8x8xf32>,
    %c487 = arith.constant 487 : index
    %c0_120 = arith.constant 0 : index
    %101 = tpu.strided_load %arg11[%c487, %c0_120] {strides = array<i32: 2, 1>} : memref<648x8xf32, #tpu.memory_space<vmem>>, vector<8x8xf32>
    %c96 = arith.constant 96 : index
    %c0_121 = arith.constant 0 : index
    %102 = vector.load %arg8[%c96, %c0_121] : memref<128x8xf32, #tpu.memory_space<vmem>>, vector<8x8xf32>
    tpu.vector_store %arg8[%c96, %c0_121], %101 {strides = array<i32>} : memref<128x8xf32, #tpu.memory_space<vmem>>, vector<8x8xf32>,
    %c523 = arith.constant 523 : index
    %c0_122 = arith.constant 0 : index
    %103 = tpu.strided_load %arg11[%c523, %c0_122] {strides = array<i32: 2, 1>} : memref<648x8xf32, #tpu.memory_space<vmem>>, vector<8x8xf32>
    %c104 = arith.constant 104 : index
    %c0_123 = arith.constant 0 : index
    %104 = vector.load %arg8[%c104, %c0_123] : memref<128x8xf32, #tpu.memory_space<vmem>>, vector<8x8xf32>
    tpu.vector_store %arg8[%c104, %c0_123], %103 {strides = array<i32>} : memref<128x8xf32, #tpu.memory_space<vmem>>, vector<8x8xf32>,
    %c559 = arith.constant 559 : index
    %c0_124 = arith.constant 0 : index
    %105 = tpu.strided_load %arg11[%c559, %c0_124] {strides = array<i32: 2, 1>} : memref<648x8xf32, #tpu.memory_space<vmem>>, vector<8x8xf32>
    %c112 = arith.constant 112 : index
    %c0_125 = arith.constant 0 : index
    %106 = vector.load %arg8[%c112, %c0_125] : memref<128x8xf32, #tpu.memory_space<vmem>>, vector<8x8xf32>
    tpu.vector_store %arg8[%c112, %c0_125], %105 {strides = array<i32>} : memref<128x8xf32, #tpu.memory_space<vmem>>, vector<8x8xf32>,
    %c595 = arith.constant 595 : index
    %c0_126 = arith.constant 0 : index
    %107 = tpu.strided_load %arg11[%c595, %c0_126] {strides = array<i32: 2, 1>} : memref<648x8xf32, #tpu.memory_space<vmem>>, vector<8x8xf32>
    %c120 = arith.constant 120 : index
    %c0_127 = arith.constant 0 : index
    %108 = vector.load %arg8[%c120, %c0_127] : memref<128x8xf32, #tpu.memory_space<vmem>>, vector<8x8xf32>
    tpu.vector_store %arg8[%c120, %c0_127], %107 {strides = array<i32>} : memref<128x8xf32, #tpu.memory_space<vmem>>, vector<8x8xf32>,
    return
  }
  func.func @transform_0(%arg0: i32) -> (i32, i32) {
    %c0_i32 = arith.constant 0 : i32
    %c0_i32_0 = arith.constant 0 : i32
    %c0_i32_1 = arith.constant 0 : i32
    return %c0_i32, %c0_i32_0 : i32, i32
  }
  func.func @transform_1(%arg0: i32) -> (i32, i32) {
    %c0_i32 = arith.constant 0 : i32
    %c0_i32_0 = arith.constant 0 : i32
    %c0_i32_1 = arith.constant 0 : i32
    return %c0_i32, %c0_i32_0 : i32, i32
  }
  func.func @transform_2(%arg0: i32) -> (i32, i32) {
    %c0_i32 = arith.constant 0 : i32
    %c0_i32_0 = arith.constant 0 : i32
    %c0_i32_1 = arith.constant 0 : i32
    return %c0_i32, %c0_i32_0 : i32, i32
  }
  func.func @transform_3(%arg0: i32) -> (i32, i32) {
    %c0_i32 = arith.constant 0 : i32
    %c0_i32_0 = arith.constant 0 : i32
    %c0_i32_1 = arith.constant 0 : i32
    return %c0_i32, %c0_i32_0 : i32, i32
  }
  func.func @transform_4(%arg0: i32) -> (i32, i32) {
    %c0_i32 = arith.constant 0 : i32
    %c0_i32_0 = arith.constant 0 : i32
    %c0_i32_1 = arith.constant 0 : i32
    return %c0_i32, %c0_i32_0 : i32, i32
  }
  func.func @transform_5(%arg0: i32) -> (i32, i32) {
    %c0_i32 = arith.constant 0 : i32
    %c0_i32_0 = arith.constant 0 : i32
    %c0_i32_1 = arith.constant 0 : i32
    return %c0_i32, %c0_i32_0 : i32, i32
  }
  func.func @transform_6(%arg0: i32) -> (i32, i32) {
    %c0_i32 = arith.constant 0 : i32
    %c0_i32_0 = arith.constant 0 : i32
    %c0_i32_1 = arith.constant 0 : i32
    return %c0_i32, %c0_i32_0 : i32, i32
  }
  func.func @transform_7(%arg0: i32) -> (i32, i32) {
    %c0_i32 = arith.constant 0 : i32
    %c0_i32_0 = arith.constant 0 : i32
    %c0_i32_1 = arith.constant 0 : i32
    return %c0_i32, %c0_i32_0 : i32, i32
  }
}

</mosaic_0001>

<llo_original>
// kernel: resblock_forward.1
$region0: #{resblock_forward.1}
  #allocation0 [shape = 'u32[]', space=smem, size = 0x4, offset = 0x4, fixed_abs, tag = 'smem constant byte address 0x4 - core index']
  #allocation1 [shape = 'u32[144,128]{1,0:T(1,128)}', space=vmem, size = 0x12000, scoped, tag = 'internal scratch']
  #allocation2 [shape = 'f32[696,4]{1,0:T(8,128)}', space=vmem, size = 0x57000, scoped, tag = 'scratch operand']
  #allocation3 [shape = 'f32[648,36]{1,0:T(8,128)}', space=vmem, size = 0x51000, scoped, tag = 'scratch operand']
  #allocation4 [shape = 'f32[648,8]{1,0:T(8,128)}', space=vmem, size = 0x51000, scoped, tag = 'scratch operand']
  %s0 = inlined_call_operand.vmem [shape: f32[696,4], index: 0, kind: input, shape index: {}]
  %s1 = inlined_call_operand.vmem [shape: f32[36,4], index: 1, kind: input, shape index: {}]
  %s2 = inlined_call_operand.vmem [shape: f32[1,4], index: 2, kind: input, shape index: {}]
  %s3 = inlined_call_operand.vmem [shape: f32[36,8], index: 3, kind: input, shape index: {}]
  %s4 = inlined_call_operand.vmem [shape: f32[1,8], index: 4, kind: input, shape index: {}]
  %s5 = inlined_call_operand.vmem [shape: f32[4,8], index: 5, kind: input, shape index: {}]
  %s6 = inlined_call_operand.vmem [shape: f32[648,1], index: 6, kind: input, shape index: {}]
  %s7 = inlined_call_operand.vmem [shape: f32[128,8], index: 7, kind: output, shape index: {}]
  %s8 = sld [smem:[#allocation0]]
  $region38: #{resblock_forward.1} parent=0
    _
  %s10 = ssub.s32 1, %s8
  %s11 = scalar_select 0, %s10, %s8
  // Predicated region
  $region2: #{resblock_forward.1} parent=0 // pred_check
    _
  $region3: #{resblock_forward.1} parent=0 // pred_check_branch
    %13 = sbr.rel (0) target = $region5
  $region4: #{resblock_forward.1} parent=0 // pred_region
    _
  $region5: #{resblock_forward.1} parent=0 // pred_fallthru
    _
  // Predicated region
  $region6: #{resblock_forward.1} parent=0 // pred_check
    _
  $region7: #{resblock_forward.1} parent=0 // pred_check_branch
    %15 = sbr.rel (0) target = $region9
  $region8: #{resblock_forward.1} parent=0 // pred_region
    _
  $region9: #{resblock_forward.1} parent=0 // pred_fallthru
    _
  // Predicated region
  $region10: #{resblock_forward.1} parent=0 // pred_check
    _
  $region11: #{resblock_forward.1} parent=0 // pred_check_branch
    %17 = sbr.rel (0) target = $region13
  $region12: #{resblock_forward.1} parent=0 // pred_region
    _
  $region13: #{resblock_forward.1} parent=0 // pred_fallthru
    _
  // Predicated region
  $region14: #{resblock_forward.1} parent=0 // pred_check
    _
  $region15: #{resblock_forward.1} parent=0 // pred_check_branch
    %19 = sbr.rel (0) target = $region17
  $region16: #{resblock_forward.1} parent=0 // pred_region
    _
  $region17: #{resblock_forward.1} parent=0 // pred_fallthru
    _
  // Predicated region
  $region18: #{resblock_forward.1} parent=0 // pred_check
    _
  $region19: #{resblock_forward.1} parent=0 // pred_check_branch
    %21 = sbr.rel (0) target = $region21
  $region20: #{resblock_forward.1} parent=0 // pred_region
    _
  $region21: #{resblock_forward.1} parent=0 // pred_fallthru
    _
  // Predicated region
  $region22: #{resblock_forward.1} parent=0 // pred_check
    _
  $region23: #{resblock_forward.1} parent=0 // pred_check_branch
    %23 = sbr.rel (0) target = $region25
  $region24: #{resblock_forward.1} parent=0 // pred_region
    _
  $region25: #{resblock_forward.1} parent=0 // pred_fallthru
    _
  // Predicated region
  $region26: #{resblock_forward.1} parent=0 // pred_check
    _
  $region27: #{resblock_forward.1} parent=0 // pred_check_branch
    %25 = sbr.rel (0) target = $region29
  $region28: #{resblock_forward.1} parent=0 // pred_region
    _
  $region29: #{resblock_forward.1} parent=0 // pred_fallthru
    _
  %v26 = vld [vmem:[%s6] sm:$0xff]
  %v27 = vld [vmem:[%s6 + $0x8] sm:$0xff]
  %v28 = vld [vmem:[%s6 + $0x10] sm:$0xff]
  %v29 = vld [vmem:[%s6 + $0x18] sm:$0xff]
  %v30 = vld [vmem:[%s6 + $0x20] sm:$0xff]
  %v31 = vld [vmem:[%s6 + $0x28] sm:$0xff]
  %v32 = vld [vmem:[%s6 + $0x30] sm:$0xff]
  %v33 = vld [vmem:[%s6 + $0x38] sm:$0xff]
  %v34 = vld [vmem:[%s6 + $0x40] sm:$0xff]
  %v35 = vld [vmem:[%s6 + $0x48] sm:$0xff]
  %v36 = vld [vmem:[%s6 + $0x50] sm:$0xff]
  %v37 = vld [vmem:[%s6 + $0x58] sm:$0xff]
  %v38 = vld [vmem:[%s6 + $0x60] sm:$0xff]
  %v39 = vld [vmem:[%s6 + $0x68] sm:$0xff]
  %v40 = vld [vmem:[%s6 + $0x70] sm:$0xff]
  %v41 = vld [vmem:[%s6 + $0x78] sm:$0xff]
  %v42 = vld [vmem:[%s6 + $0x80] sm:$0xff]
  %v43 = vld [vmem:[%s6 + $0x88] sm:$0xff]
  %v44 = vld [vmem:[%s6 + $0x90] sm:$0xff]
  %v45 = vld [vmem:[%s6 + $0x98] sm:$0xff]
  %v46 = vld [vmem:[%s6 + $0xa0] sm:$0xff]
  %v47 = vld [vmem:[%s6 + $0xa8] sm:$0xff]
  %v48 = vld [vmem:[%s6 + $0xb0] sm:$0xff]
  %v49 = vld [vmem:[%s6 + $0xb8] sm:$0xff]
  %v50 = vld [vmem:[%s6 + $0xc0] sm:$0xff]
  %v51 = vld [vmem:[%s6 + $0xc8] sm:$0xff]
  %v52 = vld [vmem:[%s6 + $0xd0] sm:$0xff]
  %v53 = vld [vmem:[%s6 + $0xd8] sm:$0xff]
  %v54 = vld [vmem:[%s6 + $0xe0] sm:$0xff]
  %v55 = vld [vmem:[%s6 + $0xe8] sm:$0xff]
  %v56 = vld [vmem:[%s6 + $0xf0] sm:$0xff]
  %v57 = vld [vmem:[%s6 + $0xf8] sm:$0xff]
  %v58 = vld [vmem:[%s6 + $0x100] sm:$0xff]
  %v59 = vld [vmem:[%s6 + $0x108] sm:$0xff]
  %v60 = vld [vmem:[%s6 + $0x110] sm:$0xff]
  %v61 = vld [vmem:[%s6 + $0x118] sm:$0xff]
  %v62 = vld [vmem:[%s6 + $0x120] sm:$0xff]
  %v63 = vld [vmem:[%s6 + $0x128] sm:$0xff]
  %v64 = vld [vmem:[%s6 + $0x130] sm:$0xff]
  %v65 = vld [vmem:[%s6 + $0x138] sm:$0xff]
  %v66 = vld [vmem:[%s6 + $0x140] sm:$0xff]
  %v67 = vld [vmem:[%s6 + $0x148] sm:$0xff]
  %v68 = vld [vmem:[%s6 + $0x150] sm:$0xff]
  %v69 = vld [vmem:[%s6 + $0x158] sm:$0xff]
  %v70 = vld [vmem:[%s6 + $0x160] sm:$0xff]
  %v71 = vld [vmem:[%s6 + $0x168] sm:$0xff]
  %v72 = vld [vmem:[%s6 + $0x170] sm:$0xff]
  %v73 = vld [vmem:[%s6 + $0x178] sm:$0xff]
  %v74 = vld [vmem:[%s6 + $0x180] sm:$0xff]
  %v75 = vld [vmem:[%s6 + $0x188] sm:$0xff]
  %v76 = vld [vmem:[%s6 + $0x190] sm:$0xff]
  %v77 = vld [vmem:[%s6 + $0x198] sm:$0xff]
  %v78 = vld [vmem:[%s6 + $0x1a0] sm:$0xff]
  %v79 = vld [vmem:[%s6 + $0x1a8] sm:$0xff]
  %v80 = vld [vmem:[%s6 + $0x1b0] sm:$0xff]
  %v81 = vld [vmem:[%s6 + $0x1b8] sm:$0xff]
  %v82 = vld [vmem:[%s6 + $0x1c0] sm:$0xff]
  %v83 = vld [vmem:[%s6 + $0x1c8] sm:$0xff]
  %v84 = vld [vmem:[%s6 + $0x1d0] sm:$0xff]
  %v85 = vld [vmem:[%s6 + $0x1d8] sm:$0xff]
  %v86 = vld [vmem:[%s6 + $0x1e0] sm:$0xff]
  %v87 = vld [vmem:[%s6 + $0x1e8] sm:$0xff]
  %v88 = vld [vmem:[%s6 + $0x1f0] sm:$0xff]
  %v89 = vld [vmem:[%s6 + $0x1f8] sm:$0xff]
  %v90 = vld [vmem:[%s6 + $0x200] sm:$0xff]
  %v91 = vld [vmem:[%s6 + $0x208] sm:$0xff]
  %v92 = vld [vmem:[%s6 + $0x210] sm:$0xff]
  %v93 = vld [vmem:[%s6 + $0x218] sm:$0xff]
  %v94 = vld [vmem:[%s6 + $0x220] sm:$0xff]
  %v95 = vld [vmem:[%s6 + $0x228] sm:$0xff]
  %v96 = vld [vmem:[%s6 + $0x230] sm:$0xff]
  %v97 = vld [vmem:[%s6 + $0x238] sm:$0xff]
  %v98 = vld [vmem:[%s6 + $0x240] sm:$0xff]
  %v99 = vld [vmem:[%s6 + $0x248] sm:$0xff]
  %v100 = vld [vmem:[%s6 + $0x250] sm:$0xff]
  %v101 = vld [vmem:[%s6 + $0x258] sm:$0xff]
  %v102 = vld [vmem:[%s6 + $0x260] sm:$0xff]
  %v103 = vld [vmem:[%s6 + $0x268] sm:$0xff]
  %v104 = vld [vmem:[%s6 + $0x270] sm:$0xff]
  %v105 = vld [vmem:[%s6 + $0x278] sm:$0xff]
  %v106 = vld [vmem:[%s6 + $0x280] sm:$0xff]
  %v107 = vld [vmem:[%s0 + $0x5] sm:$0xff]
  %v108 = vld [vmem:[%s0 + $0xd] sm:$0xff]
  %v109 = vld [vmem:[%s0 + $0x15] sm:$0xff]
  %v110 = vld [vmem:[%s0 + $0x1d] sm:$0xff]
  %v111 = vld [vmem:[%s0 + $0x25] sm:$0xff]
  %v112 = vld [vmem:[%s0 + $0x2d] sm:$0xff]
  %v113 = vld [vmem:[%s0 + $0x35] sm:$0xff]
  %v114 = vld [vmem:[%s0 + $0x3d] sm:$0xff]
  %v115 = vld [vmem:[%s0 + $0x45] sm:$0xff]
  %v116 = vld [vmem:[%s0 + $0x4d] sm:$0xff]
  %v117 = vld [vmem:[%s0 + $0x55] sm:$0xff]
  %v118 = vld [vmem:[%s0 + $0x5d] sm:$0xff]
  %v119 = vld [vmem:[%s0 + $0x65] sm:$0xff]
  %v120 = vld [vmem:[%s0 + $0x6d] sm:$0xff]
  %v121 = vld [vmem:[%s0 + $0x75] sm:$0xff]
  %v122 = vld [vmem:[%s0 + $0x7d] sm:$0xff]
  %v123 = vld [vmem:[%s0 + $0x85] sm:$0xff]
  %v124 = vld [vmem:[%s0 + $0x8d] sm:$0xff]
  %v125 = vld [vmem:[%s0 + $0x95] sm:$0xff]
  %v126 = vld [vmem:[%s0 + $0x9d] sm:$0xff]
  %v127 = vld [vmem:[%s0 + $0xa5] sm:$0xff]
  %v128 = vld [vmem:[%s0 + $0xad] sm:$0xff]
  %v129 = vld [vmem:[%s0 + $0xb5] sm:$0xff]
  %v130 = vld [vmem:[%s0 + $0xbd] sm:$0xff]
  %v131 = vld [vmem:[%s0 + $0xc5] sm:$0xff]
  %v132 = vld [vmem:[%s0 + $0xcd] sm:$0xff]
  %v133 = vld [vmem:[%s0 + $0xd5] sm:$0xff]
  %v134 = vld [vmem:[%s0 + $0xdd] sm:$0xff]
  %v135 = vld [vmem:[%s0 + $0xe5] sm:$0xff]
  %v136 = vld [vmem:[%s0 + $0xed] sm:$0xff]
  %v137 = vld [vmem:[%s0 + $0xf5] sm:$0xff]
  %v138 = vld [vmem:[%s0 + $0xfd] sm:$0xff]
  %v139 = vld [vmem:[%s0 + $0x105] sm:$0xff]
  %v140 = vld [vmem:[%s0 + $0x10d] sm:$0xff]
  %v141 = vld [vmem:[%s0 + $0x115] sm:$0xff]
  %v142 = vld [vmem:[%s0 + $0x11d] sm:$0xff]
  %v143 = vld [vmem:[%s0 + $0x125] sm:$0xff]
  %v144 = vld [vmem:[%s0 + $0x12d] sm:$0xff]
  %v145 = vld [vmem:[%s0 + $0x135] sm:$0xff]
  %v146 = vld [vmem:[%s0 + $0x13d] sm:$0xff]
  %v147 = vld [vmem:[%s0 + $0x145] sm:$0xff]
  %v148 = vld [vmem:[%s0 + $0x14d] sm:$0xff]
  %v149 = vld [vmem:[%s0 + $0x155] sm:$0xff]
  %v150 = vld [vmem:[%s0 + $0x15d] sm:$0xff]
  %v151 = vld [vmem:[%s0 + $0x165] sm:$0xff]
  %v152 = vld [vmem:[%s0 + $0x16d] sm:$0xff]
  %v153 = vld [vmem:[%s0 + $0x175] sm:$0xff]
  %v154 = vld [vmem:[%s0 + $0x17d] sm:$0xff]
  %v155 = vld [vmem:[%s0 + $0x185] sm:$0xff]
  %v156 = vld [vmem:[%s0 + $0x18d] sm:$0xff]
  %v157 = vld [vmem:[%s0 + $0x195] sm:$0xff]
  %v158 = vld [vmem:[%s0 + $0x19d] sm:$0xff]
  %v159 = vld [vmem:[%s0 + $0x1a5] sm:$0xff]
  %v160 = vld [vmem:[%s0 + $0x1ad] sm:$0xff]
  %v161 = vld [vmem:[%s0 + $0x1b5] sm:$0xff]
  %v162 = vld [vmem:[%s0 + $0x1bd] sm:$0xff]
  %v163 = vld [vmem:[%s0 + $0x1c5] sm:$0xff]
  %v164 = vld [vmem:[%s0 + $0x1cd] sm:$0xff]
  %v165 = vld [vmem:[%s0 + $0x1d5] sm:$0xff]
  %v166 = vld [vmem:[%s0 + $0x1dd] sm:$0xff]
  %v167 = vld [vmem:[%s0 + $0x1e5] sm:$0xff]
  %v168 = vld [vmem:[%s0 + $0x1ed] sm:$0xff]
  %v169 = vld [vmem:[%s0 + $0x1f5] sm:$0xff]
  %v170 = vld [vmem:[%s0 + $0x1fd] sm:$0xff]
  %v171 = vld [vmem:[%s0 + $0x205] sm:$0xff]
  %v172 = vld [vmem:[%s0 + $0x20d] sm:$0xff]
  %v173 = vld [vmem:[%s0 + $0x215] sm:$0xff]
  %v174 = vld [vmem:[%s0 + $0x21d] sm:$0xff]
  %v175 = vld [vmem:[%s0 + $0x225] sm:$0xff]
  %v176 = vld [vmem:[%s0 + $0x22d] sm:$0xff]
  %v177 = vld [vmem:[%s0 + $0x235] sm:$0xff]
  %v178 = vld [vmem:[%s0 + $0x23d] sm:$0xff]
  %v179 = vld [vmem:[%s0 + $0x245] sm:$0xff]
  %v180 = vld [vmem:[%s0 + $0x24d] sm:$0xff]
  %v181 = vld [vmem:[%s0 + $0x255] sm:$0xff]
  %v182 = vld [vmem:[%s0 + $0x25d] sm:$0xff]
  %v183 = vld [vmem:[%s0 + $0x265] sm:$0xff]
  %v184 = vld [vmem:[%s0 + $0x26d] sm:$0xff]
  %v185 = vld [vmem:[%s0 + $0x275] sm:$0xff]
  %v186 = vld [vmem:[%s0 + $0x27d] sm:$0xff]
  %v187 = vld [vmem:[%s0 + $0x285] sm:$0xff]
  %vm188 = vcmask 31744
  %189 = vst.msk [vmem:[#allocation3] sm:$0xff] %vm188, %v107
  %190 = vst.msk [vmem:[#allocation3 + $0x8] sm:$0xff] %vm188, %v108
  %191 = vst.msk [vmem:[#allocation3 + $0x10] sm:$0xff] %vm188, %v109
  %192 = vst.msk [vmem:[#allocation3 + $0x18] sm:$0xff] %vm188, %v110
  %193 = vst.msk [vmem:[#allocation3 + $0x20] sm:$0xff] %vm188, %v111
  %194 = vst.msk [vmem:[#allocation3 + $0x28] sm:$0xff] %vm188, %v112
  %195 = vst.msk [vmem:[#allocation3 + $0x30] sm:$0xff] %vm188, %v113
  %196 = vst.msk [vmem:[#allocation3 + $0x38] sm:$0xff] %vm188, %v114
  %197 = vst.msk [vmem:[#allocation3 + $0x40] sm:$0xff] %vm188, %v115
  %198 = vst.msk [vmem:[#allocation3 + $0x48] sm:$0xff] %vm188, %v116
  %199 = vst.msk [vmem:[#allocation3 + $0x50] sm:$0xff] %vm188, %v117
  %200 = vst.msk [vmem:[#allocation3 + $0x58] sm:$0xff] %vm188, %v118
  %201 = vst.msk [vmem:[#allocation3 + $0x60] sm:$0xff] %vm188, %v119
  %202 = vst.msk [vmem:[#allocation3 + $0x68] sm:$0xff] %vm188, %v120
  %203 = vst.msk [vmem:[#allocation3 + $0x70] sm:$0xff] %vm188, %v121
  %204 = vst.msk [vmem:[#allocation3 + $0x78] sm:$0xff] %vm188, %v122
  %205 = vst.msk [vmem:[#allocation3 + $0x80] sm:$0xff] %vm188, %v123
  %206 = vst.msk [vmem:[#allocation3 + $0x88] sm:$0xff] %vm188, %v124
  %207 = vst.msk [vmem:[#allocation3 + $0x90] sm:$0xff] %vm188, %v125
  %208 = vst.msk [vmem:[#allocation3 + $0x98] sm:$0xff] %vm188, %v126
  %209 = vst.msk [vmem:[#allocation3 + $0xa0] sm:$0xff] %vm188, %v127
  %210 = vst.msk [vmem:[#allocation3 + $0xa8] sm:$0xff] %vm188, %v128
  %211 = vst.msk [vmem:[#allocation3 + $0xb0] sm:$0xff] %vm188, %v129
  %212 = vst.msk [vmem:[#allocation3 + $0xb8] sm:$0xff] %vm188, %v130
  %213 = vst.msk [vmem:[#allocation3 + $0xc0] sm:$0xff] %vm188, %v131
  %214 = vst.msk [vmem:[#allocation3 + $0xc8] sm:$0xff] %vm188, %v132
  %215 = vst.msk [vmem:[#allocation3 + $0xd0] sm:$0xff] %vm188, %v133
  %216 = vst.msk [vmem:[#allocation3 + $0xd8] sm:$0xff] %vm188, %v134
  %217 = vst.msk [vmem:[#allocation3 + $0xe0] sm:$0xff] %vm188, %v135
  %218 = vst.msk [vmem:[#allocation3 + $0xe8] sm:$0xff] %vm188, %v136
  %219 = vst.msk [vmem:[#allocation3 + $0xf0] sm:$0xff] %vm188, %v137
  %220 = vst.msk [vmem:[#allocation3 + $0xf8] sm:$0xff] %vm188, %v138
  %221 = vst.msk [vmem:[#allocation3 + $0x100] sm:$0xff] %vm188, %v139
  %222 = vst.msk [vmem:[#allocation3 + $0x108] sm:$0xff] %vm188, %v140
  %223 = vst.msk [vmem:[#allocation3 + $0x110] sm:$0xff] %vm188, %v141
  %224 = vst.msk [vmem:[#allocation3 + $0x118] sm:$0xff] %vm188, %v142
  %225 = vst.msk [vmem:[#allocation3 + $0x120] sm:$0xff] %vm188, %v143
  %226 = vst.msk [vmem:[#allocation3 + $0x128] sm:$0xff] %vm188, %v144
  %227 = vst.msk [vmem:[#allocation3 + $0x130] sm:$0xff] %vm188, %v145
  %228 = vst.msk [vmem:[#allocation3 + $0x138] sm:$0xff] %vm188, %v146
  %229 = vst.msk [vmem:[#allocation3 + $0x140] sm:$0xff] %vm188, %v147
  %230 = vst.msk [vmem:[#allocation3 + $0x148] sm:$0xff] %vm188, %v148
  %231 = vst.msk [vmem:[#allocation3 + $0x150] sm:$0xff] %vm188, %v149
  %232 = vst.msk [vmem:[#allocation3 + $0x158] sm:$0xff] %vm188, %v150
  %233 = vst.msk [vmem:[#allocation3 + $0x160] sm:$0xff] %vm188, %v151
  %234 = vst.msk [vmem:[#allocation3 + $0x168] sm:$0xff] %vm188, %v152
  %235 = vst.msk [vmem:[#allocation3 + $0x170] sm:$0xff] %vm188, %v153
  %236 = vst.msk [vmem:[#allocation3 + $0x178] sm:$0xff] %vm188, %v154
  %237 = vst.msk [vmem:[#allocation3 + $0x180] sm:$0xff] %vm188, %v155
  %238 = vst.msk [vmem:[#allocation3 + $0x188] sm:$0xff] %vm188, %v156
  %239 = vst.msk [vmem:[#allocation3 + $0x190] sm:$0xff] %vm188, %v157
  %240 = vst.msk [vmem:[#allocation3 + $0x198] sm:$0xff] %vm188, %v158
  %241 = vst.msk [vmem:[#allocation3 + $0x1a0] sm:$0xff] %vm188, %v159
  %242 = vst.msk [vmem:[#allocation3 + $0x1a8] sm:$0xff] %vm188, %v160
  %243 = vst.msk [vmem:[#allocation3 + $0x1b0] sm:$0xff] %vm188, %v161
  %244 = vst.msk [vmem:[#allocation3 + $0x1b8] sm:$0xff] %vm188, %v162
  %245 = vst.msk [vmem:[#allocation3 + $0x1c0] sm:$0xff] %vm188, %v163
  %246 = vst.msk [vmem:[#allocation3 + $0x1c8] sm:$0xff] %vm188, %v164
  %247 = vst.msk [vmem:[#allocation3 + $0x1d0] sm:$0xff] %vm188, %v165
  %248 = vst.msk [vmem:[#allocation3 + $0x1d8] sm:$0xff] %vm188, %v166
  %249 = vst.msk [vmem:[#allocation3 + $0x1e0] sm:$0xff] %vm188, %v167
  %250 = vst.msk [vmem:[#allocation3 + $0x1e8] sm:$0xff] %vm188, %v168
  %251 = vst.msk [vmem:[#allocation3 + $0x1f0] sm:$0xff] %vm188, %v169
  %252 = vst.msk [vmem:[#allocation3 + $0x1f8] sm:$0xff] %vm188, %v170
  %253 = vst.msk [vmem:[#allocation3 + $0x200] sm:$0xff] %vm188, %v171
  %254 = vst.msk [vmem:[#allocation3 + $0x208] sm:$0xff] %vm188, %v172
  %255 = vst.msk [vmem:[#allocation3 + $0x210] sm:$0xff] %vm188, %v173
  %256 = vst.msk [vmem:[#allocation3 + $0x218] sm:$0xff] %vm188, %v174
  %257 = vst.msk [vmem:[#allocation3 + $0x220] sm:$0xff] %vm188, %v175
  %258 = vst.msk [vmem:[#allocation3 + $0x228] sm:$0xff] %vm188, %v176
  %259 = vst.msk [vmem:[#allocation3 + $0x230] sm:$0xff] %vm188, %v177
  %260 = vst.msk [vmem:[#allocation3 + $0x238] sm:$0xff] %vm188, %v178
  %261 = vst.msk [vmem:[#allocation3 + $0x240] sm:$0xff] %vm188, %v179
  %262 = vst.msk [vmem:[#allocation3 + $0x248] sm:$0xff] %vm188, %v180
  %263 = vst.msk [vmem:[#allocation3 + $0x250] sm:$0xff] %vm188, %v181
  %264 = vst.msk [vmem:[#allocation3 + $0x258] sm:$0xff] %vm188, %v182
  %265 = vst.msk [vmem:[#allocation3 + $0x260] sm:$0xff] %vm188, %v183
  %266 = vst.msk [vmem:[#allocation3 + $0x268] sm:$0xff] %vm188, %v184
  %267 = vst.msk [vmem:[#allocation3 + $0x270] sm:$0xff] %vm188, %v185
  %268 = vst.msk [vmem:[#allocation3 + $0x278] sm:$0xff] %vm188, %v186
  %269 = vst.msk [vmem:[#allocation3 + $0x280] sm:$0xff] %vm188, %v187
  %v270 = vld [vmem:[%s0 + $0x6] sm:$0xff]
  %v271 = vld [vmem:[%s0 + $0xe] sm:$0xff]
  %v272 = vld [vmem:[%s0 + $0x16] sm:$0xff]
  %v273 = vld [vmem:[%s0 + $0x1e] sm:$0xff]
  %v274 = vld [vmem:[%s0 + $0x26] sm:$0xff]
  %v275 = vld [vmem:[%s0 + $0x2e] sm:$0xff]
  %v276 = vld [vmem:[%s0 + $0x36] sm:$0xff]
  %v277 = vld [vmem:[%s0 + $0x3e] sm:$0xff]
  %v278 = vld [vmem:[%s0 + $0x46] sm:$0xff]
  %v279 = vld [vmem:[%s0 + $0x4e] sm:$0xff]
  %v280 = vld [vmem:[%s0 + $0x56] sm:$0xff]
  %v281 = vld [vmem:[%s0 + $0x5e] sm:$0xff]
  %v282 = vld [vmem:[%s0 + $0x66] sm:$0xff]
  %v283 = vld [vmem:[%s0 + $0x6e] sm:$0xff]
  %v284 = vld [vmem:[%s0 + $0x76] sm:$0xff]
  %v285 = vld [vmem:[%s0 + $0x7e] sm:$0xff]
  %v286 = vld [vmem:[%s0 + $0x86] sm:$0xff]
  %v287 = vld [vmem:[%s0 + $0x8e] sm:$0xff]
  %v288 = vld [vmem:[%s0 + $0x96] sm:$0xff]
  %v289 = vld [vmem:[%s0 + $0x9e] sm:$0xff]
  %v290 = vld [vmem:[%s0 + $0xa6] sm:$0xff]
  %v291 = vld [vmem:[%s0 + $0xae] sm:$0xff]
  %v292 = vld [vmem:[%s0 + $0xb6] sm:$0xff]
  %v293 = vld [vmem:[%s0 + $0xbe] sm:$0xff]
  %v294 = vld [vmem:[%s0 + $0xc6] sm:$0xff]
  %v295 = vld [vmem:[%s0 + $0xce] sm:$0xff]
  %v296 = vld [vmem:[%s0 + $0xd6] sm:$0xff]
  %v297 = vld [vmem:[%s0 + $0xde] sm:$0xff]
  %v298 = vld [vmem:[%s0 + $0xe6] sm:$0xff]
  %v299 = vld [vmem:[%s0 + $0xee] sm:$0xff]
  %v300 = vld [vmem:[%s0 + $0xf6] sm:$0xff]
  %v301 = vld [vmem:[%s0 + $0xfe] sm:$0xff]
  %v302 = vld [vmem:[%s0 + $0x106] sm:$0xff]
  %v303 = vld [vmem:[%s0 + $0x10e] sm:$0xff]
  %v304 = vld [vmem:[%s0 + $0x116] sm:$0xff]
  %v305 = vld [vmem:[%s0 + $0x11e] sm:$0xff]
  %v306 = vld [vmem:[%s0 + $0x126] sm:$0xff]
  %v307 = vld [vmem:[%s0 + $0x12e] sm:$0xff]
  %v308 = vld [vmem:[%s0 + $0x136] sm:$0xff]
  %v309 = vld [vmem:[%s0 + $0x13e] sm:$0xff]
  %v310 = vld [vmem:[%s0 + $0x146] sm:$0xff]
  %v311 = vld [vmem:[%s0 + $0x14e] sm:$0xff]
  %v312 = vld [vmem:[%s0 + $0x156] sm:$0xff]
  %v313 = vld [vmem:[%s0 + $0x15e] sm:$0xff]
  %v314 = vld [vmem:[%s0 + $0x166] sm:$0xff]
  %v315 = vld [vmem:[%s0 + $0x16e] sm:$0xff]
  %v316 = vld [vmem:[%s0 + $0x176] sm:$0xff]
  %v317 = vld [vmem:[%s0 + $0x17e] sm:$0xff]
  %v318 = vld [vmem:[%s0 + $0x186] sm:$0xff]
  %v319 = vld [vmem:[%s0 + $0x18e] sm:$0xff]
  %v320 = vld [vmem:[%s0 + $0x196] sm:$0xff]
  %v321 = vld [vmem:[%s0 + $0x19e] sm:$0xff]
  %v322 = vld [vmem:[%s0 + $0x1a6] sm:$0xff]
  %v323 = vld [vmem:[%s0 + $0x1ae] sm:$0xff]
  %v324 = vld [vmem:[%s0 + $0x1b6] sm:$0xff]
  %v325 = vld [vmem:[%s0 + $0x1be] sm:$0xff]
  %v326 = vld [vmem:[%s0 + $0x1c6] sm:$0xff]
  %v327 = vld [vmem:[%s0 + $0x1ce] sm:$0xff]
  %v328 = vld [vmem:[%s0 + $0x1d6] sm:$0xff]
  %v329 = vld [vmem:[%s0 + $0x1de] sm:$0xff]
  %v330 = vld [vmem:[%s0 + $0x1e6] sm:$0xff]
  %v331 = vld [vmem:[%s0 + $0x1ee] sm:$0xff]
  %v332 = vld [vmem:[%s0 + $0x1f6] sm:$0xff]
  %v333 = vld [vmem:[%s0 + $0x1fe] sm:$0xff]
  %v334 = vld [vmem:[%s0 + $0x206] sm:$0xff]
  %v335 = vld [vmem:[%s0 + $0x20e] sm:$0xff]
  %v336 = vld [vmem:[%s0 + $0x216] sm:$0xff]
  %v337 = vld [vmem:[%s0 + $0x21e] sm:$0xff]
  %v338 = vld [vmem:[%s0 + $0x226] sm:$0xff]
  %v339 = vld [vmem:[%s0 + $0x22e] sm:$0xff]
  %v340 = vld [vmem:[%s0 + $0x236] sm:$0xff]
  %v341 = vld [vmem:[%s0 + $0x23e] sm:$0xff]
  %v342 = vld [vmem:[%s0 + $0x246] sm:$0xff]
  %v343 = vld [vmem:[%s0 + $0x24e] sm:$0xff]
  %v344 = vld [vmem:[%s0 + $0x256] sm:$0xff]
  %v345 = vld [vmem:[%s0 + $0x25e] sm:$0xff]
  %v346 = vld [vmem:[%s0 + $0x266] sm:$0xff]
  %v347 = vld [vmem:[%s0 + $0x26e] sm:$0xff]
  %v348 = vld [vmem:[%s0 + $0x276] sm:$0xff]
  %v349 = vld [vmem:[%s0 + $0x27e] sm:$0xff]
  %v350 = vld [vmem:[%s0 + $0x286] sm:$0xff]
  %432 = vrot.lane.b32.xlu0 %v270, 4
  %v433 = vpop.permute.xlu0 %432
  %434 = vrot.lane.b32.xlu0 %v271, 4
  %v435 = vpop.permute.xlu0 %434
  %436 = vrot.lane.b32.xlu0 %v272, 4
  %v437 = vpop.permute.xlu0 %436
  %438 = vrot.lane.b32.xlu0 %v273, 4
  %v439 = vpop.permute.xlu0 %438
  %440 = vrot.lane.b32.xlu0 %v274, 4
  %v441 = vpop.permute.xlu0 %440
  %442 = vrot.lane.b32.xlu0 %v275, 4
  %v443 = vpop.permute.xlu0 %442
  %444 = vrot.lane.b32.xlu0 %v276, 4
  %v445 = vpop.permute.xlu0 %444
  %446 = vrot.lane.b32.xlu0 %v277, 4
  %v447 = vpop.permute.xlu0 %446
  %448 = vrot.lane.b32.xlu0 %v278, 4
  %v449 = vpop.permute.xlu0 %448
  %450 = vrot.lane.b32.xlu0 %v279, 4
  %v451 = vpop.permute.xlu0 %450
  %452 = vrot.lane.b32.xlu0 %v280, 4
  %v453 = vpop.permute.xlu0 %452
  %454 = vrot.lane.b32.xlu0 %v281, 4
  %v455 = vpop.permute.xlu0 %454
  %456 = vrot.lane.b32.xlu0 %v282, 4
  %v457 = vpop.permute.xlu0 %456
  %458 = vrot.lane.b32.xlu0 %v283, 4
  %v459 = vpop.permute.xlu0 %458
  %460 = vrot.lane.b32.xlu0 %v284, 4
  %v461 = vpop.permute.xlu0 %460
  %462 = vrot.lane.b32.xlu0 %v285, 4
  %v463 = vpop.permute.xlu0 %462
  %464 = vrot.lane.b32.xlu0 %v286, 4
  %v465 = vpop.permute.xlu0 %464
  %466 = vrot.lane.b32.xlu0 %v287, 4
  %v467 = vpop.permute.xlu0 %466
  %468 = vrot.lane.b32.xlu0 %v288, 4
  %v469 = vpop.permute.xlu0 %468
  %470 = vrot.lane.b32.xlu0 %v289, 4
  %v471 = vpop.permute.xlu0 %470
  %472 = vrot.lane.b32.xlu0 %v290, 4
  %v473 = vpop.permute.xlu0 %472
  %474 = vrot.lane.b32.xlu0 %v291, 4
  %v475 = vpop.permute.xlu0 %474
  %476 = vrot.lane.b32.xlu0 %v292, 4
  %v477 = vpop.permute.xlu0 %476
  %478 = vrot.lane.b32.xlu0 %v293, 4
  %v479 = vpop.permute.xlu0 %478
  %480 = vrot.lane.b32.xlu0 %v294, 4
  %v481 = vpop.permute.xlu0 %480
  %482 = vrot.lane.b32.xlu0 %v295, 4
  %v483 = vpop.permute.xlu0 %482
  %484 = vrot.lane.b32.xlu0 %v296, 4
  %v485 = vpop.permute.xlu0 %484
  %486 = vrot.lane.b32.xlu0 %v297, 4
  %v487 = vpop.permute.xlu0 %486
  %488 = vrot.lane.b32.xlu0 %v298, 4
  %v489 = vpop.permute.xlu0 %488
  %490 = vrot.lane.b32.xlu0 %v299, 4
  %v491 = vpop.permute.xlu0 %490
  %492 = vrot.lane.b32.xlu0 %v300, 4
  %v493 = vpop.permute.xlu0 %492
  %494 = vrot.lane.b32.xlu0 %v301, 4
  %v495 = vpop.permute.xlu0 %494
  %496 = vrot.lane.b32.xlu0 %v302, 4
  %v497 = vpop.permute.xlu0 %496
  %498 = vrot.lane.b32.xlu0 %v303, 4
  %v499 = vpop.permute.xlu0 %498
  %500 = vrot.lane.b32.xlu0 %v304, 4
  %v501 = vpop.permute.xlu0 %500
  %502 = vrot.lane.b32.xlu0 %v305, 4
  %v503 = vpop.permute.xlu0 %502
  %504 = vrot.lane.b32.xlu0 %v306, 4
  %v505 = vpop.permute.xlu0 %504
  %506 = vrot.lane.b32.xlu0 %v307, 4
  %v507 = vpop.permute.xlu0 %506
  %508 = vrot.lane.b32.xlu0 %v308, 4
  %v509 = vpop.permute.xlu0 %508
  %510 = vrot.lane.b32.xlu0 %v309, 4
  %v511 = vpop.permute.xlu0 %510
  %512 = vrot.lane.b32.xlu0 %v310, 4
  %v513 = vpop.permute.xlu0 %512
  %514 = vrot.lane.b32.xlu0 %v311, 4
  %v515 = vpop.permute.xlu0 %514
  %516 = vrot.lane.b32.xlu0 %v312, 4
  %v517 = vpop.permute.xlu0 %516
  %518 = vrot.lane.b32.xlu0 %v313, 4
  %v519 = vpop.permute.xlu0 %518
  %520 = vrot.lane.b32.xlu0 %v314, 4
  %v521 = vpop.permute.xlu0 %520
  %522 = vrot.lane.b32.xlu0 %v315, 4
  %v523 = vpop.permute.xlu0 %522
  %524 = vrot.lane.b32.xlu0 %v316, 4
  %v525 = vpop.permute.xlu0 %524
  %526 = vrot.lane.b32.xlu0 %v317, 4
  %v527 = vpop.permute.xlu0 %526
  %528 = vrot.lane.b32.xlu0 %v318, 4
  %v529 = vpop.permute.xlu0 %528
  %530 = vrot.lane.b32.xlu0 %v319, 4
  %v531 = vpop.permute.xlu0 %530
  %532 = vrot.lane.b32.xlu0 %v320, 4
  %v533 = vpop.permute.xlu0 %532
  %534 = vrot.lane.b32.xlu0 %v321, 4
  %v535 = vpop.permute.xlu0 %534
  %536 = vrot.lane.b32.xlu0 %v322, 4
  %v537 = vpop.permute.xlu0 %536
  %538 = vrot.lane.b32.xlu0 %v323, 4
  %v539 = vpop.permute.xlu0 %538
  %540 = vrot.lane.b32.xlu0 %v324, 4
  %v541 = vpop.permute.xlu0 %540
  %542 = vrot.lane.b32.xlu0 %v325, 4
  %v543 = vpop.permute.xlu0 %542
  %544 = vrot.lane.b32.xlu0 %v326, 4
  %v545 = vpop.permute.xlu0 %544
  %546 = vrot.lane.b32.xlu0 %v327, 4
  %v547 = vpop.permute.xlu0 %546
  %548 = vrot.lane.b32.xlu0 %v328, 4
  %v549 = vpop.permute.xlu0 %548
  %550 = vrot.lane.b32.xlu0 %v329, 4
  %v551 = vpop.permute.xlu0 %550
  %552 = vrot.lane.b32.xlu0 %v330, 4
  %v553 = vpop.permute.xlu0 %552
  %554 = vrot.lane.b32.xlu0 %v331, 4
  %v555 = vpop.permute.xlu0 %554
  %556 = vrot.lane.b32.xlu0 %v332, 4
  %v557 = vpop.permute.xlu0 %556
  %558 = vrot.lane.b32.xlu0 %v333, 4
  %v559 = vpop.permute.xlu0 %558
  %560 = vrot.lane.b32.xlu0 %v334, 4
  %v561 = vpop.permute.xlu0 %560
  %562 = vrot.lane.b32.xlu0 %v335, 4
  %v563 = vpop.permute.xlu0 %562
  %564 = vrot.lane.b32.xlu0 %v336, 4
  %v565 = vpop.permute.xlu0 %564
  %566 = vrot.lane.b32.xlu0 %v337, 4
  %v567 = vpop.permute.xlu0 %566
  %568 = vrot.lane.b32.xlu0 %v338, 4
  %v569 = vpop.permute.xlu0 %568
  %570 = vrot.lane.b32.xlu0 %v339, 4
  %v571 = vpop.permute.xlu0 %570
  %572 = vrot.lane.b32.xlu0 %v340, 4
  %v573 = vpop.permute.xlu0 %572
  %574 = vrot.lane.b32.xlu0 %v341, 4
  %v575 = vpop.permute.xlu0 %574
  %576 = vrot.lane.b32.xlu0 %v342, 4
  %v577 = vpop.permute.xlu0 %576
  %578 = vrot.lane.b32.xlu0 %v343, 4
  %v579 = vpop.permute.xlu0 %578
  %580 = vrot.lane.b32.xlu0 %v344, 4
  %v581 = vpop.permute.xlu0 %580
  %582 = vrot.lane.b32.xlu0 %v345, 4
  %v583 = vpop.permute.xlu0 %582
  %584 = vrot.lane.b32.xlu0 %v346, 4
  %v585 = vpop.permute.xlu0 %584
  %586 = vrot.lane.b32.xlu0 %v347, 4
  %v587 = vpop.permute.xlu0 %586
  %588 = vrot.lane.b32.xlu0 %v348, 4
  %v589 = vpop.permute.xlu0 %588
  %590 = vrot.lane.b32.xlu0 %v349, 4
  %v591 = vpop.permute.xlu0 %590
  %592 = vrot.lane.b32.xlu0 %v350, 4
  %v593 = vpop.permute.xlu0 %592
  %vm675 = vcmask 64544
  %676 = vst.msk [vmem:[#allocation3] sm:$0xff] %vm675, %v433
  %677 = vst.msk [vmem:[#allocation3 + $0x8] sm:$0xff] %vm675, %v435
  %678 = vst.msk [vmem:[#allocation3 + $0x10] sm:$0xff] %vm675, %v437
  %679 = vst.msk [vmem:[#allocation3 + $0x18] sm:$0xff] %vm675, %v439
  %680 = vst.msk [vmem:[#allocation3 + $0x20] sm:$0xff] %vm675, %v441
  %681 = vst.msk [vmem:[#allocation3 + $0x28] sm:$0xff] %vm675, %v443
  %682 = vst.msk [vmem:[#allocation3 + $0x30] sm:$0xff] %vm675, %v445
  %683 = vst.msk [vmem:[#allocation3 + $0x38] sm:$0xff] %vm675, %v447
  %684 = vst.msk [vmem:[#allocation3 + $0x40] sm:$0xff] %vm675, %v449
  %685 = vst.msk [vmem:[#allocation3 + $0x48] sm:$0xff] %vm675, %v451
  %686 = vst.msk [vmem:[#allocation3 + $0x50] sm:$0xff] %vm675, %v453
  %687 = vst.msk [vmem:[#allocation3 + $0x58] sm:$0xff] %vm675, %v455
  %688 = vst.msk [vmem:[#allocation3 + $0x60] sm:$0xff] %vm675, %v457
  %689 = vst.msk [vmem:[#allocation3 + $0x68] sm:$0xff] %vm675, %v459
  %690 = vst.msk [vmem:[#allocation3 + $0x70] sm:$0xff] %vm675, %v461
  %691 = vst.msk [vmem:[#allocation3 + $0x78] sm:$0xff] %vm675, %v463
  %692 = vst.msk [vmem:[#allocation3 + $0x80] sm:$0xff] %vm675, %v465
  %693 = vst.msk [vmem:[#allocation3 + $0x88] sm:$0xff] %vm675, %v467
  %694 = vst.msk [vmem:[#allocation3 + $0x90] sm:$0xff] %vm675, %v469
  %695 = vst.msk [vmem:[#allocation3 + $0x98] sm:$0xff] %vm675, %v471
  %696 = vst.msk [vmem:[#allocation3 + $0xa0] sm:$0xff] %vm675, %v473
  %697 = vst.msk [vmem:[#allocation3 + $0xa8] sm:$0xff] %vm675, %v475
  %698 = vst.msk [vmem:[#allocation3 + $0xb0] sm:$0xff] %vm675, %v477
  %699 = vst.msk [vmem:[#allocation3 + $0xb8] sm:$0xff] %vm675, %v479
  %700 = vst.msk [vmem:[#allocation3 + $0xc0] sm:$0xff] %vm675, %v481
  %701 = vst.msk [vmem:[#allocation3 + $0xc8] sm:$0xff] %vm675, %v483
  %702 = vst.msk [vmem:[#allocation3 + $0xd0] sm:$0xff] %vm675, %v485
  %703 = vst.msk [vmem:[#allocation3 + $0xd8] sm:$0xff] %vm675, %v487
  %704 = vst.msk [vmem:[#allocation3 + $0xe0] sm:$0xff] %vm675, %v489
  %705 = vst.msk [vmem:[#allocation3 + $0xe8] sm:$0xff] %vm675, %v491
  %706 = vst.msk [vmem:[#allocation3 + $0xf0] sm:$0xff] %vm675, %v493
  %707 = vst.msk [vmem:[#allocation3 + $0xf8] sm:$0xff] %vm675, %v495
  %708 = vst.msk [vmem:[#allocation3 + $0x100] sm:$0xff] %vm675, %v497
  %709 = vst.msk [vmem:[#allocation3 + $0x108] sm:$0xff] %vm675, %v499
  %710 = vst.msk [vmem:[#allocation3 + $0x110] sm:$0xff] %vm675, %v501
  %711 = vst.msk [vmem:[#allocation3 + $0x118] sm:$0xff] %vm675, %v503
  %712 = vst.msk [vmem:[#allocation3 + $0x120] sm:$0xff] %vm675, %v505
  %713 = vst.msk [vmem:[#allocation3 + $0x128] sm:$0xff] %vm675, %v507
  %714 = vst.msk [vmem:[#allocation3 + $0x130] sm:$0xff] %vm675, %v509
  %715 = vst.msk [vmem:[#allocation3 + $0x138] sm:$0xff] %vm675, %v511
  %716 = vst.msk [vmem:[#allocation3 + $0x140] sm:$0xff] %vm675, %v513
  %717 = vst.msk [vmem:[#allocation3 + $0x148] sm:$0xff] %vm675, %v515
  %718 = vst.msk [vmem:[#allocation3 + $0x150] sm:$0xff] %vm675, %v517
  %719 = vst.msk [vmem:[#allocation3 + $0x158] sm:$0xff] %vm675, %v519
  %720 = vst.msk [vmem:[#allocation3 + $0x160] sm:$0xff] %vm675, %v521
  %721 = vst.msk [vmem:[#allocation3 + $0x168] sm:$0xff] %vm675, %v523
  %722 = vst.msk [vmem:[#allocation3 + $0x170] sm:$0xff] %vm675, %v525
  %723 = vst.msk [vmem:[#allocation3 + $0x178] sm:$0xff] %vm675, %v527
  %724 = vst.msk [vmem:[#allocation3 + $0x180] sm:$0xff] %vm675, %v529
  %725 = vst.msk [vmem:[#allocation3 + $0x188] sm:$0xff] %vm675, %v531
  %726 = vst.msk [vmem:[#allocation3 + $0x190] sm:$0xff] %vm675, %v533
  %727 = vst.msk [vmem:[#allocation3 + $0x198] sm:$0xff] %vm675, %v535
  %728 = vst.msk [vmem:[#allocation3 + $0x1a0] sm:$0xff] %vm675, %v537
  %729 = vst.msk [vmem:[#allocation3 + $0x1a8] sm:$0xff] %vm675, %v539
  %730 = vst.msk [vmem:[#allocation3 + $0x1b0] sm:$0xff] %vm675, %v541
  %731 = vst.msk [vmem:[#allocation3 + $0x1b8] sm:$0xff] %vm675, %v543
  %732 = vst.msk [vmem:[#allocation3 + $0x1c0] sm:$0xff] %vm675, %v545
  %733 = vst.msk [vmem:[#allocation3 + $0x1c8] sm:$0xff] %vm675, %v547
  %734 = vst.msk [vmem:[#allocation3 + $0x1d0] sm:$0xff] %vm675, %v549
  %735 = vst.msk [vmem:[#allocation3 + $0x1d8] sm:$0xff] %vm675, %v551
  %736 = vst.msk [vmem:[#allocation3 + $0x1e0] sm:$0xff] %vm675, %v553
  %737 = vst.msk [vmem:[#allocation3 + $0x1e8] sm:$0xff] %vm675, %v555
  %738 = vst.msk [vmem:[#allocation3 + $0x1f0] sm:$0xff] %vm675, %v557
  %739 = vst.msk [vmem:[#allocation3 + $0x1f8] sm:$0xff] %vm675, %v559
  %740 = vst.msk [vmem:[#allocation3 + $0x200] sm:$0xff] %vm675, %v561
  %741 = vst.msk [vmem:[#allocation3 + $0x208] sm:$0xff] %vm675, %v563
  %742 = vst.msk [vmem:[#allocation3 + $0x210] sm:$0xff] %vm675, %v565
  %743 = vst.msk [vmem:[#allocation3 + $0x218] sm:$0xff] %vm675, %v567
  %744 = vst.msk [vmem:[#allocation3 + $0x220] sm:$0xff] %vm675, %v569
  %745 = vst.msk [vmem:[#allocation3 + $0x228] sm:$0xff] %vm675, %v571
  %746 = vst.msk [vmem:[#allocation3 + $0x230] sm:$0xff] %vm675, %v573
  %747 = vst.msk [vmem:[#allocation3 + $0x238] sm:$0xff] %vm675, %v575
  %748 = vst.msk [vmem:[#allocation3 + $0x240] sm:$0xff] %vm675, %v577
  %749 = vst.msk [vmem:[#allocation3 + $0x248] sm:$0xff] %vm675, %v579
  %750 = vst.msk [vmem:[#allocation3 + $0x250] sm:$0xff] %vm675, %v581
  %751 = vst.msk [vmem:[#allocation3 + $0x258] sm:$0xff] %vm675, %v583
  %752 = vst.msk [vmem:[#allocation3 + $0x260] sm:$0xff] %vm675, %v585
  %753 = vst.msk [vmem:[#allocation3 + $0x268] sm:$0xff] %vm675, %v587
  %754 = vst.msk [vmem:[#allocation3 + $0x270] sm:$0xff] %vm675, %v589
  %755 = vst.msk [vmem:[#allocation3 + $0x278] sm:$0xff] %vm675, %v591
  %756 = vst.msk [vmem:[#allocation3 + $0x280] sm:$0xff] %vm675, %v593
  %v757 = vld [vmem:[%s0 + $0x7] sm:$0xff]
  %v758 = vld [vmem:[%s0 + $0xf] sm:$0xff]
  %v759 = vld [vmem:[%s0 + $0x17] sm:$0xff]
  %v760 = vld [vmem:[%s0 + $0x1f] sm:$0xff]
  %v761 = vld [vmem:[%s0 + $0x27] sm:$0xff]
  %v762 = vld [vmem:[%s0 + $0x2f] sm:$0xff]
  %v763 = vld [vmem:[%s0 + $0x37] sm:$0xff]
  %v764 = vld [vmem:[%s0 + $0x3f] sm:$0xff]
  %v765 = vld [vmem:[%s0 + $0x47] sm:$0xff]
  %v766 = vld [vmem:[%s0 + $0x4f] sm:$0xff]
  %v767 = vld [vmem:[%s0 + $0x57] sm:$0xff]
  %v768 = vld [vmem:[%s0 + $0x5f] sm:$0xff]
  %v769 = vld [vmem:[%s0 + $0x67] sm:$0xff]
  %v770 = vld [vmem:[%s0 + $0x6f] sm:$0xff]
  %v771 = vld [vmem:[%s0 + $0x77] sm:$0xff]
  %v772 = vld [vmem:[%s0 + $0x7f] sm:$0xff]
  %v773 = vld [vmem:[%s0 + $0x87] sm:$0xff]
  %v774 = vld [vmem:[%s0 + $0x8f] sm:$0xff]
  %v775 = vld [vmem:[%s0 + $0x97] sm:$0xff]
  %v776 = vld [vmem:[%s0 + $0x9f] sm:$0xff]
  %v777 = vld [vmem:[%s0 + $0xa7] sm:$0xff]
  %v778 = vld [vmem:[%s0 + $0xaf] sm:$0xff]
  %v779 = vld [vmem:[%s0 + $0xb7] sm:$0xff]
  %v780 = vld [vmem:[%s0 + $0xbf] sm:$0xff]
  %v781 = vld [vmem:[%s0 + $0xc7] sm:$0xff]
  %v782 = vld [vmem:[%s0 + $0xcf] sm:$0xff]
  %v783 = vld [vmem:[%s0 + $0xd7] sm:$0xff]
  %v784 = vld [vmem:[%s0 + $0xdf] sm:$0xff]
  %v785 = vld [vmem:[%s0 + $0xe7] sm:$0xff]
  %v786 = vld [vmem:[%s0 + $0xef] sm:$0xff]
  %v787 = vld [vmem:[%s0 + $0xf7] sm:$0xff]
  %v788 = vld [vmem:[%s0 + $0xff] sm:$0xff]
  %v789 = vld [vmem:[%s0 + $0x107] sm:$0xff]
  %v790 = vld [vmem:[%s0 + $0x10f] sm:$0xff]
  %v791 = vld [vmem:[%s0 + $0x117] sm:$0xff]
  %v792 = vld [vmem:[%s0 + $0x11f] sm:$0xff]
  %v793 = vld [vmem:[%s0 + $0x127] sm:$0xff]
  %v794 = vld [vmem:[%s0 + $0x12f] sm:$0xff]
  %v795 = vld [vmem:[%s0 + $0x137] sm:$0xff]
  %v796 = vld [vmem:[%s0 + $0x13f] sm:$0xff]
  %v797 = vld [vmem:[%s0 + $0x147] sm:$0xff]
  %v798 = vld [vmem:[%s0 + $0x14f] sm:$0xff]
  %v799 = vld [vmem:[%s0 + $0x157] sm:$0xff]
  %v800 = vld [vmem:[%s0 + $0x15f] sm:$0xff]
  %v801 = vld [vmem:[%s0 + $0x167] sm:$0xff]
  %v802 = vld [vmem:[%s0 + $0x16f] sm:$0xff]
  %v803 = vld [vmem:[%s0 + $0x177] sm:$0xff]
  %v804 = vld [vmem:[%s0 + $0x17f] sm:$0xff]
  %v805 = vld [vmem:[%s0 + $0x187] sm:$0xff]
  %v806 = vld [vmem:[%s0 + $0x18f] sm:$0xff]
  %v807 = vld [vmem:[%s0 + $0x197] sm:$0xff]
  %v808 = vld [vmem:[%s0 + $0x19f] sm:$0xff]
  %v809 = vld [vmem:[%s0 + $0x1a7] sm:$0xff]
  %v810 = vld [vmem:[%s0 + $0x1af] sm:$0xff]
  %v811 = vld [vmem:[%s0 + $0x1b7] sm:$0xff]
  %v812 = vld [vmem:[%s0 + $0x1bf] sm:$0xff]
  %v813 = vld [vmem:[%s0 + $0x1c7] sm:$0xff]
  %v814 = vld [vmem:[%s0 + $0x1cf] sm:$0xff]
  %v815 = vld [vmem:[%s0 + $0x1d7] sm:$0xff]
  %v816 = vld [vmem:[%s0 + $0x1df] sm:$0xff]
  %v817 = vld [vmem:[%s0 + $0x1e7] sm:$0xff]
  %v818 = vld [vmem:[%s0 + $0x1ef] sm:$0xff]
  %v819 = vld [vmem:[%s0 + $0x1f7] sm:$0xff]
  %v820 = vld [vmem:[%s0 + $0x1ff] sm:$0xff]
  %v821 = vld [vmem:[%s0 + $0x207] sm:$0xff]
  %v822 = vld [vmem:[%s0 + $0x20f] sm:$0xff]
  %v823 = vld [vmem:[%s0 + $0x217] sm:$0xff]
  %v824 = vld [vmem:[%s0 + $0x21f] sm:$0xff]
  %v825 = vld [vmem:[%s0 + $0x227] sm:$0xff]
  %v826 = vld [vmem:[%s0 + $0x22f] sm:$0xff]
  %v827 = vld [vmem:[%s0 + $0x237] sm:$0xff]
  %v828 = vld [vmem:[%s0 + $0x23f] sm:$0xff]
  %v829 = vld [vmem:[%s0 + $0x247] sm:$0xff]
  %v830 = vld [vmem:[%s0 + $0x24f] sm:$0xff]
  %v831 = vld [vmem:[%s0 + $0x257] sm:$0xff]
  %v832 = vld [vmem:[%s0 + $0x25f] sm:$0xff]
  %v833 = vld [vmem:[%s0 + $0x267] sm:$0xff]
  %v834 = vld [vmem:[%s0 + $0x26f] sm:$0xff]
  %v835 = vld [vmem:[%s0 + $0x277] sm:$0xff]
  %v836 = vld [vmem:[%s0 + $0x27f] sm:$0xff]
  %v837 = vld [vmem:[%s0 + $0x287] sm:$0xff]
  %919 = vrot.lane.b32.xlu0 %v757, 8
  %v920 = vpop.permute.xlu0 %919
  %921 = vrot.lane.b32.xlu0 %v758, 8
  %v922 = vpop.permute.xlu0 %921
  %923 = vrot.lane.b32.xlu0 %v759, 8
  %v924 = vpop.permute.xlu0 %923
  %925 = vrot.lane.b32.xlu0 %v760, 8
  %v926 = vpop.permute.xlu0 %925
  %927 = vrot.lane.b32.xlu0 %v761, 8
  %v928 = vpop.permute.xlu0 %927
  %929 = vrot.lane.b32.xlu0 %v762, 8
  %v930 = vpop.permute.xlu0 %929
  %931 = vrot.lane.b32.xlu0 %v763, 8
  %v932 = vpop.permute.xlu0 %931
  %933 = vrot.lane.b32.xlu0 %v764, 8
  %v934 = vpop.permute.xlu0 %933
  %935 = vrot.lane.b32.xlu0 %v765, 8
  %v936 = vpop.permute.xlu0 %935
  %937 = vrot.lane.b32.xlu0 %v766, 8
  %v938 = vpop.permute.xlu0 %937
  %939 = vrot.lane.b32.xlu0 %v767, 8
  %v940 = vpop.permute.xlu0 %939
  %941 = vrot.lane.b32.xlu0 %v768, 8
  %v942 = vpop.permute.xlu0 %941
  %943 = vrot.lane.b32.xlu0 %v769, 8
  %v944 = vpop.permute.xlu0 %943
  %945 = vrot.lane.b32.xlu0 %v770, 8
  %v946 = vpop.permute.xlu0 %945
  %947 = vrot.lane.b32.xlu0 %v771, 8
  %v948 = vpop.permute.xlu0 %947
  %949 = vrot.lane.b32.xlu0 %v772, 8
  %v950 = vpop.permute.xlu0 %949
  %951 = vrot.lane.b32.xlu0 %v773, 8
  %v952 = vpop.permute.xlu0 %951
  %953 = vrot.lane.b32.xlu0 %v774, 8
  %v954 = vpop.permute.xlu0 %953
  %955 = vrot.lane.b32.xlu0 %v775, 8
  %v956 = vpop.permute.xlu0 %955
  %957 = vrot.lane.b32.xlu0 %v776, 8
  %v958 = vpop.permute.xlu0 %957
  %959 = vrot.lane.b32.xlu0 %v777, 8
  %v960 = vpop.permute.xlu0 %959
  %961 = vrot.lane.b32.xlu0 %v778, 8
  %v962 = vpop.permute.xlu0 %961
  %963 = vrot.lane.b32.xlu0 %v779, 8
  %v964 = vpop.permute.xlu0 %963
  %965 = vrot.lane.b32.xlu0 %v780, 8
  %v966 = vpop.permute.xlu0 %965
  %967 = vrot.lane.b32.xlu0 %v781, 8
  %v968 = vpop.permute.xlu0 %967
  %969 = vrot.lane.b32.xlu0 %v782, 8
  %v970 = vpop.permute.xlu0 %969
  %971 = vrot.lane.b32.xlu0 %v783, 8
  %v972 = vpop.permute.xlu0 %971
  %973 = vrot.lane.b32.xlu0 %v784, 8
  %v974 = vpop.permute.xlu0 %973
  %975 = vrot.lane.b32.xlu0 %v785, 8
  %v976 = vpop.permute.xlu0 %975
  %977 = vrot.lane.b32.xlu0 %v786, 8
  %v978 = vpop.permute.xlu0 %977
  %979 = vrot.lane.b32.xlu0 %v787, 8
  %v980 = vpop.permute.xlu0 %979
  %981 = vrot.lane.b32.xlu0 %v788, 8
  %v982 = vpop.permute.xlu0 %981
  %983 = vrot.lane.b32.xlu0 %v789, 8
  %v984 = vpop.permute.xlu0 %983
  %985 = vrot.lane.b32.xlu0 %v790, 8
  %v986 = vpop.permute.xlu0 %985
  %987 = vrot.lane.b32.xlu0 %v791, 8
  %v988 = vpop.permute.xlu0 %987
  %989 = vrot.lane.b32.xlu0 %v792, 8
  %v990 = vpop.permute.xlu0 %989
  %991 = vrot.lane.b32.xlu0 %v793, 8
  %v992 = vpop.permute.xlu0 %991
  %993 = vrot.lane.b32.xlu0 %v794, 8
  %v994 = vpop.permute.xlu0 %993
  %995 = vrot.lane.b32.xlu0 %v795, 8
  %v996 = vpop.permute.xlu0 %995
  %997 = vrot.lane.b32.xlu0 %v796, 8
  %v998 = vpop.permute.xlu0 %997
  %999 = vrot.lane.b32.xlu0 %v797, 8
  %v1000 = vpop.permute.xlu0 %999
  %1001 = vrot.lane.b32.xlu0 %v798, 8
  %v1002 = vpop.permute.xlu0 %1001
  %1003 = vrot.lane.b32.xlu0 %v799, 8
  %v1004 = vpop.permute.xlu0 %1003
  %1005 = vrot.lane.b32.xlu0 %v800, 8
  %v1006 = vpop.permute.xlu0 %1005
  %1007 = vrot.lane.b32.xlu0 %v801, 8
  %v1008 = vpop.permute.xlu0 %1007
  %1009 = vrot.lane.b32.xlu0 %v802, 8
  %v1010 = vpop.permute.xlu0 %1009
  %1011 = vrot.lane.b32.xlu0 %v803, 8
  %v1012 = vpop.permute.xlu0 %1011
  %1013 = vrot.lane.b32.xlu0 %v804, 8
  %v1014 = vpop.permute.xlu0 %1013
  %1015 = vrot.lane.b32.xlu0 %v805, 8
  %v1016 = vpop.permute.xlu0 %1015
  %1017 = vrot.lane.b32.xlu0 %v806, 8
  %v1018 = vpop.permute.xlu0 %1017
  %1019 = vrot.lane.b32.xlu0 %v807, 8
  %v1020 = vpop.permute.xlu0 %1019
  %1021 = vrot.lane.b32.xlu0 %v808, 8
  %v1022 = vpop.permute.xlu0 %1021
  %1023 = vrot.lane.b32.xlu0 %v809, 8
  %v1024 = vpop.permute.xlu0 %1023
  %1025 = vrot.lane.b32.xlu0 %v810, 8
  %v1026 = vpop.permute.xlu0 %1025
  %1027 = vrot.lane.b32.xlu0 %v811, 8
  %v1028 = vpop.permute.xlu0 %1027
  %1029 = vrot.lane.b32.xlu0 %v812, 8
  %v1030 = vpop.permute.xlu0 %1029
  %1031 = vrot.lane.b32.xlu0 %v813, 8
  %v1032 = vpop.permute.xlu0 %1031
  %1033 = vrot.lane.b32.xlu0 %v814, 8
  %v1034 = vpop.permute.xlu0 %1033
  %1035 = vrot.lane.b32.xlu0 %v815, 8
  %v1036 = vpop.permute.xlu0 %1035
  %1037 = vrot.lane.b32.xlu0 %v816, 8
  %v1038 = vpop.permute.xlu0 %1037
  %1039 = vrot.lane.b32.xlu0 %v817, 8
  %v1040 = vpop.permute.xlu0 %1039
  %1041 = vrot.lane.b32.xlu0 %v818, 8
  %v1042 = vpop.permute.xlu0 %1041
  %1043 = vrot.lane.b32.xlu0 %v819, 8
  %v1044 = vpop.permute.xlu0 %1043
  %1045 = vrot.lane.b32.xlu0 %v820, 8
  %v1046 = vpop.permute.xlu0 %1045
  %1047 = vrot.lane.b32.xlu0 %v821, 8
  %v1048 = vpop.permute.xlu0 %1047
  %1049 = vrot.lane.b32.xlu0 %v822, 8
  %v1050 = vpop.permute.xlu0 %1049
  %1051 = vrot.lane.b32.xlu0 %v823, 8
  %v1052 = vpop.permute.xlu0 %1051
  %1053 = vrot.lane.b32.xlu0 %v824, 8
  %v1054 = vpop.permute.xlu0 %1053
  %1055 = vrot.lane.b32.xlu0 %v825, 8
  %v1056 = vpop.permute.xlu0 %1055
  %1057 = vrot.lane.b32.xlu0 %v826, 8
  %v1058 = vpop.permute.xlu0 %1057
  %1059 = vrot.lane.b32.xlu0 %v827, 8
  %v1060 = vpop.permute.xlu0 %1059
  %1061 = vrot.lane.b32.xlu0 %v828, 8
  %v1062 = vpop.permute.xlu0 %1061
  %1063 = vrot.lane.b32.xlu0 %v829, 8
  %v1064 = vpop.permute.xlu0 %1063
  %1065 = vrot.lane.b32.xlu0 %v830, 8
  %v1066 = vpop.permute.xlu0 %1065
  %1067 = vrot.lane.b32.xlu0 %v831, 8
  %v1068 = vpop.permute.xlu0 %1067
  %1069 = vrot.lane.b32.xlu0 %v832, 8
  %v1070 = vpop.permute.xlu0 %1069
  %1071 = vrot.lane.b32.xlu0 %v833, 8
  %v1072 = vpop.permute.xlu0 %1071
  %1073 = vrot.lane.b32.xlu0 %v834, 8
  %v1074 = vpop.permute.xlu0 %1073
  %1075 = vrot.lane.b32.xlu0 %v835, 8
  %v1076 = vpop.permute.xlu0 %1075
  %1077 = vrot.lane.b32.xlu0 %v836, 8
  %v1078 = vpop.permute.xlu0 %1077
  %1079 = vrot.lane.b32.xlu0 %v837, 8
  %v1080 = vpop.permute.xlu0 %1079
  %vm1162 = vcmask 97344
  %1163 = vst.msk [vmem:[#allocation3] sm:$0xff] %vm1162, %v920
  %1164 = vst.msk [vmem:[#allocation3 + $0x8] sm:$0xff] %vm1162, %v922
  %1165 = vst.msk [vmem:[#allocation3 + $0x10] sm:$0xff] %vm1162, %v924
  %1166 = vst.msk [vmem:[#allocation3 + $0x18] sm:$0xff] %vm1162, %v926
  %1167 = vst.msk [vmem:[#allocation3 + $0x20] sm:$0xff] %vm1162, %v928
  %1168 = vst.msk [vmem:[#allocation3 + $0x28] sm:$0xff] %vm1162, %v930
  %1169 = vst.msk [vmem:[#allocation3 + $0x30] sm:$0xff] %vm1162, %v932
  %1170 = vst.msk [vmem:[#allocation3 + $0x38] sm:$0xff] %vm1162, %v934
  %1171 = vst.msk [vmem:[#allocation3 + $0x40] sm:$0xff] %vm1162, %v936
  %1172 = vst.msk [vmem:[#allocation3 + $0x48] sm:$0xff] %vm1162, %v938
  %1173 = vst.msk [vmem:[#allocation3 + $0x50] sm:$0xff] %vm1162, %v940
  %1174 = vst.msk [vmem:[#allocation3 + $0x58] sm:$0xff] %vm1162, %v942
  %1175 = vst.msk [vmem:[#allocation3 + $0x60] sm:$0xff] %vm1162, %v944
  %1176 = vst.msk [vmem:[#allocation3 + $0x68] sm:$0xff] %vm1162, %v946
  %1177 = vst.msk [vmem:[#allocation3 + $0x70] sm:$0xff] %vm1162, %v948
  %1178 = vst.msk [vmem:[#allocation3 + $0x78] sm:$0xff] %vm1162, %v950
  %1179 = vst.msk [vmem:[#allocation3 + $0x80] sm:$0xff] %vm1162, %v952
  %1180 = vst.msk [vmem:[#allocation3 + $0x88] sm:$0xff] %vm1162, %v954
  %1181 = vst.msk [vmem:[#allocation3 + $0x90] sm:$0xff] %vm1162, %v956
  %1182 = vst.msk [vmem:[#allocation3 + $0x98] sm:$0xff] %vm1162, %v958
  %1183 = vst.msk [vmem:[#allocation3 + $0xa0] sm:$0xff] %vm1162, %v960
  %1184 = vst.msk [vmem:[#allocation3 + $0xa8] sm:$0xff] %vm1162, %v962
  %1185 = vst.msk [vmem:[#allocation3 + $0xb0] sm:$0xff] %vm1162, %v964
  %1186 = vst.msk [vmem:[#allocation3 + $0xb8] sm:$0xff] %vm1162, %v966
  %1187 = vst.msk [vmem:[#allocation3 + $0xc0] sm:$0xff] %vm1162, %v968
  %1188 = vst.msk [vmem:[#allocation3 + $0xc8] sm:$0xff] %vm1162, %v970
  %1189 = vst.msk [vmem:[#allocation3 + $0xd0] sm:$0xff] %vm1162, %v972
  %1190 = vst.msk [vmem:[#allocation3 + $0xd8] sm:$0xff] %vm1162, %v974
  %1191 = vst.msk [vmem:[#allocation3 + $0xe0] sm:$0xff] %vm1162, %v976
  %1192 = vst.msk [vmem:[#allocation3 + $0xe8] sm:$0xff] %vm1162, %v978
  %1193 = vst.msk [vmem:[#allocation3 + $0xf0] sm:$0xff] %vm1162, %v980
  %1194 = vst.msk [vmem:[#allocation3 + $0xf8] sm:$0xff] %vm1162, %v982
  %1195 = vst.msk [vmem:[#allocation3 + $0x100] sm:$0xff] %vm1162, %v984
  %1196 = vst.msk [vmem:[#allocation3 + $0x108] sm:$0xff] %vm1162, %v986
  %1197 = vst.msk [vmem:[#allocation3 + $0x110] sm:$0xff] %vm1162, %v988
  %1198 = vst.msk [vmem:[#allocation3 + $0x118] sm:$0xff] %vm1162, %v990
  %1199 = vst.msk [vmem:[#allocation3 + $0x120] sm:$0xff] %vm1162, %v992
  %1200 = vst.msk [vmem:[#allocation3 + $0x128] sm:$0xff] %vm1162, %v994
  %1201 = vst.msk [vmem:[#allocation3 + $0x130] sm:$0xff] %vm1162, %v996
  %1202 = vst.msk [vmem:[#allocation3 + $0x138] sm:$0xff] %vm1162, %v998
  %1203 = vst.msk [vmem:[#allocation3 + $0x140] sm:$0xff] %vm1162, %v1000
  %1204 = vst.msk [vmem:[#allocation3 + $0x148] sm:$0xff] %vm1162, %v1002
  %1205 = vst.msk [vmem:[#allocation3 + $0x150] sm:$0xff] %vm1162, %v1004
  %1206 = vst.msk [vmem:[#allocation3 + $0x158] sm:$0xff] %vm1162, %v1006
  %1207 = vst.msk [vmem:[#allocation3 + $0x160] sm:$0xff] %vm1162, %v1008
  %1208 = vst.msk [vmem:[#allocation3 + $0x168] sm:$0xff] %vm1162, %v1010
  %1209 = vst.msk [vmem:[#allocation3 + $0x170] sm:$0xff] %vm1162, %v1012
  %1210 = vst.msk [vmem:[#allocation3 + $0x178] sm:$0xff] %vm1162, %v1014
  %1211 = vst.msk [vmem:[#allocation3 + $0x180] sm:$0xff] %vm1162, %v1016
  %1212 = vst.msk [vmem:[#allocation3 + $0x188] sm:$0xff] %vm1162, %v1018
  %1213 = vst.msk [vmem:[#allocation3 + $0x190] sm:$0xff] %vm1162, %v1020
  %1214 = vst.msk [vmem:[#allocation3 + $0x198] sm:$0xff] %vm1162, %v1022
  %1215 = vst.msk [vmem:[#allocation3 + $0x1a0] sm:$0xff] %vm1162, %v1024
  %1216 = vst.msk [vmem:[#allocation3 + $0x1a8] sm:$0xff] %vm1162, %v1026
  %1217 = vst.msk [vmem:[#allocation3 + $0x1b0] sm:$0xff] %vm1162, %v1028
  %1218 = vst.msk [vmem:[#allocation3 + $0x1b8] sm:$0xff] %vm1162, %v1030
  %1219 = vst.msk [vmem:[#allocation3 + $0x1c0] sm:$0xff] %vm1162, %v1032
  %1220 = vst.msk [vmem:[#allocation3 + $0x1c8] sm:$0xff] %vm1162, %v1034
  %1221 = vst.msk [vmem:[#allocation3 + $0x1d0] sm:$0xff] %vm1162, %v1036
  %1222 = vst.msk [vmem:[#allocation3 + $0x1d8] sm:$0xff] %vm1162, %v1038
  %1223 = vst.msk [vmem:[#allocation3 + $0x1e0] sm:$0xff] %vm1162, %v1040
  %1224 = vst.msk [vmem:[#allocation3 + $0x1e8] sm:$0xff] %vm1162, %v1042
  %1225 = vst.msk [vmem:[#allocation3 + $0x1f0] sm:$0xff] %vm1162, %v1044
  %1226 = vst.msk [vmem:[#allocation3 + $0x1f8] sm:$0xff] %vm1162, %v1046
  %1227 = vst.msk [vmem:[#allocation3 + $0x200] sm:$0xff] %vm1162, %v1048
  %1228 = vst.msk [vmem:[#allocation3 + $0x208] sm:$0xff] %vm1162, %v1050
  %1229 = vst.msk [vmem:[#allocation3 + $0x210] sm:$0xff] %vm1162, %v1052
  %1230 = vst.msk [vmem:[#allocation3 + $0x218] sm:$0xff] %vm1162, %v1054
  %1231 = vst.msk [vmem:[#allocation3 + $0x220] sm:$0xff] %vm1162, %v1056
  %1232 = vst.msk [vmem:[#allocation3 + $0x228] sm:$0xff] %vm1162, %v1058
  %1233 = vst.msk [vmem:[#allocation3 + $0x230] sm:$0xff] %vm1162, %v1060
  %1234 = vst.msk [vmem:[#allocation3 + $0x238] sm:$0xff] %vm1162, %v1062
  %1235 = vst.msk [vmem:[#allocation3 + $0x240] sm:$0xff] %vm1162, %v1064
  %1236 = vst.msk [vmem:[#allocation3 + $0x248] sm:$0xff] %vm1162, %v1066
  %1237 = vst.msk [vmem:[#allocation3 + $0x250] sm:$0xff] %vm1162, %v1068
  %1238 = vst.msk [vmem:[#allocation3 + $0x258] sm:$0xff] %vm1162, %v1070
  %1239 = vst.msk [vmem:[#allocation3 + $0x260] sm:$0xff] %vm1162, %v1072
  %1240 = vst.msk [vmem:[#allocation3 + $0x268] sm:$0xff] %vm1162, %v1074
  %1241 = vst.msk [vmem:[#allocation3 + $0x270] sm:$0xff] %vm1162, %v1076
  %1242 = vst.msk [vmem:[#allocation3 + $0x278] sm:$0xff] %vm1162, %v1078
  %1243 = vst.msk [vmem:[#allocation3 + $0x280] sm:$0xff] %vm1162, %v1080
  %v1244 = vld [vmem:[%s0 + $0x17] sm:$0xff]
  %v1245 = vld [vmem:[%s0 + $0x1f] sm:$0xff]
  %v1246 = vld [vmem:[%s0 + $0x27] sm:$0xff]
  %v1247 = vld [vmem:[%s0 + $0x2f] sm:$0xff]
  %v1248 = vld [vmem:[%s0 + $0x37] sm:$0xff]
  %v1249 = vld [vmem:[%s0 + $0x3f] sm:$0xff]
  %v1250 = vld [vmem:[%s0 + $0x47] sm:$0xff]
  %v1251 = vld [vmem:[%s0 + $0x4f] sm:$0xff]
  %v1252 = vld [vmem:[%s0 + $0x57] sm:$0xff]
  %v1253 = vld [vmem:[%s0 + $0x5f] sm:$0xff]
  %v1254 = vld [vmem:[%s0 + $0x67] sm:$0xff]
  %v1255 = vld [vmem:[%s0 + $0x6f] sm:$0xff]
  %v1256 = vld [vmem:[%s0 + $0x77] sm:$0xff]
  %v1257 = vld [vmem:[%s0 + $0x7f] sm:$0xff]
  %v1258 = vld [vmem:[%s0 + $0x87] sm:$0xff]
  %v1259 = vld [vmem:[%s0 + $0x8f] sm:$0xff]
  %v1260 = vld [vmem:[%s0 + $0x97] sm:$0xff]
  %v1261 = vld [vmem:[%s0 + $0x9f] sm:$0xff]
  %v1262 = vld [vmem:[%s0 + $0xa7] sm:$0xff]
  %v1263 = vld [vmem:[%s0 + $0xaf] sm:$0xff]
  %v1264 = vld [vmem:[%s0 + $0xb7] sm:$0xff]
  %v1265 = vld [vmem:[%s0 + $0xbf] sm:$0xff]
  %v1266 = vld [vmem:[%s0 + $0xc7] sm:$0xff]
  %v1267 = vld [vmem:[%s0 + $0xcf] sm:$0xff]
  %v1268 = vld [vmem:[%s0 + $0xd7] sm:$0xff]
  %v1269 = vld [vmem:[%s0 + $0xdf] sm:$0xff]
  %v1270 = vld [vmem:[%s0 + $0xe7] sm:$0xff]
  %v1271 = vld [vmem:[%s0 + $0xef] sm:$0xff]
  %v1272 = vld [vmem:[%s0 + $0xf7] sm:$0xff]
  %v1273 = vld [vmem:[%s0 + $0xff] sm:$0xff]
  %v1274 = vld [vmem:[%s0 + $0x107] sm:$0xff]
  %v1275 = vld [vmem:[%s0 + $0x10f] sm:$0xff]
  %v1276 = vld [vmem:[%s0 + $0x117] sm:$0xff]
  %v1277 = vld [vmem:[%s0 + $0x11f] sm:$0xff]
  %v1278 = vld [vmem:[%s0 + $0x127] sm:$0xff]
  %v1279 = vld [vmem:[%s0 + $0x12f] sm:$0xff]
  %v1280 = vld [vmem:[%s0 + $0x137] sm:$0xff]
  %v1281 = vld [vmem:[%s0 + $0x13f] sm:$0xff]
  %v1282 = vld [vmem:[%s0 + $0x147] sm:$0xff]
  %v1283 = vld [vmem:[%s0 + $0x14f] sm:$0xff]
  %v1284 = vld [vmem:[%s0 + $0x157] sm:$0xff]
  %v1285 = vld [vmem:[%s0 + $0x15f] sm:$0xff]
  %v1286 = vld [vmem:[%s0 + $0x167] sm:$0xff]
  %v1287 = vld [vmem:[%s0 + $0x16f] sm:$0xff]
  %v1288 = vld [vmem:[%s0 + $0x177] sm:$0xff]
  %v1289 = vld [vmem:[%s0 + $0x17f] sm:$0xff]
  %v1290 = vld [vmem:[%s0 + $0x187] sm:$0xff]
  %v1291 = vld [vmem:[%s0 + $0x18f] sm:$0xff]
  %v1292 = vld [vmem:[%s0 + $0x197] sm:$0xff]
  %v1293 = vld [vmem:[%s0 + $0x19f] sm:$0xff]
  %v1294 = vld [vmem:[%s0 + $0x1a7] sm:$0xff]
  %v1295 = vld [vmem:[%s0 + $0x1af] sm:$0xff]
  %v1296 = vld [vmem:[%s0 + $0x1b7] sm:$0xff]
  %v1297 = vld [vmem:[%s0 + $0x1bf] sm:$0xff]
  %v1298 = vld [vmem:[%s0 + $0x1c7] sm:$0xff]
  %v1299 = vld [vmem:[%s0 + $0x1cf] sm:$0xff]
  %v1300 = vld [vmem:[%s0 + $0x1d7] sm:$0xff]
  %v1301 = vld [vmem:[%s0 + $0x1df] sm:$0xff]
  %v1302 = vld [vmem:[%s0 + $0x1e7] sm:$0xff]
  %v1303 = vld [vmem:[%s0 + $0x1ef] sm:$0xff]
  %v1304 = vld [vmem:[%s0 + $0x1f7] sm:$0xff]
  %v1305 = vld [vmem:[%s0 + $0x1ff] sm:$0xff]
  %v1306 = vld [vmem:[%s0 + $0x207] sm:$0xff]
  %v1307 = vld [vmem:[%s0 + $0x20f] sm:$0xff]
  %v1308 = vld [vmem:[%s0 + $0x217] sm:$0xff]
  %v1309 = vld [vmem:[%s0 + $0x21f] sm:$0xff]
  %v1310 = vld [vmem:[%s0 + $0x227] sm:$0xff]
  %v1311 = vld [vmem:[%s0 + $0x22f] sm:$0xff]
  %v1312 = vld [vmem:[%s0 + $0x237] sm:$0xff]
  %v1313 = vld [vmem:[%s0 + $0x23f] sm:$0xff]
  %v1314 = vld [vmem:[%s0 + $0x247] sm:$0xff]
  %v1315 = vld [vmem:[%s0 + $0x24f] sm:$0xff]
  %v1316 = vld [vmem:[%s0 + $0x257] sm:$0xff]
  %v1317 = vld [vmem:[%s0 + $0x25f] sm:$0xff]
  %v1318 = vld [vmem:[%s0 + $0x267] sm:$0xff]
  %v1319 = vld [vmem:[%s0 + $0x26f] sm:$0xff]
  %v1320 = vld [vmem:[%s0 + $0x277] sm:$0xff]
  %v1321 = vld [vmem:[%s0 + $0x27f] sm:$0xff]
  %v1322 = vld [vmem:[%s0 + $0x287] sm:$0xff]
  %v1323 = vld [vmem:[%s0 + $0x28f] sm:$0xff]
  %v1324 = vld [vmem:[%s0 + $0x297] sm:$0xff]
  %1406 = vrot.lane.b32.xlu0 %v1244, 12
  %v1407 = vpop.permute.xlu0 %1406
  %1408 = vrot.lane.b32.xlu0 %v1245, 12
  %v1409 = vpop.permute.xlu0 %1408
  %1410 = vrot.lane.b32.xlu0 %v1246, 12
  %v1411 = vpop.permute.xlu0 %1410
  %1412 = vrot.lane.b32.xlu0 %v1247, 12
  %v1413 = vpop.permute.xlu0 %1412
  %1414 = vrot.lane.b32.xlu0 %v1248, 12
  %v1415 = vpop.permute.xlu0 %1414
  %1416 = vrot.lane.b32.xlu0 %v1249, 12
  %v1417 = vpop.permute.xlu0 %1416
  %1418 = vrot.lane.b32.xlu0 %v1250, 12
  %v1419 = vpop.permute.xlu0 %1418
  %1420 = vrot.lane.b32.xlu0 %v1251, 12
  %v1421 = vpop.permute.xlu0 %1420
  %1422 = vrot.lane.b32.xlu0 %v1252, 12
  %v1423 = vpop.permute.xlu0 %1422
  %1424 = vrot.lane.b32.xlu0 %v1253, 12
  %v1425 = vpop.permute.xlu0 %1424
  %1426 = vrot.lane.b32.xlu0 %v1254, 12
  %v1427 = vpop.permute.xlu0 %1426
  %1428 = vrot.lane.b32.xlu0 %v1255, 12
  %v1429 = vpop.permute.xlu0 %1428
  %1430 = vrot.lane.b32.xlu0 %v1256, 12
  %v1431 = vpop.permute.xlu0 %1430
  %1432 = vrot.lane.b32.xlu0 %v1257, 12
  %v1433 = vpop.permute.xlu0 %1432
  %1434 = vrot.lane.b32.xlu0 %v1258, 12
  %v1435 = vpop.permute.xlu0 %1434
  %1436 = vrot.lane.b32.xlu0 %v1259, 12
  %v1437 = vpop.permute.xlu0 %1436
  %1438 = vrot.lane.b32.xlu0 %v1260, 12
  %v1439 = vpop.permute.xlu0 %1438
  %1440 = vrot.lane.b32.xlu0 %v1261, 12
  %v1441 = vpop.permute.xlu0 %1440
  %1442 = vrot.lane.b32.xlu0 %v1262, 12
  %v1443 = vpop.permute.xlu0 %1442
  %1444 = vrot.lane.b32.xlu0 %v1263, 12
  %v1445 = vpop.permute.xlu0 %1444
  %1446 = vrot.lane.b32.xlu0 %v1264, 12
  %v1447 = vpop.permute.xlu0 %1446
  %1448 = vrot.lane.b32.xlu0 %v1265, 12
  %v1449 = vpop.permute.xlu0 %1448
  %1450 = vrot.lane.b32.xlu0 %v1266, 12
  %v1451 = vpop.permute.xlu0 %1450
  %1452 = vrot.lane.b32.xlu0 %v1267, 12
  %v1453 = vpop.permute.xlu0 %1452
  %1454 = vrot.lane.b32.xlu0 %v1268, 12
  %v1455 = vpop.permute.xlu0 %1454
  %1456 = vrot.lane.b32.xlu0 %v1269, 12
  %v1457 = vpop.permute.xlu0 %1456
  %1458 = vrot.lane.b32.xlu0 %v1270, 12
  %v1459 = vpop.permute.xlu0 %1458
  %1460 = vrot.lane.b32.xlu0 %v1271, 12
  %v1461 = vpop.permute.xlu0 %1460
  %1462 = vrot.lane.b32.xlu0 %v1272, 12
  %v1463 = vpop.permute.xlu0 %1462
  %1464 = vrot.lane.b32.xlu0 %v1273, 12
  %v1465 = vpop.permute.xlu0 %1464
  %1466 = vrot.lane.b32.xlu0 %v1274, 12
  %v1467 = vpop.permute.xlu0 %1466
  %1468 = vrot.lane.b32.xlu0 %v1275, 12
  %v1469 = vpop.permute.xlu0 %1468
  %1470 = vrot.lane.b32.xlu0 %v1276, 12
  %v1471 = vpop.permute.xlu0 %1470
  %1472 = vrot.lane.b32.xlu0 %v1277, 12
  %v1473 = vpop.permute.xlu0 %1472
  %1474 = vrot.lane.b32.xlu0 %v1278, 12
  %v1475 = vpop.permute.xlu0 %1474
  %1476 = vrot.lane.b32.xlu0 %v1279, 12
  %v1477 = vpop.permute.xlu0 %1476
  %1478 = vrot.lane.b32.xlu0 %v1280, 12
  %v1479 = vpop.permute.xlu0 %1478
  %1480 = vrot.lane.b32.xlu0 %v1281, 12
  %v1481 = vpop.permute.xlu0 %1480
  %1482 = vrot.lane.b32.xlu0 %v1282, 12
  %v1483 = vpop.permute.xlu0 %1482
  %1484 = vrot.lane.b32.xlu0 %v1283, 12
  %v1485 = vpop.permute.xlu0 %1484
  %1486 = vrot.lane.b32.xlu0 %v1284, 12
  %v1487 = vpop.permute.xlu0 %1486
  %1488 = vrot.lane.b32.xlu0 %v1285, 12
  %v1489 = vpop.permute.xlu0 %1488
  %1490 = vrot.lane.b32.xlu0 %v1286, 12
  %v1491 = vpop.permute.xlu0 %1490
  %1492 = vrot.lane.b32.xlu0 %v1287, 12
  %v1493 = vpop.permute.xlu0 %1492
  %1494 = vrot.lane.b32.xlu0 %v1288, 12
  %v1495 = vpop.permute.xlu0 %1494
  %1496 = vrot.lane.b32.xlu0 %v1289, 12
  %v1497 = vpop.permute.xlu0 %1496
  %1498 = vrot.lane.b32.xlu0 %v1290, 12
  %v1499 = vpop.permute.xlu0 %1498
  %1500 = vrot.lane.b32.xlu0 %v1291, 12
  %v1501 = vpop.permute.xlu0 %1500
  %1502 = vrot.lane.b32.xlu0 %v1292, 12
  %v1503 = vpop.permute.xlu0 %1502
  %1504 = vrot.lane.b32.xlu0 %v1293, 12
  %v1505 = vpop.permute.xlu0 %1504
  %1506 = vrot.lane.b32.xlu0 %v1294, 12
  %v1507 = vpop.permute.xlu0 %1506
  %1508 = vrot.lane.b32.xlu0 %v1295, 12
  %v1509 = vpop.permute.xlu0 %1508
  %1510 = vrot.lane.b32.xlu0 %v1296, 12
  %v1511 = vpop.permute.xlu0 %1510
  %1512 = vrot.lane.b32.xlu0 %v1297, 12
  %v1513 = vpop.permute.xlu0 %1512
  %1514 = vrot.lane.b32.xlu0 %v1298, 12
  %v1515 = vpop.permute.xlu0 %1514
  %1516 = vrot.lane.b32.xlu0 %v1299, 12
  %v1517 = vpop.permute.xlu0 %1516
  %1518 = vrot.lane.b32.xlu0 %v1300, 12
  %v1519 = vpop.permute.xlu0 %1518
  %1520 = vrot.lane.b32.xlu0 %v1301, 12
  %v1521 = vpop.permute.xlu0 %1520
  %1522 = vrot.lane.b32.xlu0 %v1302, 12
  %v1523 = vpop.permute.xlu0 %1522
  %1524 = vrot.lane.b32.xlu0 %v1303, 12
  %v1525 = vpop.permute.xlu0 %1524
  %1526 = vrot.lane.b32.xlu0 %v1304, 12
  %v1527 = vpop.permute.xlu0 %1526
  %1528 = vrot.lane.b32.xlu0 %v1305, 12
  %v1529 = vpop.permute.xlu0 %1528
  %1530 = vrot.lane.b32.xlu0 %v1306, 12
  %v1531 = vpop.permute.xlu0 %1530
  %1532 = vrot.lane.b32.xlu0 %v1307, 12
  %v1533 = vpop.permute.xlu0 %1532
  %1534 = vrot.lane.b32.xlu0 %v1308, 12
  %v1535 = vpop.permute.xlu0 %1534
  %1536 = vrot.lane.b32.xlu0 %v1309, 12
  %v1537 = vpop.permute.xlu0 %1536
  %1538 = vrot.lane.b32.xlu0 %v1310, 12
  %v1539 = vpop.permute.xlu0 %1538
  %1540 = vrot.lane.b32.xlu0 %v1311, 12
  %v1541 = vpop.permute.xlu0 %1540
  %1542 = vrot.lane.b32.xlu0 %v1312, 12
  %v1543 = vpop.permute.xlu0 %1542
  %1544 = vrot.lane.b32.xlu0 %v1313, 12
  %v1545 = vpop.permute.xlu0 %1544
  %1546 = vrot.lane.b32.xlu0 %v1314, 12
  %v1547 = vpop.permute.xlu0 %1546
  %1548 = vrot.lane.b32.xlu0 %v1315, 12
  %v1549 = vpop.permute.xlu0 %1548
  %1550 = vrot.lane.b32.xlu0 %v1316, 12
  %v1551 = vpop.permute.xlu0 %1550
  %1552 = vrot.lane.b32.xlu0 %v1317, 12
  %v1553 = vpop.permute.xlu0 %1552
  %1554 = vrot.lane.b32.xlu0 %v1318, 12
  %v1555 = vpop.permute.xlu0 %1554
  %1556 = vrot.lane.b32.xlu0 %v1319, 12
  %v1557 = vpop.permute.xlu0 %1556
  %1558 = vrot.lane.b32.xlu0 %v1320, 12
  %v1559 = vpop.permute.xlu0 %1558
  %1560 = vrot.lane.b32.xlu0 %v1321, 12
  %v1561 = vpop.permute.xlu0 %1560
  %1562 = vrot.lane.b32.xlu0 %v1322, 12
  %v1563 = vpop.permute.xlu0 %1562
  %1564 = vrot.lane.b32.xlu0 %v1323, 12
  %v1565 = vpop.permute.xlu0 %1564
  %1566 = vrot.lane.b32.xlu0 %v1324, 12
  %v1567 = vpop.permute.xlu0 %1566
  %vm1649 = vcmask 130144
  %1650 = vst.msk [vmem:[#allocation3] sm:$0xff] %vm1649, %v1407
  %1651 = vst.msk [vmem:[#allocation3 + $0x8] sm:$0xff] %vm1649, %v1409
  %1652 = vst.msk [vmem:[#allocation3 + $0x10] sm:$0xff] %vm1649, %v1411
  %1653 = vst.msk [vmem:[#allocation3 + $0x18] sm:$0xff] %vm1649, %v1413
  %1654 = vst.msk [vmem:[#allocation3 + $0x20] sm:$0xff] %vm1649, %v1415
  %1655 = vst.msk [vmem:[#allocation3 + $0x28] sm:$0xff] %vm1649, %v1417
  %1656 = vst.msk [vmem:[#allocation3 + $0x30] sm:$0xff] %vm1649, %v1419
  %1657 = vst.msk [vmem:[#allocation3 + $0x38] sm:$0xff] %vm1649, %v1421
  %1658 = vst.msk [vmem:[#allocation3 + $0x40] sm:$0xff] %vm1649, %v1423
  %1659 = vst.msk [vmem:[#allocation3 + $0x48] sm:$0xff] %vm1649, %v1425
  %1660 = vst.msk [vmem:[#allocation3 + $0x50] sm:$0xff] %vm1649, %v1427
  %1661 = vst.msk [vmem:[#allocation3 + $0x58] sm:$0xff] %vm1649, %v1429
  %1662 = vst.msk [vmem:[#allocation3 + $0x60] sm:$0xff] %vm1649, %v1431
  %1663 = vst.msk [vmem:[#allocation3 + $0x68] sm:$0xff] %vm1649, %v1433
  %1664 = vst.msk [vmem:[#allocation3 + $0x70] sm:$0xff] %vm1649, %v1435
  %1665 = vst.msk [vmem:[#allocation3 + $0x78] sm:$0xff] %vm1649, %v1437
  %1666 = vst.msk [vmem:[#allocation3 + $0x80] sm:$0xff] %vm1649, %v1439
  %1667 = vst.msk [vmem:[#allocation3 + $0x88] sm:$0xff] %vm1649, %v1441
  %1668 = vst.msk [vmem:[#allocation3 + $0x90] sm:$0xff] %vm1649, %v1443
  %1669 = vst.msk [vmem:[#allocation3 + $0x98] sm:$0xff] %vm1649, %v1445
  %1670 = vst.msk [vmem:[#allocation3 + $0xa0] sm:$0xff] %vm1649, %v1447
  %1671 = vst.msk [vmem:[#allocation3 + $0xa8] sm:$0xff] %vm1649, %v1449
  %1672 = vst.msk [vmem:[#allocation3 + $0xb0] sm:$0xff] %vm1649, %v1451
  %1673 = vst.msk [vmem:[#allocation3 + $0xb8] sm:$0xff] %vm1649, %v1453
  %1674 = vst.msk [vmem:[#allocation3 + $0xc0] sm:$0xff] %vm1649, %v1455
  %1675 = vst.msk [vmem:[#allocation3 + $0xc8] sm:$0xff] %vm1649, %v1457
  %1676 = vst.msk [vmem:[#allocation3 + $0xd0] sm:$0xff] %vm1649, %v1459
  %1677 = vst.msk [vmem:[#allocation3 + $0xd8] sm:$0xff] %vm1649, %v1461
  %1678 = vst.msk [vmem:[#allocation3 + $0xe0] sm:$0xff] %vm1649, %v1463
  %1679 = vst.msk [vmem:[#allocation3 + $0xe8] sm:$0xff] %vm1649, %v1465
  %1680 = vst.msk [vmem:[#allocation3 + $0xf0] sm:$0xff] %vm1649, %v1467
  %1681 = vst.msk [vmem:[#allocation3 + $0xf8] sm:$0xff] %vm1649, %v1469
  %1682 = vst.msk [vmem:[#allocation3 + $0x100] sm:$0xff] %vm1649, %v1471
  %1683 = vst.msk [vmem:[#allocation3 + $0x108] sm:$0xff] %vm1649, %v1473
  %1684 = vst.msk [vmem:[#allocation3 + $0x110] sm:$0xff] %vm1649, %v1475
  %1685 = vst.msk [vmem:[#allocation3 + $0x118] sm:$0xff] %vm1649, %v1477
  %1686 = vst.msk [vmem:[#allocation3 + $0x120] sm:$0xff] %vm1649, %v1479
  %1687 = vst.msk [vmem:[#allocation3 + $0x128] sm:$0xff] %vm1649, %v1481
  %1688 = vst.msk [vmem:[#allocation3 + $0x130] sm:$0xff] %vm1649, %v1483
  %1689 = vst.msk [vmem:[#allocation3 + $0x138] sm:$0xff] %vm1649, %v1485
  %1690 = vst.msk [vmem:[#allocation3 + $0x140] sm:$0xff] %vm1649, %v1487
  %1691 = vst.msk [vmem:[#allocation3 + $0x148] sm:$0xff] %vm1649, %v1489
  %1692 = vst.msk [vmem:[#allocation3 + $0x150] sm:$0xff] %vm1649, %v1491
  %1693 = vst.msk [vmem:[#allocation3 + $0x158] sm:$0xff] %vm1649, %v1493
  %1694 = vst.msk [vmem:[#allocation3 + $0x160] sm:$0xff] %vm1649, %v1495
  %1695 = vst.msk [vmem:[#allocation3 + $0x168] sm:$0xff] %vm1649, %v1497
  %1696 = vst.msk [vmem:[#allocation3 + $0x170] sm:$0xff] %vm1649, %v1499
  %1697 = vst.msk [vmem:[#allocation3 + $0x178] sm:$0xff] %vm1649, %v1501
  %1698 = vst.msk [vmem:[#allocation3 + $0x180] sm:$0xff] %vm1649, %v1503
  %1699 = vst.msk [vmem:[#allocation3 + $0x188] sm:$0xff] %vm1649, %v1505
  %1700 = vst.msk [vmem:[#allocation3 + $0x190] sm:$0xff] %vm1649, %v1507
  %1701 = vst.msk [vmem:[#allocation3 + $0x198] sm:$0xff] %vm1649, %v1509
  %1702 = vst.msk [vmem:[#allocation3 + $0x1a0] sm:$0xff] %vm1649, %v1511
  %1703 = vst.msk [vmem:[#allocation3 + $0x1a8] sm:$0xff] %vm1649, %v1513
  %1704 = vst.msk [vmem:[#allocation3 + $0x1b0] sm:$0xff] %vm1649, %v1515
  %1705 = vst.msk [vmem:[#allocation3 + $0x1b8] sm:$0xff] %vm1649, %v1517
  %1706 = vst.msk [vmem:[#allocation3 + $0x1c0] sm:$0xff] %vm1649, %v1519
  %1707 = vst.msk [vmem:[#allocation3 + $0x1c8] sm:$0xff] %vm1649, %v1521
  %1708 = vst.msk [vmem:[#allocation3 + $0x1d0] sm:$0xff] %vm1649, %v1523
  %1709 = vst.msk [vmem:[#allocation3 + $0x1d8] sm:$0xff] %vm1649, %v1525
  %1710 = vst.msk [vmem:[#allocation3 + $0x1e0] sm:$0xff] %vm1649, %v1527
  %1711 = vst.msk [vmem:[#allocation3 + $0x1e8] sm:$0xff] %vm1649, %v1529
  %1712 = vst.msk [vmem:[#allocation3 + $0x1f0] sm:$0xff] %vm1649, %v1531
  %1713 = vst.msk [vmem:[#allocation3 + $0x1f8] sm:$0xff] %vm1649, %v1533
  %1714 = vst.msk [vmem:[#allocation3 + $0x200] sm:$0xff] %vm1649, %v1535
  %1715 = vst.msk [vmem:[#allocation3 + $0x208] sm:$0xff] %vm1649, %v1537
  %1716 = vst.msk [vmem:[#allocation3 + $0x210] sm:$0xff] %vm1649, %v1539
  %1717 = vst.msk [vmem:[#allocation3 + $0x218] sm:$0xff] %vm1649, %v1541
  %1718 = vst.msk [vmem:[#allocation3 + $0x220] sm:$0xff] %vm1649, %v1543
  %1719 = vst.msk [vmem:[#allocation3 + $0x228] sm:$0xff] %vm1649, %v1545
  %1720 = vst.msk [vmem:[#allocation3 + $0x230] sm:$0xff] %vm1649, %v1547
  %1721 = vst.msk [vmem:[#allocation3 + $0x238] sm:$0xff] %vm1649, %v1549
  %1722 = vst.msk [vmem:[#allocation3 + $0x240] sm:$0xff] %vm1649, %v1551
  %1723 = vst.msk [vmem:[#allocation3 + $0x248] sm:$0xff] %vm1649, %v1553
  %1724 = vst.msk [vmem:[#allocation3 + $0x250] sm:$0xff] %vm1649, %v1555
  %1725 = vst.msk [vmem:[#allocation3 + $0x258] sm:$0xff] %vm1649, %v1557
  %1726 = vst.msk [vmem:[#allocation3 + $0x260] sm:$0xff] %vm1649, %v1559
  %1727 = vst.msk [vmem:[#allocation3 + $0x268] sm:$0xff] %vm1649, %v1561
  %1728 = vst.msk [vmem:[#allocation3 + $0x270] sm:$0xff] %vm1649, %v1563
  %1729 = vst.msk [vmem:[#allocation3 + $0x278] sm:$0xff] %vm1649, %v1565
  %1730 = vst.msk [vmem:[#allocation3 + $0x280] sm:$0xff] %vm1649, %v1567
  %v1731 = vld [vmem:[%s0 + $0x18] sm:$0xff]
  %v1732 = vld [vmem:[%s0 + $0x20] sm:$0xff]
  %v1733 = vld [vmem:[%s0 + $0x28] sm:$0xff]
  %v1734 = vld [vmem:[%s0 + $0x30] sm:$0xff]
  %v1735 = vld [vmem:[%s0 + $0x38] sm:$0xff]
  %v1736 = vld [vmem:[%s0 + $0x40] sm:$0xff]
  %v1737 = vld [vmem:[%s0 + $0x48] sm:$0xff]
  %v1738 = vld [vmem:[%s0 + $0x50] sm:$0xff]
  %v1739 = vld [vmem:[%s0 + $0x58] sm:$0xff]
  %v1740 = vld [vmem:[%s0 + $0x60] sm:$0xff]
  %v1741 = vld [vmem:[%s0 + $0x68] sm:$0xff]
  %v1742 = vld [vmem:[%s0 + $0x70] sm:$0xff]
  %v1743 = vld [vmem:[%s0 + $0x78] sm:$0xff]
  %v1744 = vld [vmem:[%s0 + $0x80] sm:$0xff]
  %v1745 = vld [vmem:[%s0 + $0x88] sm:$0xff]
  %v1746 = vld [vmem:[%s0 + $0x90] sm:$0xff]
  %v1747 = vld [vmem:[%s0 + $0x98] sm:$0xff]
  %v1748 = vld [vmem:[%s0 + $0xa0] sm:$0xff]
  %v1749 = vld [vmem:[%s0 + $0xa8] sm:$0xff]
  %v1750 = vld [vmem:[%s0 + $0xb0] sm:$0xff]
  %v1751 = vld [vmem:[%s0 + $0xb8] sm:$0xff]
  %v1752 = vld [vmem:[%s0 + $0xc0] sm:$0xff]
  %v1753 = vld [vmem:[%s0 + $0xc8] sm:$0xff]
  %v1754 = vld [vmem:[%s0 + $0xd0] sm:$0xff]
  %v1755 = vld [vmem:[%s0 + $0xd8] sm:$0xff]
  %v1756 = vld [vmem:[%s0 + $0xe0] sm:$0xff]
  %v1757 = vld [vmem:[%s0 + $0xe8] sm:$0xff]
  %v1758 = vld [vmem:[%s0 + $0xf0] sm:$0xff]
  %v1759 = vld [vmem:[%s0 + $0xf8] sm:$0xff]
  %v1760 = vld [vmem:[%s0 + $0x100] sm:$0xff]
  %v1761 = vld [vmem:[%s0 + $0x108] sm:$0xff]
  %v1762 = vld [vmem:[%s0 + $0x110] sm:$0xff]
  %v1763 = vld [vmem:[%s0 + $0x118] sm:$0xff]
  %v1764 = vld [vmem:[%s0 + $0x120] sm:$0xff]
  %v1765 = vld [vmem:[%s0 + $0x128] sm:$0xff]
  %v1766 = vld [vmem:[%s0 + $0x130] sm:$0xff]
  %v1767 = vld [vmem:[%s0 + $0x138] sm:$0xff]
  %v1768 = vld [vmem:[%s0 + $0x140] sm:$0xff]
  %v1769 = vld [vmem:[%s0 + $0x148] sm:$0xff]
  %v1770 = vld [vmem:[%s0 + $0x150] sm:$0xff]
  %v1771 = vld [vmem:[%s0 + $0x158] sm:$0xff]
  %v1772 = vld [vmem:[%s0 + $0x160] sm:$0xff]
  %v1773 = vld [vmem:[%s0 + $0x168] sm:$0xff]
  %v1774 = vld [vmem:[%s0 + $0x170] sm:$0xff]
  %v1775 = vld [vmem:[%s0 + $0x178] sm:$0xff]
  %v1776 = vld [vmem:[%s0 + $0x180] sm:$0xff]
  %v1777 = vld [vmem:[%s0 + $0x188] sm:$0xff]
  %v1778 = vld [vmem:[%s0 + $0x190] sm:$0xff]
  %v1779 = vld [vmem:[%s0 + $0x198] sm:$0xff]
  %v1780 = vld [vmem:[%s0 + $0x1a0] sm:$0xff]
  %v1781 = vld [vmem:[%s0 + $0x1a8] sm:$0xff]
  %v1782 = vld [vmem:[%s0 + $0x1b0] sm:$0xff]
  %v1783 = vld [vmem:[%s0 + $0x1b8] sm:$0xff]
  %v1784 = vld [vmem:[%s0 + $0x1c0] sm:$0xff]
  %v1785 = vld [vmem:[%s0 + $0x1c8] sm:$0xff]
  %v1786 = vld [vmem:[%s0 + $0x1d0] sm:$0xff]
  %v1787 = vld [vmem:[%s0 + $0x1d8] sm:$0xff]
  %v1788 = vld [vmem:[%s0 + $0x1e0] sm:$0xff]
  %v1789 = vld [vmem:[%s0 + $0x1e8] sm:$0xff]
  %v1790 = vld [vmem:[%s0 + $0x1f0] sm:$0xff]
  %v1791 = vld [vmem:[%s0 + $0x1f8] sm:$0xff]
  %v1792 = vld [vmem:[%s0 + $0x200] sm:$0xff]
  %v1793 = vld [vmem:[%s0 + $0x208] sm:$0xff]
  %v1794 = vld [vmem:[%s0 + $0x210] sm:$0xff]
  %v1795 = vld [vmem:[%s0 + $0x218] sm:$0xff]
  %v1796 = vld [vmem:[%s0 + $0x220] sm:$0xff]
  %v1797 = vld [vmem:[%s0 + $0x228] sm:$0xff]
  %v1798 = vld [vmem:[%s0 + $0x230] sm:$0xff]
  %v1799 = vld [vmem:[%s0 + $0x238] sm:$0xff]
  %v1800 = vld [vmem:[%s0 + $0x240] sm:$0xff]
  %v1801 = vld [vmem:[%s0 + $0x248] sm:$0xff]
  %v1802 = vld [vmem:[%s0 + $0x250] sm:$0xff]
  %v1803 = vld [vmem:[%s0 + $0x258] sm:$0xff]
  %v1804 = vld [vmem:[%s0 + $0x260] sm:$0xff]
  %v1805 = vld [vmem:[%s0 + $0x268] sm:$0xff]
  %v1806 = vld [vmem:[%s0 + $0x270] sm:$0xff]
  %v1807 = vld [vmem:[%s0 + $0x278] sm:$0xff]
  %v1808 = vld [vmem:[%s0 + $0x280] sm:$0xff]
  %v1809 = vld [vmem:[%s0 + $0x288] sm:$0xff]
  %v1810 = vld [vmem:[%s0 + $0x290] sm:$0xff]
  %v1811 = vld [vmem:[%s0 + $0x298] sm:$0xff]
  %1893 = vrot.lane.b32.xlu0 %v1731, 16
  %v1894 = vpop.permute.xlu0 %1893
  %1895 = vrot.lane.b32.xlu0 %v1732, 16
  %v1896 = vpop.permute.xlu0 %1895
  %1897 = vrot.lane.b32.xlu0 %v1733, 16
  %v1898 = vpop.permute.xlu0 %1897
  %1899 = vrot.lane.b32.xlu0 %v1734, 16
  %v1900 = vpop.permute.xlu0 %1899
  %1901 = vrot.lane.b32.xlu0 %v1735, 16
  %v1902 = vpop.permute.xlu0 %1901
  %1903 = vrot.lane.b32.xlu0 %v1736, 16
  %v1904 = vpop.permute.xlu0 %1903
  %1905 = vrot.lane.b32.xlu0 %v1737, 16
  %v1906 = vpop.permute.xlu0 %1905
  %1907 = vrot.lane.b32.xlu0 %v1738, 16
  %v1908 = vpop.permute.xlu0 %1907
  %1909 = vrot.lane.b32.xlu0 %v1739, 16
  %v1910 = vpop.permute.xlu0 %1909
  %1911 = vrot.lane.b32.xlu0 %v1740, 16
  %v1912 = vpop.permute.xlu0 %1911
  %1913 = vrot.lane.b32.xlu0 %v1741, 16
  %v1914 = vpop.permute.xlu0 %1913
  %1915 = vrot.lane.b32.xlu0 %v1742, 16
  %v1916 = vpop.permute.xlu0 %1915
  %1917 = vrot.lane.b32.xlu0 %v1743, 16
  %v1918 = vpop.permute.xlu0 %1917
  %1919 = vrot.lane.b32.xlu0 %v1744, 16
  %v1920 = vpop.permute.xlu0 %1919
  %1921 = vrot.lane.b32.xlu0 %v1745, 16
  %v1922 = vpop.permute.xlu0 %1921
  %1923 = vrot.lane.b32.xlu0 %v1746, 16
  %v1924 = vpop.permute.xlu0 %1923
  %1925 = vrot.lane.b32.xlu0 %v1747, 16
  %v1926 = vpop.permute.xlu0 %1925
  %1927 = vrot.lane.b32.xlu0 %v1748, 16
  %v1928 = vpop.permute.xlu0 %1927
  %1929 = vrot.lane.b32.xlu0 %v1749, 16
  %v1930 = vpop.permute.xlu0 %1929
  %1931 = vrot.lane.b32.xlu0 %v1750, 16
  %v1932 = vpop.permute.xlu0 %1931
  %1933 = vrot.lane.b32.xlu0 %v1751, 16
  %v1934 = vpop.permute.xlu0 %1933
  %1935 = vrot.lane.b32.xlu0 %v1752, 16
  %v1936 = vpop.permute.xlu0 %1935
  %1937 = vrot.lane.b32.xlu0 %v1753, 16
  %v1938 = vpop.permute.xlu0 %1937
  %1939 = vrot.lane.b32.xlu0 %v1754, 16
  %v1940 = vpop.permute.xlu0 %1939
  %1941 = vrot.lane.b32.xlu0 %v1755, 16
  %v1942 = vpop.permute.xlu0 %1941
  %1943 = vrot.lane.b32.xlu0 %v1756, 16
  %v1944 = vpop.permute.xlu0 %1943
  %1945 = vrot.lane.b32.xlu0 %v1757, 16
  %v1946 = vpop.permute.xlu0 %1945
  %1947 = vrot.lane.b32.xlu0 %v1758, 16
  %v1948 = vpop.permute.xlu0 %1947
  %1949 = vrot.lane.b32.xlu0 %v1759, 16
  %v1950 = vpop.permute.xlu0 %1949
  %1951 = vrot.lane.b32.xlu0 %v1760, 16
  %v1952 = vpop.permute.xlu0 %1951
  %1953 = vrot.lane.b32.xlu0 %v1761, 16
  %v1954 = vpop.permute.xlu0 %1953
  %1955 = vrot.lane.b32.xlu0 %v1762, 16
  %v1956 = vpop.permute.xlu0 %1955
  %1957 = vrot.lane.b32.xlu0 %v1763, 16
  %v1958 = vpop.permute.xlu0 %1957
  %1959 = vrot.lane.b32.xlu0 %v1764, 16
  %v1960 = vpop.permute.xlu0 %1959
  %1961 = vrot.lane.b32.xlu0 %v1765, 16
  %v1962 = vpop.permute.xlu0 %1961
  %1963 = vrot.lane.b32.xlu0 %v1766, 16
  %v1964 = vpop.permute.xlu0 %1963
  %1965 = vrot.lane.b32.xlu0 %v1767, 16
  %v1966 = vpop.permute.xlu0 %1965
  %1967 = vrot.lane.b32.xlu0 %v1768, 16
  %v1968 = vpop.permute.xlu0 %1967
  %1969 = vrot.lane.b32.xlu0 %v1769, 16
  %v1970 = vpop.permute.xlu0 %1969
  %1971 = vrot.lane.b32.xlu0 %v1770, 16
  %v1972 = vpop.permute.xlu0 %1971
  %1973 = vrot.lane.b32.xlu0 %v1771, 16
  %v1974 = vpop.permute.xlu0 %1973
  %1975 = vrot.lane.b32.xlu0 %v1772, 16
  %v1976 = vpop.permute.xlu0 %1975
  %1977 = vrot.lane.b32.xlu0 %v1773, 16
  %v1978 = vpop.permute.xlu0 %1977
  %1979 = vrot.lane.b32.xlu0 %v1774, 16
  %v1980 = vpop.permute.xlu0 %1979
  %1981 = vrot.lane.b32.xlu0 %v1775, 16
  %v1982 = vpop.permute.xlu0 %1981
  %1983 = vrot.lane.b32.xlu0 %v1776, 16
  %v1984 = vpop.permute.xlu0 %1983
  %1985 = vrot.lane.b32.xlu0 %v1777, 16
  %v1986 = vpop.permute.xlu0 %1985
  %1987 = vrot.lane.b32.xlu0 %v1778, 16
  %v1988 = vpop.permute.xlu0 %1987
  %1989 = vrot.lane.b32.xlu0 %v1779, 16
  %v1990 = vpop.permute.xlu0 %1989
  %1991 = vrot.lane.b32.xlu0 %v1780, 16
  %v1992 = vpop.permute.xlu0 %1991
  %1993 = vrot.lane.b32.xlu0 %v1781, 16
  %v1994 = vpop.permute.xlu0 %1993
  %1995 = vrot.lane.b32.xlu0 %v1782, 16
  %v1996 = vpop.permute.xlu0 %1995
  %1997 = vrot.lane.b32.xlu0 %v1783, 16
  %v1998 = vpop.permute.xlu0 %1997
  %1999 = vrot.lane.b32.xlu0 %v1784, 16
  %v2000 = vpop.permute.xlu0 %1999
  %2001 = vrot.lane.b32.xlu0 %v1785, 16
  %v2002 = vpop.permute.xlu0 %2001
  %2003 = vrot.lane.b32.xlu0 %v1786, 16
  %v2004 = vpop.permute.xlu0 %2003
  %2005 = vrot.lane.b32.xlu0 %v1787, 16
  %v2006 = vpop.permute.xlu0 %2005
  %2007 = vrot.lane.b32.xlu0 %v1788, 16
  %v2008 = vpop.permute.xlu0 %2007
  %2009 = vrot.lane.b32.xlu0 %v1789, 16
  %v2010 = vpop.permute.xlu0 %2009
  %2011 = vrot.lane.b32.xlu0 %v1790, 16
  %v2012 = vpop.permute.xlu0 %2011
  %2013 = vrot.lane.b32.xlu0 %v1791, 16
  %v2014 = vpop.permute.xlu0 %2013
  %2015 = vrot.lane.b32.xlu0 %v1792, 16
  %v2016 = vpop.permute.xlu0 %2015
  %2017 = vrot.lane.b32.xlu0 %v1793, 16
  %v2018 = vpop.permute.xlu0 %2017
  %2019 = vrot.lane.b32.xlu0 %v1794, 16
  %v2020 = vpop.permute.xlu0 %2019
  %2021 = vrot.lane.b32.xlu0 %v1795, 16
  %v2022 = vpop.permute.xlu0 %2021
  %2023 = vrot.lane.b32.xlu0 %v1796, 16
  %v2024 = vpop.permute.xlu0 %2023
  %2025 = vrot.lane.b32.xlu0 %v1797, 16
  %v2026 = vpop.permute.xlu0 %2025
  %2027 = vrot.lane.b32.xlu0 %v1798, 16
  %v2028 = vpop.permute.xlu0 %2027
  %2029 = vrot.lane.b32.xlu0 %v1799, 16
  %v2030 = vpop.permute.xlu0 %2029
  %2031 = vrot.lane.b32.xlu0 %v1800, 16
  %v2032 = vpop.permute.xlu0 %2031
  %2033 = vrot.lane.b32.xlu0 %v1801, 16
  %v2034 = vpop.permute.xlu0 %2033
  %2035 = vrot.lane.b32.xlu0 %v1802, 16
  %v2036 = vpop.permute.xlu0 %2035
  %2037 = vrot.lane.b32.xlu0 %v1803, 16
  %v2038 = vpop.permute.xlu0 %2037
  %2039 = vrot.lane.b32.xlu0 %v1804, 16
  %v2040 = vpop.permute.xlu0 %2039
  %2041 = vrot.lane.b32.xlu0 %v1805, 16
  %v2042 = vpop.permute.xlu0 %2041
  %2043 = vrot.lane.b32.xlu0 %v1806, 16
  %v2044 = vpop.permute.xlu0 %2043
  %2045 = vrot.lane.b32.xlu0 %v1807, 16
  %v2046 = vpop.permute.xlu0 %2045
  %2047 = vrot.lane.b32.xlu0 %v1808, 16
  %v2048 = vpop.permute.xlu0 %2047
  %2049 = vrot.lane.b32.xlu0 %v1809, 16
  %v2050 = vpop.permute.xlu0 %2049
  %2051 = vrot.lane.b32.xlu0 %v1810, 16
  %v2052 = vpop.permute.xlu0 %2051
  %2053 = vrot.lane.b32.xlu0 %v1811, 16
  %v2054 = vpop.permute.xlu0 %2053
  %vm2136 = vcmask 162944
  %2137 = vst.msk [vmem:[#allocation3] sm:$0xff] %vm2136, %v1894
  %2138 = vst.msk [vmem:[#allocation3 + $0x8] sm:$0xff] %vm2136, %v1896
  %2139 = vst.msk [vmem:[#allocation3 + $0x10] sm:$0xff] %vm2136, %v1898
  %2140 = vst.msk [vmem:[#allocation3 + $0x18] sm:$0xff] %vm2136, %v1900
  %2141 = vst.msk [vmem:[#allocation3 + $0x20] sm:$0xff] %vm2136, %v1902
  %2142 = vst.msk [vmem:[#allocation3 + $0x28] sm:$0xff] %vm2136, %v1904
  %2143 = vst.msk [vmem:[#allocation3 + $0x30] sm:$0xff] %vm2136, %v1906
  %2144 = vst.msk [vmem:[#allocation3 + $0x38] sm:$0xff] %vm2136, %v1908
  %2145 = vst.msk [vmem:[#allocation3 + $0x40] sm:$0xff] %vm2136, %v1910
  %2146 = vst.msk [vmem:[#allocation3 + $0x48] sm:$0xff] %vm2136, %v1912
  %2147 = vst.msk [vmem:[#allocation3 + $0x50] sm:$0xff] %vm2136, %v1914
  %2148 = vst.msk [vmem:[#allocation3 + $0x58] sm:$0xff] %vm2136, %v1916
  %2149 = vst.msk [vmem:[#allocation3 + $0x60] sm:$0xff] %vm2136, %v1918
  %2150 = vst.msk [vmem:[#allocation3 + $0x68] sm:$0xff] %vm2136, %v1920
  %2151 = vst.msk [vmem:[#allocation3 + $0x70] sm:$0xff] %vm2136, %v1922
  %2152 = vst.msk [vmem:[#allocation3 + $0x78] sm:$0xff] %vm2136, %v1924
  %2153 = vst.msk [vmem:[#allocation3 + $0x80] sm:$0xff] %vm2136, %v1926
  %2154 = vst.msk [vmem:[#allocation3 + $0x88] sm:$0xff] %vm2136, %v1928
  %2155 = vst.msk [vmem:[#allocation3 + $0x90] sm:$0xff] %vm2136, %v1930
  %2156 = vst.msk [vmem:[#allocation3 + $0x98] sm:$0xff] %vm2136, %v1932
  %2157 = vst.msk [vmem:[#allocation3 + $0xa0] sm:$0xff] %vm2136, %v1934
  %2158 = vst.msk [vmem:[#allocation3 + $0xa8] sm:$0xff] %vm2136, %v1936
  %2159 = vst.msk [vmem:[#allocation3 + $0xb0] sm:$0xff] %vm2136, %v1938
  %2160 = vst.msk [vmem:[#allocation3 + $0xb8] sm:$0xff] %vm2136, %v1940
  %2161 = vst.msk [vmem:[#allocation3 + $0xc0] sm:$0xff] %vm2136, %v1942
  %2162 = vst.msk [vmem:[#allocation3 + $0xc8] sm:$0xff] %vm2136, %v1944
  %2163 = vst.msk [vmem:[#allocation3 + $0xd0] sm:$0xff] %vm2136, %v1946
  %2164 = vst.msk [vmem:[#allocation3 + $0xd8] sm:$0xff] %vm2136, %v1948
  %2165 = vst.msk [vmem:[#allocation3 + $0xe0] sm:$0xff] %vm2136, %v1950
  %2166 = vst.msk [vmem:[#allocation3 + $0xe8] sm:$0xff] %vm2136, %v1952
  %2167 = vst.msk [vmem:[#allocation3 + $0xf0] sm:$0xff] %vm2136, %v1954
  %2168 = vst.msk [vmem:[#allocation3 + $0xf8] sm:$0xff] %vm2136, %v1956
  %2169 = vst.msk [vmem:[#allocation3 + $0x100] sm:$0xff] %vm2136, %v1958
  %2170 = vst.msk [vmem:[#allocation3 + $0x108] sm:$0xff] %vm2136, %v1960
  %2171 = vst.msk [vmem:[#allocation3 + $0x110] sm:$0xff] %vm2136, %v1962
  %2172 = vst.msk [vmem:[#allocation3 + $0x118] sm:$0xff] %vm2136, %v1964
  %2173 = vst.msk [vmem:[#allocation3 + $0x120] sm:$0xff] %vm2136, %v1966
  %2174 = vst.msk [vmem:[#allocation3 + $0x128] sm:$0xff] %vm2136, %v1968
  %2175 = vst.msk [vmem:[#allocation3 + $0x130] sm:$0xff] %vm2136, %v1970
  %2176 = vst.msk [vmem:[#allocation3 + $0x138] sm:$0xff] %vm2136, %v1972
  %2177 = vst.msk [vmem:[#allocation3 + $0x140] sm:$0xff] %vm2136, %v1974
  %2178 = vst.msk [vmem:[#allocation3 + $0x148] sm:$0xff] %vm2136, %v1976
  %2179 = vst.msk [vmem:[#allocation3 + $0x150] sm:$0xff] %vm2136, %v1978
  %2180 = vst.msk [vmem:[#allocation3 + $0x158] sm:$0xff] %vm2136, %v1980
  %2181 = vst.msk [vmem:[#allocation3 + $0x160] sm:$0xff] %vm2136, %v1982
  %2182 = vst.msk [vmem:[#allocation3 + $0x168] sm:$0xff] %vm2136, %v1984
  %2183 = vst.msk [vmem:[#allocation3 + $0x170] sm:$0xff] %vm2136, %v1986
  %2184 = vst.msk [vmem:[#allocation3 + $0x178] sm:$0xff] %vm2136, %v1988
  %2185 = vst.msk [vmem:[#allocation3 + $0x180] sm:$0xff] %vm2136, %v1990
  %2186 = vst.msk [vmem:[#allocation3 + $0x188] sm:$0xff] %vm2136, %v1992
  %2187 = vst.msk [vmem:[#allocation3 + $0x190] sm:$0xff] %vm2136, %v1994
  %2188 = vst.msk [vmem:[#allocation3 + $0x198] sm:$0xff] %vm2136, %v1996
  %2189 = vst.msk [vmem:[#allocation3 + $0x1a0] sm:$0xff] %vm2136, %v1998
  %2190 = vst.msk [vmem:[#allocation3 + $0x1a8] sm:$0xff] %vm2136, %v2000
  %2191 = vst.msk [vmem:[#allocation3 + $0x1b0] sm:$0xff] %vm2136, %v2002
  %2192 = vst.msk [vmem:[#allocation3 + $0x1b8] sm:$0xff] %vm2136, %v2004
  %2193 = vst.msk [vmem:[#allocation3 + $0x1c0] sm:$0xff] %vm2136, %v2006
  %2194 = vst.msk [vmem:[#allocation3 + $0x1c8] sm:$0xff] %vm2136, %v2008
  %2195 = vst.msk [vmem:[#allocation3 + $0x1d0] sm:$0xff] %vm2136, %v2010
  %2196 = vst.msk [vmem:[#allocation3 + $0x1d8] sm:$0xff] %vm2136, %v2012
  %2197 = vst.msk [vmem:[#allocation3 + $0x1e0] sm:$0xff] %vm2136, %v2014
  %2198 = vst.msk [vmem:[#allocation3 + $0x1e8] sm:$0xff] %vm2136, %v2016
  %2199 = vst.msk [vmem:[#allocation3 + $0x1f0] sm:$0xff] %vm2136, %v2018
  %2200 = vst.msk [vmem:[#allocation3 + $0x1f8] sm:$0xff] %vm2136, %v2020
  %2201 = vst.msk [vmem:[#allocation3 + $0x200] sm:$0xff] %vm2136, %v2022
  %2202 = vst.msk [vmem:[#allocation3 + $0x208] sm:$0xff] %vm2136, %v2024
  %2203 = vst.msk [vmem:[#allocation3 + $0x210] sm:$0xff] %vm2136, %v2026
  %2204 = vst.msk [vmem:[#allocation3 + $0x218] sm:$0xff] %vm2136, %v2028
  %2205 = vst.msk [vmem:[#allocation3 + $0x220] sm:$0xff] %vm2136, %v2030
  %2206 = vst.msk [vmem:[#allocation3 + $0x228] sm:$0xff] %vm2136, %v2032
  %2207 = vst.msk [vmem:[#allocation3 + $0x230] sm:$0xff] %vm2136, %v2034
  %2208 = vst.msk [vmem:[#allocation3 + $0x238] sm:$0xff] %vm2136, %v2036
  %2209 = vst.msk [vmem:[#allocation3 + $0x240] sm:$0xff] %vm2136, %v2038
  %2210 = vst.msk [vmem:[#allocation3 + $0x248] sm:$0xff] %vm2136, %v2040
  %2211 = vst.msk [vmem:[#allocation3 + $0x250] sm:$0xff] %vm2136, %v2042
  %2212 = vst.msk [vmem:[#allocation3 + $0x258] sm:$0xff] %vm2136, %v2044
  %2213 = vst.msk [vmem:[#allocation3 + $0x260] sm:$0xff] %vm2136, %v2046
  %2214 = vst.msk [vmem:[#allocation3 + $0x268] sm:$0xff] %vm2136, %v2048
  %2215 = vst.msk [vmem:[#allocation3 + $0x270] sm:$0xff] %vm2136, %v2050
  %2216 = vst.msk [vmem:[#allocation3 + $0x278] sm:$0xff] %vm2136, %v2052
  %2217 = vst.msk [vmem:[#allocation3 + $0x280] sm:$0xff] %vm2136, %v2054
  %v2218 = vld [vmem:[%s0 + $0x19] sm:$0xff]
  %v2219 = vld [vmem:[%s0 + $0x21] sm:$0xff]
  %v2220 = vld [vmem:[%s0 + $0x29] sm:$0xff]
  %v2221 = vld [vmem:[%s0 + $0x31] sm:$0xff]
  %v2222 = vld [vmem:[%s0 + $0x39] sm:$0xff]
  %v2223 = vld [vmem:[%s0 + $0x41] sm:$0xff]
  %v2224 = vld [vmem:[%s0 + $0x49] sm:$0xff]
  %v2225 = vld [vmem:[%s0 + $0x51] sm:$0xff]
  %v2226 = vld [vmem:[%s0 + $0x59] sm:$0xff]
  %v2227 = vld [vmem:[%s0 + $0x61] sm:$0xff]
  %v2228 = vld [vmem:[%s0 + $0x69] sm:$0xff]
  %v2229 = vld [vmem:[%s0 + $0x71] sm:$0xff]
  %v2230 = vld [vmem:[%s0 + $0x79] sm:$0xff]
  %v2231 = vld [vmem:[%s0 + $0x81] sm:$0xff]
  %v2232 = vld [vmem:[%s0 + $0x89] sm:$0xff]
  %v2233 = vld [vmem:[%s0 + $0x91] sm:$0xff]
  %v2234 = vld [vmem:[%s0 + $0x99] sm:$0xff]
  %v2235 = vld [vmem:[%s0 + $0xa1] sm:$0xff]
  %v2236 = vld [vmem:[%s0 + $0xa9] sm:$0xff]
  %v2237 = vld [vmem:[%s0 + $0xb1] sm:$0xff]
  %v2238 = vld [vmem:[%s0 + $0xb9] sm:$0xff]
  %v2239 = vld [vmem:[%s0 + $0xc1] sm:$0xff]
  %v2240 = vld [vmem:[%s0 + $0xc9] sm:$0xff]
  %v2241 = vld [vmem:[%s0 + $0xd1] sm:$0xff]
  %v2242 = vld [vmem:[%s0 + $0xd9] sm:$0xff]
  %v2243 = vld [vmem:[%s0 + $0xe1] sm:$0xff]
  %v2244 = vld [vmem:[%s0 + $0xe9] sm:$0xff]
  %v2245 = vld [vmem:[%s0 + $0xf1] sm:$0xff]
  %v2246 = vld [vmem:[%s0 + $0xf9] sm:$0xff]
  %v2247 = vld [vmem:[%s0 + $0x101] sm:$0xff]
  %v2248 = vld [vmem:[%s0 + $0x109] sm:$0xff]
  %v2249 = vld [vmem:[%s0 + $0x111] sm:$0xff]
  %v2250 = vld [vmem:[%s0 + $0x119] sm:$0xff]
  %v2251 = vld [vmem:[%s0 + $0x121] sm:$0xff]
  %v2252 = vld [vmem:[%s0 + $0x129] sm:$0xff]
  %v2253 = vld [vmem:[%s0 + $0x131] sm:$0xff]
  %v2254 = vld [vmem:[%s0 + $0x139] sm:$0xff]
  %v2255 = vld [vmem:[%s0 + $0x141] sm:$0xff]
  %v2256 = vld [vmem:[%s0 + $0x149] sm:$0xff]
  %v2257 = vld [vmem:[%s0 + $0x151] sm:$0xff]
  %v2258 = vld [vmem:[%s0 + $0x159] sm:$0xff]
  %v2259 = vld [vmem:[%s0 + $0x161] sm:$0xff]
  %v2260 = vld [vmem:[%s0 + $0x169] sm:$0xff]
  %v2261 = vld [vmem:[%s0 + $0x171] sm:$0xff]
  %v2262 = vld [vmem:[%s0 + $0x179] sm:$0xff]
  %v2263 = vld [vmem:[%s0 + $0x181] sm:$0xff]
  %v2264 = vld [vmem:[%s0 + $0x189] sm:$0xff]
  %v2265 = vld [vmem:[%s0 + $0x191] sm:$0xff]
  %v2266 = vld [vmem:[%s0 + $0x199] sm:$0xff]
  %v2267 = vld [vmem:[%s0 + $0x1a1] sm:$0xff]
  %v2268 = vld [vmem:[%s0 + $0x1a9] sm:$0xff]
  %v2269 = vld [vmem:[%s0 + $0x1b1] sm:$0xff]
  %v2270 = vld [vmem:[%s0 + $0x1b9] sm:$0xff]
  %v2271 = vld [vmem:[%s0 + $0x1c1] sm:$0xff]
  %v2272 = vld [vmem:[%s0 + $0x1c9] sm:$0xff]
  %v2273 = vld [vmem:[%s0 + $0x1d1] sm:$0xff]
  %v2274 = vld [vmem:[%s0 + $0x1d9] sm:$0xff]
  %v2275 = vld [vmem:[%s0 + $0x1e1] sm:$0xff]
  %v2276 = vld [vmem:[%s0 + $0x1e9] sm:$0xff]
  %v2277 = vld [vmem:[%s0 + $0x1f1] sm:$0xff]
  %v2278 = vld [vmem:[%s0 + $0x1f9] sm:$0xff]
  %v2279 = vld [vmem:[%s0 + $0x201] sm:$0xff]
  %v2280 = vld [vmem:[%s0 + $0x209] sm:$0xff]
  %v2281 = vld [vmem:[%s0 + $0x211] sm:$0xff]
  %v2282 = vld [vmem:[%s0 + $0x219] sm:$0xff]
  %v2283 = vld [vmem:[%s0 + $0x221] sm:$0xff]
  %v2284 = vld [vmem:[%s0 + $0x229] sm:$0xff]
  %v2285 = vld [vmem:[%s0 + $0x231] sm:$0xff]
  %v2286 = vld [vmem:[%s0 + $0x239] sm:$0xff]
  %v2287 = vld [vmem:[%s0 + $0x241] sm:$0xff]
  %v2288 = vld [vmem:[%s0 + $0x249] sm:$0xff]
  %v2289 = vld [vmem:[%s0 + $0x251] sm:$0xff]
  %v2290 = vld [vmem:[%s0 + $0x259] sm:$0xff]
  %v2291 = vld [vmem:[%s0 + $0x261] sm:$0xff]
  %v2292 = vld [vmem:[%s0 + $0x269] sm:$0xff]
  %v2293 = vld [vmem:[%s0 + $0x271] sm:$0xff]
  %v2294 = vld [vmem:[%s0 + $0x279] sm:$0xff]
  %v2295 = vld [vmem:[%s0 + $0x281] sm:$0xff]
  %v2296 = vld [vmem:[%s0 + $0x289] sm:$0xff]
  %v2297 = vld [vmem:[%s0 + $0x291] sm:$0xff]
  %v2298 = vld [vmem:[%s0 + $0x299] sm:$0xff]
  %2380 = vrot.lane.b32.xlu0 %v2218, 20
  %v2381 = vpop.permute.xlu0 %2380
  %2382 = vrot.lane.b32.xlu0 %v2219, 20
  %v2383 = vpop.permute.xlu0 %2382
  %2384 = vrot.lane.b32.xlu0 %v2220, 20
  %v2385 = vpop.permute.xlu0 %2384
  %2386 = vrot.lane.b32.xlu0 %v2221, 20
  %v2387 = vpop.permute.xlu0 %2386
  %2388 = vrot.lane.b32.xlu0 %v2222, 20
  %v2389 = vpop.permute.xlu0 %2388
  %2390 = vrot.lane.b32.xlu0 %v2223, 20
  %v2391 = vpop.permute.xlu0 %2390
  %2392 = vrot.lane.b32.xlu0 %v2224, 20
  %v2393 = vpop.permute.xlu0 %2392
  %2394 = vrot.lane.b32.xlu0 %v2225, 20
  %v2395 = vpop.permute.xlu0 %2394
  %2396 = vrot.lane.b32.xlu0 %v2226, 20
  %v2397 = vpop.permute.xlu0 %2396
  %2398 = vrot.lane.b32.xlu0 %v2227, 20
  %v2399 = vpop.permute.xlu0 %2398
  %2400 = vrot.lane.b32.xlu0 %v2228, 20
  %v2401 = vpop.permute.xlu0 %2400
  %2402 = vrot.lane.b32.xlu0 %v2229, 20
  %v2403 = vpop.permute.xlu0 %2402
  %2404 = vrot.lane.b32.xlu0 %v2230, 20
  %v2405 = vpop.permute.xlu0 %2404
  %2406 = vrot.lane.b32.xlu0 %v2231, 20
  %v2407 = vpop.permute.xlu0 %2406
  %2408 = vrot.lane.b32.xlu0 %v2232, 20
  %v2409 = vpop.permute.xlu0 %2408
  %2410 = vrot.lane.b32.xlu0 %v2233, 20
  %v2411 = vpop.permute.xlu0 %2410
  %2412 = vrot.lane.b32.xlu0 %v2234, 20
  %v2413 = vpop.permute.xlu0 %2412
  %2414 = vrot.lane.b32.xlu0 %v2235, 20
  %v2415 = vpop.permute.xlu0 %2414
  %2416 = vrot.lane.b32.xlu0 %v2236, 20
  %v2417 = vpop.permute.xlu0 %2416
  %2418 = vrot.lane.b32.xlu0 %v2237, 20
  %v2419 = vpop.permute.xlu0 %2418
  %2420 = vrot.lane.b32.xlu0 %v2238, 20
  %v2421 = vpop.permute.xlu0 %2420
  %2422 = vrot.lane.b32.xlu0 %v2239, 20
  %v2423 = vpop.permute.xlu0 %2422
  %2424 = vrot.lane.b32.xlu0 %v2240, 20
  %v2425 = vpop.permute.xlu0 %2424
  %2426 = vrot.lane.b32.xlu0 %v2241, 20
  %v2427 = vpop.permute.xlu0 %2426
  %2428 = vrot.lane.b32.xlu0 %v2242, 20
  %v2429 = vpop.permute.xlu0 %2428
  %2430 = vrot.lane.b32.xlu0 %v2243, 20
  %v2431 = vpop.permute.xlu0 %2430
  %2432 = vrot.lane.b32.xlu0 %v2244, 20
  %v2433 = vpop.permute.xlu0 %2432
  %2434 = vrot.lane.b32.xlu0 %v2245, 20
  %v2435 = vpop.permute.xlu0 %2434
  %2436 = vrot.lane.b32.xlu0 %v2246, 20
  %v2437 = vpop.permute.xlu0 %2436
  %2438 = vrot.lane.b32.xlu0 %v2247, 20
  %v2439 = vpop.permute.xlu0 %2438
  %2440 = vrot.lane.b32.xlu0 %v2248, 20
  %v2441 = vpop.permute.xlu0 %2440
  %2442 = vrot.lane.b32.xlu0 %v2249, 20
  %v2443 = vpop.permute.xlu0 %2442
  %2444 = vrot.lane.b32.xlu0 %v2250, 20
  %v2445 = vpop.permute.xlu0 %2444
  %2446 = vrot.lane.b32.xlu0 %v2251, 20
  %v2447 = vpop.permute.xlu0 %2446
  %2448 = vrot.lane.b32.xlu0 %v2252, 20
  %v2449 = vpop.permute.xlu0 %2448
  %2450 = vrot.lane.b32.xlu0 %v2253, 20
  %v2451 = vpop.permute.xlu0 %2450
  %2452 = vrot.lane.b32.xlu0 %v2254, 20
  %v2453 = vpop.permute.xlu0 %2452
  %2454 = vrot.lane.b32.xlu0 %v2255, 20
  %v2455 = vpop.permute.xlu0 %2454
  %2456 = vrot.lane.b32.xlu0 %v2256, 20
  %v2457 = vpop.permute.xlu0 %2456
  %2458 = vrot.lane.b32.xlu0 %v2257, 20
  %v2459 = vpop.permute.xlu0 %2458
  %2460 = vrot.lane.b32.xlu0 %v2258, 20
  %v2461 = vpop.permute.xlu0 %2460
  %2462 = vrot.lane.b32.xlu0 %v2259, 20
  %v2463 = vpop.permute.xlu0 %2462
  %2464 = vrot.lane.b32.xlu0 %v2260, 20
  %v2465 = vpop.permute.xlu0 %2464
  %2466 = vrot.lane.b32.xlu0 %v2261, 20
  %v2467 = vpop.permute.xlu0 %2466
  %2468 = vrot.lane.b32.xlu0 %v2262, 20
  %v2469 = vpop.permute.xlu0 %2468
  %2470 = vrot.lane.b32.xlu0 %v2263, 20
  %v2471 = vpop.permute.xlu0 %2470
  %2472 = vrot.lane.b32.xlu0 %v2264, 20
  %v2473 = vpop.permute.xlu0 %2472
  %2474 = vrot.lane.b32.xlu0 %v2265, 20
  %v2475 = vpop.permute.xlu0 %2474
  %2476 = vrot.lane.b32.xlu0 %v2266, 20
  %v2477 = vpop.permute.xlu0 %2476
  %2478 = vrot.lane.b32.xlu0 %v2267, 20
  %v2479 = vpop.permute.xlu0 %2478
  %2480 = vrot.lane.b32.xlu0 %v2268, 20
  %v2481 = vpop.permute.xlu0 %2480
  %2482 = vrot.lane.b32.xlu0 %v2269, 20
  %v2483 = vpop.permute.xlu0 %2482
  %2484 = vrot.lane.b32.xlu0 %v2270, 20
  %v2485 = vpop.permute.xlu0 %2484
  %2486 = vrot.lane.b32.xlu0 %v2271, 20
  %v2487 = vpop.permute.xlu0 %2486
  %2488 = vrot.lane.b32.xlu0 %v2272, 20
  %v2489 = vpop.permute.xlu0 %2488
  %2490 = vrot.lane.b32.xlu0 %v2273, 20
  %v2491 = vpop.permute.xlu0 %2490
  %2492 = vrot.lane.b32.xlu0 %v2274, 20
  %v2493 = vpop.permute.xlu0 %2492
  %2494 = vrot.lane.b32.xlu0 %v2275, 20
  %v2495 = vpop.permute.xlu0 %2494
  %2496 = vrot.lane.b32.xlu0 %v2276, 20
  %v2497 = vpop.permute.xlu0 %2496
  %2498 = vrot.lane.b32.xlu0 %v2277, 20
  %v2499 = vpop.permute.xlu0 %2498
  %2500 = vrot.lane.b32.xlu0 %v2278, 20
  %v2501 = vpop.permute.xlu0 %2500
  %2502 = vrot.lane.b32.xlu0 %v2279, 20
  %v2503 = vpop.permute.xlu0 %2502
  %2504 = vrot.lane.b32.xlu0 %v2280, 20
  %v2505 = vpop.permute.xlu0 %2504
  %2506 = vrot.lane.b32.xlu0 %v2281, 20
  %v2507 = vpop.permute.xlu0 %2506
  %2508 = vrot.lane.b32.xlu0 %v2282, 20
  %v2509 = vpop.permute.xlu0 %2508
  %2510 = vrot.lane.b32.xlu0 %v2283, 20
  %v2511 = vpop.permute.xlu0 %2510
  %2512 = vrot.lane.b32.xlu0 %v2284, 20
  %v2513 = vpop.permute.xlu0 %2512
  %2514 = vrot.lane.b32.xlu0 %v2285, 20
  %v2515 = vpop.permute.xlu0 %2514
  %2516 = vrot.lane.b32.xlu0 %v2286, 20
  %v2517 = vpop.permute.xlu0 %2516
  %2518 = vrot.lane.b32.xlu0 %v2287, 20
  %v2519 = vpop.permute.xlu0 %2518
  %2520 = vrot.lane.b32.xlu0 %v2288, 20
  %v2521 = vpop.permute.xlu0 %2520
  %2522 = vrot.lane.b32.xlu0 %v2289, 20
  %v2523 = vpop.permute.xlu0 %2522
  %2524 = vrot.lane.b32.xlu0 %v2290, 20
  %v2525 = vpop.permute.xlu0 %2524
  %2526 = vrot.lane.b32.xlu0 %v2291, 20
  %v2527 = vpop.permute.xlu0 %2526
  %2528 = vrot.lane.b32.xlu0 %v2292, 20
  %v2529 = vpop.permute.xlu0 %2528
  %2530 = vrot.lane.b32.xlu0 %v2293, 20
  %v2531 = vpop.permute.xlu0 %2530
  %2532 = vrot.lane.b32.xlu0 %v2294, 20
  %v2533 = vpop.permute.xlu0 %2532
  %2534 = vrot.lane.b32.xlu0 %v2295, 20
  %v2535 = vpop.permute.xlu0 %2534
  %2536 = vrot.lane.b32.xlu0 %v2296, 20
  %v2537 = vpop.permute.xlu0 %2536
  %2538 = vrot.lane.b32.xlu0 %v2297, 20
  %v2539 = vpop.permute.xlu0 %2538
  %2540 = vrot.lane.b32.xlu0 %v2298, 20
  %v2541 = vpop.permute.xlu0 %2540
  %vm2623 = vcmask 195744
  %2624 = vst.msk [vmem:[#allocation3] sm:$0xff] %vm2623, %v2381
  %2625 = vst.msk [vmem:[#allocation3 + $0x8] sm:$0xff] %vm2623, %v2383
  %2626 = vst.msk [vmem:[#allocation3 + $0x10] sm:$0xff] %vm2623, %v2385
  %2627 = vst.msk [vmem:[#allocation3 + $0x18] sm:$0xff] %vm2623, %v2387
  %2628 = vst.msk [vmem:[#allocation3 + $0x20] sm:$0xff] %vm2623, %v2389
  %2629 = vst.msk [vmem:[#allocation3 + $0x28] sm:$0xff] %vm2623, %v2391
  %2630 = vst.msk [vmem:[#allocation3 + $0x30] sm:$0xff] %vm2623, %v2393
  %2631 = vst.msk [vmem:[#allocation3 + $0x38] sm:$0xff] %vm2623, %v2395
  %2632 = vst.msk [vmem:[#allocation3 + $0x40] sm:$0xff] %vm2623, %v2397
  %2633 = vst.msk [vmem:[#allocation3 + $0x48] sm:$0xff] %vm2623, %v2399
  %2634 = vst.msk [vmem:[#allocation3 + $0x50] sm:$0xff] %vm2623, %v2401
  %2635 = vst.msk [vmem:[#allocation3 + $0x58] sm:$0xff] %vm2623, %v2403
  %2636 = vst.msk [vmem:[#allocation3 + $0x60] sm:$0xff] %vm2623, %v2405
  %2637 = vst.msk [vmem:[#allocation3 + $0x68] sm:$0xff] %vm2623, %v2407
  %2638 = vst.msk [vmem:[#allocation3 + $0x70] sm:$0xff] %vm2623, %v2409
  %2639 = vst.msk [vmem:[#allocation3 + $0x78] sm:$0xff] %vm2623, %v2411
  %2640 = vst.msk [vmem:[#allocation3 + $0x80] sm:$0xff] %vm2623, %v2413
  %2641 = vst.msk [vmem:[#allocation3 + $0x88] sm:$0xff] %vm2623, %v2415
  %2642 = vst.msk [vmem:[#allocation3 + $0x90] sm:$0xff] %vm2623, %v2417
  %2643 = vst.msk [vmem:[#allocation3 + $0x98] sm:$0xff] %vm2623, %v2419
  %2644 = vst.msk [vmem:[#allocation3 + $0xa0] sm:$0xff] %vm2623, %v2421
  %2645 = vst.msk [vmem:[#allocation3 + $0xa8] sm:$0xff] %vm2623, %v2423
  %2646 = vst.msk [vmem:[#allocation3 + $0xb0] sm:$0xff] %vm2623, %v2425
  %2647 = vst.msk [vmem:[#allocation3 + $0xb8] sm:$0xff] %vm2623, %v2427
  %2648 = vst.msk [vmem:[#allocation3 + $0xc0] sm:$0xff] %vm2623, %v2429
  %2649 = vst.msk [vmem:[#allocation3 + $0xc8] sm:$0xff] %vm2623, %v2431
  %2650 = vst.msk [vmem:[#allocation3 + $0xd0] sm:$0xff] %vm2623, %v2433
  %2651 = vst.msk [vmem:[#allocation3 + $0xd8] sm:$0xff] %vm2623, %v2435
  %2652 = vst.msk [vmem:[#allocation3 + $0xe0] sm:$0xff] %vm2623, %v2437
  %2653 = vst.msk [vmem:[#allocation3 + $0xe8] sm:$0xff] %vm2623, %v2439
  %2654 = vst.msk [vmem:[#allocation3 + $0xf0] sm:$0xff] %vm2623, %v2441
  %2655 = vst.msk [vmem:[#allocation3 + $0xf8] sm:$0xff] %vm2623, %v2443
  %2656 = vst.msk [vmem:[#allocation3 + $0x100] sm:$0xff] %vm2623, %v2445
  %2657 = vst.msk [vmem:[#allocation3 + $0x108] sm:$0xff] %vm2623, %v2447
  %2658 = vst.msk [vmem:[#allocation3 + $0x110] sm:$0xff] %vm2623, %v2449
  %2659 = vst.msk [vmem:[#allocation3 + $0x118] sm:$0xff] %vm2623, %v2451
  %2660 = vst.msk [vmem:[#allocation3 + $0x120] sm:$0xff] %vm2623, %v2453
  %2661 = vst.msk [vmem:[#allocation3 + $0x128] sm:$0xff] %vm2623, %v2455
  %2662 = vst.msk [vmem:[#allocation3 + $0x130] sm:$0xff] %vm2623, %v2457
  %2663 = vst.msk [vmem:[#allocation3 + $0x138] sm:$0xff] %vm2623, %v2459
  %2664 = vst.msk [vmem:[#allocation3 + $0x140] sm:$0xff] %vm2623, %v2461
  %2665 = vst.msk [vmem:[#allocation3 + $0x148] sm:$0xff] %vm2623, %v2463
  %2666 = vst.msk [vmem:[#allocation3 + $0x150] sm:$0xff] %vm2623, %v2465
  %2667 = vst.msk [vmem:[#allocation3 + $0x158] sm:$0xff] %vm2623, %v2467
  %2668 = vst.msk [vmem:[#allocation3 + $0x160] sm:$0xff] %vm2623, %v2469
  %2669 = vst.msk [vmem:[#allocation3 + $0x168] sm:$0xff] %vm2623, %v2471
  %2670 = vst.msk [vmem:[#allocation3 + $0x170] sm:$0xff] %vm2623, %v2473
  %2671 = vst.msk [vmem:[#allocation3 + $0x178] sm:$0xff] %vm2623, %v2475
  %2672 = vst.msk [vmem:[#allocation3 + $0x180] sm:$0xff] %vm2623, %v2477
  %2673 = vst.msk [vmem:[#allocation3 + $0x188] sm:$0xff] %vm2623, %v2479
  %2674 = vst.msk [vmem:[#allocation3 + $0x190] sm:$0xff] %vm2623, %v2481
  %2675 = vst.msk [vmem:[#allocation3 + $0x198] sm:$0xff] %vm2623, %v2483
  %2676 = vst.msk [vmem:[#allocation3 + $0x1a0] sm:$0xff] %vm2623, %v2485
  %2677 = vst.msk [vmem:[#allocation3 + $0x1a8] sm:$0xff] %vm2623, %v2487
  %2678 = vst.msk [vmem:[#allocation3 + $0x1b0] sm:$0xff] %vm2623, %v2489
  %2679 = vst.msk [vmem:[#allocation3 + $0x1b8] sm:$0xff] %vm2623, %v2491
  %2680 = vst.msk [vmem:[#allocation3 + $0x1c0] sm:$0xff] %vm2623, %v2493
  %2681 = vst.msk [vmem:[#allocation3 + $0x1c8] sm:$0xff] %vm2623, %v2495
  %2682 = vst.msk [vmem:[#allocation3 + $0x1d0] sm:$0xff] %vm2623, %v2497
  %2683 = vst.msk [vmem:[#allocation3 + $0x1d8] sm:$0xff] %vm2623, %v2499
  %2684 = vst.msk [vmem:[#allocation3 + $0x1e0] sm:$0xff] %vm2623, %v2501
  %2685 = vst.msk [vmem:[#allocation3 + $0x1e8] sm:$0xff] %vm2623, %v2503
  %2686 = vst.msk [vmem:[#allocation3 + $0x1f0] sm:$0xff] %vm2623, %v2505
  %2687 = vst.msk [vmem:[#allocation3 + $0x1f8] sm:$0xff] %vm2623, %v2507
  %2688 = vst.msk [vmem:[#allocation3 + $0x200] sm:$0xff] %vm2623, %v2509
  %2689 = vst.msk [vmem:[#allocation3 + $0x208] sm:$0xff] %vm2623, %v2511
  %2690 = vst.msk [vmem:[#allocation3 + $0x210] sm:$0xff] %vm2623, %v2513
  %2691 = vst.msk [vmem:[#allocation3 + $0x218] sm:$0xff] %vm2623, %v2515
  %2692 = vst.msk [vmem:[#allocation3 + $0x220] sm:$0xff] %vm2623, %v2517
  %2693 = vst.msk [vmem:[#allocation3 + $0x228] sm:$0xff] %vm2623, %v2519
  %2694 = vst.msk [vmem:[#allocation3 + $0x230] sm:$0xff] %vm2623, %v2521
  %2695 = vst.msk [vmem:[#allocation3 + $0x238] sm:$0xff] %vm2623, %v2523
  %2696 = vst.msk [vmem:[#allocation3 + $0x240] sm:$0xff] %vm2623, %v2525
  %2697 = vst.msk [vmem:[#allocation3 + $0x248] sm:$0xff] %vm2623, %v2527
  %2698 = vst.msk [vmem:[#allocation3 + $0x250] sm:$0xff] %vm2623, %v2529
  %2699 = vst.msk [vmem:[#allocation3 + $0x258] sm:$0xff] %vm2623, %v2531
  %2700 = vst.msk [vmem:[#allocation3 + $0x260] sm:$0xff] %vm2623, %v2533
  %2701 = vst.msk [vmem:[#allocation3 + $0x268] sm:$0xff] %vm2623, %v2535
  %2702 = vst.msk [vmem:[#allocation3 + $0x270] sm:$0xff] %vm2623, %v2537
  %2703 = vst.msk [vmem:[#allocation3 + $0x278] sm:$0xff] %vm2623, %v2539
  %2704 = vst.msk [vmem:[#allocation3 + $0x280] sm:$0xff] %vm2623, %v2541
  %v2705 = vld [vmem:[%s0 + $0x29] sm:$0xff]
  %v2706 = vld [vmem:[%s0 + $0x31] sm:$0xff]
  %v2707 = vld [vmem:[%s0 + $0x39] sm:$0xff]
  %v2708 = vld [vmem:[%s0 + $0x41] sm:$0xff]
  %v2709 = vld [vmem:[%s0 + $0x49] sm:$0xff]
  %v2710 = vld [vmem:[%s0 + $0x51] sm:$0xff]
  %v2711 = vld [vmem:[%s0 + $0x59] sm:$0xff]
  %v2712 = vld [vmem:[%s0 + $0x61] sm:$0xff]
  %v2713 = vld [vmem:[%s0 + $0x69] sm:$0xff]
  %v2714 = vld [vmem:[%s0 + $0x71] sm:$0xff]
  %v2715 = vld [vmem:[%s0 + $0x79] sm:$0xff]
  %v2716 = vld [vmem:[%s0 + $0x81] sm:$0xff]
  %v2717 = vld [vmem:[%s0 + $0x89] sm:$0xff]
  %v2718 = vld [vmem:[%s0 + $0x91] sm:$0xff]
  %v2719 = vld [vmem:[%s0 + $0x99] sm:$0xff]
  %v2720 = vld [vmem:[%s0 + $0xa1] sm:$0xff]
  %v2721 = vld [vmem:[%s0 + $0xa9] sm:$0xff]
  %v2722 = vld [vmem:[%s0 + $0xb1] sm:$0xff]
  %v2723 = vld [vmem:[%s0 + $0xb9] sm:$0xff]
  %v2724 = vld [vmem:[%s0 + $0xc1] sm:$0xff]
  %v2725 = vld [vmem:[%s0 + $0xc9] sm:$0xff]
  %v2726 = vld [vmem:[%s0 + $0xd1] sm:$0xff]
  %v2727 = vld [vmem:[%s0 + $0xd9] sm:$0xff]
  %v2728 = vld [vmem:[%s0 + $0xe1] sm:$0xff]
  %v2729 = vld [vmem:[%s0 + $0xe9] sm:$0xff]
  %v2730 = vld [vmem:[%s0 + $0xf1] sm:$0xff]
  %v2731 = vld [vmem:[%s0 + $0xf9] sm:$0xff]
  %v2732 = vld [vmem:[%s0 + $0x101] sm:$0xff]
  %v2733 = vld [vmem:[%s0 + $0x109] sm:$0xff]
  %v2734 = vld [vmem:[%s0 + $0x111] sm:$0xff]
  %v2735 = vld [vmem:[%s0 + $0x119] sm:$0xff]
  %v2736 = vld [vmem:[%s0 + $0x121] sm:$0xff]
  %v2737 = vld [vmem:[%s0 + $0x129] sm:$0xff]
  %v2738 = vld [vmem:[%s0 + $0x131] sm:$0xff]
  %v2739 = vld [vmem:[%s0 + $0x139] sm:$0xff]
  %v2740 = vld [vmem:[%s0 + $0x141] sm:$0xff]
  %v2741 = vld [vmem:[%s0 + $0x149] sm:$0xff]
  %v2742 = vld [vmem:[%s0 + $0x151] sm:$0xff]
  %v2743 = vld [vmem:[%s0 + $0x159] sm:$0xff]
  %v2744 = vld [vmem:[%s0 + $0x161] sm:$0xff]
  %v2745 = vld [vmem:[%s0 + $0x169] sm:$0xff]
  %v2746 = vld [vmem:[%s0 + $0x171] sm:$0xff]
  %v2747 = vld [vmem:[%s0 + $0x179] sm:$0xff]
  %v2748 = vld [vmem:[%s0 + $0x181] sm:$0xff]
  %v2749 = vld [vmem:[%s0 + $0x189] sm:$0xff]
  %v2750 = vld [vmem:[%s0 + $0x191] sm:$0xff]
  %v2751 = vld [vmem:[%s0 + $0x199] sm:$0xff]
  %v2752 = vld [vmem:[%s0 + $0x1a1] sm:$0xff]
  %v2753 = vld [vmem:[%s0 + $0x1a9] sm:$0xff]
  %v2754 = vld [vmem:[%s0 + $0x1b1] sm:$0xff]
  %v2755 = vld [vmem:[%s0 + $0x1b9] sm:$0xff]
  %v2756 = vld [vmem:[%s0 + $0x1c1] sm:$0xff]
  %v2757 = vld [vmem:[%s0 + $0x1c9] sm:$0xff]
  %v2758 = vld [vmem:[%s0 + $0x1d1] sm:$0xff]
  %v2759 = vld [vmem:[%s0 + $0x1d9] sm:$0xff]
  %v2760 = vld [vmem:[%s0 + $0x1e1] sm:$0xff]
  %v2761 = vld [vmem:[%s0 + $0x1e9] sm:$0xff]
  %v2762 = vld [vmem:[%s0 + $0x1f1] sm:$0xff]
  %v2763 = vld [vmem:[%s0 + $0x1f9] sm:$0xff]
  %v2764 = vld [vmem:[%s0 + $0x201] sm:$0xff]
  %v2765 = vld [vmem:[%s0 + $0x209] sm:$0xff]
  %v2766 = vld [vmem:[%s0 + $0x211] sm:$0xff]
  %v2767 = vld [vmem:[%s0 + $0x219] sm:$0xff]
  %v2768 = vld [vmem:[%s0 + $0x221] sm:$0xff]
  %v2769 = vld [vmem:[%s0 + $0x229] sm:$0xff]
  %v2770 = vld [vmem:[%s0 + $0x231] sm:$0xff]
  %v2771 = vld [vmem:[%s0 + $0x239] sm:$0xff]
  %v2772 = vld [vmem:[%s0 + $0x241] sm:$0xff]
  %v2773 = vld [vmem:[%s0 + $0x249] sm:$0xff]
  %v2774 = vld [vmem:[%s0 + $0x251] sm:$0xff]
  %v2775 = vld [vmem:[%s0 + $0x259] sm:$0xff]
  %v2776 = vld [vmem:[%s0 + $0x261] sm:$0xff]
  %v2777 = vld [vmem:[%s0 + $0x269] sm:$0xff]
  %v2778 = vld [vmem:[%s0 + $0x271] sm:$0xff]
  %v2779 = vld [vmem:[%s0 + $0x279] sm:$0xff]
  %v2780 = vld [vmem:[%s0 + $0x281] sm:$0xff]
  %v2781 = vld [vmem:[%s0 + $0x289] sm:$0xff]
  %v2782 = vld [vmem:[%s0 + $0x291] sm:$0xff]
  %v2783 = vld [vmem:[%s0 + $0x299] sm:$0xff]
  %v2784 = vld [vmem:[%s0 + $0x2a1] sm:$0xff]
  %v2785 = vld [vmem:[%s0 + $0x2a9] sm:$0xff]
  %2867 = vrot.lane.b32.xlu0 %v2705, 24
  %v2868 = vpop.permute.xlu0 %2867
  %2869 = vrot.lane.b32.xlu0 %v2706, 24
  %v2870 = vpop.permute.xlu0 %2869
  %2871 = vrot.lane.b32.xlu0 %v2707, 24
  %v2872 = vpop.permute.xlu0 %2871
  %2873 = vrot.lane.b32.xlu0 %v2708, 24
  %v2874 = vpop.permute.xlu0 %2873
  %2875 = vrot.lane.b32.xlu0 %v2709, 24
  %v2876 = vpop.permute.xlu0 %2875
  %2877 = vrot.lane.b32.xlu0 %v2710, 24
  %v2878 = vpop.permute.xlu0 %2877
  %2879 = vrot.lane.b32.xlu0 %v2711, 24
  %v2880 = vpop.permute.xlu0 %2879
  %2881 = vrot.lane.b32.xlu0 %v2712, 24
  %v2882 = vpop.permute.xlu0 %2881
  %2883 = vrot.lane.b32.xlu0 %v2713, 24
  %v2884 = vpop.permute.xlu0 %2883
  %2885 = vrot.lane.b32.xlu0 %v2714, 24
  %v2886 = vpop.permute.xlu0 %2885
  %2887 = vrot.lane.b32.xlu0 %v2715, 24
  %v2888 = vpop.permute.xlu0 %2887
  %2889 = vrot.lane.b32.xlu0 %v2716, 24
  %v2890 = vpop.permute.xlu0 %2889
  %2891 = vrot.lane.b32.xlu0 %v2717, 24
  %v2892 = vpop.permute.xlu0 %2891
  %2893 = vrot.lane.b32.xlu0 %v2718, 24
  %v2894 = vpop.permute.xlu0 %2893
  %2895 = vrot.lane.b32.xlu0 %v2719, 24
  %v2896 = vpop.permute.xlu0 %2895
  %2897 = vrot.lane.b32.xlu0 %v2720, 24
  %v2898 = vpop.permute.xlu0 %2897
  %2899 = vrot.lane.b32.xlu0 %v2721, 24
  %v2900 = vpop.permute.xlu0 %2899
  %2901 = vrot.lane.b32.xlu0 %v2722, 24
  %v2902 = vpop.permute.xlu0 %2901
  %2903 = vrot.lane.b32.xlu0 %v2723, 24
  %v2904 = vpop.permute.xlu0 %2903
  %2905 = vrot.lane.b32.xlu0 %v2724, 24
  %v2906 = vpop.permute.xlu0 %2905
  %2907 = vrot.lane.b32.xlu0 %v2725, 24
  %v2908 = vpop.permute.xlu0 %2907
  %2909 = vrot.lane.b32.xlu0 %v2726, 24
  %v2910 = vpop.permute.xlu0 %2909
  %2911 = vrot.lane.b32.xlu0 %v2727, 24
  %v2912 = vpop.permute.xlu0 %2911
  %2913 = vrot.lane.b32.xlu0 %v2728, 24
  %v2914 = vpop.permute.xlu0 %2913
  %2915 = vrot.lane.b32.xlu0 %v2729, 24
  %v2916 = vpop.permute.xlu0 %2915
  %2917 = vrot.lane.b32.xlu0 %v2730, 24
  %v2918 = vpop.permute.xlu0 %2917
  %2919 = vrot.lane.b32.xlu0 %v2731, 24
  %v2920 = vpop.permute.xlu0 %2919
  %2921 = vrot.lane.b32.xlu0 %v2732, 24
  %v2922 = vpop.permute.xlu0 %2921
  %2923 = vrot.lane.b32.xlu0 %v2733, 24
  %v2924 = vpop.permute.xlu0 %2923
  %2925 = vrot.lane.b32.xlu0 %v2734, 24
  %v2926 = vpop.permute.xlu0 %2925
  %2927 = vrot.lane.b32.xlu0 %v2735, 24
  %v2928 = vpop.permute.xlu0 %2927
  %2929 = vrot.lane.b32.xlu0 %v2736, 24
  %v2930 = vpop.permute.xlu0 %2929
  %2931 = vrot.lane.b32.xlu0 %v2737, 24
  %v2932 = vpop.permute.xlu0 %2931
  %2933 = vrot.lane.b32.xlu0 %v2738, 24
  %v2934 = vpop.permute.xlu0 %2933
  %2935 = vrot.lane.b32.xlu0 %v2739, 24
  %v2936 = vpop.permute.xlu0 %2935
  %2937 = vrot.lane.b32.xlu0 %v2740, 24
  %v2938 = vpop.permute.xlu0 %2937
  %2939 = vrot.lane.b32.xlu0 %v2741, 24
  %v2940 = vpop.permute.xlu0 %2939
  %2941 = vrot.lane.b32.xlu0 %v2742, 24
  %v2942 = vpop.permute.xlu0 %2941
  %2943 = vrot.lane.b32.xlu0 %v2743, 24
  %v2944 = vpop.permute.xlu0 %2943
  %2945 = vrot.lane.b32.xlu0 %v2744, 24
  %v2946 = vpop.permute.xlu0 %2945
  %2947 = vrot.lane.b32.xlu0 %v2745, 24
  %v2948 = vpop.permute.xlu0 %2947
  %2949 = vrot.lane.b32.xlu0 %v2746, 24
  %v2950 = vpop.permute.xlu0 %2949
  %2951 = vrot.lane.b32.xlu0 %v2747, 24
  %v2952 = vpop.permute.xlu0 %2951
  %2953 = vrot.lane.b32.xlu0 %v2748, 24
  %v2954 = vpop.permute.xlu0 %2953
  %2955 = vrot.lane.b32.xlu0 %v2749, 24
  %v2956 = vpop.permute.xlu0 %2955
  %2957 = vrot.lane.b32.xlu0 %v2750, 24
  %v2958 = vpop.permute.xlu0 %2957
  %2959 = vrot.lane.b32.xlu0 %v2751, 24
  %v2960 = vpop.permute.xlu0 %2959
  %2961 = vrot.lane.b32.xlu0 %v2752, 24
  %v2962 = vpop.permute.xlu0 %2961
  %2963 = vrot.lane.b32.xlu0 %v2753, 24
  %v2964 = vpop.permute.xlu0 %2963
  %2965 = vrot.lane.b32.xlu0 %v2754, 24
  %v2966 = vpop.permute.xlu0 %2965
  %2967 = vrot.lane.b32.xlu0 %v2755, 24
  %v2968 = vpop.permute.xlu0 %2967
  %2969 = vrot.lane.b32.xlu0 %v2756, 24
  %v2970 = vpop.permute.xlu0 %2969
  %2971 = vrot.lane.b32.xlu0 %v2757, 24
  %v2972 = vpop.permute.xlu0 %2971
  %2973 = vrot.lane.b32.xlu0 %v2758, 24
  %v2974 = vpop.permute.xlu0 %2973
  %2975 = vrot.lane.b32.xlu0 %v2759, 24
  %v2976 = vpop.permute.xlu0 %2975
  %2977 = vrot.lane.b32.xlu0 %v2760, 24
  %v2978 = vpop.permute.xlu0 %2977
  %2979 = vrot.lane.b32.xlu0 %v2761, 24
  %v2980 = vpop.permute.xlu0 %2979
  %2981 = vrot.lane.b32.xlu0 %v2762, 24
  %v2982 = vpop.permute.xlu0 %2981
  %2983 = vrot.lane.b32.xlu0 %v2763, 24
  %v2984 = vpop.permute.xlu0 %2983
  %2985 = vrot.lane.b32.xlu0 %v2764, 24
  %v2986 = vpop.permute.xlu0 %2985
  %2987 = vrot.lane.b32.xlu0 %v2765, 24
  %v2988 = vpop.permute.xlu0 %2987
  %2989 = vrot.lane.b32.xlu0 %v2766, 24
  %v2990 = vpop.permute.xlu0 %2989
  %2991 = vrot.lane.b32.xlu0 %v2767, 24
  %v2992 = vpop.permute.xlu0 %2991
  %2993 = vrot.lane.b32.xlu0 %v2768, 24
  %v2994 = vpop.permute.xlu0 %2993
  %2995 = vrot.lane.b32.xlu0 %v2769, 24
  %v2996 = vpop.permute.xlu0 %2995
  %2997 = vrot.lane.b32.xlu0 %v2770, 24
  %v2998 = vpop.permute.xlu0 %2997
  %2999 = vrot.lane.b32.xlu0 %v2771, 24
  %v3000 = vpop.permute.xlu0 %2999
  %3001 = vrot.lane.b32.xlu0 %v2772, 24
  %v3002 = vpop.permute.xlu0 %3001
  %3003 = vrot.lane.b32.xlu0 %v2773, 24
  %v3004 = vpop.permute.xlu0 %3003
  %3005 = vrot.lane.b32.xlu0 %v2774, 24
  %v3006 = vpop.permute.xlu0 %3005
  %3007 = vrot.lane.b32.xlu0 %v2775, 24
  %v3008 = vpop.permute.xlu0 %3007
  %3009 = vrot.lane.b32.xlu0 %v2776, 24
  %v3010 = vpop.permute.xlu0 %3009
  %3011 = vrot.lane.b32.xlu0 %v2777, 24
  %v3012 = vpop.permute.xlu0 %3011
  %3013 = vrot.lane.b32.xlu0 %v2778, 24
  %v3014 = vpop.permute.xlu0 %3013
  %3015 = vrot.lane.b32.xlu0 %v2779, 24
  %v3016 = vpop.permute.xlu0 %3015
  %3017 = vrot.lane.b32.xlu0 %v2780, 24
  %v3018 = vpop.permute.xlu0 %3017
  %3019 = vrot.lane.b32.xlu0 %v2781, 24
  %v3020 = vpop.permute.xlu0 %3019
  %3021 = vrot.lane.b32.xlu0 %v2782, 24
  %v3022 = vpop.permute.xlu0 %3021
  %3023 = vrot.lane.b32.xlu0 %v2783, 24
  %v3024 = vpop.permute.xlu0 %3023
  %3025 = vrot.lane.b32.xlu0 %v2784, 24
  %v3026 = vpop.permute.xlu0 %3025
  %3027 = vrot.lane.b32.xlu0 %v2785, 24
  %v3028 = vpop.permute.xlu0 %3027
  %vm3110 = vcmask 228544
  %3111 = vst.msk [vmem:[#allocation3] sm:$0xff] %vm3110, %v2868
  %3112 = vst.msk [vmem:[#allocation3 + $0x8] sm:$0xff] %vm3110, %v2870
  %3113 = vst.msk [vmem:[#allocation3 + $0x10] sm:$0xff] %vm3110, %v2872
  %3114 = vst.msk [vmem:[#allocation3 + $0x18] sm:$0xff] %vm3110, %v2874
  %3115 = vst.msk [vmem:[#allocation3 + $0x20] sm:$0xff] %vm3110, %v2876
  %3116 = vst.msk [vmem:[#allocation3 + $0x28] sm:$0xff] %vm3110, %v2878
  %3117 = vst.msk [vmem:[#allocation3 + $0x30] sm:$0xff] %vm3110, %v2880
  %3118 = vst.msk [vmem:[#allocation3 + $0x38] sm:$0xff] %vm3110, %v2882
  %3119 = vst.msk [vmem:[#allocation3 + $0x40] sm:$0xff] %vm3110, %v2884
  %3120 = vst.msk [vmem:[#allocation3 + $0x48] sm:$0xff] %vm3110, %v2886
  %3121 = vst.msk [vmem:[#allocation3 + $0x50] sm:$0xff] %vm3110, %v2888
  %3122 = vst.msk [vmem:[#allocation3 + $0x58] sm:$0xff] %vm3110, %v2890
  %3123 = vst.msk [vmem:[#allocation3 + $0x60] sm:$0xff] %vm3110, %v2892
  %3124 = vst.msk [vmem:[#allocation3 + $0x68] sm:$0xff] %vm3110, %v2894
  %3125 = vst.msk [vmem:[#allocation3 + $0x70] sm:$0xff] %vm3110, %v2896
  %3126 = vst.msk [vmem:[#allocation3 + $0x78] sm:$0xff] %vm3110, %v2898
  %3127 = vst.msk [vmem:[#allocation3 + $0x80] sm:$0xff] %vm3110, %v2900
  %3128 = vst.msk [vmem:[#allocation3 + $0x88] sm:$0xff] %vm3110, %v2902
  %3129 = vst.msk [vmem:[#allocation3 + $0x90] sm:$0xff] %vm3110, %v2904
  %3130 = vst.msk [vmem:[#allocation3 + $0x98] sm:$0xff] %vm3110, %v2906
  %3131 = vst.msk [vmem:[#allocation3 + $0xa0] sm:$0xff] %vm3110, %v2908
  %3132 = vst.msk [vmem:[#allocation3 + $0xa8] sm:$0xff] %vm3110, %v2910
  %3133 = vst.msk [vmem:[#allocation3 + $0xb0] sm:$0xff] %vm3110, %v2912
  %3134 = vst.msk [vmem:[#allocation3 + $0xb8] sm:$0xff] %vm3110, %v2914
  %3135 = vst.msk [vmem:[#allocation3 + $0xc0] sm:$0xff] %vm3110, %v2916
  %3136 = vst.msk [vmem:[#allocation3 + $0xc8] sm:$0xff] %vm3110, %v2918
  %3137 = vst.msk [vmem:[#allocation3 + $0xd0] sm:$0xff] %vm3110, %v2920
  %3138 = vst.msk [vmem:[#allocation3 + $0xd8] sm:$0xff] %vm3110, %v2922
  %3139 = vst.msk [vmem:[#allocation3 + $0xe0] sm:$0xff] %vm3110, %v2924
  %3140 = vst.msk [vmem:[#allocation3 + $0xe8] sm:$0xff] %vm3110, %v2926
  %3141 = vst.msk [vmem:[#allocation3 + $0xf0] sm:$0xff] %vm3110, %v2928
  %3142 = vst.msk [vmem:[#allocation3 + $0xf8] sm:$0xff] %vm3110, %v2930
  %3143 = vst.msk [vmem:[#allocation3 + $0x100] sm:$0xff] %vm3110, %v2932
  %3144 = vst.msk [vmem:[#allocation3 + $0x108] sm:$0xff] %vm3110, %v2934
  %3145 = vst.msk [vmem:[#allocation3 + $0x110] sm:$0xff] %vm3110, %v2936
  %3146 = vst.msk [vmem:[#allocation3 + $0x118] sm:$0xff] %vm3110, %v2938
  %3147 = vst.msk [vmem:[#allocation3 + $0x120] sm:$0xff] %vm3110, %v2940
  %3148 = vst.msk [vmem:[#allocation3 + $0x128] sm:$0xff] %vm3110, %v2942
  %3149 = vst.msk [vmem:[#allocation3 + $0x130] sm:$0xff] %vm3110, %v2944
  %3150 = vst.msk [vmem:[#allocation3 + $0x138] sm:$0xff] %vm3110, %v2946
  %3151 = vst.msk [vmem:[#allocation3 + $0x140] sm:$0xff] %vm3110, %v2948
  %3152 = vst.msk [vmem:[#allocation3 + $0x148] sm:$0xff] %vm3110, %v2950
  %3153 = vst.msk [vmem:[#allocation3 + $0x150] sm:$0xff] %vm3110, %v2952
  %3154 = vst.msk [vmem:[#allocation3 + $0x158] sm:$0xff] %vm3110, %v2954
  %3155 = vst.msk [vmem:[#allocation3 + $0x160] sm:$0xff] %vm3110, %v2956
  %3156 = vst.msk [vmem:[#allocation3 + $0x168] sm:$0xff] %vm3110, %v2958
  %3157 = vst.msk [vmem:[#allocation3 + $0x170] sm:$0xff] %vm3110, %v2960
  %3158 = vst.msk [vmem:[#allocation3 + $0x178] sm:$0xff] %vm3110, %v2962
  %3159 = vst.msk [vmem:[#allocation3 + $0x180] sm:$0xff] %vm3110, %v2964
  %3160 = vst.msk [vmem:[#allocation3 + $0x188] sm:$0xff] %vm3110, %v2966
  %3161 = vst.msk [vmem:[#allocation3 + $0x190] sm:$0xff] %vm3110, %v2968
  %3162 = vst.msk [vmem:[#allocation3 + $0x198] sm:$0xff] %vm3110, %v2970
  %3163 = vst.msk [vmem:[#allocation3 + $0x1a0] sm:$0xff] %vm3110, %v2972
  %3164 = vst.msk [vmem:[#allocation3 + $0x1a8] sm:$0xff] %vm3110, %v2974
  %3165 = vst.msk [vmem:[#allocation3 + $0x1b0] sm:$0xff] %vm3110, %v2976
  %3166 = vst.msk [vmem:[#allocation3 + $0x1b8] sm:$0xff] %vm3110, %v2978
  %3167 = vst.msk [vmem:[#allocation3 + $0x1c0] sm:$0xff] %vm3110, %v2980
  %3168 = vst.msk [vmem:[#allocation3 + $0x1c8] sm:$0xff] %vm3110, %v2982
  %3169 = vst.msk [vmem:[#allocation3 + $0x1d0] sm:$0xff] %vm3110, %v2984
  %3170 = vst.msk [vmem:[#allocation3 + $0x1d8] sm:$0xff] %vm3110, %v2986
  %3171 = vst.msk [vmem:[#allocation3 + $0x1e0] sm:$0xff] %vm3110, %v2988
  %3172 = vst.msk [vmem:[#allocation3 + $0x1e8] sm:$0xff] %vm3110, %v2990
  %3173 = vst.msk [vmem:[#allocation3 + $0x1f0] sm:$0xff] %vm3110, %v2992
  %3174 = vst.msk [vmem:[#allocation3 + $0x1f8] sm:$0xff] %vm3110, %v2994
  %3175 = vst.msk [vmem:[#allocation3 + $0x200] sm:$0xff] %vm3110, %v2996
  %3176 = vst.msk [vmem:[#allocation3 + $0x208] sm:$0xff] %vm3110, %v2998
  %3177 = vst.msk [vmem:[#allocation3 + $0x210] sm:$0xff] %vm3110, %v3000
  %3178 = vst.msk [vmem:[#allocation3 + $0x218] sm:$0xff] %vm3110, %v3002
  %3179 = vst.msk [vmem:[#allocation3 + $0x220] sm:$0xff] %vm3110, %v3004
  %3180 = vst.msk [vmem:[#allocation3 + $0x228] sm:$0xff] %vm3110, %v3006
  %3181 = vst.msk [vmem:[#allocation3 + $0x230] sm:$0xff] %vm3110, %v3008
  %3182 = vst.msk [vmem:[#allocation3 + $0x238] sm:$0xff] %vm3110, %v3010
  %3183 = vst.msk [vmem:[#allocation3 + $0x240] sm:$0xff] %vm3110, %v3012
  %3184 = vst.msk [vmem:[#allocation3 + $0x248] sm:$0xff] %vm3110, %v3014
  %3185 = vst.msk [vmem:[#allocation3 + $0x250] sm:$0xff] %vm3110, %v3016
  %3186 = vst.msk [vmem:[#allocation3 + $0x258] sm:$0xff] %vm3110, %v3018
  %3187 = vst.msk [vmem:[#allocation3 + $0x260] sm:$0xff] %vm3110, %v3020
  %3188 = vst.msk [vmem:[#allocation3 + $0x268] sm:$0xff] %vm3110, %v3022
  %3189 = vst.msk [vmem:[#allocation3 + $0x270] sm:$0xff] %vm3110, %v3024
  %3190 = vst.msk [vmem:[#allocation3 + $0x278] sm:$0xff] %vm3110, %v3026
  %3191 = vst.msk [vmem:[#allocation3 + $0x280] sm:$0xff] %vm3110, %v3028
  %v3192 = vld [vmem:[%s0 + $0x2a] sm:$0xff]
  %v3193 = vld [vmem:[%s0 + $0x32] sm:$0xff]
  %v3194 = vld [vmem:[%s0 + $0x3a] sm:$0xff]
  %v3195 = vld [vmem:[%s0 + $0x42] sm:$0xff]
  %v3196 = vld [vmem:[%s0 + $0x4a] sm:$0xff]
  %v3197 = vld [vmem:[%s0 + $0x52] sm:$0xff]
  %v3198 = vld [vmem:[%s0 + $0x5a] sm:$0xff]
  %v3199 = vld [vmem:[%s0 + $0x62] sm:$0xff]
  %v3200 = vld [vmem:[%s0 + $0x6a] sm:$0xff]
  %v3201 = vld [vmem:[%s0 + $0x72] sm:$0xff]
  %v3202 = vld [vmem:[%s0 + $0x7a] sm:$0xff]
  %v3203 = vld [vmem:[%s0 + $0x82] sm:$0xff]
  %v3204 = vld [vmem:[%s0 + $0x8a] sm:$0xff]
  %v3205 = vld [vmem:[%s0 + $0x92] sm:$0xff]
  %v3206 = vld [vmem:[%s0 + $0x9a] sm:$0xff]
  %v3207 = vld [vmem:[%s0 + $0xa2] sm:$0xff]
  %v3208 = vld [vmem:[%s0 + $0xaa] sm:$0xff]
  %v3209 = vld [vmem:[%s0 + $0xb2] sm:$0xff]
  %v3210 = vld [vmem:[%s0 + $0xba] sm:$0xff]
  %v3211 = vld [vmem:[%s0 + $0xc2] sm:$0xff]
  %v3212 = vld [vmem:[%s0 + $0xca] sm:$0xff]
  %v3213 = vld [vmem:[%s0 + $0xd2] sm:$0xff]
  %v3214 = vld [vmem:[%s0 + $0xda] sm:$0xff]
  %v3215 = vld [vmem:[%s0 + $0xe2] sm:$0xff]
  %v3216 = vld [vmem:[%s0 + $0xea] sm:$0xff]
  %v3217 = vld [vmem:[%s0 + $0xf2] sm:$0xff]
  %v3218 = vld [vmem:[%s0 + $0xfa] sm:$0xff]
  %v3219 = vld [vmem:[%s0 + $0x102] sm:$0xff]
  %v3220 = vld [vmem:[%s0 + $0x10a] sm:$0xff]
  %v3221 = vld [vmem:[%s0 + $0x112] sm:$0xff]
  %v3222 = vld [vmem:[%s0 + $0x11a] sm:$0xff]
  %v3223 = vld [vmem:[%s0 + $0x122] sm:$0xff]
  %v3224 = vld [vmem:[%s0 + $0x12a] sm:$0xff]
  %v3225 = vld [vmem:[%s0 + $0x132] sm:$0xff]
  %v3226 = vld [vmem:[%s0 + $0x13a] sm:$0xff]
  %v3227 = vld [vmem:[%s0 + $0x142] sm:$0xff]
  %v3228 = vld [vmem:[%s0 + $0x14a] sm:$0xff]
  %v3229 = vld [vmem:[%s0 + $0x152] sm:$0xff]
  %v3230 = vld [vmem:[%s0 + $0x15a] sm:$0xff]
  %v3231 = vld [vmem:[%s0 + $0x162] sm:$0xff]
  %v3232 = vld [vmem:[%s0 + $0x16a] sm:$0xff]
  %v3233 = vld [vmem:[%s0 + $0x172] sm:$0xff]
  %v3234 = vld [vmem:[%s0 + $0x17a] sm:$0xff]
  %v3235 = vld [vmem:[%s0 + $0x182] sm:$0xff]
  %v3236 = vld [vmem:[%s0 + $0x18a] sm:$0xff]
  %v3237 = vld [vmem:[%s0 + $0x192] sm:$0xff]
  %v3238 = vld [vmem:[%s0 + $0x19a] sm:$0xff]
  %v3239 = vld [vmem:[%s0 + $0x1a2] sm:$0xff]
  %v3240 = vld [vmem:[%s0 + $0x1aa] sm:$0xff]
  %v3241 = vld [vmem:[%s0 + $0x1b2] sm:$0xff]
  %v3242 = vld [vmem:[%s0 + $0x1ba] sm:$0xff]
  %v3243 = vld [vmem:[%s0 + $0x1c2] sm:$0xff]
  %v3244 = vld [vmem:[%s0 + $0x1ca] sm:$0xff]
  %v3245 = vld [vmem:[%s0 + $0x1d2] sm:$0xff]
  %v3246 = vld [vmem:[%s0 + $0x1da] sm:$0xff]
  %v3247 = vld [vmem:[%s0 + $0x1e2] sm:$0xff]
  %v3248 = vld [vmem:[%s0 + $0x1ea] sm:$0xff]
  %v3249 = vld [vmem:[%s0 + $0x1f2] sm:$0xff]
  %v3250 = vld [vmem:[%s0 + $0x1fa] sm:$0xff]
  %v3251 = vld [vmem:[%s0 + $0x202] sm:$0xff]
  %v3252 = vld [vmem:[%s0 + $0x20a] sm:$0xff]
  %v3253 = vld [vmem:[%s0 + $0x212] sm:$0xff]
  %v3254 = vld [vmem:[%s0 + $0x21a] sm:$0xff]
  %v3255 = vld [vmem:[%s0 + $0x222] sm:$0xff]
  %v3256 = vld [vmem:[%s0 + $0x22a] sm:$0xff]
  %v3257 = vld [vmem:[%s0 + $0x232] sm:$0xff]
  %v3258 = vld [vmem:[%s0 + $0x23a] sm:$0xff]
  %v3259 = vld [vmem:[%s0 + $0x242] sm:$0xff]
  %v3260 = vld [vmem:[%s0 + $0x24a] sm:$0xff]
  %v3261 = vld [vmem:[%s0 + $0x252] sm:$0xff]
  %v3262 = vld [vmem:[%s0 + $0x25a] sm:$0xff]
  %v3263 = vld [vmem:[%s0 + $0x262] sm:$0xff]
  %v3264 = vld [vmem:[%s0 + $0x26a] sm:$0xff]
  %v3265 = vld [vmem:[%s0 + $0x272] sm:$0xff]
  %v3266 = vld [vmem:[%s0 + $0x27a] sm:$0xff]
  %v3267 = vld [vmem:[%s0 + $0x282] sm:$0xff]
  %v3268 = vld [vmem:[%s0 + $0x28a] sm:$0xff]
  %v3269 = vld [vmem:[%s0 + $0x292] sm:$0xff]
  %v3270 = vld [vmem:[%s0 + $0x29a] sm:$0xff]
  %v3271 = vld [vmem:[%s0 + $0x2a2] sm:$0xff]
  %v3272 = vld [vmem:[%s0 + $0x2aa] sm:$0xff]
  %3354 = vrot.lane.b32.xlu0 %v3192, 28
  %v3355 = vpop.permute.xlu0 %3354
  %3356 = vrot.lane.b32.xlu0 %v3193, 28
  %v3357 = vpop.permute.xlu0 %3356
  %3358 = vrot.lane.b32.xlu0 %v3194, 28
  %v3359 = vpop.permute.xlu0 %3358
  %3360 = vrot.lane.b32.xlu0 %v3195, 28
  %v3361 = vpop.permute.xlu0 %3360
  %3362 = vrot.lane.b32.xlu0 %v3196, 28
  %v3363 = vpop.permute.xlu0 %3362
  %3364 = vrot.lane.b32.xlu0 %v3197, 28
  %v3365 = vpop.permute.xlu0 %3364
  %3366 = vrot.lane.b32.xlu0 %v3198, 28
  %v3367 = vpop.permute.xlu0 %3366
  %3368 = vrot.lane.b32.xlu0 %v3199, 28
  %v3369 = vpop.permute.xlu0 %3368
  %3370 = vrot.lane.b32.xlu0 %v3200, 28
  %v3371 = vpop.permute.xlu0 %3370
  %3372 = vrot.lane.b32.xlu0 %v3201, 28
  %v3373 = vpop.permute.xlu0 %3372
  %3374 = vrot.lane.b32.xlu0 %v3202, 28
  %v3375 = vpop.permute.xlu0 %3374
  %3376 = vrot.lane.b32.xlu0 %v3203, 28
  %v3377 = vpop.permute.xlu0 %3376
  %3378 = vrot.lane.b32.xlu0 %v3204, 28
  %v3379 = vpop.permute.xlu0 %3378
  %3380 = vrot.lane.b32.xlu0 %v3205, 28
  %v3381 = vpop.permute.xlu0 %3380
  %3382 = vrot.lane.b32.xlu0 %v3206, 28
  %v3383 = vpop.permute.xlu0 %3382
  %3384 = vrot.lane.b32.xlu0 %v3207, 28
  %v3385 = vpop.permute.xlu0 %3384
  %3386 = vrot.lane.b32.xlu0 %v3208, 28
  %v3387 = vpop.permute.xlu0 %3386
  %3388 = vrot.lane.b32.xlu0 %v3209, 28
  %v3389 = vpop.permute.xlu0 %3388
  %3390 = vrot.lane.b32.xlu0 %v3210, 28
  %v3391 = vpop.permute.xlu0 %3390
  %3392 = vrot.lane.b32.xlu0 %v3211, 28
  %v3393 = vpop.permute.xlu0 %3392
  %3394 = vrot.lane.b32.xlu0 %v3212, 28
  %v3395 = vpop.permute.xlu0 %3394
  %3396 = vrot.lane.b32.xlu0 %v3213, 28
  %v3397 = vpop.permute.xlu0 %3396
  %3398 = vrot.lane.b32.xlu0 %v3214, 28
  %v3399 = vpop.permute.xlu0 %3398
  %3400 = vrot.lane.b32.xlu0 %v3215, 28
  %v3401 = vpop.permute.xlu0 %3400
  %3402 = vrot.lane.b32.xlu0 %v3216, 28
  %v3403 = vpop.permute.xlu0 %3402
  %3404 = vrot.lane.b32.xlu0 %v3217, 28
  %v3405 = vpop.permute.xlu0 %3404
  %3406 = vrot.lane.b32.xlu0 %v3218, 28
  %v3407 = vpop.permute.xlu0 %3406
  %3408 = vrot.lane.b32.xlu0 %v3219, 28
  %v3409 = vpop.permute.xlu0 %3408
  %3410 = vrot.lane.b32.xlu0 %v3220, 28
  %v3411 = vpop.permute.xlu0 %3410
  %3412 = vrot.lane.b32.xlu0 %v3221, 28
  %v3413 = vpop.permute.xlu0 %3412
  %3414 = vrot.lane.b32.xlu0 %v3222, 28
  %v3415 = vpop.permute.xlu0 %3414
  %3416 = vrot.lane.b32.xlu0 %v3223, 28
  %v3417 = vpop.permute.xlu0 %3416
  %3418 = vrot.lane.b32.xlu0 %v3224, 28
  %v3419 = vpop.permute.xlu0 %3418
  %3420 = vrot.lane.b32.xlu0 %v3225, 28
  %v3421 = vpop.permute.xlu0 %3420
  %3422 = vrot.lane.b32.xlu0 %v3226, 28
  %v3423 = vpop.permute.xlu0 %3422
  %3424 = vrot.lane.b32.xlu0 %v3227, 28
  %v3425 = vpop.permute.xlu0 %3424
  %3426 = vrot.lane.b32.xlu0 %v3228, 28
  %v3427 = vpop.permute.xlu0 %3426
  %3428 = vrot.lane.b32.xlu0 %v3229, 28
  %v3429 = vpop.permute.xlu0 %3428
  %3430 = vrot.lane.b32.xlu0 %v3230, 28
  %v3431 = vpop.permute.xlu0 %3430
  %3432 = vrot.lane.b32.xlu0 %v3231, 28
  %v3433 = vpop.permute.xlu0 %3432
  %3434 = vrot.lane.b32.xlu0 %v3232, 28
  %v3435 = vpop.permute.xlu0 %3434
  %3436 = vrot.lane.b32.xlu0 %v3233, 28
  %v3437 = vpop.permute.xlu0 %3436
  %3438 = vrot.lane.b32.xlu0 %v3234, 28
  %v3439 = vpop.permute.xlu0 %3438
  %3440 = vrot.lane.b32.xlu0 %v3235, 28
  %v3441 = vpop.permute.xlu0 %3440
  %3442 = vrot.lane.b32.xlu0 %v3236, 28
  %v3443 = vpop.permute.xlu0 %3442
  %3444 = vrot.lane.b32.xlu0 %v3237, 28
  %v3445 = vpop.permute.xlu0 %3444
  %3446 = vrot.lane.b32.xlu0 %v3238, 28
  %v3447 = vpop.permute.xlu0 %3446
  %3448 = vrot.lane.b32.xlu0 %v3239, 28
  %v3449 = vpop.permute.xlu0 %3448
  %3450 = vrot.lane.b32.xlu0 %v3240, 28
  %v3451 = vpop.permute.xlu0 %3450
  %3452 = vrot.lane.b32.xlu0 %v3241, 28
  %v3453 = vpop.permute.xlu0 %3452
  %3454 = vrot.lane.b32.xlu0 %v3242, 28
  %v3455 = vpop.permute.xlu0 %3454
  %3456 = vrot.lane.b32.xlu0 %v3243, 28
  %v3457 = vpop.permute.xlu0 %3456
  %3458 = vrot.lane.b32.xlu0 %v3244, 28
  %v3459 = vpop.permute.xlu0 %3458
  %3460 = vrot.lane.b32.xlu0 %v3245, 28
  %v3461 = vpop.permute.xlu0 %3460
  %3462 = vrot.lane.b32.xlu0 %v3246, 28
  %v3463 = vpop.permute.xlu0 %3462
  %3464 = vrot.lane.b32.xlu0 %v3247, 28
  %v3465 = vpop.permute.xlu0 %3464
  %3466 = vrot.lane.b32.xlu0 %v3248, 28
  %v3467 = vpop.permute.xlu0 %3466
  %3468 = vrot.lane.b32.xlu0 %v3249, 28
  %v3469 = vpop.permute.xlu0 %3468
  %3470 = vrot.lane.b32.xlu0 %v3250, 28
  %v3471 = vpop.permute.xlu0 %3470
  %3472 = vrot.lane.b32.xlu0 %v3251, 28
  %v3473 = vpop.permute.xlu0 %3472
  %3474 = vrot.lane.b32.xlu0 %v3252, 28
  %v3475 = vpop.permute.xlu0 %3474
  %3476 = vrot.lane.b32.xlu0 %v3253, 28
  %v3477 = vpop.permute.xlu0 %3476
  %3478 = vrot.lane.b32.xlu0 %v3254, 28
  %v3479 = vpop.permute.xlu0 %3478
  %3480 = vrot.lane.b32.xlu0 %v3255, 28
  %v3481 = vpop.permute.xlu0 %3480
  %3482 = vrot.lane.b32.xlu0 %v3256, 28
  %v3483 = vpop.permute.xlu0 %3482
  %3484 = vrot.lane.b32.xlu0 %v3257, 28
  %v3485 = vpop.permute.xlu0 %3484
  %3486 = vrot.lane.b32.xlu0 %v3258, 28
  %v3487 = vpop.permute.xlu0 %3486
  %3488 = vrot.lane.b32.xlu0 %v3259, 28
  %v3489 = vpop.permute.xlu0 %3488
  %3490 = vrot.lane.b32.xlu0 %v3260, 28
  %v3491 = vpop.permute.xlu0 %3490
  %3492 = vrot.lane.b32.xlu0 %v3261, 28
  %v3493 = vpop.permute.xlu0 %3492
  %3494 = vrot.lane.b32.xlu0 %v3262, 28
  %v3495 = vpop.permute.xlu0 %3494
  %3496 = vrot.lane.b32.xlu0 %v3263, 28
  %v3497 = vpop.permute.xlu0 %3496
  %3498 = vrot.lane.b32.xlu0 %v3264, 28
  %v3499 = vpop.permute.xlu0 %3498
  %3500 = vrot.lane.b32.xlu0 %v3265, 28
  %v3501 = vpop.permute.xlu0 %3500
  %3502 = vrot.lane.b32.xlu0 %v3266, 28
  %v3503 = vpop.permute.xlu0 %3502
  %3504 = vrot.lane.b32.xlu0 %v3267, 28
  %v3505 = vpop.permute.xlu0 %3504
  %3506 = vrot.lane.b32.xlu0 %v3268, 28
  %v3507 = vpop.permute.xlu0 %3506
  %3508 = vrot.lane.b32.xlu0 %v3269, 28
  %v3509 = vpop.permute.xlu0 %3508
  %3510 = vrot.lane.b32.xlu0 %v3270, 28
  %v3511 = vpop.permute.xlu0 %3510
  %3512 = vrot.lane.b32.xlu0 %v3271, 28
  %v3513 = vpop.permute.xlu0 %3512
  %3514 = vrot.lane.b32.xlu0 %v3272, 28
  %v3515 = vpop.permute.xlu0 %3514
  %vm3597 = vcmask 261344
  %3598 = vst.msk [vmem:[#allocation3] sm:$0xff] %vm3597, %v3355
  %3599 = vst.msk [vmem:[#allocation3 + $0x8] sm:$0xff] %vm3597, %v3357
  %3600 = vst.msk [vmem:[#allocation3 + $0x10] sm:$0xff] %vm3597, %v3359
  %3601 = vst.msk [vmem:[#allocation3 + $0x18] sm:$0xff] %vm3597, %v3361
  %3602 = vst.msk [vmem:[#allocation3 + $0x20] sm:$0xff] %vm3597, %v3363
  %3603 = vst.msk [vmem:[#allocation3 + $0x28] sm:$0xff] %vm3597, %v3365
  %3604 = vst.msk [vmem:[#allocation3 + $0x30] sm:$0xff] %vm3597, %v3367
  %3605 = vst.msk [vmem:[#allocation3 + $0x38] sm:$0xff] %vm3597, %v3369
  %3606 = vst.msk [vmem:[#allocation3 + $0x40] sm:$0xff] %vm3597, %v3371
  %3607 = vst.msk [vmem:[#allocation3 + $0x48] sm:$0xff] %vm3597, %v3373
  %3608 = vst.msk [vmem:[#allocation3 + $0x50] sm:$0xff] %vm3597, %v3375
  %3609 = vst.msk [vmem:[#allocation3 + $0x58] sm:$0xff] %vm3597, %v3377
  %3610 = vst.msk [vmem:[#allocation3 + $0x60] sm:$0xff] %vm3597, %v3379
  %3611 = vst.msk [vmem:[#allocation3 + $0x68] sm:$0xff] %vm3597, %v3381
  %3612 = vst.msk [vmem:[#allocation3 + $0x70] sm:$0xff] %vm3597, %v3383
  %3613 = vst.msk [vmem:[#allocation3 + $0x78] sm:$0xff] %vm3597, %v3385
  %3614 = vst.msk [vmem:[#allocation3 + $0x80] sm:$0xff] %vm3597, %v3387
  %3615 = vst.msk [vmem:[#allocation3 + $0x88] sm:$0xff] %vm3597, %v3389
  %3616 = vst.msk [vmem:[#allocation3 + $0x90] sm:$0xff] %vm3597, %v3391
  %3617 = vst.msk [vmem:[#allocation3 + $0x98] sm:$0xff] %vm3597, %v3393
  %3618 = vst.msk [vmem:[#allocation3 + $0xa0] sm:$0xff] %vm3597, %v3395
  %3619 = vst.msk [vmem:[#allocation3 + $0xa8] sm:$0xff] %vm3597, %v3397
  %3620 = vst.msk [vmem:[#allocation3 + $0xb0] sm:$0xff] %vm3597, %v3399
  %3621 = vst.msk [vmem:[#allocation3 + $0xb8] sm:$0xff] %vm3597, %v3401
  %3622 = vst.msk [vmem:[#allocation3 + $0xc0] sm:$0xff] %vm3597, %v3403
  %3623 = vst.msk [vmem:[#allocation3 + $0xc8] sm:$0xff] %vm3597, %v3405
  %3624 = vst.msk [vmem:[#allocation3 + $0xd0] sm:$0xff] %vm3597, %v3407
  %3625 = vst.msk [vmem:[#allocation3 + $0xd8] sm:$0xff] %vm3597, %v3409
  %3626 = vst.msk [vmem:[#allocation3 + $0xe0] sm:$0xff] %vm3597, %v3411
  %3627 = vst.msk [vmem:[#allocation3 + $0xe8] sm:$0xff] %vm3597, %v3413
  %3628 = vst.msk [vmem:[#allocation3 + $0xf0] sm:$0xff] %vm3597, %v3415
  %3629 = vst.msk [vmem:[#allocation3 + $0xf8] sm:$0xff] %vm3597, %v3417
  %3630 = vst.msk [vmem:[#allocation3 + $0x100] sm:$0xff] %vm3597, %v3419
  %3631 = vst.msk [vmem:[#allocation3 + $0x108] sm:$0xff] %vm3597, %v3421
  %3632 = vst.msk [vmem:[#allocation3 + $0x110] sm:$0xff] %vm3597, %v3423
  %3633 = vst.msk [vmem:[#allocation3 + $0x118] sm:$0xff] %vm3597, %v3425
  %3634 = vst.msk [vmem:[#allocation3 + $0x120] sm:$0xff] %vm3597, %v3427
  %3635 = vst.msk [vmem:[#allocation3 + $0x128] sm:$0xff] %vm3597, %v3429
  %3636 = vst.msk [vmem:[#allocation3 + $0x130] sm:$0xff] %vm3597, %v3431
  %3637 = vst.msk [vmem:[#allocation3 + $0x138] sm:$0xff] %vm3597, %v3433
  %3638 = vst.msk [vmem:[#allocation3 + $0x140] sm:$0xff] %vm3597, %v3435
  %3639 = vst.msk [vmem:[#allocation3 + $0x148] sm:$0xff] %vm3597, %v3437
  %3640 = vst.msk [vmem:[#allocation3 + $0x150] sm:$0xff] %vm3597, %v3439
  %3641 = vst.msk [vmem:[#allocation3 + $0x158] sm:$0xff] %vm3597, %v3441
  %3642 = vst.msk [vmem:[#allocation3 + $0x160] sm:$0xff] %vm3597, %v3443
  %3643 = vst.msk [vmem:[#allocation3 + $0x168] sm:$0xff] %vm3597, %v3445
  %3644 = vst.msk [vmem:[#allocation3 + $0x170] sm:$0xff] %vm3597, %v3447
  %3645 = vst.msk [vmem:[#allocation3 + $0x178] sm:$0xff] %vm3597, %v3449
  %3646 = vst.msk [vmem:[#allocation3 + $0x180] sm:$0xff] %vm3597, %v3451
  %3647 = vst.msk [vmem:[#allocation3 + $0x188] sm:$0xff] %vm3597, %v3453
  %3648 = vst.msk [vmem:[#allocation3 + $0x190] sm:$0xff] %vm3597, %v3455
  %3649 = vst.msk [vmem:[#allocation3 + $0x198] sm:$0xff] %vm3597, %v3457
  %3650 = vst.msk [vmem:[#allocation3 + $0x1a0] sm:$0xff] %vm3597, %v3459
  %3651 = vst.msk [vmem:[#allocation3 + $0x1a8] sm:$0xff] %vm3597, %v3461
  %3652 = vst.msk [vmem:[#allocation3 + $0x1b0] sm:$0xff] %vm3597, %v3463
  %3653 = vst.msk [vmem:[#allocation3 + $0x1b8] sm:$0xff] %vm3597, %v3465
  %3654 = vst.msk [vmem:[#allocation3 + $0x1c0] sm:$0xff] %vm3597, %v3467
  %3655 = vst.msk [vmem:[#allocation3 + $0x1c8] sm:$0xff] %vm3597, %v3469
  %3656 = vst.msk [vmem:[#allocation3 + $0x1d0] sm:$0xff] %vm3597, %v3471
  %3657 = vst.msk [vmem:[#allocation3 + $0x1d8] sm:$0xff] %vm3597, %v3473
  %3658 = vst.msk [vmem:[#allocation3 + $0x1e0] sm:$0xff] %vm3597, %v3475
  %3659 = vst.msk [vmem:[#allocation3 + $0x1e8] sm:$0xff] %vm3597, %v3477
  %3660 = vst.msk [vmem:[#allocation3 + $0x1f0] sm:$0xff] %vm3597, %v3479
  %3661 = vst.msk [vmem:[#allocation3 + $0x1f8] sm:$0xff] %vm3597, %v3481
  %3662 = vst.msk [vmem:[#allocation3 + $0x200] sm:$0xff] %vm3597, %v3483
  %3663 = vst.msk [vmem:[#allocation3 + $0x208] sm:$0xff] %vm3597, %v3485
  %3664 = vst.msk [vmem:[#allocation3 + $0x210] sm:$0xff] %vm3597, %v3487
  %3665 = vst.msk [vmem:[#allocation3 + $0x218] sm:$0xff] %vm3597, %v3489
  %3666 = vst.msk [vmem:[#allocation3 + $0x220] sm:$0xff] %vm3597, %v3491
  %3667 = vst.msk [vmem:[#allocation3 + $0x228] sm:$0xff] %vm3597, %v3493
  %3668 = vst.msk [vmem:[#allocation3 + $0x230] sm:$0xff] %vm3597, %v3495
  %3669 = vst.msk [vmem:[#allocation3 + $0x238] sm:$0xff] %vm3597, %v3497
  %3670 = vst.msk [vmem:[#allocation3 + $0x240] sm:$0xff] %vm3597, %v3499
  %3671 = vst.msk [vmem:[#allocation3 + $0x248] sm:$0xff] %vm3597, %v3501
  %3672 = vst.msk [vmem:[#allocation3 + $0x250] sm:$0xff] %vm3597, %v3503
  %3673 = vst.msk [vmem:[#allocation3 + $0x258] sm:$0xff] %vm3597, %v3505
  %3674 = vst.msk [vmem:[#allocation3 + $0x260] sm:$0xff] %vm3597, %v3507
  %3675 = vst.msk [vmem:[#allocation3 + $0x268] sm:$0xff] %vm3597, %v3509
  %3676 = vst.msk [vmem:[#allocation3 + $0x270] sm:$0xff] %vm3597, %v3511
  %3677 = vst.msk [vmem:[#allocation3 + $0x278] sm:$0xff] %vm3597, %v3513
  %3678 = vst.msk [vmem:[#allocation3 + $0x280] sm:$0xff] %vm3597, %v3515
  %v3679 = vld [vmem:[%s0 + $0x2b] sm:$0xff]
  %v3680 = vld [vmem:[%s0 + $0x33] sm:$0xff]
  %v3681 = vld [vmem:[%s0 + $0x3b] sm:$0xff]
  %v3682 = vld [vmem:[%s0 + $0x43] sm:$0xff]
  %v3683 = vld [vmem:[%s0 + $0x4b] sm:$0xff]
  %v3684 = vld [vmem:[%s0 + $0x53] sm:$0xff]
  %v3685 = vld [vmem:[%s0 + $0x5b] sm:$0xff]
  %v3686 = vld [vmem:[%s0 + $0x63] sm:$0xff]
  %v3687 = vld [vmem:[%s0 + $0x6b] sm:$0xff]
  %v3688 = vld [vmem:[%s0 + $0x73] sm:$0xff]
  %v3689 = vld [vmem:[%s0 + $0x7b] sm:$0xff]
  %v3690 = vld [vmem:[%s0 + $0x83] sm:$0xff]
  %v3691 = vld [vmem:[%s0 + $0x8b] sm:$0xff]
  %v3692 = vld [vmem:[%s0 + $0x93] sm:$0xff]
  %v3693 = vld [vmem:[%s0 + $0x9b] sm:$0xff]
  %v3694 = vld [vmem:[%s0 + $0xa3] sm:$0xff]
  %v3695 = vld [vmem:[%s0 + $0xab] sm:$0xff]
  %v3696 = vld [vmem:[%s0 + $0xb3] sm:$0xff]
  %v3697 = vld [vmem:[%s0 + $0xbb] sm:$0xff]
  %v3698 = vld [vmem:[%s0 + $0xc3] sm:$0xff]
  %v3699 = vld [vmem:[%s0 + $0xcb] sm:$0xff]
  %v3700 = vld [vmem:[%s0 + $0xd3] sm:$0xff]
  %v3701 = vld [vmem:[%s0 + $0xdb] sm:$0xff]
  %v3702 = vld [vmem:[%s0 + $0xe3] sm:$0xff]
  %v3703 = vld [vmem:[%s0 + $0xeb] sm:$0xff]
  %v3704 = vld [vmem:[%s0 + $0xf3] sm:$0xff]
  %v3705 = vld [vmem:[%s0 + $0xfb] sm:$0xff]
  %v3706 = vld [vmem:[%s0 + $0x103] sm:$0xff]
  %v3707 = vld [vmem:[%s0 + $0x10b] sm:$0xff]
  %v3708 = vld [vmem:[%s0 + $0x113] sm:$0xff]
  %v3709 = vld [vmem:[%s0 + $0x11b] sm:$0xff]
  %v3710 = vld [vmem:[%s0 + $0x123] sm:$0xff]
  %v3711 = vld [vmem:[%s0 + $0x12b] sm:$0xff]
  %v3712 = vld [vmem:[%s0 + $0x133] sm:$0xff]
  %v3713 = vld [vmem:[%s0 + $0x13b] sm:$0xff]
  %v3714 = vld [vmem:[%s0 + $0x143] sm:$0xff]
  %v3715 = vld [vmem:[%s0 + $0x14b] sm:$0xff]
  %v3716 = vld [vmem:[%s0 + $0x153] sm:$0xff]
  %v3717 = vld [vmem:[%s0 + $0x15b] sm:$0xff]
  %v3718 = vld [vmem:[%s0 + $0x163] sm:$0xff]
  %v3719 = vld [vmem:[%s0 + $0x16b] sm:$0xff]
  %v3720 = vld [vmem:[%s0 + $0x173] sm:$0xff]
  %v3721 = vld [vmem:[%s0 + $0x17b] sm:$0xff]
  %v3722 = vld [vmem:[%s0 + $0x183] sm:$0xff]
  %v3723 = vld [vmem:[%s0 + $0x18b] sm:$0xff]
  %v3724 = vld [vmem:[%s0 + $0x193] sm:$0xff]
  %v3725 = vld [vmem:[%s0 + $0x19b] sm:$0xff]
  %v3726 = vld [vmem:[%s0 + $0x1a3] sm:$0xff]
  %v3727 = vld [vmem:[%s0 + $0x1ab] sm:$0xff]
  %v3728 = vld [vmem:[%s0 + $0x1b3] sm:$0xff]
  %v3729 = vld [vmem:[%s0 + $0x1bb] sm:$0xff]
  %v3730 = vld [vmem:[%s0 + $0x1c3] sm:$0xff]
  %v3731 = vld [vmem:[%s0 + $0x1cb] sm:$0xff]
  %v3732 = vld [vmem:[%s0 + $0x1d3] sm:$0xff]
  %v3733 = vld [vmem:[%s0 + $0x1db] sm:$0xff]
  %v3734 = vld [vmem:[%s0 + $0x1e3] sm:$0xff]
  %v3735 = vld [vmem:[%s0 + $0x1eb] sm:$0xff]
  %v3736 = vld [vmem:[%s0 + $0x1f3] sm:$0xff]
  %v3737 = vld [vmem:[%s0 + $0x1fb] sm:$0xff]
  %v3738 = vld [vmem:[%s0 + $0x203] sm:$0xff]
  %v3739 = vld [vmem:[%s0 + $0x20b] sm:$0xff]
  %v3740 = vld [vmem:[%s0 + $0x213] sm:$0xff]
  %v3741 = vld [vmem:[%s0 + $0x21b] sm:$0xff]
  %v3742 = vld [vmem:[%s0 + $0x223] sm:$0xff]
  %v3743 = vld [vmem:[%s0 + $0x22b] sm:$0xff]
  %v3744 = vld [vmem:[%s0 + $0x233] sm:$0xff]
  %v3745 = vld [vmem:[%s0 + $0x23b] sm:$0xff]
  %v3746 = vld [vmem:[%s0 + $0x243] sm:$0xff]
  %v3747 = vld [vmem:[%s0 + $0x24b] sm:$0xff]
  %v3748 = vld [vmem:[%s0 + $0x253] sm:$0xff]
  %v3749 = vld [vmem:[%s0 + $0x25b] sm:$0xff]
  %v3750 = vld [vmem:[%s0 + $0x263] sm:$0xff]
  %v3751 = vld [vmem:[%s0 + $0x26b] sm:$0xff]
  %v3752 = vld [vmem:[%s0 + $0x273] sm:$0xff]
  %v3753 = vld [vmem:[%s0 + $0x27b] sm:$0xff]
  %v3754 = vld [vmem:[%s0 + $0x283] sm:$0xff]
  %v3755 = vld [vmem:[%s0 + $0x28b] sm:$0xff]
  %v3756 = vld [vmem:[%s0 + $0x293] sm:$0xff]
  %v3757 = vld [vmem:[%s0 + $0x29b] sm:$0xff]
  %v3758 = vld [vmem:[%s0 + $0x2a3] sm:$0xff]
  %v3759 = vld [vmem:[%s0 + $0x2ab] sm:$0xff]
  %3841 = vrot.lane.b32.xlu0 %v3679, 32
  %v3842 = vpop.permute.xlu0 %3841
  %3843 = vrot.lane.b32.xlu0 %v3680, 32
  %v3844 = vpop.permute.xlu0 %3843
  %3845 = vrot.lane.b32.xlu0 %v3681, 32
  %v3846 = vpop.permute.xlu0 %3845
  %3847 = vrot.lane.b32.xlu0 %v3682, 32
  %v3848 = vpop.permute.xlu0 %3847
  %3849 = vrot.lane.b32.xlu0 %v3683, 32
  %v3850 = vpop.permute.xlu0 %3849
  %3851 = vrot.lane.b32.xlu0 %v3684, 32
  %v3852 = vpop.permute.xlu0 %3851
  %3853 = vrot.lane.b32.xlu0 %v3685, 32
  %v3854 = vpop.permute.xlu0 %3853
  %3855 = vrot.lane.b32.xlu0 %v3686, 32
  %v3856 = vpop.permute.xlu0 %3855
  %3857 = vrot.lane.b32.xlu0 %v3687, 32
  %v3858 = vpop.permute.xlu0 %3857
  %3859 = vrot.lane.b32.xlu0 %v3688, 32
  %v3860 = vpop.permute.xlu0 %3859
  %3861 = vrot.lane.b32.xlu0 %v3689, 32
  %v3862 = vpop.permute.xlu0 %3861
  %3863 = vrot.lane.b32.xlu0 %v3690, 32
  %v3864 = vpop.permute.xlu0 %3863
  %3865 = vrot.lane.b32.xlu0 %v3691, 32
  %v3866 = vpop.permute.xlu0 %3865
  %3867 = vrot.lane.b32.xlu0 %v3692, 32
  %v3868 = vpop.permute.xlu0 %3867
  %3869 = vrot.lane.b32.xlu0 %v3693, 32
  %v3870 = vpop.permute.xlu0 %3869
  %3871 = vrot.lane.b32.xlu0 %v3694, 32
  %v3872 = vpop.permute.xlu0 %3871
  %3873 = vrot.lane.b32.xlu0 %v3695, 32
  %v3874 = vpop.permute.xlu0 %3873
  %3875 = vrot.lane.b32.xlu0 %v3696, 32
  %v3876 = vpop.permute.xlu0 %3875
  %3877 = vrot.lane.b32.xlu0 %v3697, 32
  %v3878 = vpop.permute.xlu0 %3877
  %3879 = vrot.lane.b32.xlu0 %v3698, 32
  %v3880 = vpop.permute.xlu0 %3879
  %3881 = vrot.lane.b32.xlu0 %v3699, 32
  %v3882 = vpop.permute.xlu0 %3881
  %3883 = vrot.lane.b32.xlu0 %v3700, 32
  %v3884 = vpop.permute.xlu0 %3883
  %3885 = vrot.lane.b32.xlu0 %v3701, 32
  %v3886 = vpop.permute.xlu0 %3885
  %3887 = vrot.lane.b32.xlu0 %v3702, 32
  %v3888 = vpop.permute.xlu0 %3887
  %3889 = vrot.lane.b32.xlu0 %v3703, 32
  %v3890 = vpop.permute.xlu0 %3889
  %3891 = vrot.lane.b32.xlu0 %v3704, 32
  %v3892 = vpop.permute.xlu0 %3891
  %3893 = vrot.lane.b32.xlu0 %v3705, 32
  %v3894 = vpop.permute.xlu0 %3893
  %3895 = vrot.lane.b32.xlu0 %v3706, 32
  %v3896 = vpop.permute.xlu0 %3895
  %3897 = vrot.lane.b32.xlu0 %v3707, 32
  %v3898 = vpop.permute.xlu0 %3897
  %3899 = vrot.lane.b32.xlu0 %v3708, 32
  %v3900 = vpop.permute.xlu0 %3899
  %3901 = vrot.lane.b32.xlu0 %v3709, 32
  %v3902 = vpop.permute.xlu0 %3901
  %3903 = vrot.lane.b32.xlu0 %v3710, 32
  %v3904 = vpop.permute.xlu0 %3903
  %3905 = vrot.lane.b32.xlu0 %v3711, 32
  %v3906 = vpop.permute.xlu0 %3905
  %3907 = vrot.lane.b32.xlu0 %v3712, 32
  %v3908 = vpop.permute.xlu0 %3907
  %3909 = vrot.lane.b32.xlu0 %v3713, 32
  %v3910 = vpop.permute.xlu0 %3909
  %3911 = vrot.lane.b32.xlu0 %v3714, 32
  %v3912 = vpop.permute.xlu0 %3911
  %3913 = vrot.lane.b32.xlu0 %v3715, 32
  %v3914 = vpop.permute.xlu0 %3913
  %3915 = vrot.lane.b32.xlu0 %v3716, 32
  %v3916 = vpop.permute.xlu0 %3915
  %3917 = vrot.lane.b32.xlu0 %v3717, 32
  %v3918 = vpop.permute.xlu0 %3917
  %3919 = vrot.lane.b32.xlu0 %v3718, 32
  %v3920 = vpop.permute.xlu0 %3919
  %3921 = vrot.lane.b32.xlu0 %v3719, 32
  %v3922 = vpop.permute.xlu0 %3921
  %3923 = vrot.lane.b32.xlu0 %v3720, 32
  %v3924 = vpop.permute.xlu0 %3923
  %3925 = vrot.lane.b32.xlu0 %v3721, 32
  %v3926 = vpop.permute.xlu0 %3925
  %3927 = vrot.lane.b32.xlu0 %v3722, 32
  %v3928 = vpop.permute.xlu0 %3927
  %3929 = vrot.lane.b32.xlu0 %v3723, 32
  %v3930 = vpop.permute.xlu0 %3929
  %3931 = vrot.lane.b32.xlu0 %v3724, 32
  %v3932 = vpop.permute.xlu0 %3931
  %3933 = vrot.lane.b32.xlu0 %v3725, 32
  %v3934 = vpop.permute.xlu0 %3933
  %3935 = vrot.lane.b32.xlu0 %v3726, 32
  %v3936 = vpop.permute.xlu0 %3935
  %3937 = vrot.lane.b32.xlu0 %v3727, 32
  %v3938 = vpop.permute.xlu0 %3937
  %3939 = vrot.lane.b32.xlu0 %v3728, 32
  %v3940 = vpop.permute.xlu0 %3939
  %3941 = vrot.lane.b32.xlu0 %v3729, 32
  %v3942 = vpop.permute.xlu0 %3941
  %3943 = vrot.lane.b32.xlu0 %v3730, 32
  %v3944 = vpop.permute.xlu0 %3943
  %3945 = vrot.lane.b32.xlu0 %v3731, 32
  %v3946 = vpop.permute.xlu0 %3945
  %3947 = vrot.lane.b32.xlu0 %v3732, 32
  %v3948 = vpop.permute.xlu0 %3947
  %3949 = vrot.lane.b32.xlu0 %v3733, 32
  %v3950 = vpop.permute.xlu0 %3949
  %3951 = vrot.lane.b32.xlu0 %v3734, 32
  %v3952 = vpop.permute.xlu0 %3951
  %3953 = vrot.lane.b32.xlu0 %v3735, 32
  %v3954 = vpop.permute.xlu0 %3953
  %3955 = vrot.lane.b32.xlu0 %v3736, 32
  %v3956 = vpop.permute.xlu0 %3955
  %3957 = vrot.lane.b32.xlu0 %v3737, 32
  %v3958 = vpop.permute.xlu0 %3957
  %3959 = vrot.lane.b32.xlu0 %v3738, 32
  %v3960 = vpop.permute.xlu0 %3959
  %3961 = vrot.lane.b32.xlu0 %v3739, 32
  %v3962 = vpop.permute.xlu0 %3961
  %3963 = vrot.lane.b32.xlu0 %v3740, 32
  %v3964 = vpop.permute.xlu0 %3963
  %3965 = vrot.lane.b32.xlu0 %v3741, 32
  %v3966 = vpop.permute.xlu0 %3965
  %3967 = vrot.lane.b32.xlu0 %v3742, 32
  %v3968 = vpop.permute.xlu0 %3967
  %3969 = vrot.lane.b32.xlu0 %v3743, 32
  %v3970 = vpop.permute.xlu0 %3969
  %3971 = vrot.lane.b32.xlu0 %v3744, 32
  %v3972 = vpop.permute.xlu0 %3971
  %3973 = vrot.lane.b32.xlu0 %v3745, 32
  %v3974 = vpop.permute.xlu0 %3973
  %3975 = vrot.lane.b32.xlu0 %v3746, 32
  %v3976 = vpop.permute.xlu0 %3975
  %3977 = vrot.lane.b32.xlu0 %v3747, 32
  %v3978 = vpop.permute.xlu0 %3977
  %3979 = vrot.lane.b32.xlu0 %v3748, 32
  %v3980 = vpop.permute.xlu0 %3979
  %3981 = vrot.lane.b32.xlu0 %v3749, 32
  %v3982 = vpop.permute.xlu0 %3981
  %3983 = vrot.lane.b32.xlu0 %v3750, 32
  %v3984 = vpop.permute.xlu0 %3983
  %3985 = vrot.lane.b32.xlu0 %v3751, 32
  %v3986 = vpop.permute.xlu0 %3985
  %3987 = vrot.lane.b32.xlu0 %v3752, 32
  %v3988 = vpop.permute.xlu0 %3987
  %3989 = vrot.lane.b32.xlu0 %v3753, 32
  %v3990 = vpop.permute.xlu0 %3989
  %3991 = vrot.lane.b32.xlu0 %v3754, 32
  %v3992 = vpop.permute.xlu0 %3991
  %3993 = vrot.lane.b32.xlu0 %v3755, 32
  %v3994 = vpop.permute.xlu0 %3993
  %3995 = vrot.lane.b32.xlu0 %v3756, 32
  %v3996 = vpop.permute.xlu0 %3995
  %3997 = vrot.lane.b32.xlu0 %v3757, 32
  %v3998 = vpop.permute.xlu0 %3997
  %3999 = vrot.lane.b32.xlu0 %v3758, 32
  %v4000 = vpop.permute.xlu0 %3999
  %4001 = vrot.lane.b32.xlu0 %v3759, 32
  %v4002 = vpop.permute.xlu0 %4001
  %vm4084 = vcmask 294144
  %4085 = vst.msk [vmem:[#allocation3] sm:$0xff] %vm4084, %v3842
  %4086 = vst.msk [vmem:[#allocation3 + $0x8] sm:$0xff] %vm4084, %v3844
  %4087 = vst.msk [vmem:[#allocation3 + $0x10] sm:$0xff] %vm4084, %v3846
  %4088 = vst.msk [vmem:[#allocation3 + $0x18] sm:$0xff] %vm4084, %v3848
  %4089 = vst.msk [vmem:[#allocation3 + $0x20] sm:$0xff] %vm4084, %v3850
  %4090 = vst.msk [vmem:[#allocation3 + $0x28] sm:$0xff] %vm4084, %v3852
  %4091 = vst.msk [vmem:[#allocation3 + $0x30] sm:$0xff] %vm4084, %v3854
  %4092 = vst.msk [vmem:[#allocation3 + $0x38] sm:$0xff] %vm4084, %v3856
  %4093 = vst.msk [vmem:[#allocation3 + $0x40] sm:$0xff] %vm4084, %v3858
  %4094 = vst.msk [vmem:[#allocation3 + $0x48] sm:$0xff] %vm4084, %v3860
  %4095 = vst.msk [vmem:[#allocation3 + $0x50] sm:$0xff] %vm4084, %v3862
  %4096 = vst.msk [vmem:[#allocation3 + $0x58] sm:$0xff] %vm4084, %v3864
  %4097 = vst.msk [vmem:[#allocation3 + $0x60] sm:$0xff] %vm4084, %v3866
  %4098 = vst.msk [vmem:[#allocation3 + $0x68] sm:$0xff] %vm4084, %v3868
  %4099 = vst.msk [vmem:[#allocation3 + $0x70] sm:$0xff] %vm4084, %v3870
  %4100 = vst.msk [vmem:[#allocation3 + $0x78] sm:$0xff] %vm4084, %v3872
  %4101 = vst.msk [vmem:[#allocation3 + $0x80] sm:$0xff] %vm4084, %v3874
  %4102 = vst.msk [vmem:[#allocation3 + $0x88] sm:$0xff] %vm4084, %v3876
  %4103 = vst.msk [vmem:[#allocation3 + $0x90] sm:$0xff] %vm4084, %v3878
  %4104 = vst.msk [vmem:[#allocation3 + $0x98] sm:$0xff] %vm4084, %v3880
  %4105 = vst.msk [vmem:[#allocation3 + $0xa0] sm:$0xff] %vm4084, %v3882
  %4106 = vst.msk [vmem:[#allocation3 + $0xa8] sm:$0xff] %vm4084, %v3884
  %4107 = vst.msk [vmem:[#allocation3 + $0xb0] sm:$0xff] %vm4084, %v3886
  %4108 = vst.msk [vmem:[#allocation3 + $0xb8] sm:$0xff] %vm4084, %v3888
  %4109 = vst.msk [vmem:[#allocation3 + $0xc0] sm:$0xff] %vm4084, %v3890
  %4110 = vst.msk [vmem:[#allocation3 + $0xc8] sm:$0xff] %vm4084, %v3892
  %4111 = vst.msk [vmem:[#allocation3 + $0xd0] sm:$0xff] %vm4084, %v3894
  %4112 = vst.msk [vmem:[#allocation3 + $0xd8] sm:$0xff] %vm4084, %v3896
  %4113 = vst.msk [vmem:[#allocation3 + $0xe0] sm:$0xff] %vm4084, %v3898
  %4114 = vst.msk [vmem:[#allocation3 + $0xe8] sm:$0xff] %vm4084, %v3900
  %4115 = vst.msk [vmem:[#allocation3 + $0xf0] sm:$0xff] %vm4084, %v3902
  %4116 = vst.msk [vmem:[#allocation3 + $0xf8] sm:$0xff] %vm4084, %v3904
  %4117 = vst.msk [vmem:[#allocation3 + $0x100] sm:$0xff] %vm4084, %v3906
  %4118 = vst.msk [vmem:[#allocation3 + $0x108] sm:$0xff] %vm4084, %v3908
  %4119 = vst.msk [vmem:[#allocation3 + $0x110] sm:$0xff] %vm4084, %v3910
  %4120 = vst.msk [vmem:[#allocation3 + $0x118] sm:$0xff] %vm4084, %v3912
  %4121 = vst.msk [vmem:[#allocation3 + $0x120] sm:$0xff] %vm4084, %v3914
  %4122 = vst.msk [vmem:[#allocation3 + $0x128] sm:$0xff] %vm4084, %v3916
  %4123 = vst.msk [vmem:[#allocation3 + $0x130] sm:$0xff] %vm4084, %v3918
  %4124 = vst.msk [vmem:[#allocation3 + $0x138] sm:$0xff] %vm4084, %v3920
  %4125 = vst.msk [vmem:[#allocation3 + $0x140] sm:$0xff] %vm4084, %v3922
  %4126 = vst.msk [vmem:[#allocation3 + $0x148] sm:$0xff] %vm4084, %v3924
  %4127 = vst.msk [vmem:[#allocation3 + $0x150] sm:$0xff] %vm4084, %v3926
  %4128 = vst.msk [vmem:[#allocation3 + $0x158] sm:$0xff] %vm4084, %v3928
  %4129 = vst.msk [vmem:[#allocation3 + $0x160] sm:$0xff] %vm4084, %v3930
  %4130 = vst.msk [vmem:[#allocation3 + $0x168] sm:$0xff] %vm4084, %v3932
  %4131 = vst.msk [vmem:[#allocation3 + $0x170] sm:$0xff] %vm4084, %v3934
  %4132 = vst.msk [vmem:[#allocation3 + $0x178] sm:$0xff] %vm4084, %v3936
  %4133 = vst.msk [vmem:[#allocation3 + $0x180] sm:$0xff] %vm4084, %v3938
  %4134 = vst.msk [vmem:[#allocation3 + $0x188] sm:$0xff] %vm4084, %v3940
  %4135 = vst.msk [vmem:[#allocation3 + $0x190] sm:$0xff] %vm4084, %v3942
  %4136 = vst.msk [vmem:[#allocation3 + $0x198] sm:$0xff] %vm4084, %v3944
  %4137 = vst.msk [vmem:[#allocation3 + $0x1a0] sm:$0xff] %vm4084, %v3946
  %4138 = vst.msk [vmem:[#allocation3 + $0x1a8] sm:$0xff] %vm4084, %v3948
  %4139 = vst.msk [vmem:[#allocation3 + $0x1b0] sm:$0xff] %vm4084, %v3950
  %4140 = vst.msk [vmem:[#allocation3 + $0x1b8] sm:$0xff] %vm4084, %v3952
  %4141 = vst.msk [vmem:[#allocation3 + $0x1c0] sm:$0xff] %vm4084, %v3954
  %4142 = vst.msk [vmem:[#allocation3 + $0x1c8] sm:$0xff] %vm4084, %v3956
  %4143 = vst.msk [vmem:[#allocation3 + $0x1d0] sm:$0xff] %vm4084, %v3958
  %4144 = vst.msk [vmem:[#allocation3 + $0x1d8] sm:$0xff] %vm4084, %v3960
  %4145 = vst.msk [vmem:[#allocation3 + $0x1e0] sm:$0xff] %vm4084, %v3962
  %4146 = vst.msk [vmem:[#allocation3 + $0x1e8] sm:$0xff] %vm4084, %v3964
  %4147 = vst.msk [vmem:[#allocation3 + $0x1f0] sm:$0xff] %vm4084, %v3966
  %4148 = vst.msk [vmem:[#allocation3 + $0x1f8] sm:$0xff] %vm4084, %v3968
  %4149 = vst.msk [vmem:[#allocation3 + $0x200] sm:$0xff] %vm4084, %v3970
  %4150 = vst.msk [vmem:[#allocation3 + $0x208] sm:$0xff] %vm4084, %v3972
  %4151 = vst.msk [vmem:[#allocation3 + $0x210] sm:$0xff] %vm4084, %v3974
  %4152 = vst.msk [vmem:[#allocation3 + $0x218] sm:$0xff] %vm4084, %v3976
  %4153 = vst.msk [vmem:[#allocation3 + $0x220] sm:$0xff] %vm4084, %v3978
  %4154 = vst.msk [vmem:[#allocation3 + $0x228] sm:$0xff] %vm4084, %v3980
  %4155 = vst.msk [vmem:[#allocation3 + $0x230] sm:$0xff] %vm4084, %v3982
  %4156 = vst.msk [vmem:[#allocation3 + $0x238] sm:$0xff] %vm4084, %v3984
  %4157 = vst.msk [vmem:[#allocation3 + $0x240] sm:$0xff] %vm4084, %v3986
  %4158 = vst.msk [vmem:[#allocation3 + $0x248] sm:$0xff] %vm4084, %v3988
  %4159 = vst.msk [vmem:[#allocation3 + $0x250] sm:$0xff] %vm4084, %v3990
  %4160 = vst.msk [vmem:[#allocation3 + $0x258] sm:$0xff] %vm4084, %v3992
  %4161 = vst.msk [vmem:[#allocation3 + $0x260] sm:$0xff] %vm4084, %v3994
  %4162 = vst.msk [vmem:[#allocation3 + $0x268] sm:$0xff] %vm4084, %v3996
  %4163 = vst.msk [vmem:[#allocation3 + $0x270] sm:$0xff] %vm4084, %v3998
  %4164 = vst.msk [vmem:[#allocation3 + $0x278] sm:$0xff] %vm4084, %v4000
  %4165 = vst.msk [vmem:[#allocation3 + $0x280] sm:$0xff] %vm4084, %v4002
  %v4166 = vld [vmem:[#allocation3] sm:$0xff]
  %v4167 = vld [vmem:[#allocation3 + $0x8] sm:$0xff]
  %v4168 = vld [vmem:[#allocation3 + $0x10] sm:$0xff]
  %v4169 = vld [vmem:[#allocation3 + $0x18] sm:$0xff]
  %v4170 = vld [vmem:[#allocation3 + $0x20] sm:$0xff]
  %v4171 = vld [vmem:[#allocation3 + $0x28] sm:$0xff]
  %v4172 = vld [vmem:[#allocation3 + $0x30] sm:$0xff]
  %v4173 = vld [vmem:[#allocation3 + $0x38] sm:$0xff]
  %v4174 = vld [vmem:[#allocation3 + $0x40] sm:$0xff]
  %v4175 = vld [vmem:[#allocation3 + $0x48] sm:$0xff]
  %v4176 = vld [vmem:[#allocation3 + $0x50] sm:$0xff]
  %v4177 = vld [vmem:[#allocation3 + $0x58] sm:$0xff]
  %v4178 = vld [vmem:[#allocation3 + $0x60] sm:$0xff]
  %v4179 = vld [vmem:[#allocation3 + $0x68] sm:$0xff]
  %v4180 = vld [vmem:[#allocation3 + $0x70] sm:$0xff]
  %v4181 = vld [vmem:[#allocation3 + $0x78] sm:$0xff]
  %v4182 = vld [vmem:[#allocation3 + $0x80] sm:$0xff]
  %v4183 = vld [vmem:[#allocation3 + $0x88] sm:$0xff]
  %v4184 = vld [vmem:[#allocation3 + $0x90] sm:$0xff]
  %v4185 = vld [vmem:[#allocation3 + $0x98] sm:$0xff]
  %v4186 = vld [vmem:[#allocation3 + $0xa0] sm:$0xff]
  %v4187 = vld [vmem:[#allocation3 + $0xa8] sm:$0xff]
  %v4188 = vld [vmem:[#allocation3 + $0xb0] sm:$0xff]
  %v4189 = vld [vmem:[#allocation3 + $0xb8] sm:$0xff]
  %v4190 = vld [vmem:[#allocation3 + $0xc0] sm:$0xff]
  %v4191 = vld [vmem:[#allocation3 + $0xc8] sm:$0xff]
  %v4192 = vld [vmem:[#allocation3 + $0xd0] sm:$0xff]
  %v4193 = vld [vmem:[#allocation3 + $0xd8] sm:$0xff]
  %v4194 = vld [vmem:[#allocation3 + $0xe0] sm:$0xff]
  %v4195 = vld [vmem:[#allocation3 + $0xe8] sm:$0xff]
  %v4196 = vld [vmem:[#allocation3 + $0xf0] sm:$0xff]
  %v4197 = vld [vmem:[#allocation3 + $0xf8] sm:$0xff]
  %v4198 = vld [vmem:[#allocation3 + $0x100] sm:$0xff]
  %v4199 = vld [vmem:[#allocation3 + $0x108] sm:$0xff]
  %v4200 = vld [vmem:[#allocation3 + $0x110] sm:$0xff]
  %v4201 = vld [vmem:[#allocation3 + $0x118] sm:$0xff]
  %v4202 = vld [vmem:[#allocation3 + $0x120] sm:$0xff]
  %v4203 = vld [vmem:[#allocation3 + $0x128] sm:$0xff]
  %v4204 = vld [vmem:[#allocation3 + $0x130] sm:$0xff]
  %v4205 = vld [vmem:[#allocation3 + $0x138] sm:$0xff]
  %v4206 = vld [vmem:[#allocation3 + $0x140] sm:$0xff]
  %v4207 = vld [vmem:[#allocation3 + $0x148] sm:$0xff]
  %v4208 = vld [vmem:[#allocation3 + $0x150] sm:$0xff]
  %v4209 = vld [vmem:[#allocation3 + $0x158] sm:$0xff]
  %v4210 = vld [vmem:[#allocation3 + $0x160] sm:$0xff]
  %v4211 = vld [vmem:[#allocation3 + $0x168] sm:$0xff]
  %v4212 = vld [vmem:[#allocation3 + $0x170] sm:$0xff]
  %v4213 = vld [vmem:[#allocation3 + $0x178] sm:$0xff]
  %v4214 = vld [vmem:[#allocation3 + $0x180] sm:$0xff]
  %v4215 = vld [vmem:[#allocation3 + $0x188] sm:$0xff]
  %v4216 = vld [vmem:[#allocation3 + $0x190] sm:$0xff]
  %v4217 = vld [vmem:[#allocation3 + $0x198] sm:$0xff]
  %v4218 = vld [vmem:[#allocation3 + $0x1a0] sm:$0xff]
  %v4219 = vld [vmem:[#allocation3 + $0x1a8] sm:$0xff]
  %v4220 = vld [vmem:[#allocation3 + $0x1b0] sm:$0xff]
  %v4221 = vld [vmem:[#allocation3 + $0x1b8] sm:$0xff]
  %v4222 = vld [vmem:[#allocation3 + $0x1c0] sm:$0xff]
  %v4223 = vld [vmem:[#allocation3 + $0x1c8] sm:$0xff]
  %v4224 = vld [vmem:[#allocation3 + $0x1d0] sm:$0xff]
  %v4225 = vld [vmem:[#allocation3 + $0x1d8] sm:$0xff]
  %v4226 = vld [vmem:[#allocation3 + $0x1e0] sm:$0xff]
  %v4227 = vld [vmem:[#allocation3 + $0x1e8] sm:$0xff]
  %v4228 = vld [vmem:[#allocation3 + $0x1f0] sm:$0xff]
  %v4229 = vld [vmem:[#allocation3 + $0x1f8] sm:$0xff]
  %v4230 = vld [vmem:[#allocation3 + $0x200] sm:$0xff]
  %v4231 = vld [vmem:[#allocation3 + $0x208] sm:$0xff]
  %v4232 = vld [vmem:[#allocation3 + $0x210] sm:$0xff]
  %v4233 = vld [vmem:[#allocation3 + $0x218] sm:$0xff]
  %v4234 = vld [vmem:[#allocation3 + $0x220] sm:$0xff]
  %v4235 = vld [vmem:[#allocation3 + $0x228] sm:$0xff]
  %v4236 = vld [vmem:[#allocation3 + $0x230] sm:$0xff]
  %v4237 = vld [vmem:[#allocation3 + $0x238] sm:$0xff]
  %v4238 = vld [vmem:[#allocation3 + $0x240] sm:$0xff]
  %v4239 = vld [vmem:[#allocation3 + $0x248] sm:$0xff]
  %v4240 = vld [vmem:[#allocation3 + $0x250] sm:$0xff]
  %v4241 = vld [vmem:[#allocation3 + $0x258] sm:$0xff]
  %v4242 = vld [vmem:[#allocation3 + $0x260] sm:$0xff]
  %v4243 = vld [vmem:[#allocation3 + $0x268] sm:$0xff]
  %v4244 = vld [vmem:[#allocation3 + $0x270] sm:$0xff]
  %v4245 = vld [vmem:[#allocation3 + $0x278] sm:$0xff]
  %v4246 = vld [vmem:[#allocation3 + $0x280] sm:$0xff]
  %v4247 = vld [vmem:[%s1] sm:$0xff]
  %v4248 = vld [vmem:[%s1 + $0x8] sm:$0xff]
  %v4249 = vld [vmem:[%s1 + $0x10] sm:$0xff]
  %v4250 = vld [vmem:[%s1 + $0x18] sm:$0xff]
  %v4251 = vld [vmem:[%s1 + $0x20] sm:$0xf]
  %v4252 = vld [vmem:[%s2] sm:$0x1]
  %v4254 = vlaneseq
  %v4255 = vshrl.u32 %v4254, 7
  %v4256 = vsub.s32 0, %v4255
  %v4257 = vrot.slane %v4252, %v4256
  %vm4259 = vcmask 293888
  %v4261 = vsel %vm4259, %v4166, 0
  %v4264 = vsel %vm4259, %v4167, 0
  %v4267 = vsel %vm4259, %v4168, 0
  %v4270 = vsel %vm4259, %v4169, 0
  %v4273 = vsel %vm4259, %v4170, 0
  %v4276 = vsel %vm4259, %v4171, 0
  %v4279 = vsel %vm4259, %v4172, 0
  %v4282 = vsel %vm4259, %v4173, 0
  %v4285 = vsel %vm4259, %v4174, 0
  %v4288 = vsel %vm4259, %v4175, 0
  %v4291 = vsel %vm4259, %v4176, 0
  %v4294 = vsel %vm4259, %v4177, 0
  %v4297 = vsel %vm4259, %v4178, 0
  %v4300 = vsel %vm4259, %v4179, 0
  %v4303 = vsel %vm4259, %v4180, 0
  %v4306 = vsel %vm4259, %v4181, 0
  %v4309 = vsel %vm4259, %v4182, 0
  %v4312 = vsel %vm4259, %v4183, 0
  %v4315 = vsel %vm4259, %v4184, 0
  %v4318 = vsel %vm4259, %v4185, 0
  %v4321 = vsel %vm4259, %v4186, 0
  %v4324 = vsel %vm4259, %v4187, 0
  %v4327 = vsel %vm4259, %v4188, 0
  %v4330 = vsel %vm4259, %v4189, 0
  %v4333 = vsel %vm4259, %v4190, 0
  %v4336 = vsel %vm4259, %v4191, 0
  %v4339 = vsel %vm4259, %v4192, 0
  %v4342 = vsel %vm4259, %v4193, 0
  %v4345 = vsel %vm4259, %v4194, 0
  %v4348 = vsel %vm4259, %v4195, 0
  %v4351 = vsel %vm4259, %v4196, 0
  %v4354 = vsel %vm4259, %v4197, 0
  %v4357 = vsel %vm4259, %v4198, 0
  %v4360 = vsel %vm4259, %v4199, 0
  %v4363 = vsel %vm4259, %v4200, 0
  %v4366 = vsel %vm4259, %v4201, 0
  %v4369 = vsel %vm4259, %v4202, 0
  %v4372 = vsel %vm4259, %v4203, 0
  %v4375 = vsel %vm4259, %v4204, 0
  %v4378 = vsel %vm4259, %v4205, 0
  %v4381 = vsel %vm4259, %v4206, 0
  %v4384 = vsel %vm4259, %v4207, 0
  %v4387 = vsel %vm4259, %v4208, 0
  %v4390 = vsel %vm4259, %v4209, 0
  %v4393 = vsel %vm4259, %v4210, 0
  %v4396 = vsel %vm4259, %v4211, 0
  %v4399 = vsel %vm4259, %v4212, 0
  %v4402 = vsel %vm4259, %v4213, 0
  %v4405 = vsel %vm4259, %v4214, 0
  %v4408 = vsel %vm4259, %v4215, 0
  %v4411 = vsel %vm4259, %v4216, 0
  %v4414 = vsel %vm4259, %v4217, 0
  %v4417 = vsel %vm4259, %v4218, 0
  %v4420 = vsel %vm4259, %v4219, 0
  %v4423 = vsel %vm4259, %v4220, 0
  %v4426 = vsel %vm4259, %v4221, 0
  %v4429 = vsel %vm4259, %v4222, 0
  %v4432 = vsel %vm4259, %v4223, 0
  %v4435 = vsel %vm4259, %v4224, 0
  %v4438 = vsel %vm4259, %v4225, 0
  %v4441 = vsel %vm4259, %v4226, 0
  %v4444 = vsel %vm4259, %v4227, 0
  %v4447 = vsel %vm4259, %v4228, 0
  %v4450 = vsel %vm4259, %v4229, 0
  %v4453 = vsel %vm4259, %v4230, 0
  %v4456 = vsel %vm4259, %v4231, 0
  %v4459 = vsel %vm4259, %v4232, 0
  %v4462 = vsel %vm4259, %v4233, 0
  %v4465 = vsel %vm4259, %v4234, 0
  %v4468 = vsel %vm4259, %v4235, 0
  %v4471 = vsel %vm4259, %v4236, 0
  %v4474 = vsel %vm4259, %v4237, 0
  %v4477 = vsel %vm4259, %v4238, 0
  %v4480 = vsel %vm4259, %v4239, 0
  %v4483 = vsel %vm4259, %v4240, 0
  %v4486 = vsel %vm4259, %v4241, 0
  %v4489 = vsel %vm4259, %v4242, 0
  %v4492 = vsel %vm4259, %v4243, 0
  %v4495 = vsel %vm4259, %v4244, 0
  %v4498 = vsel %vm4259, %v4245, 0
  %v4501 = vsel %vm4259, %v4246, 0
  %vm4503 = vcmask 1043456
  %v4505 = vsel %vm4503, %v4251, 0
  %4507 = vmatprep.subr.mxu0 0.0
  %4508 = vmatpush1.msra.mxu0 %v4247
  %4509 = vmatprep.subr.mxu0 0.0
  %4510 = vmatpush1.msra.mxu0 %v4248
  %4511 = vmatprep.subr.mxu0 0.0
  %4512 = vmatpush1.msra.mxu0 %v4249
  %4513 = vmatprep.subr.mxu0 0.0
  %4514 = vmatpush1.msra.mxu0 %v4250
  %4515 = vmatprep.subr.mxu0 0.0
  %4516 = vmatpush1.msra.mxu0 %v4505
  %4517 = vmatprep.subr.mxu0 0.0
  %4518 = vmatpush1.msra.mxu0 0.0
  %4519 = vmatprep.subr.mxu0 0.0
  %4520 = vmatpush1.msra.mxu0 0.0
  %4521 = vmatprep.subr.mxu0 0.0
  %4522 = vmatpush1.msra.mxu0 0.0
  %4523 = vmatprep.subr.mxu0 0.0
  %4524 = vmatpush1.msra.mxu0 0.0
  %4525 = vmatprep.subr.mxu0 0.0
  %4526 = vmatpush1.msra.mxu0 0.0
  %4527 = vmatprep.subr.mxu0 0.0
  %4528 = vmatpush1.msra.mxu0 0.0
  %4529 = vmatprep.subr.mxu0 0.0
  %4530 = vmatpush1.msra.mxu0 0.0
  %4531 = vmatprep.subr.mxu0 0.0
  %4532 = vmatpush1.msra.mxu0 0.0
  %4533 = vmatprep.subr.mxu0 0.0
  %4534 = vmatpush1.msra.mxu0 0.0
  %4535 = vmatprep.subr.mxu0 0.0
  %4536 = vmatpush1.msra.mxu0 0.0
  %4537 = vmatprep.subr.mxu0 0.0
  %4538 = vmatpush1.msra.mxu0 0.0
  %4539 = vmatprep.subr.mxu0 0.0
  %4540 = vmatpush1.msra.mxu0 0.0
  %4541 = vmatprep.subr.mxu0 0.0
  %4542 = vmatpush1.msra.mxu0 0.0
  %4543 = vmatprep.subr.mxu0 0.0
  %4544 = vmatpush1.msra.mxu0 0.0
  %4545 = vmatprep.subr.mxu0 0.0
  %4546 = vmatpush1.msra.mxu0 0.0
  %4547 = vmatprep.subr.mxu0 0.0
  %4548 = vmatpush1.msra.mxu0 0.0
  %4549 = vmatprep.subr.mxu0 0.0
  %4550 = vmatpush1.msra.mxu0 0.0
  %4551 = vmatprep.subr.mxu0 0.0
  %4552 = vmatpush1.msra.mxu0 0.0
  %4553 = vmatprep.subr.mxu0 0.0
  %4554 = vmatpush1.msra.mxu0 0.0
  %4555 = vmatprep.subr.mxu0 0.0
  %4556 = vmatpush1.msra.mxu0 0.0
  %4557 = vmatprep.subr.mxu0 0.0
  %4558 = vmatpush1.msra.mxu0 0.0
  %4559 = vmatprep.subr.mxu0 0.0
  %4560 = vmatpush1.msra.mxu0 0.0
  %4561 = vmatprep.subr.mxu0 0.0
  %4562 = vmatpush1.msra.mxu0 0.0
  %4563 = vmatprep.subr.mxu0 0.0
  %4564 = vmatpush1.msra.mxu0 0.0
  %4565 = vmatprep.subr.mxu0 0.0
  %4566 = vmatpush1.msra.mxu0 0.0
  %4567 = vmatprep.subr.mxu0 0.0
  %4568 = vmatpush1.msra.mxu0 0.0
  %4569 = vmatprep.subr.mxu0 0.0
  %4570 = vmatpush1.msra.mxu0 0.0
  %4571 = vmatprep.mubr.f32.mxu0 0.0
  %4572 = vmatmul.mubr.f32.gmra.mrb[0].mxu0 %v4261
  %v4573 = vpop.f32.mrb[0].mxu0
  %v4574 = vadd.f32 %v4257, %v4573
  %v4575 = vpop.f32.mrb[0].mxu0
  %4576 = vmatprep.mubr.f32.mxu0 0.0
  %4577 = vmatmul.mubr.f32.gmra.mrb[0].mxu0 %v4264
  %v4578 = vpop.f32.mrb[0].mxu0
  %v4579 = vadd.f32 %v4257, %v4578
  %v4580 = vpop.f32.mrb[0].mxu0
  %4581 = vmatprep.mubr.f32.mxu0 0.0
  %4582 = vmatmul.mubr.f32.gmra.mrb[0].mxu0 %v4267
  %v4583 = vpop.f32.mrb[0].mxu0
  %v4584 = vadd.f32 %v4257, %v4583
  %v4585 = vpop.f32.mrb[0].mxu0
  %4586 = vmatprep.mubr.f32.mxu0 0.0
  %4587 = vmatmul.mubr.f32.gmra.mrb[0].mxu0 %v4270
  %v4588 = vpop.f32.mrb[0].mxu0
  %v4589 = vadd.f32 %v4257, %v4588
  %v4590 = vpop.f32.mrb[0].mxu0
  %4591 = vmatprep.mubr.f32.mxu0 0.0
  %4592 = vmatmul.mubr.f32.gmra.mrb[0].mxu0 %v4273
  %v4593 = vpop.f32.mrb[0].mxu0
  %v4594 = vadd.f32 %v4257, %v4593
  %v4595 = vpop.f32.mrb[0].mxu0
  %4596 = vmatprep.mubr.f32.mxu0 0.0
  %4597 = vmatmul.mubr.f32.gmra.mrb[0].mxu0 %v4276
  %v4598 = vpop.f32.mrb[0].mxu0
  %v4599 = vadd.f32 %v4257, %v4598
  %v4600 = vpop.f32.mrb[0].mxu0
  %4601 = vmatprep.mubr.f32.mxu0 0.0
  %4602 = vmatmul.mubr.f32.gmra.mrb[0].mxu0 %v4279
  %v4603 = vpop.f32.mrb[0].mxu0
  %v4604 = vadd.f32 %v4257, %v4603
  %v4605 = vpop.f32.mrb[0].mxu0
  %4606 = vmatprep.mubr.f32.mxu0 0.0
  %4607 = vmatmul.mubr.f32.gmra.mrb[0].mxu0 %v4282
  %v4608 = vpop.f32.mrb[0].mxu0
  %v4609 = vadd.f32 %v4257, %v4608
  %v4610 = vpop.f32.mrb[0].mxu0
  %4611 = vmatprep.mubr.f32.mxu0 0.0
  %4612 = vmatmul.mubr.f32.gmra.mrb[0].mxu0 %v4285
  %v4613 = vpop.f32.mrb[0].mxu0
  %v4614 = vadd.f32 %v4257, %v4613
  %v4615 = vpop.f32.mrb[0].mxu0
  %4616 = vmatprep.mubr.f32.mxu0 0.0
  %4617 = vmatmul.mubr.f32.gmra.mrb[0].mxu0 %v4288
  %v4618 = vpop.f32.mrb[0].mxu0
  %v4619 = vadd.f32 %v4257, %v4618
  %v4620 = vpop.f32.mrb[0].mxu0
  %4621 = vmatprep.mubr.f32.mxu0 0.0
  %4622 = vmatmul.mubr.f32.gmra.mrb[0].mxu0 %v4291
  %v4623 = vpop.f32.mrb[0].mxu0
  %v4624 = vadd.f32 %v4257, %v4623
  %v4625 = vpop.f32.mrb[0].mxu0
  %4626 = vmatprep.mubr.f32.mxu0 0.0
  %4627 = vmatmul.mubr.f32.gmra.mrb[0].mxu0 %v4294
  %v4628 = vpop.f32.mrb[0].mxu0
  %v4629 = vadd.f32 %v4257, %v4628
  %v4630 = vpop.f32.mrb[0].mxu0
  %4631 = vmatprep.mubr.f32.mxu0 0.0
  %4632 = vmatmul.mubr.f32.gmra.mrb[0].mxu0 %v4297
  %v4633 = vpop.f32.mrb[0].mxu0
  %v4634 = vadd.f32 %v4257, %v4633
  %v4635 = vpop.f32.mrb[0].mxu0
  %4636 = vmatprep.mubr.f32.mxu0 0.0
  %4637 = vmatmul.mubr.f32.gmra.mrb[0].mxu0 %v4300
  %v4638 = vpop.f32.mrb[0].mxu0
  %v4639 = vadd.f32 %v4257, %v4638
  %v4640 = vpop.f32.mrb[0].mxu0
  %4641 = vmatprep.mubr.f32.mxu0 0.0
  %4642 = vmatmul.mubr.f32.gmra.mrb[0].mxu0 %v4303
  %v4643 = vpop.f32.mrb[0].mxu0
  %v4644 = vadd.f32 %v4257, %v4643
  %v4645 = vpop.f32.mrb[0].mxu0
  %4646 = vmatprep.mubr.f32.mxu0 0.0
  %4647 = vmatmul.mubr.f32.gmra.mrb[0].mxu0 %v4306
  %v4648 = vpop.f32.mrb[0].mxu0
  %v4649 = vadd.f32 %v4257, %v4648
  %v4650 = vpop.f32.mrb[0].mxu0
  %4651 = vmatprep.mubr.f32.mxu0 0.0
  %4652 = vmatmul.mubr.f32.gmra.mrb[0].mxu0 %v4309
  %v4653 = vpop.f32.mrb[0].mxu0
  %v4654 = vadd.f32 %v4257, %v4653
  %v4655 = vpop.f32.mrb[0].mxu0
  %4656 = vmatprep.mubr.f32.mxu0 0.0
  %4657 = vmatmul.mubr.f32.gmra.mrb[0].mxu0 %v4312
  %v4658 = vpop.f32.mrb[0].mxu0
  %v4659 = vadd.f32 %v4257, %v4658
  %v4660 = vpop.f32.mrb[0].mxu0
  %4661 = vmatprep.mubr.f32.mxu0 0.0
  %4662 = vmatmul.mubr.f32.gmra.mrb[0].mxu0 %v4315
  %v4663 = vpop.f32.mrb[0].mxu0
  %v4664 = vadd.f32 %v4257, %v4663
  %v4665 = vpop.f32.mrb[0].mxu0
  %4666 = vmatprep.mubr.f32.mxu0 0.0
  %4667 = vmatmul.mubr.f32.gmra.mrb[0].mxu0 %v4318
  %v4668 = vpop.f32.mrb[0].mxu0
  %v4669 = vadd.f32 %v4257, %v4668
  %v4670 = vpop.f32.mrb[0].mxu0
  %4671 = vmatprep.mubr.f32.mxu0 0.0
  %4672 = vmatmul.mubr.f32.gmra.mrb[0].mxu0 %v4321
  %v4673 = vpop.f32.mrb[0].mxu0
  %v4674 = vadd.f32 %v4257, %v4673
  %v4675 = vpop.f32.mrb[0].mxu0
  %4676 = vmatprep.mubr.f32.mxu0 0.0
  %4677 = vmatmul.mubr.f32.gmra.mrb[0].mxu0 %v4324
  %v4678 = vpop.f32.mrb[0].mxu0
  %v4679 = vadd.f32 %v4257, %v4678
  %v4680 = vpop.f32.mrb[0].mxu0
  %4681 = vmatprep.mubr.f32.mxu0 0.0
  %4682 = vmatmul.mubr.f32.gmra.mrb[0].mxu0 %v4327
  %v4683 = vpop.f32.mrb[0].mxu0
  %v4684 = vadd.f32 %v4257, %v4683
  %v4685 = vpop.f32.mrb[0].mxu0
  %4686 = vmatprep.mubr.f32.mxu0 0.0
  %4687 = vmatmul.mubr.f32.gmra.mrb[0].mxu0 %v4330
  %v4688 = vpop.f32.mrb[0].mxu0
  %v4689 = vadd.f32 %v4257, %v4688
  %v4690 = vpop.f32.mrb[0].mxu0
  %4691 = vmatprep.mubr.f32.mxu0 0.0
  %4692 = vmatmul.mubr.f32.gmra.mrb[0].mxu0 %v4333
  %v4693 = vpop.f32.mrb[0].mxu0
  %v4694 = vadd.f32 %v4257, %v4693
  %v4695 = vpop.f32.mrb[0].mxu0
  %4696 = vmatprep.mubr.f32.mxu0 0.0
  %4697 = vmatmul.mubr.f32.gmra.mrb[0].mxu0 %v4336
  %v4698 = vpop.f32.mrb[0].mxu0
  %v4699 = vadd.f32 %v4257, %v4698
  %v4700 = vpop.f32.mrb[0].mxu0
  %4701 = vmatprep.mubr.f32.mxu0 0.0
  %4702 = vmatmul.mubr.f32.gmra.mrb[0].mxu0 %v4339
  %v4703 = vpop.f32.mrb[0].mxu0
  %v4704 = vadd.f32 %v4257, %v4703
  %v4705 = vpop.f32.mrb[0].mxu0
  %4706 = vmatprep.mubr.f32.mxu0 0.0
  %4707 = vmatmul.mubr.f32.gmra.mrb[0].mxu0 %v4342
  %v4708 = vpop.f32.mrb[0].mxu0
  %v4709 = vadd.f32 %v4257, %v4708
  %v4710 = vpop.f32.mrb[0].mxu0
  %4711 = vmatprep.mubr.f32.mxu0 0.0
  %4712 = vmatmul.mubr.f32.gmra.mrb[0].mxu0 %v4345
  %v4713 = vpop.f32.mrb[0].mxu0
  %v4714 = vadd.f32 %v4257, %v4713
  %v4715 = vpop.f32.mrb[0].mxu0
  %4716 = vmatprep.mubr.f32.mxu0 0.0
  %4717 = vmatmul.mubr.f32.gmra.mrb[0].mxu0 %v4348
  %v4718 = vpop.f32.mrb[0].mxu0
  %v4719 = vadd.f32 %v4257, %v4718
  %v4720 = vpop.f32.mrb[0].mxu0
  %4721 = vmatprep.mubr.f32.mxu0 0.0
  %4722 = vmatmul.mubr.f32.gmra.mrb[0].mxu0 %v4351
  %v4723 = vpop.f32.mrb[0].mxu0
  %v4724 = vadd.f32 %v4257, %v4723
  %v4725 = vpop.f32.mrb[0].mxu0
  %4726 = vmatprep.mubr.f32.mxu0 0.0
  %4727 = vmatmul.mubr.f32.gmra.mrb[0].mxu0 %v4354
  %v4728 = vpop.f32.mrb[0].mxu0
  %v4729 = vadd.f32 %v4257, %v4728
  %v4730 = vpop.f32.mrb[0].mxu0
  %4731 = vmatprep.mubr.f32.mxu0 0.0
  %4732 = vmatmul.mubr.f32.gmra.mrb[0].mxu0 %v4357
  %v4733 = vpop.f32.mrb[0].mxu0
  %v4734 = vadd.f32 %v4257, %v4733
  %v4735 = vpop.f32.mrb[0].mxu0
  %4736 = vmatprep.mubr.f32.mxu0 0.0
  %4737 = vmatmul.mubr.f32.gmra.mrb[0].mxu0 %v4360
  %v4738 = vpop.f32.mrb[0].mxu0
  %v4739 = vadd.f32 %v4257, %v4738
  %v4740 = vpop.f32.mrb[0].mxu0
  %4741 = vmatprep.mubr.f32.mxu0 0.0
  %4742 = vmatmul.mubr.f32.gmra.mrb[0].mxu0 %v4363
  %v4743 = vpop.f32.mrb[0].mxu0
  %v4744 = vadd.f32 %v4257, %v4743
  %v4745 = vpop.f32.mrb[0].mxu0
  %4746 = vmatprep.mubr.f32.mxu0 0.0
  %4747 = vmatmul.mubr.f32.gmra.mrb[0].mxu0 %v4366
  %v4748 = vpop.f32.mrb[0].mxu0
  %v4749 = vadd.f32 %v4257, %v4748
  %v4750 = vpop.f32.mrb[0].mxu0
  %4751 = vmatprep.mubr.f32.mxu0 0.0
  %4752 = vmatmul.mubr.f32.gmra.mrb[0].mxu0 %v4369
  %v4753 = vpop.f32.mrb[0].mxu0
  %v4754 = vadd.f32 %v4257, %v4753
  %v4755 = vpop.f32.mrb[0].mxu0
  %4756 = vmatprep.mubr.f32.mxu0 0.0
  %4757 = vmatmul.mubr.f32.gmra.mrb[0].mxu0 %v4372
  %v4758 = vpop.f32.mrb[0].mxu0
  %v4759 = vadd.f32 %v4257, %v4758
  %v4760 = vpop.f32.mrb[0].mxu0
  %4761 = vmatprep.mubr.f32.mxu0 0.0
  %4762 = vmatmul.mubr.f32.gmra.mrb[0].mxu0 %v4375
  %v4763 = vpop.f32.mrb[0].mxu0
  %v4764 = vadd.f32 %v4257, %v4763
  %v4765 = vpop.f32.mrb[0].mxu0
  %4766 = vmatprep.mubr.f32.mxu0 0.0
  %4767 = vmatmul.mubr.f32.gmra.mrb[0].mxu0 %v4378
  %v4768 = vpop.f32.mrb[0].mxu0
  %v4769 = vadd.f32 %v4257, %v4768
  %v4770 = vpop.f32.mrb[0].mxu0
  %4771 = vmatprep.mubr.f32.mxu0 0.0
  %4772 = vmatmul.mubr.f32.gmra.mrb[0].mxu0 %v4381
  %v4773 = vpop.f32.mrb[0].mxu0
  %v4774 = vadd.f32 %v4257, %v4773
  %v4775 = vpop.f32.mrb[0].mxu0
  %4776 = vmatprep.mubr.f32.mxu0 0.0
  %4777 = vmatmul.mubr.f32.gmra.mrb[0].mxu0 %v4384
  %v4778 = vpop.f32.mrb[0].mxu0
  %v4779 = vadd.f32 %v4257, %v4778
  %v4780 = vpop.f32.mrb[0].mxu0
  %4781 = vmatprep.mubr.f32.mxu0 0.0
  %4782 = vmatmul.mubr.f32.gmra.mrb[0].mxu0 %v4387
  %v4783 = vpop.f32.mrb[0].mxu0
  %v4784 = vadd.f32 %v4257, %v4783
  %v4785 = vpop.f32.mrb[0].mxu0
  %4786 = vmatprep.mubr.f32.mxu0 0.0
  %4787 = vmatmul.mubr.f32.gmra.mrb[0].mxu0 %v4390
  %v4788 = vpop.f32.mrb[0].mxu0
  %v4789 = vadd.f32 %v4257, %v4788
  %v4790 = vpop.f32.mrb[0].mxu0
  %4791 = vmatprep.mubr.f32.mxu0 0.0
  %4792 = vmatmul.mubr.f32.gmra.mrb[0].mxu0 %v4393
  %v4793 = vpop.f32.mrb[0].mxu0
  %v4794 = vadd.f32 %v4257, %v4793
  %v4795 = vpop.f32.mrb[0].mxu0
  %4796 = vmatprep.mubr.f32.mxu0 0.0
  %4797 = vmatmul.mubr.f32.gmra.mrb[0].mxu0 %v4396
  %v4798 = vpop.f32.mrb[0].mxu0
  %v4799 = vadd.f32 %v4257, %v4798
  %v4800 = vpop.f32.mrb[0].mxu0
  %4801 = vmatprep.mubr.f32.mxu0 0.0
  %4802 = vmatmul.mubr.f32.gmra.mrb[0].mxu0 %v4399
  %v4803 = vpop.f32.mrb[0].mxu0
  %v4804 = vadd.f32 %v4257, %v4803
  %v4805 = vpop.f32.mrb[0].mxu0
  %4806 = vmatprep.mubr.f32.mxu0 0.0
  %4807 = vmatmul.mubr.f32.gmra.mrb[0].mxu0 %v4402
  %v4808 = vpop.f32.mrb[0].mxu0
  %v4809 = vadd.f32 %v4257, %v4808
  %v4810 = vpop.f32.mrb[0].mxu0
  %4811 = vmatprep.mubr.f32.mxu0 0.0
  %4812 = vmatmul.mubr.f32.gmra.mrb[0].mxu0 %v4405
  %v4813 = vpop.f32.mrb[0].mxu0
  %v4814 = vadd.f32 %v4257, %v4813
  %v4815 = vpop.f32.mrb[0].mxu0
  %4816 = vmatprep.mubr.f32.mxu0 0.0
  %4817 = vmatmul.mubr.f32.gmra.mrb[0].mxu0 %v4408
  %v4818 = vpop.f32.mrb[0].mxu0
  %v4819 = vadd.f32 %v4257, %v4818
  %v4820 = vpop.f32.mrb[0].mxu0
  %4821 = vmatprep.mubr.f32.mxu0 0.0
  %4822 = vmatmul.mubr.f32.gmra.mrb[0].mxu0 %v4411
  %v4823 = vpop.f32.mrb[0].mxu0
  %v4824 = vadd.f32 %v4257, %v4823
  %v4825 = vpop.f32.mrb[0].mxu0
  %4826 = vmatprep.mubr.f32.mxu0 0.0
  %4827 = vmatmul.mubr.f32.gmra.mrb[0].mxu0 %v4414
  %v4828 = vpop.f32.mrb[0].mxu0
  %v4829 = vadd.f32 %v4257, %v4828
  %v4830 = vpop.f32.mrb[0].mxu0
  %4831 = vmatprep.mubr.f32.mxu0 0.0
  %4832 = vmatmul.mubr.f32.gmra.mrb[0].mxu0 %v4417
  %v4833 = vpop.f32.mrb[0].mxu0
  %v4834 = vadd.f32 %v4257, %v4833
  %v4835 = vpop.f32.mrb[0].mxu0
  %4836 = vmatprep.mubr.f32.mxu0 0.0
  %4837 = vmatmul.mubr.f32.gmra.mrb[0].mxu0 %v4420
  %v4838 = vpop.f32.mrb[0].mxu0
  %v4839 = vadd.f32 %v4257, %v4838
  %v4840 = vpop.f32.mrb[0].mxu0
  %4841 = vmatprep.mubr.f32.mxu0 0.0
  %4842 = vmatmul.mubr.f32.gmra.mrb[0].mxu0 %v4423
  %v4843 = vpop.f32.mrb[0].mxu0
  %v4844 = vadd.f32 %v4257, %v4843
  %v4845 = vpop.f32.mrb[0].mxu0
  %4846 = vmatprep.mubr.f32.mxu0 0.0
  %4847 = vmatmul.mubr.f32.gmra.mrb[0].mxu0 %v4426
  %v4848 = vpop.f32.mrb[0].mxu0
  %v4849 = vadd.f32 %v4257, %v4848
  %v4850 = vpop.f32.mrb[0].mxu0
  %4851 = vmatprep.mubr.f32.mxu0 0.0
  %4852 = vmatmul.mubr.f32.gmra.mrb[0].mxu0 %v4429
  %v4853 = vpop.f32.mrb[0].mxu0
  %v4854 = vadd.f32 %v4257, %v4853
  %v4855 = vpop.f32.mrb[0].mxu0
  %4856 = vmatprep.mubr.f32.mxu0 0.0
  %4857 = vmatmul.mubr.f32.gmra.mrb[0].mxu0 %v4432
  %v4858 = vpop.f32.mrb[0].mxu0
  %v4859 = vadd.f32 %v4257, %v4858
  %v4860 = vpop.f32.mrb[0].mxu0
  %4861 = vmatprep.mubr.f32.mxu0 0.0
  %4862 = vmatmul.mubr.f32.gmra.mrb[0].mxu0 %v4435
  %v4863 = vpop.f32.mrb[0].mxu0
  %v4864 = vadd.f32 %v4257, %v4863
  %v4865 = vpop.f32.mrb[0].mxu0
  %4866 = vmatprep.mubr.f32.mxu0 0.0
  %4867 = vmatmul.mubr.f32.gmra.mrb[0].mxu0 %v4438
  %v4868 = vpop.f32.mrb[0].mxu0
  %v4869 = vadd.f32 %v4257, %v4868
  %v4870 = vpop.f32.mrb[0].mxu0
  %4871 = vmatprep.mubr.f32.mxu0 0.0
  %4872 = vmatmul.mubr.f32.gmra.mrb[0].mxu0 %v4441
  %v4873 = vpop.f32.mrb[0].mxu0
  %v4874 = vadd.f32 %v4257, %v4873
  %v4875 = vpop.f32.mrb[0].mxu0
  %4876 = vmatprep.mubr.f32.mxu0 0.0
  %4877 = vmatmul.mubr.f32.gmra.mrb[0].mxu0 %v4444
  %v4878 = vpop.f32.mrb[0].mxu0
  %v4879 = vadd.f32 %v4257, %v4878
  %v4880 = vpop.f32.mrb[0].mxu0
  %4881 = vmatprep.mubr.f32.mxu0 0.0
  %4882 = vmatmul.mubr.f32.gmra.mrb[0].mxu0 %v4447
  %v4883 = vpop.f32.mrb[0].mxu0
  %v4884 = vadd.f32 %v4257, %v4883
  %v4885 = vpop.f32.mrb[0].mxu0
  %4886 = vmatprep.mubr.f32.mxu0 0.0
  %4887 = vmatmul.mubr.f32.gmra.mrb[0].mxu0 %v4450
  %v4888 = vpop.f32.mrb[0].mxu0
  %v4889 = vadd.f32 %v4257, %v4888
  %v4890 = vpop.f32.mrb[0].mxu0
  %4891 = vmatprep.mubr.f32.mxu0 0.0
  %4892 = vmatmul.mubr.f32.gmra.mrb[0].mxu0 %v4453
  %v4893 = vpop.f32.mrb[0].mxu0
  %v4894 = vadd.f32 %v4257, %v4893
  %v4895 = vpop.f32.mrb[0].mxu0
  %4896 = vmatprep.mubr.f32.mxu0 0.0
  %4897 = vmatmul.mubr.f32.gmra.mrb[0].mxu0 %v4456
  %v4898 = vpop.f32.mrb[0].mxu0
  %v4899 = vadd.f32 %v4257, %v4898
  %v4900 = vpop.f32.mrb[0].mxu0
  %4901 = vmatprep.mubr.f32.mxu0 0.0
  %4902 = vmatmul.mubr.f32.gmra.mrb[0].mxu0 %v4459
  %v4903 = vpop.f32.mrb[0].mxu0
  %v4904 = vadd.f32 %v4257, %v4903
  %v4905 = vpop.f32.mrb[0].mxu0
  %4906 = vmatprep.mubr.f32.mxu0 0.0
  %4907 = vmatmul.mubr.f32.gmra.mrb[0].mxu0 %v4462
  %v4908 = vpop.f32.mrb[0].mxu0
  %v4909 = vadd.f32 %v4257, %v4908
  %v4910 = vpop.f32.mrb[0].mxu0
  %4911 = vmatprep.mubr.f32.mxu0 0.0
  %4912 = vmatmul.mubr.f32.gmra.mrb[0].mxu0 %v4465
  %v4913 = vpop.f32.mrb[0].mxu0
  %v4914 = vadd.f32 %v4257, %v4913
  %v4915 = vpop.f32.mrb[0].mxu0
  %4916 = vmatprep.mubr.f32.mxu0 0.0
  %4917 = vmatmul.mubr.f32.gmra.mrb[0].mxu0 %v4468
  %v4918 = vpop.f32.mrb[0].mxu0
  %v4919 = vadd.f32 %v4257, %v4918
  %v4920 = vpop.f32.mrb[0].mxu0
  %4921 = vmatprep.mubr.f32.mxu0 0.0
  %4922 = vmatmul.mubr.f32.gmra.mrb[0].mxu0 %v4471
  %v4923 = vpop.f32.mrb[0].mxu0
  %v4924 = vadd.f32 %v4257, %v4923
  %v4925 = vpop.f32.mrb[0].mxu0
  %4926 = vmatprep.mubr.f32.mxu0 0.0
  %4927 = vmatmul.mubr.f32.gmra.mrb[0].mxu0 %v4474
  %v4928 = vpop.f32.mrb[0].mxu0
  %v4929 = vadd.f32 %v4257, %v4928
  %v4930 = vpop.f32.mrb[0].mxu0
  %4931 = vmatprep.mubr.f32.mxu0 0.0
  %4932 = vmatmul.mubr.f32.gmra.mrb[0].mxu0 %v4477
  %v4933 = vpop.f32.mrb[0].mxu0
  %v4934 = vadd.f32 %v4257, %v4933
  %v4935 = vpop.f32.mrb[0].mxu0
  %4936 = vmatprep.mubr.f32.mxu0 0.0
  %4937 = vmatmul.mubr.f32.gmra.mrb[0].mxu0 %v4480
  %v4938 = vpop.f32.mrb[0].mxu0
  %v4939 = vadd.f32 %v4257, %v4938
  %v4940 = vpop.f32.mrb[0].mxu0
  %4941 = vmatprep.mubr.f32.mxu0 0.0
  %4942 = vmatmul.mubr.f32.gmra.mrb[0].mxu0 %v4483
  %v4943 = vpop.f32.mrb[0].mxu0
  %v4944 = vadd.f32 %v4257, %v4943
  %v4945 = vpop.f32.mrb[0].mxu0
  %4946 = vmatprep.mubr.f32.mxu0 0.0
  %4947 = vmatmul.mubr.f32.gmra.mrb[0].mxu0 %v4486
  %v4948 = vpop.f32.mrb[0].mxu0
  %v4949 = vadd.f32 %v4257, %v4948
  %v4950 = vpop.f32.mrb[0].mxu0
  %4951 = vmatprep.mubr.f32.mxu0 0.0
  %4952 = vmatmul.mubr.f32.gmra.mrb[0].mxu0 %v4489
  %v4953 = vpop.f32.mrb[0].mxu0
  %v4954 = vadd.f32 %v4257, %v4953
  %v4955 = vpop.f32.mrb[0].mxu0
  %4956 = vmatprep.mubr.f32.mxu0 0.0
  %4957 = vmatmul.mubr.f32.gmra.mrb[0].mxu0 %v4492
  %v4958 = vpop.f32.mrb[0].mxu0
  %v4959 = vadd.f32 %v4257, %v4958
  %v4960 = vpop.f32.mrb[0].mxu0
  %4961 = vmatprep.mubr.f32.mxu0 0.0
  %4962 = vmatmul.mubr.f32.gmra.mrb[0].mxu0 %v4495
  %v4963 = vpop.f32.mrb[0].mxu0
  %v4964 = vadd.f32 %v4257, %v4963
  %v4965 = vpop.f32.mrb[0].mxu0
  %4966 = vmatprep.mubr.f32.mxu0 0.0
  %4967 = vmatmul.mubr.f32.gmra.mrb[0].mxu0 %v4498
  %v4968 = vpop.f32.mrb[0].mxu0
  %v4969 = vadd.f32 %v4257, %v4968
  %v4970 = vpop.f32.mrb[0].mxu0
  %4971 = vmatprep.mubr.f32.mxu0 0.0
  %4972 = vmatmul.mubr.f32.gmra.mrb[0].mxu0 %v4501
  %v4973 = vpop.f32.mrb[0].mxu0
  %v4974 = vadd.f32 %v4257, %v4973
  %v4975 = vpop.f32.mrb[0].mxu0
  %4976 = vdwg.mxu0
  %vm4977 = vcmp.ge.f32.partialorder %v4574, 0.0
  %vm4978 = vcmp.ge.f32.partialorder %v4579, 0.0
  %vm4979 = vcmp.ge.f32.partialorder %v4584, 0.0
  %vm4980 = vcmp.ge.f32.partialorder %v4589, 0.0
  %vm4981 = vcmp.ge.f32.partialorder %v4594, 0.0
  %vm4982 = vcmp.ge.f32.partialorder %v4599, 0.0
  %vm4983 = vcmp.ge.f32.partialorder %v4604, 0.0
  %vm4984 = vcmp.ge.f32.partialorder %v4609, 0.0
  %vm4985 = vcmp.ge.f32.partialorder %v4614, 0.0
  %vm4986 = vcmp.ge.f32.partialorder %v4619, 0.0
  %vm4987 = vcmp.ge.f32.partialorder %v4624, 0.0
  %vm4988 = vcmp.ge.f32.partialorder %v4629, 0.0
  %vm4989 = vcmp.ge.f32.partialorder %v4634, 0.0
  %vm4990 = vcmp.ge.f32.partialorder %v4639, 0.0
  %vm4991 = vcmp.ge.f32.partialorder %v4644, 0.0
  %vm4992 = vcmp.ge.f32.partialorder %v4649, 0.0
  %vm4993 = vcmp.ge.f32.partialorder %v4654, 0.0
  %vm4994 = vcmp.ge.f32.partialorder %v4659, 0.0
  %vm4995 = vcmp.ge.f32.partialorder %v4664, 0.0
  %vm4996 = vcmp.ge.f32.partialorder %v4669, 0.0
  %vm4997 = vcmp.ge.f32.partialorder %v4674, 0.0
  %vm4998 = vcmp.ge.f32.partialorder %v4679, 0.0
  %vm4999 = vcmp.ge.f32.partialorder %v4684, 0.0
  %vm5000 = vcmp.ge.f32.partialorder %v4689, 0.0
  %vm5001 = vcmp.ge.f32.partialorder %v4694, 0.0
  %vm5002 = vcmp.ge.f32.partialorder %v4699, 0.0
  %vm5003 = vcmp.ge.f32.partialorder %v4704, 0.0
  %vm5004 = vcmp.ge.f32.partialorder %v4709, 0.0
  %vm5005 = vcmp.ge.f32.partialorder %v4714, 0.0
  %vm5006 = vcmp.ge.f32.partialorder %v4719, 0.0
  %vm5007 = vcmp.ge.f32.partialorder %v4724, 0.0
  %vm5008 = vcmp.ge.f32.partialorder %v4729, 0.0
  %vm5009 = vcmp.ge.f32.partialorder %v4734, 0.0
  %vm5010 = vcmp.ge.f32.partialorder %v4739, 0.0
  %vm5011 = vcmp.ge.f32.partialorder %v4744, 0.0
  %vm5012 = vcmp.ge.f32.partialorder %v4749, 0.0
  %vm5013 = vcmp.ge.f32.partialorder %v4754, 0.0
  %vm5014 = vcmp.ge.f32.partialorder %v4759, 0.0
  %vm5015 = vcmp.ge.f32.partialorder %v4764, 0.0
  %vm5016 = vcmp.ge.f32.partialorder %v4769, 0.0
  %vm5017 = vcmp.ge.f32.partialorder %v4774, 0.0
  %vm5018 = vcmp.ge.f32.partialorder %v4779, 0.0
  %vm5019 = vcmp.ge.f32.partialorder %v4784, 0.0
  %vm5020 = vcmp.ge.f32.partialorder %v4789, 0.0
  %vm5021 = vcmp.ge.f32.partialorder %v4794, 0.0
  %vm5022 = vcmp.ge.f32.partialorder %v4799, 0.0
  %vm5023 = vcmp.ge.f32.partialorder %v4804, 0.0
  %vm5024 = vcmp.ge.f32.partialorder %v4809, 0.0
  %vm5025 = vcmp.ge.f32.partialorder %v4814, 0.0
  %vm5026 = vcmp.ge.f32.partialorder %v4819, 0.0
  %vm5027 = vcmp.ge.f32.partialorder %v4824, 0.0
  %vm5028 = vcmp.ge.f32.partialorder %v4829, 0.0
  %vm5029 = vcmp.ge.f32.partialorder %v4834, 0.0
  %vm5030 = vcmp.ge.f32.partialorder %v4839, 0.0
  %vm5031 = vcmp.ge.f32.partialorder %v4844, 0.0
  %vm5032 = vcmp.ge.f32.partialorder %v4849, 0.0
  %vm5033 = vcmp.ge.f32.partialorder %v4854, 0.0
  %vm5034 = vcmp.ge.f32.partialorder %v4859, 0.0
  %vm5035 = vcmp.ge.f32.partialorder %v4864, 0.0
  %vm5036 = vcmp.ge.f32.partialorder %v4869, 0.0
  %vm5037 = vcmp.ge.f32.partialorder %v4874, 0.0
  %vm5038 = vcmp.ge.f32.partialorder %v4879, 0.0
  %vm5039 = vcmp.ge.f32.partialorder %v4884, 0.0
  %vm5040 = vcmp.ge.f32.partialorder %v4889, 0.0
  %vm5041 = vcmp.ge.f32.partialorder %v4894, 0.0
  %vm5042 = vcmp.ge.f32.partialorder %v4899, 0.0
  %vm5043 = vcmp.ge.f32.partialorder %v4904, 0.0
  %vm5044 = vcmp.ge.f32.partialorder %v4909, 0.0
  %vm5045 = vcmp.ge.f32.partialorder %v4914, 0.0
  %vm5046 = vcmp.ge.f32.partialorder %v4919, 0.0
  %vm5047 = vcmp.ge.f32.partialorder %v4924, 0.0
  %vm5048 = vcmp.ge.f32.partialorder %v4929, 0.0
  %vm5049 = vcmp.ge.f32.partialorder %v4934, 0.0
  %vm5050 = vcmp.ge.f32.partialorder %v4939, 0.0
  %vm5051 = vcmp.ge.f32.partialorder %v4944, 0.0
  %vm5052 = vcmp.ge.f32.partialorder %v4949, 0.0
  %vm5053 = vcmp.ge.f32.partialorder %v4954, 0.0
  %vm5054 = vcmp.ge.f32.partialorder %v4959, 0.0
  %vm5055 = vcmp.ge.f32.partialorder %v4964, 0.0
  %vm5056 = vcmp.ge.f32.partialorder %v4969, 0.0
  %vm5057 = vcmp.ge.f32.partialorder %v4974, 0.0
  %v5058 = vmul.f32 %v4574, 0.2
  %v5059 = vmul.f32 %v4579, 0.2
  %v5060 = vmul.f32 %v4584, 0.2
  %v5061 = vmul.f32 %v4589, 0.2
  %v5062 = vmul.f32 %v4594, 0.2
  %v5063 = vmul.f32 %v4599, 0.2
  %v5064 = vmul.f32 %v4604, 0.2
  %v5065 = vmul.f32 %v4609, 0.2
  %v5066 = vmul.f32 %v4614, 0.2
  %v5067 = vmul.f32 %v4619, 0.2
  %v5068 = vmul.f32 %v4624, 0.2
  %v5069 = vmul.f32 %v4629, 0.2
  %v5070 = vmul.f32 %v4634, 0.2
  %v5071 = vmul.f32 %v4639, 0.2
  %v5072 = vmul.f32 %v4644, 0.2
  %v5073 = vmul.f32 %v4649, 0.2
  %v5074 = vmul.f32 %v4654, 0.2
  %v5075 = vmul.f32 %v4659, 0.2
  %v5076 = vmul.f32 %v4664, 0.2
  %v5077 = vmul.f32 %v4669, 0.2
  %v5078 = vmul.f32 %v4674, 0.2
  %v5079 = vmul.f32 %v4679, 0.2
  %v5080 = vmul.f32 %v4684, 0.2
  %v5081 = vmul.f32 %v4689, 0.2
  %v5082 = vmul.f32 %v4694, 0.2
  %v5083 = vmul.f32 %v4699, 0.2
  %v5084 = vmul.f32 %v4704, 0.2
  %v5085 = vmul.f32 %v4709, 0.2
  %v5086 = vmul.f32 %v4714, 0.2
  %v5087 = vmul.f32 %v4719, 0.2
  %v5088 = vmul.f32 %v4724, 0.2
  %v5089 = vmul.f32 %v4729, 0.2
  %v5090 = vmul.f32 %v4734, 0.2
  %v5091 = vmul.f32 %v4739, 0.2
  %v5092 = vmul.f32 %v4744, 0.2
  %v5093 = vmul.f32 %v4749, 0.2
  %v5094 = vmul.f32 %v4754, 0.2
  %v5095 = vmul.f32 %v4759, 0.2
  %v5096 = vmul.f32 %v4764, 0.2
  %v5097 = vmul.f32 %v4769, 0.2
  %v5098 = vmul.f32 %v4774, 0.2
  %v5099 = vmul.f32 %v4779, 0.2
  %v5100 = vmul.f32 %v4784, 0.2
  %v5101 = vmul.f32 %v4789, 0.2
  %v5102 = vmul.f32 %v4794, 0.2
  %v5103 = vmul.f32 %v4799, 0.2
  %v5104 = vmul.f32 %v4804, 0.2
  %v5105 = vmul.f32 %v4809, 0.2
  %v5106 = vmul.f32 %v4814, 0.2
  %v5107 = vmul.f32 %v4819, 0.2
  %v5108 = vmul.f32 %v4824, 0.2
  %v5109 = vmul.f32 %v4829, 0.2
  %v5110 = vmul.f32 %v4834, 0.2
  %v5111 = vmul.f32 %v4839, 0.2
  %v5112 = vmul.f32 %v4844, 0.2
  %v5113 = vmul.f32 %v4849, 0.2
  %v5114 = vmul.f32 %v4854, 0.2
  %v5115 = vmul.f32 %v4859, 0.2
  %v5116 = vmul.f32 %v4864, 0.2
  %v5117 = vmul.f32 %v4869, 0.2
  %v5118 = vmul.f32 %v4874, 0.2
  %v5119 = vmul.f32 %v4879, 0.2
  %v5120 = vmul.f32 %v4884, 0.2
  %v5121 = vmul.f32 %v4889, 0.2
  %v5122 = vmul.f32 %v4894, 0.2
  %v5123 = vmul.f32 %v4899, 0.2
  %v5124 = vmul.f32 %v4904, 0.2
  %v5125 = vmul.f32 %v4909, 0.2
  %v5126 = vmul.f32 %v4914, 0.2
  %v5127 = vmul.f32 %v4919, 0.2
  %v5128 = vmul.f32 %v4924, 0.2
  %v5129 = vmul.f32 %v4929, 0.2
  %v5130 = vmul.f32 %v4934, 0.2
  %v5131 = vmul.f32 %v4939, 0.2
  %v5132 = vmul.f32 %v4944, 0.2
  %v5133 = vmul.f32 %v4949, 0.2
  %v5134 = vmul.f32 %v4954, 0.2
  %v5135 = vmul.f32 %v4959, 0.2
  %v5136 = vmul.f32 %v4964, 0.2
  %v5137 = vmul.f32 %v4969, 0.2
  %v5138 = vmul.f32 %v4974, 0.2
  %v5139 = vsel %vm4977, %v4574, %v5058
  %v5140 = vsel %vm4978, %v4579, %v5059
  %v5141 = vsel %vm4979, %v4584, %v5060
  %v5142 = vsel %vm4980, %v4589, %v5061
  %v5143 = vsel %vm4981, %v4594, %v5062
  %v5144 = vsel %vm4982, %v4599, %v5063
  %v5145 = vsel %vm4983, %v4604, %v5064
  %v5146 = vsel %vm4984, %v4609, %v5065
  %v5147 = vsel %vm4985, %v4614, %v5066
  %v5148 = vsel %vm4986, %v4619, %v5067
  %v5149 = vsel %vm4987, %v4624, %v5068
  %v5150 = vsel %vm4988, %v4629, %v5069
  %v5151 = vsel %vm4989, %v4634, %v5070
  %v5152 = vsel %vm4990, %v4639, %v5071
  %v5153 = vsel %vm4991, %v4644, %v5072
  %v5154 = vsel %vm4992, %v4649, %v5073
  %v5155 = vsel %vm4993, %v4654, %v5074
  %v5156 = vsel %vm4994, %v4659, %v5075
  %v5157 = vsel %vm4995, %v4664, %v5076
  %v5158 = vsel %vm4996, %v4669, %v5077
  %v5159 = vsel %vm4997, %v4674, %v5078
  %v5160 = vsel %vm4998, %v4679, %v5079
  %v5161 = vsel %vm4999, %v4684, %v5080
  %v5162 = vsel %vm5000, %v4689, %v5081
  %v5163 = vsel %vm5001, %v4694, %v5082
  %v5164 = vsel %vm5002, %v4699, %v5083
  %v5165 = vsel %vm5003, %v4704, %v5084
  %v5166 = vsel %vm5004, %v4709, %v5085
  %v5167 = vsel %vm5005, %v4714, %v5086
  %v5168 = vsel %vm5006, %v4719, %v5087
  %v5169 = vsel %vm5007, %v4724, %v5088
  %v5170 = vsel %vm5008, %v4729, %v5089
  %v5171 = vsel %vm5009, %v4734, %v5090
  %v5172 = vsel %vm5010, %v4739, %v5091
  %v5173 = vsel %vm5011, %v4744, %v5092
  %v5174 = vsel %vm5012, %v4749, %v5093
  %v5175 = vsel %vm5013, %v4754, %v5094
  %v5176 = vsel %vm5014, %v4759, %v5095
  %v5177 = vsel %vm5015, %v4764, %v5096
  %v5178 = vsel %vm5016, %v4769, %v5097
  %v5179 = vsel %vm5017, %v4774, %v5098
  %v5180 = vsel %vm5018, %v4779, %v5099
  %v5181 = vsel %vm5019, %v4784, %v5100
  %v5182 = vsel %vm5020, %v4789, %v5101
  %v5183 = vsel %vm5021, %v4794, %v5102
  %v5184 = vsel %vm5022, %v4799, %v5103
  %v5185 = vsel %vm5023, %v4804, %v5104
  %v5186 = vsel %vm5024, %v4809, %v5105
  %v5187 = vsel %vm5025, %v4814, %v5106
  %v5188 = vsel %vm5026, %v4819, %v5107
  %v5189 = vsel %vm5027, %v4824, %v5108
  %v5190 = vsel %vm5028, %v4829, %v5109
  %v5191 = vsel %vm5029, %v4834, %v5110
  %v5192 = vsel %vm5030, %v4839, %v5111
  %v5193 = vsel %vm5031, %v4844, %v5112
  %v5194 = vsel %vm5032, %v4849, %v5113
  %v5195 = vsel %vm5033, %v4854, %v5114
  %v5196 = vsel %vm5034, %v4859, %v5115
  %v5197 = vsel %vm5035, %v4864, %v5116
  %v5198 = vsel %vm5036, %v4869, %v5117
  %v5199 = vsel %vm5037, %v4874, %v5118
  %v5200 = vsel %vm5038, %v4879, %v5119
  %v5201 = vsel %vm5039, %v4884, %v5120
  %v5202 = vsel %vm5040, %v4889, %v5121
  %v5203 = vsel %vm5041, %v4894, %v5122
  %v5204 = vsel %vm5042, %v4899, %v5123
  %v5205 = vsel %vm5043, %v4904, %v5124
  %v5206 = vsel %vm5044, %v4909, %v5125
  %v5207 = vsel %vm5045, %v4914, %v5126
  %v5208 = vsel %vm5046, %v4919, %v5127
  %v5209 = vsel %vm5047, %v4924, %v5128
  %v5210 = vsel %vm5048, %v4929, %v5129
  %v5211 = vsel %vm5049, %v4934, %v5130
  %v5212 = vsel %vm5050, %v4939, %v5131
  %v5213 = vsel %vm5051, %v4944, %v5132
  %v5214 = vsel %vm5052, %v4949, %v5133
  %v5215 = vsel %vm5053, %v4954, %v5134
  %v5216 = vsel %vm5054, %v4959, %v5135
  %v5217 = vsel %vm5055, %v4964, %v5136
  %v5218 = vsel %vm5056, %v4969, %v5137
  %v5219 = vsel %vm5057, %v4974, %v5138
  %v5220 = vmul.f32 %v5139, 1.4142135
  %v5221 = vmul.f32 %v5140, 1.4142135
  %v5222 = vmul.f32 %v5141, 1.4142135
  %v5223 = vmul.f32 %v5142, 1.4142135
  %v5224 = vmul.f32 %v5143, 1.4142135
  %v5225 = vmul.f32 %v5144, 1.4142135
  %v5226 = vmul.f32 %v5145, 1.4142135
  %v5227 = vmul.f32 %v5146, 1.4142135
  %v5228 = vmul.f32 %v5147, 1.4142135
  %v5229 = vmul.f32 %v5148, 1.4142135
  %v5230 = vmul.f32 %v5149, 1.4142135
  %v5231 = vmul.f32 %v5150, 1.4142135
  %v5232 = vmul.f32 %v5151, 1.4142135
  %v5233 = vmul.f32 %v5152, 1.4142135
  %v5234 = vmul.f32 %v5153, 1.4142135
  %v5235 = vmul.f32 %v5154, 1.4142135
  %v5236 = vmul.f32 %v5155, 1.4142135
  %v5237 = vmul.f32 %v5156, 1.4142135
  %v5238 = vmul.f32 %v5157, 1.4142135
  %v5239 = vmul.f32 %v5158, 1.4142135
  %v5240 = vmul.f32 %v5159, 1.4142135
  %v5241 = vmul.f32 %v5160, 1.4142135
  %v5242 = vmul.f32 %v5161, 1.4142135
  %v5243 = vmul.f32 %v5162, 1.4142135
  %v5244 = vmul.f32 %v5163, 1.4142135
  %v5245 = vmul.f32 %v5164, 1.4142135
  %v5246 = vmul.f32 %v5165, 1.4142135
  %v5247 = vmul.f32 %v5166, 1.4142135
  %v5248 = vmul.f32 %v5167, 1.4142135
  %v5249 = vmul.f32 %v5168, 1.4142135
  %v5250 = vmul.f32 %v5169, 1.4142135
  %v5251 = vmul.f32 %v5170, 1.4142135
  %v5252 = vmul.f32 %v5171, 1.4142135
  %v5253 = vmul.f32 %v5172, 1.4142135
  %v5254 = vmul.f32 %v5173, 1.4142135
  %v5255 = vmul.f32 %v5174, 1.4142135
  %v5256 = vmul.f32 %v5175, 1.4142135
  %v5257 = vmul.f32 %v5176, 1.4142135
  %v5258 = vmul.f32 %v5177, 1.4142135
  %v5259 = vmul.f32 %v5178, 1.4142135
  %v5260 = vmul.f32 %v5179, 1.4142135
  %v5261 = vmul.f32 %v5180, 1.4142135
  %v5262 = vmul.f32 %v5181, 1.4142135
  %v5263 = vmul.f32 %v5182, 1.4142135
  %v5264 = vmul.f32 %v5183, 1.4142135
  %v5265 = vmul.f32 %v5184, 1.4142135
  %v5266 = vmul.f32 %v5185, 1.4142135
  %v5267 = vmul.f32 %v5186, 1.4142135
  %v5268 = vmul.f32 %v5187, 1.4142135
  %v5269 = vmul.f32 %v5188, 1.4142135
  %v5270 = vmul.f32 %v5189, 1.4142135
  %v5271 = vmul.f32 %v5190, 1.4142135
  %v5272 = vmul.f32 %v5191, 1.4142135
  %v5273 = vmul.f32 %v5192, 1.4142135
  %v5274 = vmul.f32 %v5193, 1.4142135
  %v5275 = vmul.f32 %v5194, 1.4142135
  %v5276 = vmul.f32 %v5195, 1.4142135
  %v5277 = vmul.f32 %v5196, 1.4142135
  %v5278 = vmul.f32 %v5197, 1.4142135
  %v5279 = vmul.f32 %v5198, 1.4142135
  %v5280 = vmul.f32 %v5199, 1.4142135
  %v5281 = vmul.f32 %v5200, 1.4142135
  %v5282 = vmul.f32 %v5201, 1.4142135
  %v5283 = vmul.f32 %v5202, 1.4142135
  %v5284 = vmul.f32 %v5203, 1.4142135
  %v5285 = vmul.f32 %v5204, 1.4142135
  %v5286 = vmul.f32 %v5205, 1.4142135
  %v5287 = vmul.f32 %v5206, 1.4142135
  %v5288 = vmul.f32 %v5207, 1.4142135
  %v5289 = vmul.f32 %v5208, 1.4142135
  %v5290 = vmul.f32 %v5209, 1.4142135
  %v5291 = vmul.f32 %v5210, 1.4142135
  %v5292 = vmul.f32 %v5211, 1.4142135
  %v5293 = vmul.f32 %v5212, 1.4142135
  %v5294 = vmul.f32 %v5213, 1.4142135
  %v5295 = vmul.f32 %v5214, 1.4142135
  %v5296 = vmul.f32 %v5215, 1.4142135
  %v5297 = vmul.f32 %v5216, 1.4142135
  %v5298 = vmul.f32 %v5217, 1.4142135
  %v5299 = vmul.f32 %v5218, 1.4142135
  %v5300 = vmul.f32 %v5219, 1.4142135
  %5302 = vset.pattern.permute.xlu0 0
  %5303 = vperm.xlu0 %5302, %v26
  %v5304 = vpop.permute.xlu0 %5303
  %5307 = vset.pattern.permute.xlu0 0
  %5308 = vperm.xlu0 %5307, %v27
  %v5309 = vpop.permute.xlu0 %5308
  %5312 = vset.pattern.permute.xlu0 0
  %5313 = vperm.xlu0 %5312, %v28
  %v5314 = vpop.permute.xlu0 %5313
  %5317 = vset.pattern.permute.xlu0 0
  %5318 = vperm.xlu0 %5317, %v29
  %v5319 = vpop.permute.xlu0 %5318
  %5322 = vset.pattern.permute.xlu0 0
  %5323 = vperm.xlu0 %5322, %v30
  %v5324 = vpop.permute.xlu0 %5323
  %5327 = vset.pattern.permute.xlu0 0
  %5328 = vperm.xlu0 %5327, %v31
  %v5329 = vpop.permute.xlu0 %5328
  %5332 = vset.pattern.permute.xlu0 0
  %5333 = vperm.xlu0 %5332, %v32
  %v5334 = vpop.permute.xlu0 %5333
  %5337 = vset.pattern.permute.xlu0 0
  %5338 = vperm.xlu0 %5337, %v33
  %v5339 = vpop.permute.xlu0 %5338
  %5342 = vset.pattern.permute.xlu0 0
  %5343 = vperm.xlu0 %5342, %v34
  %v5344 = vpop.permute.xlu0 %5343
  %5347 = vset.pattern.permute.xlu0 0
  %5348 = vperm.xlu0 %5347, %v35
  %v5349 = vpop.permute.xlu0 %5348
  %5352 = vset.pattern.permute.xlu0 0
  %5353 = vperm.xlu0 %5352, %v36
  %v5354 = vpop.permute.xlu0 %5353
  %5357 = vset.pattern.permute.xlu0 0
  %5358 = vperm.xlu0 %5357, %v37
  %v5359 = vpop.permute.xlu0 %5358
  %5362 = vset.pattern.permute.xlu0 0
  %5363 = vperm.xlu0 %5362, %v38
  %v5364 = vpop.permute.xlu0 %5363
  %5367 = vset.pattern.permute.xlu0 0
  %5368 = vperm.xlu0 %5367, %v39
  %v5369 = vpop.permute.xlu0 %5368
  %5372 = vset.pattern.permute.xlu0 0
  %5373 = vperm.xlu0 %5372, %v40
  %v5374 = vpop.permute.xlu0 %5373
  %5377 = vset.pattern.permute.xlu0 0
  %5378 = vperm.xlu0 %5377, %v41
  %v5379 = vpop.permute.xlu0 %5378
  %5382 = vset.pattern.permute.xlu0 0
  %5383 = vperm.xlu0 %5382, %v42
  %v5384 = vpop.permute.xlu0 %5383
  %5387 = vset.pattern.permute.xlu0 0
  %5388 = vperm.xlu0 %5387, %v43
  %v5389 = vpop.permute.xlu0 %5388
  %5392 = vset.pattern.permute.xlu0 0
  %5393 = vperm.xlu0 %5392, %v44
  %v5394 = vpop.permute.xlu0 %5393
  %5397 = vset.pattern.permute.xlu0 0
  %5398 = vperm.xlu0 %5397, %v45
  %v5399 = vpop.permute.xlu0 %5398
  %5402 = vset.pattern.permute.xlu0 0
  %5403 = vperm.xlu0 %5402, %v46
  %v5404 = vpop.permute.xlu0 %5403
  %5407 = vset.pattern.permute.xlu0 0
  %5408 = vperm.xlu0 %5407, %v47
  %v5409 = vpop.permute.xlu0 %5408
  %5412 = vset.pattern.permute.xlu0 0
  %5413 = vperm.xlu0 %5412, %v48
  %v5414 = vpop.permute.xlu0 %5413
  %5417 = vset.pattern.permute.xlu0 0
  %5418 = vperm.xlu0 %5417, %v49
  %v5419 = vpop.permute.xlu0 %5418
  %5422 = vset.pattern.permute.xlu0 0
  %5423 = vperm.xlu0 %5422, %v50
  %v5424 = vpop.permute.xlu0 %5423
  %5427 = vset.pattern.permute.xlu0 0
  %5428 = vperm.xlu0 %5427, %v51
  %v5429 = vpop.permute.xlu0 %5428
  %5432 = vset.pattern.permute.xlu0 0
  %5433 = vperm.xlu0 %5432, %v52
  %v5434 = vpop.permute.xlu0 %5433
  %5437 = vset.pattern.permute.xlu0 0
  %5438 = vperm.xlu0 %5437, %v53
  %v5439 = vpop.permute.xlu0 %5438
  %5442 = vset.pattern.permute.xlu0 0
  %5443 = vperm.xlu0 %5442, %v54
  %v5444 = vpop.permute.xlu0 %5443
  %5447 = vset.pattern.permute.xlu0 0
  %5448 = vperm.xlu0 %5447, %v55
  %v5449 = vpop.permute.xlu0 %5448
  %5452 = vset.pattern.permute.xlu0 0
  %5453 = vperm.xlu0 %5452, %v56
  %v5454 = vpop.permute.xlu0 %5453
  %5457 = vset.pattern.permute.xlu0 0
  %5458 = vperm.xlu0 %5457, %v57
  %v5459 = vpop.permute.xlu0 %5458
  %5462 = vset.pattern.permute.xlu0 0
  %5463 = vperm.xlu0 %5462, %v58
  %v5464 = vpop.permute.xlu0 %5463
  %5467 = vset.pattern.permute.xlu0 0
  %5468 = vperm.xlu0 %5467, %v59
  %v5469 = vpop.permute.xlu0 %5468
  %5472 = vset.pattern.permute.xlu0 0
  %5473 = vperm.xlu0 %5472, %v60
  %v5474 = vpop.permute.xlu0 %5473
  %5477 = vset.pattern.permute.xlu0 0
  %5478 = vperm.xlu0 %5477, %v61
  %v5479 = vpop.permute.xlu0 %5478
  %5482 = vset.pattern.permute.xlu0 0
  %5483 = vperm.xlu0 %5482, %v62
  %v5484 = vpop.permute.xlu0 %5483
  %5487 = vset.pattern.permute.xlu0 0
  %5488 = vperm.xlu0 %5487, %v63
  %v5489 = vpop.permute.xlu0 %5488
  %5492 = vset.pattern.permute.xlu0 0
  %5493 = vperm.xlu0 %5492, %v64
  %v5494 = vpop.permute.xlu0 %5493
  %5497 = vset.pattern.permute.xlu0 0
  %5498 = vperm.xlu0 %5497, %v65
  %v5499 = vpop.permute.xlu0 %5498
  %5502 = vset.pattern.permute.xlu0 0
  %5503 = vperm.xlu0 %5502, %v66
  %v5504 = vpop.permute.xlu0 %5503
  %5507 = vset.pattern.permute.xlu0 0
  %5508 = vperm.xlu0 %5507, %v67
  %v5509 = vpop.permute.xlu0 %5508
  %5512 = vset.pattern.permute.xlu0 0
  %5513 = vperm.xlu0 %5512, %v68
  %v5514 = vpop.permute.xlu0 %5513
  %5517 = vset.pattern.permute.xlu0 0
  %5518 = vperm.xlu0 %5517, %v69
  %v5519 = vpop.permute.xlu0 %5518
  %5522 = vset.pattern.permute.xlu0 0
  %5523 = vperm.xlu0 %5522, %v70
  %v5524 = vpop.permute.xlu0 %5523
  %5527 = vset.pattern.permute.xlu0 0
  %5528 = vperm.xlu0 %5527, %v71
  %v5529 = vpop.permute.xlu0 %5528
  %5532 = vset.pattern.permute.xlu0 0
  %5533 = vperm.xlu0 %5532, %v72
  %v5534 = vpop.permute.xlu0 %5533
  %5537 = vset.pattern.permute.xlu0 0
  %5538 = vperm.xlu0 %5537, %v73
  %v5539 = vpop.permute.xlu0 %5538
  %5542 = vset.pattern.permute.xlu0 0
  %5543 = vperm.xlu0 %5542, %v74
  %v5544 = vpop.permute.xlu0 %5543
  %5547 = vset.pattern.permute.xlu0 0
  %5548 = vperm.xlu0 %5547, %v75
  %v5549 = vpop.permute.xlu0 %5548
  %5552 = vset.pattern.permute.xlu0 0
  %5553 = vperm.xlu0 %5552, %v76
  %v5554 = vpop.permute.xlu0 %5553
  %5557 = vset.pattern.permute.xlu0 0
  %5558 = vperm.xlu0 %5557, %v77
  %v5559 = vpop.permute.xlu0 %5558
  %5562 = vset.pattern.permute.xlu0 0
  %5563 = vperm.xlu0 %5562, %v78
  %v5564 = vpop.permute.xlu0 %5563
  %5567 = vset.pattern.permute.xlu0 0
  %5568 = vperm.xlu0 %5567, %v79
  %v5569 = vpop.permute.xlu0 %5568
  %5572 = vset.pattern.permute.xlu0 0
  %5573 = vperm.xlu0 %5572, %v80
  %v5574 = vpop.permute.xlu0 %5573
  %5577 = vset.pattern.permute.xlu0 0
  %5578 = vperm.xlu0 %5577, %v81
  %v5579 = vpop.permute.xlu0 %5578
  %5582 = vset.pattern.permute.xlu0 0
  %5583 = vperm.xlu0 %5582, %v82
  %v5584 = vpop.permute.xlu0 %5583
  %5587 = vset.pattern.permute.xlu0 0
  %5588 = vperm.xlu0 %5587, %v83
  %v5589 = vpop.permute.xlu0 %5588
  %5592 = vset.pattern.permute.xlu0 0
  %5593 = vperm.xlu0 %5592, %v84
  %v5594 = vpop.permute.xlu0 %5593
  %5597 = vset.pattern.permute.xlu0 0
  %5598 = vperm.xlu0 %5597, %v85
  %v5599 = vpop.permute.xlu0 %5598
  %5602 = vset.pattern.permute.xlu0 0
  %5603 = vperm.xlu0 %5602, %v86
  %v5604 = vpop.permute.xlu0 %5603
  %5607 = vset.pattern.permute.xlu0 0
  %5608 = vperm.xlu0 %5607, %v87
  %v5609 = vpop.permute.xlu0 %5608
  %5612 = vset.pattern.permute.xlu0 0
  %5613 = vperm.xlu0 %5612, %v88
  %v5614 = vpop.permute.xlu0 %5613
  %5617 = vset.pattern.permute.xlu0 0
  %5618 = vperm.xlu0 %5617, %v89
  %v5619 = vpop.permute.xlu0 %5618
  %5622 = vset.pattern.permute.xlu0 0
  %5623 = vperm.xlu0 %5622, %v90
  %v5624 = vpop.permute.xlu0 %5623
  %5627 = vset.pattern.permute.xlu0 0
  %5628 = vperm.xlu0 %5627, %v91
  %v5629 = vpop.permute.xlu0 %5628
  %5632 = vset.pattern.permute.xlu0 0
  %5633 = vperm.xlu0 %5632, %v92
  %v5634 = vpop.permute.xlu0 %5633
  %5637 = vset.pattern.permute.xlu0 0
  %5638 = vperm.xlu0 %5637, %v93
  %v5639 = vpop.permute.xlu0 %5638
  %5642 = vset.pattern.permute.xlu0 0
  %5643 = vperm.xlu0 %5642, %v94
  %v5644 = vpop.permute.xlu0 %5643
  %5647 = vset.pattern.permute.xlu0 0
  %5648 = vperm.xlu0 %5647, %v95
  %v5649 = vpop.permute.xlu0 %5648
  %5652 = vset.pattern.permute.xlu0 0
  %5653 = vperm.xlu0 %5652, %v96
  %v5654 = vpop.permute.xlu0 %5653
  %5657 = vset.pattern.permute.xlu0 0
  %5658 = vperm.xlu0 %5657, %v97
  %v5659 = vpop.permute.xlu0 %5658
  %5662 = vset.pattern.permute.xlu0 0
  %5663 = vperm.xlu0 %5662, %v98
  %v5664 = vpop.permute.xlu0 %5663
  %5667 = vset.pattern.permute.xlu0 0
  %5668 = vperm.xlu0 %5667, %v99
  %v5669 = vpop.permute.xlu0 %5668
  %5672 = vset.pattern.permute.xlu0 0
  %5673 = vperm.xlu0 %5672, %v100
  %v5674 = vpop.permute.xlu0 %5673
  %5677 = vset.pattern.permute.xlu0 0
  %5678 = vperm.xlu0 %5677, %v101
  %v5679 = vpop.permute.xlu0 %5678
  %5682 = vset.pattern.permute.xlu0 0
  %5683 = vperm.xlu0 %5682, %v102
  %v5684 = vpop.permute.xlu0 %5683
  %5687 = vset.pattern.permute.xlu0 0
  %5688 = vperm.xlu0 %5687, %v103
  %v5689 = vpop.permute.xlu0 %5688
  %5692 = vset.pattern.permute.xlu0 0
  %5693 = vperm.xlu0 %5692, %v104
  %v5694 = vpop.permute.xlu0 %5693
  %5697 = vset.pattern.permute.xlu0 0
  %5698 = vperm.xlu0 %5697, %v105
  %v5699 = vpop.permute.xlu0 %5698
  %5702 = vset.pattern.permute.xlu0 0
  %5703 = vperm.xlu0 %5702, %v106
  %v5704 = vpop.permute.xlu0 %5703
  %v5706 = vmul.f32 %v5220, %v5304
  %v5707 = vmul.f32 %v5221, %v5309
  %v5708 = vmul.f32 %v5222, %v5314
  %v5709 = vmul.f32 %v5223, %v5319
  %v5710 = vmul.f32 %v5224, %v5324
  %v5711 = vmul.f32 %v5225, %v5329
  %v5712 = vmul.f32 %v5226, %v5334
  %v5713 = vmul.f32 %v5227, %v5339
  %v5714 = vmul.f32 %v5228, %v5344
  %v5715 = vmul.f32 %v5229, %v5349
  %v5716 = vmul.f32 %v5230, %v5354
  %v5717 = vmul.f32 %v5231, %v5359
  %v5718 = vmul.f32 %v5232, %v5364
  %v5719 = vmul.f32 %v5233, %v5369
  %v5720 = vmul.f32 %v5234, %v5374
  %v5721 = vmul.f32 %v5235, %v5379
  %v5722 = vmul.f32 %v5236, %v5384
  %v5723 = vmul.f32 %v5237, %v5389
  %v5724 = vmul.f32 %v5238, %v5394
  %v5725 = vmul.f32 %v5239, %v5399
  %v5726 = vmul.f32 %v5240, %v5404
  %v5727 = vmul.f32 %v5241, %v5409
  %v5728 = vmul.f32 %v5242, %v5414
  %v5729 = vmul.f32 %v5243, %v5419
  %v5730 = vmul.f32 %v5244, %v5424
  %v5731 = vmul.f32 %v5245, %v5429
  %v5732 = vmul.f32 %v5246, %v5434
  %v5733 = vmul.f32 %v5247, %v5439
  %v5734 = vmul.f32 %v5248, %v5444
  %v5735 = vmul.f32 %v5249, %v5449
  %v5736 = vmul.f32 %v5250, %v5454
  %v5737 = vmul.f32 %v5251, %v5459
  %v5738 = vmul.f32 %v5252, %v5464
  %v5739 = vmul.f32 %v5253, %v5469
  %v5740 = vmul.f32 %v5254, %v5474
  %v5741 = vmul.f32 %v5255, %v5479
  %v5742 = vmul.f32 %v5256, %v5484
  %v5743 = vmul.f32 %v5257, %v5489
  %v5744 = vmul.f32 %v5258, %v5494
  %v5745 = vmul.f32 %v5259, %v5499
  %v5746 = vmul.f32 %v5260, %v5504
  %v5747 = vmul.f32 %v5261, %v5509
  %v5748 = vmul.f32 %v5262, %v5514
  %v5749 = vmul.f32 %v5263, %v5519
  %v5750 = vmul.f32 %v5264, %v5524
  %v5751 = vmul.f32 %v5265, %v5529
  %v5752 = vmul.f32 %v5266, %v5534
  %v5753 = vmul.f32 %v5267, %v5539
  %v5754 = vmul.f32 %v5268, %v5544
  %v5755 = vmul.f32 %v5269, %v5549
  %v5756 = vmul.f32 %v5270, %v5554
  %v5757 = vmul.f32 %v5271, %v5559
  %v5758 = vmul.f32 %v5272, %v5564
  %v5759 = vmul.f32 %v5273, %v5569
  %v5760 = vmul.f32 %v5274, %v5574
  %v5761 = vmul.f32 %v5275, %v5579
  %v5762 = vmul.f32 %v5276, %v5584
  %v5763 = vmul.f32 %v5277, %v5589
  %v5764 = vmul.f32 %v5278, %v5594
  %v5765 = vmul.f32 %v5279, %v5599
  %v5766 = vmul.f32 %v5280, %v5604
  %v5767 = vmul.f32 %v5281, %v5609
  %v5768 = vmul.f32 %v5282, %v5614
  %v5769 = vmul.f32 %v5283, %v5619
  %v5770 = vmul.f32 %v5284, %v5624
  %v5771 = vmul.f32 %v5285, %v5629
  %v5772 = vmul.f32 %v5286, %v5634
  %v5773 = vmul.f32 %v5287, %v5639
  %v5774 = vmul.f32 %v5288, %v5644
  %v5775 = vmul.f32 %v5289, %v5649
  %v5776 = vmul.f32 %v5290, %v5654
  %v5777 = vmul.f32 %v5291, %v5659
  %v5778 = vmul.f32 %v5292, %v5664
  %v5779 = vmul.f32 %v5293, %v5669
  %v5780 = vmul.f32 %v5294, %v5674
  %v5781 = vmul.f32 %v5295, %v5679
  %v5782 = vmul.f32 %v5296, %v5684
  %v5783 = vmul.f32 %v5297, %v5689
  %v5784 = vmul.f32 %v5298, %v5694
  %v5785 = vmul.f32 %v5299, %v5699
  %v5786 = vmul.f32 %v5300, %v5704
  %5787 = vst.msk [vmem:[#allocation2] sm:$0xff] %vm188, 0.0
  %5788 = vst.msk [vmem:[#allocation2 + $0x8] sm:$0xff] %vm188, 0.0
  %5789 = vst.msk [vmem:[#allocation2 + $0x10] sm:$0xff] %vm188, 0.0
  %5790 = vst.msk [vmem:[#allocation2 + $0x2a0] sm:$0xff] %vm188, 0.0
  %5791 = vst.msk [vmem:[#allocation2 + $0x2a8] sm:$0xff] %vm188, 0.0
  %5792 = vst.msk [vmem:[#allocation2 + $0x2b0] sm:$0xff] %vm188, 0.0
  %5793 = vst.msk [vmem:[#allocation2 + $0x18] sm:$0xff] %vm188, %v5706
  %5794 = vst.msk [vmem:[#allocation2 + $0x20] sm:$0xff] %vm188, %v5707
  %5795 = vst.msk [vmem:[#allocation2 + $0x28] sm:$0xff] %vm188, %v5708
  %5796 = vst.msk [vmem:[#allocation2 + $0x30] sm:$0xff] %vm188, %v5709
  %5797 = vst.msk [vmem:[#allocation2 + $0x38] sm:$0xff] %vm188, %v5710
  %5798 = vst.msk [vmem:[#allocation2 + $0x40] sm:$0xff] %vm188, %v5711
  %5799 = vst.msk [vmem:[#allocation2 + $0x48] sm:$0xff] %vm188, %v5712
  %5800 = vst.msk [vmem:[#allocation2 + $0x50] sm:$0xff] %vm188, %v5713
  %5801 = vst.msk [vmem:[#allocation2 + $0x58] sm:$0xff] %vm188, %v5714
  %5802 = vst.msk [vmem:[#allocation2 + $0x60] sm:$0xff] %vm188, %v5715
  %5803 = vst.msk [vmem:[#allocation2 + $0x68] sm:$0xff] %vm188, %v5716
  %5804 = vst.msk [vmem:[#allocation2 + $0x70] sm:$0xff] %vm188, %v5717
  %5805 = vst.msk [vmem:[#allocation2 + $0x78] sm:$0xff] %vm188, %v5718
  %5806 = vst.msk [vmem:[#allocation2 + $0x80] sm:$0xff] %vm188, %v5719
  %5807 = vst.msk [vmem:[#allocation2 + $0x88] sm:$0xff] %vm188, %v5720
  %5808 = vst.msk [vmem:[#allocation2 + $0x90] sm:$0xff] %vm188, %v5721
  %5809 = vst.msk [vmem:[#allocation2 + $0x98] sm:$0xff] %vm188, %v5722
  %5810 = vst.msk [vmem:[#allocation2 + $0xa0] sm:$0xff] %vm188, %v5723
  %5811 = vst.msk [vmem:[#allocation2 + $0xa8] sm:$0xff] %vm188, %v5724
  %5812 = vst.msk [vmem:[#allocation2 + $0xb0] sm:$0xff] %vm188, %v5725
  %5813 = vst.msk [vmem:[#allocation2 + $0xb8] sm:$0xff] %vm188, %v5726
  %5814 = vst.msk [vmem:[#allocation2 + $0xc0] sm:$0xff] %vm188, %v5727
  %5815 = vst.msk [vmem:[#allocation2 + $0xc8] sm:$0xff] %vm188, %v5728
  %5816 = vst.msk [vmem:[#allocation2 + $0xd0] sm:$0xff] %vm188, %v5729
  %5817 = vst.msk [vmem:[#allocation2 + $0xd8] sm:$0xff] %vm188, %v5730
  %5818 = vst.msk [vmem:[#allocation2 + $0xe0] sm:$0xff] %vm188, %v5731
  %5819 = vst.msk [vmem:[#allocation2 + $0xe8] sm:$0xff] %vm188, %v5732
  %5820 = vst.msk [vmem:[#allocation2 + $0xf0] sm:$0xff] %vm188, %v5733
  %5821 = vst.msk [vmem:[#allocation2 + $0xf8] sm:$0xff] %vm188, %v5734
  %5822 = vst.msk [vmem:[#allocation2 + $0x100] sm:$0xff] %vm188, %v5735
  %5823 = vst.msk [vmem:[#allocation2 + $0x108] sm:$0xff] %vm188, %v5736
  %5824 = vst.msk [vmem:[#allocation2 + $0x110] sm:$0xff] %vm188, %v5737
  %5825 = vst.msk [vmem:[#allocation2 + $0x118] sm:$0xff] %vm188, %v5738
  %5826 = vst.msk [vmem:[#allocation2 + $0x120] sm:$0xff] %vm188, %v5739
  %5827 = vst.msk [vmem:[#allocation2 + $0x128] sm:$0xff] %vm188, %v5740
  %5828 = vst.msk [vmem:[#allocation2 + $0x130] sm:$0xff] %vm188, %v5741
  %5829 = vst.msk [vmem:[#allocation2 + $0x138] sm:$0xff] %vm188, %v5742
  %5830 = vst.msk [vmem:[#allocation2 + $0x140] sm:$0xff] %vm188, %v5743
  %5831 = vst.msk [vmem:[#allocation2 + $0x148] sm:$0xff] %vm188, %v5744
  %5832 = vst.msk [vmem:[#allocation2 + $0x150] sm:$0xff] %vm188, %v5745
  %5833 = vst.msk [vmem:[#allocation2 + $0x158] sm:$0xff] %vm188, %v5746
  %5834 = vst.msk [vmem:[#allocation2 + $0x160] sm:$0xff] %vm188, %v5747
  %5835 = vst.msk [vmem:[#allocation2 + $0x168] sm:$0xff] %vm188, %v5748
  %5836 = vst.msk [vmem:[#allocation2 + $0x170] sm:$0xff] %vm188, %v5749
  %5837 = vst.msk [vmem:[#allocation2 + $0x178] sm:$0xff] %vm188, %v5750
  %5838 = vst.msk [vmem:[#allocation2 + $0x180] sm:$0xff] %vm188, %v5751
  %5839 = vst.msk [vmem:[#allocation2 + $0x188] sm:$0xff] %vm188, %v5752
  %5840 = vst.msk [vmem:[#allocation2 + $0x190] sm:$0xff] %vm188, %v5753
  %5841 = vst.msk [vmem:[#allocation2 + $0x198] sm:$0xff] %vm188, %v5754
  %5842 = vst.msk [vmem:[#allocation2 + $0x1a0] sm:$0xff] %vm188, %v5755
  %5843 = vst.msk [vmem:[#allocation2 + $0x1a8] sm:$0xff] %vm188, %v5756
  %5844 = vst.msk [vmem:[#allocation2 + $0x1b0] sm:$0xff] %vm188, %v5757
  %5845 = vst.msk [vmem:[#allocation2 + $0x1b8] sm:$0xff] %vm188, %v5758
  %5846 = vst.msk [vmem:[#allocation2 + $0x1c0] sm:$0xff] %vm188, %v5759
  %5847 = vst.msk [vmem:[#allocation2 + $0x1c8] sm:$0xff] %vm188, %v5760
  %5848 = vst.msk [vmem:[#allocation2 + $0x1d0] sm:$0xff] %vm188, %v5761
  %5849 = vst.msk [vmem:[#allocation2 + $0x1d8] sm:$0xff] %vm188, %v5762
  %5850 = vst.msk [vmem:[#allocation2 + $0x1e0] sm:$0xff] %vm188, %v5763
  %5851 = vst.msk [vmem:[#allocation2 + $0x1e8] sm:$0xff] %vm188, %v5764
  %5852 = vst.msk [vmem:[#allocation2 + $0x1f0] sm:$0xff] %vm188, %v5765
  %5853 = vst.msk [vmem:[#allocation2 + $0x1f8] sm:$0xff] %vm188, %v5766
  %5854 = vst.msk [vmem:[#allocation2 + $0x200] sm:$0xff] %vm188, %v5767
  %5855 = vst.msk [vmem:[#allocation2 + $0x208] sm:$0xff] %vm188, %v5768
  %5856 = vst.msk [vmem:[#allocation2 + $0x210] sm:$0xff] %vm188, %v5769
  %5857 = vst.msk [vmem:[#allocation2 + $0x218] sm:$0xff] %vm188, %v5770
  %5858 = vst.msk [vmem:[#allocation2 + $0x220] sm:$0xff] %vm188, %v5771
  %5859 = vst.msk [vmem:[#allocation2 + $0x228] sm:$0xff] %vm188, %v5772
  %5860 = vst.msk [vmem:[#allocation2 + $0x230] sm:$0xff] %vm188, %v5773
  %5861 = vst.msk [vmem:[#allocation2 + $0x238] sm:$0xff] %vm188, %v5774
  %5862 = vst.msk [vmem:[#allocation2 + $0x240] sm:$0xff] %vm188, %v5775
  %5863 = vst.msk [vmem:[#allocation2 + $0x248] sm:$0xff] %vm188, %v5776
  %5864 = vst.msk [vmem:[#allocation2 + $0x250] sm:$0xff] %vm188, %v5777
  %5865 = vst.msk [vmem:[#allocation2 + $0x258] sm:$0xff] %vm188, %v5778
  %5866 = vst.msk [vmem:[#allocation2 + $0x260] sm:$0xff] %vm188, %v5779
  %5867 = vst.msk [vmem:[#allocation2 + $0x268] sm:$0xff] %vm188, %v5780
  %5868 = vst.msk [vmem:[#allocation2 + $0x270] sm:$0xff] %vm188, %v5781
  %5869 = vst.msk [vmem:[#allocation2 + $0x278] sm:$0xff] %vm188, %v5782
  %5870 = vst.msk [vmem:[#allocation2 + $0x280] sm:$0xff] %vm188, %v5783
  %5871 = vst.msk [vmem:[#allocation2 + $0x288] sm:$0xff] %vm188, %v5784
  %5872 = vst.msk [vmem:[#allocation2 + $0x290] sm:$0xff] %vm188, %v5785
  %5873 = vst.msk [vmem:[#allocation2 + $0x298] sm:$0xff] %vm188, %v5786
  %v5874 = vld [vmem:[#allocation2 + $0x5] sm:$0xff]
  %v5875 = vld [vmem:[#allocation2 + $0xd] sm:$0xff]
  %v5876 = vld [vmem:[#allocation2 + $0x15] sm:$0xff]
  %v5877 = vld [vmem:[#allocation2 + $0x1d] sm:$0xff]
  %v5878 = vld [vmem:[#allocation2 + $0x25] sm:$0xff]
  %v5879 = vld [vmem:[#allocation2 + $0x2d] sm:$0xff]
  %v5880 = vld [vmem:[#allocation2 + $0x35] sm:$0xff]
  %v5881 = vld [vmem:[#allocation2 + $0x3d] sm:$0xff]
  %v5882 = vld [vmem:[#allocation2 + $0x45] sm:$0xff]
  %v5883 = vld [vmem:[#allocation2 + $0x4d] sm:$0xff]
  %v5884 = vld [vmem:[#allocation2 + $0x55] sm:$0xff]
  %v5885 = vld [vmem:[#allocation2 + $0x5d] sm:$0xff]
  %v5886 = vld [vmem:[#allocation2 + $0x65] sm:$0xff]
  %v5887 = vld [vmem:[#allocation2 + $0x6d] sm:$0xff]
  %v5888 = vld [vmem:[#allocation2 + $0x75] sm:$0xff]
  %v5889 = vld [vmem:[#allocation2 + $0x7d] sm:$0xff]
  %v5890 = vld [vmem:[#allocation2 + $0x85] sm:$0xff]
  %v5891 = vld [vmem:[#allocation2 + $0x8d] sm:$0xff]
  %v5892 = vld [vmem:[#allocation2 + $0x95] sm:$0xff]
  %v5893 = vld [vmem:[#allocation2 + $0x9d] sm:$0xff]
  %v5894 = vld [vmem:[#allocation2 + $0xa5] sm:$0xff]
  %v5895 = vld [vmem:[#allocation2 + $0xad] sm:$0xff]
  %v5896 = vld [vmem:[#allocation2 + $0xb5] sm:$0xff]
  %v5897 = vld [vmem:[#allocation2 + $0xbd] sm:$0xff]
  %v5898 = vld [vmem:[#allocation2 + $0xc5] sm:$0xff]
  %v5899 = vld [vmem:[#allocation2 + $0xcd] sm:$0xff]
  %v5900 = vld [vmem:[#allocation2 + $0xd5] sm:$0xff]
  %v5901 = vld [vmem:[#allocation2 + $0xdd] sm:$0xff]
  %v5902 = vld [vmem:[#allocation2 + $0xe5] sm:$0xff]
  %v5903 = vld [vmem:[#allocation2 + $0xed] sm:$0xff]
  %v5904 = vld [vmem:[#allocation2 + $0xf5] sm:$0xff]
  %v5905 = vld [vmem:[#allocation2 + $0xfd] sm:$0xff]
  %v5906 = vld [vmem:[#allocation2 + $0x105] sm:$0xff]
  %v5907 = vld [vmem:[#allocation2 + $0x10d] sm:$0xff]
  %v5908 = vld [vmem:[#allocation2 + $0x115] sm:$0xff]
  %v5909 = vld [vmem:[#allocation2 + $0x11d] sm:$0xff]
  %v5910 = vld [vmem:[#allocation2 + $0x125] sm:$0xff]
  %v5911 = vld [vmem:[#allocation2 + $0x12d] sm:$0xff]
  %v5912 = vld [vmem:[#allocation2 + $0x135] sm:$0xff]
  %v5913 = vld [vmem:[#allocation2 + $0x13d] sm:$0xff]
  %v5914 = vld [vmem:[#allocation2 + $0x145] sm:$0xff]
  %v5915 = vld [vmem:[#allocation2 + $0x14d] sm:$0xff]
  %v5916 = vld [vmem:[#allocation2 + $0x155] sm:$0xff]
  %v5917 = vld [vmem:[#allocation2 + $0x15d] sm:$0xff]
  %v5918 = vld [vmem:[#allocation2 + $0x165] sm:$0xff]
  %v5919 = vld [vmem:[#allocation2 + $0x16d] sm:$0xff]
  %v5920 = vld [vmem:[#allocation2 + $0x175] sm:$0xff]
  %v5921 = vld [vmem:[#allocation2 + $0x17d] sm:$0xff]
  %v5922 = vld [vmem:[#allocation2 + $0x185] sm:$0xff]
  %v5923 = vld [vmem:[#allocation2 + $0x18d] sm:$0xff]
  %v5924 = vld [vmem:[#allocation2 + $0x195] sm:$0xff]
  %v5925 = vld [vmem:[#allocation2 + $0x19d] sm:$0xff]
  %v5926 = vld [vmem:[#allocation2 + $0x1a5] sm:$0xff]
  %v5927 = vld [vmem:[#allocation2 + $0x1ad] sm:$0xff]
  %v5928 = vld [vmem:[#allocation2 + $0x1b5] sm:$0xff]
  %v5929 = vld [vmem:[#allocation2 + $0x1bd] sm:$0xff]
  %v5930 = vld [vmem:[#allocation2 + $0x1c5] sm:$0xff]
  %v5931 = vld [vmem:[#allocation2 + $0x1cd] sm:$0xff]
  %v5932 = vld [vmem:[#allocation2 + $0x1d5] sm:$0xff]
  %v5933 = vld [vmem:[#allocation2 + $0x1dd] sm:$0xff]
  %v5934 = vld [vmem:[#allocation2 + $0x1e5] sm:$0xff]
  %v5935 = vld [vmem:[#allocation2 + $0x1ed] sm:$0xff]
  %v5936 = vld [vmem:[#allocation2 + $0x1f5] sm:$0xff]
  %v5937 = vld [vmem:[#allocation2 + $0x1fd] sm:$0xff]
  %v5938 = vld [vmem:[#allocation2 + $0x205] sm:$0xff]
  %v5939 = vld [vmem:[#allocation2 + $0x20d] sm:$0xff]
  %v5940 = vld [vmem:[#allocation2 + $0x215] sm:$0xff]
  %v5941 = vld [vmem:[#allocation2 + $0x21d] sm:$0xff]
  %v5942 = vld [vmem:[#allocation2 + $0x225] sm:$0xff]
  %v5943 = vld [vmem:[#allocation2 + $0x22d] sm:$0xff]
  %v5944 = vld [vmem:[#allocation2 + $0x235] sm:$0xff]
  %v5945 = vld [vmem:[#allocation2 + $0x23d] sm:$0xff]
  %v5946 = vld [vmem:[#allocation2 + $0x245] sm:$0xff]
  %v5947 = vld [vmem:[#allocation2 + $0x24d] sm:$0xff]
  %v5948 = vld [vmem:[#allocation2 + $0x255] sm:$0xff]
  %v5949 = vld [vmem:[#allocation2 + $0x25d] sm:$0xff]
  %v5950 = vld [vmem:[#allocation2 + $0x265] sm:$0xff]
  %v5951 = vld [vmem:[#allocation2 + $0x26d] sm:$0xff]
  %v5952 = vld [vmem:[#allocation2 + $0x275] sm:$0xff]
  %v5953 = vld [vmem:[#allocation2 + $0x27d] sm:$0xff]
  %v5954 = vld [vmem:[#allocation2 + $0x285] sm:$0xff]
  %5955 = vst.msk [vmem:[#allocation3] sm:$0xff] %vm188, %v5874
  %5956 = vst.msk [vmem:[#allocation3 + $0x8] sm:$0xff] %vm188, %v5875
  %5957 = vst.msk [vmem:[#allocation3 + $0x10] sm:$0xff] %vm188, %v5876
  %5958 = vst.msk [vmem:[#allocation3 + $0x18] sm:$0xff] %vm188, %v5877
  %5959 = vst.msk [vmem:[#allocation3 + $0x20] sm:$0xff] %vm188, %v5878
  %5960 = vst.msk [vmem:[#allocation3 + $0x28] sm:$0xff] %vm188, %v5879
  %5961 = vst.msk [vmem:[#allocation3 + $0x30] sm:$0xff] %vm188, %v5880
  %5962 = vst.msk [vmem:[#allocation3 + $0x38] sm:$0xff] %vm188, %v5881
  %5963 = vst.msk [vmem:[#allocation3 + $0x40] sm:$0xff] %vm188, %v5882
  %5964 = vst.msk [vmem:[#allocation3 + $0x48] sm:$0xff] %vm188, %v5883
  %5965 = vst.msk [vmem:[#allocation3 + $0x50] sm:$0xff] %vm188, %v5884
  %5966 = vst.msk [vmem:[#allocation3 + $0x58] sm:$0xff] %vm188, %v5885
  %5967 = vst.msk [vmem:[#allocation3 + $0x60] sm:$0xff] %vm188, %v5886
  %5968 = vst.msk [vmem:[#allocation3 + $0x68] sm:$0xff] %vm188, %v5887
  %5969 = vst.msk [vmem:[#allocation3 + $0x70] sm:$0xff] %vm188, %v5888
  %5970 = vst.msk [vmem:[#allocation3 + $0x78] sm:$0xff] %vm188, %v5889
  %5971 = vst.msk [vmem:[#allocation3 + $0x80] sm:$0xff] %vm188, %v5890
  %5972 = vst.msk [vmem:[#allocation3 + $0x88] sm:$0xff] %vm188, %v5891
  %5973 = vst.msk [vmem:[#allocation3 + $0x90] sm:$0xff] %vm188, %v5892
  %5974 = vst.msk [vmem:[#allocation3 + $0x98] sm:$0xff] %vm188, %v5893
  %5975 = vst.msk [vmem:[#allocation3 + $0xa0] sm:$0xff] %vm188, %v5894
  %5976 = vst.msk [vmem:[#allocation3 + $0xa8] sm:$0xff] %vm188, %v5895
  %5977 = vst.msk [vmem:[#allocation3 + $0xb0] sm:$0xff] %vm188, %v5896
  %5978 = vst.msk [vmem:[#allocation3 + $0xb8] sm:$0xff] %vm188, %v5897
  %5979 = vst.msk [vmem:[#allocation3 + $0xc0] sm:$0xff] %vm188, %v5898
  %5980 = vst.msk [vmem:[#allocation3 + $0xc8] sm:$0xff] %vm188, %v5899
  %5981 = vst.msk [vmem:[#allocation3 + $0xd0] sm:$0xff] %vm188, %v5900
  %5982 = vst.msk [vmem:[#allocation3 + $0xd8] sm:$0xff] %vm188, %v5901
  %5983 = vst.msk [vmem:[#allocation3 + $0xe0] sm:$0xff] %vm188, %v5902
  %5984 = vst.msk [vmem:[#allocation3 + $0xe8] sm:$0xff] %vm188, %v5903
  %5985 = vst.msk [vmem:[#allocation3 + $0xf0] sm:$0xff] %vm188, %v5904
  %5986 = vst.msk [vmem:[#allocation3 + $0xf8] sm:$0xff] %vm188, %v5905
  %5987 = vst.msk [vmem:[#allocation3 + $0x100] sm:$0xff] %vm188, %v5906
  %5988 = vst.msk [vmem:[#allocation3 + $0x108] sm:$0xff] %vm188, %v5907
  %5989 = vst.msk [vmem:[#allocation3 + $0x110] sm:$0xff] %vm188, %v5908
  %5990 = vst.msk [vmem:[#allocation3 + $0x118] sm:$0xff] %vm188, %v5909
  %5991 = vst.msk [vmem:[#allocation3 + $0x120] sm:$0xff] %vm188, %v5910
  %5992 = vst.msk [vmem:[#allocation3 + $0x128] sm:$0xff] %vm188, %v5911
  %5993 = vst.msk [vmem:[#allocation3 + $0x130] sm:$0xff] %vm188, %v5912
  %5994 = vst.msk [vmem:[#allocation3 + $0x138] sm:$0xff] %vm188, %v5913
  %5995 = vst.msk [vmem:[#allocation3 + $0x140] sm:$0xff] %vm188, %v5914
  %5996 = vst.msk [vmem:[#allocation3 + $0x148] sm:$0xff] %vm188, %v5915
  %5997 = vst.msk [vmem:[#allocation3 + $0x150] sm:$0xff] %vm188, %v5916
  %5998 = vst.msk [vmem:[#allocation3 + $0x158] sm:$0xff] %vm188, %v5917
  %5999 = vst.msk [vmem:[#allocation3 + $0x160] sm:$0xff] %vm188, %v5918
  %6000 = vst.msk [vmem:[#allocation3 + $0x168] sm:$0xff] %vm188, %v5919
  %6001 = vst.msk [vmem:[#allocation3 + $0x170] sm:$0xff] %vm188, %v5920
  %6002 = vst.msk [vmem:[#allocation3 + $0x178] sm:$0xff] %vm188, %v5921
  %6003 = vst.msk [vmem:[#allocation3 + $0x180] sm:$0xff] %vm188, %v5922
  %6004 = vst.msk [vmem:[#allocation3 + $0x188] sm:$0xff] %vm188, %v5923
  %6005 = vst.msk [vmem:[#allocation3 + $0x190] sm:$0xff] %vm188, %v5924
  %6006 = vst.msk [vmem:[#allocation3 + $0x198] sm:$0xff] %vm188, %v5925
  %6007 = vst.msk [vmem:[#allocation3 + $0x1a0] sm:$0xff] %vm188, %v5926
  %6008 = vst.msk [vmem:[#allocation3 + $0x1a8] sm:$0xff] %vm188, %v5927
  %6009 = vst.msk [vmem:[#allocation3 + $0x1b0] sm:$0xff] %vm188, %v5928
  %6010 = vst.msk [vmem:[#allocation3 + $0x1b8] sm:$0xff] %vm188, %v5929
  %6011 = vst.msk [vmem:[#allocation3 + $0x1c0] sm:$0xff] %vm188, %v5930
  %6012 = vst.msk [vmem:[#allocation3 + $0x1c8] sm:$0xff] %vm188, %v5931
  %6013 = vst.msk [vmem:[#allocation3 + $0x1d0] sm:$0xff] %vm188, %v5932
  %6014 = vst.msk [vmem:[#allocation3 + $0x1d8] sm:$0xff] %vm188, %v5933
  %6015 = vst.msk [vmem:[#allocation3 + $0x1e0] sm:$0xff] %vm188, %v5934
  %6016 = vst.msk [vmem:[#allocation3 + $0x1e8] sm:$0xff] %vm188, %v5935
  %6017 = vst.msk [vmem:[#allocation3 + $0x1f0] sm:$0xff] %vm188, %v5936
  %6018 = vst.msk [vmem:[#allocation3 + $0x1f8] sm:$0xff] %vm188, %v5937
  %6019 = vst.msk [vmem:[#allocation3 + $0x200] sm:$0xff] %vm188, %v5938
  %6020 = vst.msk [vmem:[#allocation3 + $0x208] sm:$0xff] %vm188, %v5939
  %6021 = vst.msk [vmem:[#allocation3 + $0x210] sm:$0xff] %vm188, %v5940
  %6022 = vst.msk [vmem:[#allocation3 + $0x218] sm:$0xff] %vm188, %v5941
  %6023 = vst.msk [vmem:[#allocation3 + $0x220] sm:$0xff] %vm188, %v5942
  %6024 = vst.msk [vmem:[#allocation3 + $0x228] sm:$0xff] %vm188, %v5943
  %6025 = vst.msk [vmem:[#allocation3 + $0x230] sm:$0xff] %vm188, %v5944
  %6026 = vst.msk [vmem:[#allocation3 + $0x238] sm:$0xff] %vm188, %v5945
  %6027 = vst.msk [vmem:[#allocation3 + $0x240] sm:$0xff] %vm188, %v5946
  %6028 = vst.msk [vmem:[#allocation3 + $0x248] sm:$0xff] %vm188, %v5947
  %6029 = vst.msk [vmem:[#allocation3 + $0x250] sm:$0xff] %vm188, %v5948
  %6030 = vst.msk [vmem:[#allocation3 + $0x258] sm:$0xff] %vm188, %v5949
  %6031 = vst.msk [vmem:[#allocation3 + $0x260] sm:$0xff] %vm188, %v5950
  %6032 = vst.msk [vmem:[#allocation3 + $0x268] sm:$0xff] %vm188, %v5951
  %6033 = vst.msk [vmem:[#allocation3 + $0x270] sm:$0xff] %vm188, %v5952
  %6034 = vst.msk [vmem:[#allocation3 + $0x278] sm:$0xff] %vm188, %v5953
  %6035 = vst.msk [vmem:[#allocation3 + $0x280] sm:$0xff] %vm188, %v5954
  %v6036 = vld [vmem:[#allocation2 + $0x6] sm:$0xff]
  %v6037 = vld [vmem:[#allocation2 + $0xe] sm:$0xff]
  %v6038 = vld [vmem:[#allocation2 + $0x16] sm:$0xff]
  %v6039 = vld [vmem:[#allocation2 + $0x1e] sm:$0xff]
  %v6040 = vld [vmem:[#allocation2 + $0x26] sm:$0xff]
  %v6041 = vld [vmem:[#allocation2 + $0x2e] sm:$0xff]
  %v6042 = vld [vmem:[#allocation2 + $0x36] sm:$0xff]
  %v6043 = vld [vmem:[#allocation2 + $0x3e] sm:$0xff]
  %v6044 = vld [vmem:[#allocation2 + $0x46] sm:$0xff]
  %v6045 = vld [vmem:[#allocation2 + $0x4e] sm:$0xff]
  %v6046 = vld [vmem:[#allocation2 + $0x56] sm:$0xff]
  %v6047 = vld [vmem:[#allocation2 + $0x5e] sm:$0xff]
  %v6048 = vld [vmem:[#allocation2 + $0x66] sm:$0xff]
  %v6049 = vld [vmem:[#allocation2 + $0x6e] sm:$0xff]
  %v6050 = vld [vmem:[#allocation2 + $0x76] sm:$0xff]
  %v6051 = vld [vmem:[#allocation2 + $0x7e] sm:$0xff]
  %v6052 = vld [vmem:[#allocation2 + $0x86] sm:$0xff]
  %v6053 = vld [vmem:[#allocation2 + $0x8e] sm:$0xff]
  %v6054 = vld [vmem:[#allocation2 + $0x96] sm:$0xff]
  %v6055 = vld [vmem:[#allocation2 + $0x9e] sm:$0xff]
  %v6056 = vld [vmem:[#allocation2 + $0xa6] sm:$0xff]
  %v6057 = vld [vmem:[#allocation2 + $0xae] sm:$0xff]
  %v6058 = vld [vmem:[#allocation2 + $0xb6] sm:$0xff]
  %v6059 = vld [vmem:[#allocation2 + $0xbe] sm:$0xff]
  %v6060 = vld [vmem:[#allocation2 + $0xc6] sm:$0xff]
  %v6061 = vld [vmem:[#allocation2 + $0xce] sm:$0xff]
  %v6062 = vld [vmem:[#allocation2 + $0xd6] sm:$0xff]
  %v6063 = vld [vmem:[#allocation2 + $0xde] sm:$0xff]
  %v6064 = vld [vmem:[#allocation2 + $0xe6] sm:$0xff]
  %v6065 = vld [vmem:[#allocation2 + $0xee] sm:$0xff]
  %v6066 = vld [vmem:[#allocation2 + $0xf6] sm:$0xff]
  %v6067 = vld [vmem:[#allocation2 + $0xfe] sm:$0xff]
  %v6068 = vld [vmem:[#allocation2 + $0x106] sm:$0xff]
  %v6069 = vld [vmem:[#allocation2 + $0x10e] sm:$0xff]
  %v6070 = vld [vmem:[#allocation2 + $0x116] sm:$0xff]
  %v6071 = vld [vmem:[#allocation2 + $0x11e] sm:$0xff]
  %v6072 = vld [vmem:[#allocation2 + $0x126] sm:$0xff]
  %v6073 = vld [vmem:[#allocation2 + $0x12e] sm:$0xff]
  %v6074 = vld [vmem:[#allocation2 + $0x136] sm:$0xff]
  %v6075 = vld [vmem:[#allocation2 + $0x13e] sm:$0xff]
  %v6076 = vld [vmem:[#allocation2 + $0x146] sm:$0xff]
  %v6077 = vld [vmem:[#allocation2 + $0x14e] sm:$0xff]
  %v6078 = vld [vmem:[#allocation2 + $0x156] sm:$0xff]
  %v6079 = vld [vmem:[#allocation2 + $0x15e] sm:$0xff]
  %v6080 = vld [vmem:[#allocation2 + $0x166] sm:$0xff]
  %v6081 = vld [vmem:[#allocation2 + $0x16e] sm:$0xff]
  %v6082 = vld [vmem:[#allocation2 + $0x176] sm:$0xff]
  %v6083 = vld [vmem:[#allocation2 + $0x17e] sm:$0xff]
  %v6084 = vld [vmem:[#allocation2 + $0x186] sm:$0xff]
  %v6085 = vld [vmem:[#allocation2 + $0x18e] sm:$0xff]
  %v6086 = vld [vmem:[#allocation2 + $0x196] sm:$0xff]
  %v6087 = vld [vmem:[#allocation2 + $0x19e] sm:$0xff]
  %v6088 = vld [vmem:[#allocation2 + $0x1a6] sm:$0xff]
  %v6089 = vld [vmem:[#allocation2 + $0x1ae] sm:$0xff]
  %v6090 = vld [vmem:[#allocation2 + $0x1b6] sm:$0xff]
  %v6091 = vld [vmem:[#allocation2 + $0x1be] sm:$0xff]
  %v6092 = vld [vmem:[#allocation2 + $0x1c6] sm:$0xff]
  %v6093 = vld [vmem:[#allocation2 + $0x1ce] sm:$0xff]
  %v6094 = vld [vmem:[#allocation2 + $0x1d6] sm:$0xff]
  %v6095 = vld [vmem:[#allocation2 + $0x1de] sm:$0xff]
  %v6096 = vld [vmem:[#allocation2 + $0x1e6] sm:$0xff]
  %v6097 = vld [vmem:[#allocation2 + $0x1ee] sm:$0xff]
  %v6098 = vld [vmem:[#allocation2 + $0x1f6] sm:$0xff]
  %v6099 = vld [vmem:[#allocation2 + $0x1fe] sm:$0xff]
  %v6100 = vld [vmem:[#allocation2 + $0x206] sm:$0xff]
  %v6101 = vld [vmem:[#allocation2 + $0x20e] sm:$0xff]
  %v6102 = vld [vmem:[#allocation2 + $0x216] sm:$0xff]
  %v6103 = vld [vmem:[#allocation2 + $0x21e] sm:$0xff]
  %v6104 = vld [vmem:[#allocation2 + $0x226] sm:$0xff]
  %v6105 = vld [vmem:[#allocation2 + $0x22e] sm:$0xff]
  %v6106 = vld [vmem:[#allocation2 + $0x236] sm:$0xff]
  %v6107 = vld [vmem:[#allocation2 + $0x23e] sm:$0xff]
  %v6108 = vld [vmem:[#allocation2 + $0x246] sm:$0xff]
  %v6109 = vld [vmem:[#allocation2 + $0x24e] sm:$0xff]
  %v6110 = vld [vmem:[#allocation2 + $0x256] sm:$0xff]
  %v6111 = vld [vmem:[#allocation2 + $0x25e] sm:$0xff]
  %v6112 = vld [vmem:[#allocation2 + $0x266] sm:$0xff]
  %v6113 = vld [vmem:[#allocation2 + $0x26e] sm:$0xff]
  %v6114 = vld [vmem:[#allocation2 + $0x276] sm:$0xff]
  %v6115 = vld [vmem:[#allocation2 + $0x27e] sm:$0xff]
  %v6116 = vld [vmem:[#allocation2 + $0x286] sm:$0xff]
  %6198 = vrot.lane.b32.xlu0 %v6036, 4
  %v6199 = vpop.permute.xlu0 %6198
  %6200 = vrot.lane.b32.xlu0 %v6037, 4
  %v6201 = vpop.permute.xlu0 %6200
  %6202 = vrot.lane.b32.xlu0 %v6038, 4
  %v6203 = vpop.permute.xlu0 %6202
  %6204 = vrot.lane.b32.xlu0 %v6039, 4
  %v6205 = vpop.permute.xlu0 %6204
  %6206 = vrot.lane.b32.xlu0 %v6040, 4
  %v6207 = vpop.permute.xlu0 %6206
  %6208 = vrot.lane.b32.xlu0 %v6041, 4
  %v6209 = vpop.permute.xlu0 %6208
  %6210 = vrot.lane.b32.xlu0 %v6042, 4
  %v6211 = vpop.permute.xlu0 %6210
  %6212 = vrot.lane.b32.xlu0 %v6043, 4
  %v6213 = vpop.permute.xlu0 %6212
  %6214 = vrot.lane.b32.xlu0 %v6044, 4
  %v6215 = vpop.permute.xlu0 %6214
  %6216 = vrot.lane.b32.xlu0 %v6045, 4
  %v6217 = vpop.permute.xlu0 %6216
  %6218 = vrot.lane.b32.xlu0 %v6046, 4
  %v6219 = vpop.permute.xlu0 %6218
  %6220 = vrot.lane.b32.xlu0 %v6047, 4
  %v6221 = vpop.permute.xlu0 %6220
  %6222 = vrot.lane.b32.xlu0 %v6048, 4
  %v6223 = vpop.permute.xlu0 %6222
  %6224 = vrot.lane.b32.xlu0 %v6049, 4
  %v6225 = vpop.permute.xlu0 %6224
  %6226 = vrot.lane.b32.xlu0 %v6050, 4
  %v6227 = vpop.permute.xlu0 %6226
  %6228 = vrot.lane.b32.xlu0 %v6051, 4
  %v6229 = vpop.permute.xlu0 %6228
  %6230 = vrot.lane.b32.xlu0 %v6052, 4
  %v6231 = vpop.permute.xlu0 %6230
  %6232 = vrot.lane.b32.xlu0 %v6053, 4
  %v6233 = vpop.permute.xlu0 %6232
  %6234 = vrot.lane.b32.xlu0 %v6054, 4
  %v6235 = vpop.permute.xlu0 %6234
  %6236 = vrot.lane.b32.xlu0 %v6055, 4
  %v6237 = vpop.permute.xlu0 %6236
  %6238 = vrot.lane.b32.xlu0 %v6056, 4
  %v6239 = vpop.permute.xlu0 %6238
  %6240 = vrot.lane.b32.xlu0 %v6057, 4
  %v6241 = vpop.permute.xlu0 %6240
  %6242 = vrot.lane.b32.xlu0 %v6058, 4
  %v6243 = vpop.permute.xlu0 %6242
  %6244 = vrot.lane.b32.xlu0 %v6059, 4
  %v6245 = vpop.permute.xlu0 %6244
  %6246 = vrot.lane.b32.xlu0 %v6060, 4
  %v6247 = vpop.permute.xlu0 %6246
  %6248 = vrot.lane.b32.xlu0 %v6061, 4
  %v6249 = vpop.permute.xlu0 %6248
  %6250 = vrot.lane.b32.xlu0 %v6062, 4
  %v6251 = vpop.permute.xlu0 %6250
  %6252 = vrot.lane.b32.xlu0 %v6063, 4
  %v6253 = vpop.permute.xlu0 %6252
  %6254 = vrot.lane.b32.xlu0 %v6064, 4
  %v6255 = vpop.permute.xlu0 %6254
  %6256 = vrot.lane.b32.xlu0 %v6065, 4
  %v6257 = vpop.permute.xlu0 %6256
  %6258 = vrot.lane.b32.xlu0 %v6066, 4
  %v6259 = vpop.permute.xlu0 %6258
  %6260 = vrot.lane.b32.xlu0 %v6067, 4
  %v6261 = vpop.permute.xlu0 %6260
  %6262 = vrot.lane.b32.xlu0 %v6068, 4
  %v6263 = vpop.permute.xlu0 %6262
  %6264 = vrot.lane.b32.xlu0 %v6069, 4
  %v6265 = vpop.permute.xlu0 %6264
  %6266 = vrot.lane.b32.xlu0 %v6070, 4
  %v6267 = vpop.permute.xlu0 %6266
  %6268 = vrot.lane.b32.xlu0 %v6071, 4
  %v6269 = vpop.permute.xlu0 %6268
  %6270 = vrot.lane.b32.xlu0 %v6072, 4
  %v6271 = vpop.permute.xlu0 %6270
  %6272 = vrot.lane.b32.xlu0 %v6073, 4
  %v6273 = vpop.permute.xlu0 %6272
  %6274 = vrot.lane.b32.xlu0 %v6074, 4
  %v6275 = vpop.permute.xlu0 %6274
  %6276 = vrot.lane.b32.xlu0 %v6075, 4
  %v6277 = vpop.permute.xlu0 %6276
  %6278 = vrot.lane.b32.xlu0 %v6076, 4
  %v6279 = vpop.permute.xlu0 %6278
  %6280 = vrot.lane.b32.xlu0 %v6077, 4
  %v6281 = vpop.permute.xlu0 %6280
  %6282 = vrot.lane.b32.xlu0 %v6078, 4
  %v6283 = vpop.permute.xlu0 %6282
  %6284 = vrot.lane.b32.xlu0 %v6079, 4
  %v6285 = vpop.permute.xlu0 %6284
  %6286 = vrot.lane.b32.xlu0 %v6080, 4
  %v6287 = vpop.permute.xlu0 %6286
  %6288 = vrot.lane.b32.xlu0 %v6081, 4
  %v6289 = vpop.permute.xlu0 %6288
  %6290 = vrot.lane.b32.xlu0 %v6082, 4
  %v6291 = vpop.permute.xlu0 %6290
  %6292 = vrot.lane.b32.xlu0 %v6083, 4
  %v6293 = vpop.permute.xlu0 %6292
  %6294 = vrot.lane.b32.xlu0 %v6084, 4
  %v6295 = vpop.permute.xlu0 %6294
  %6296 = vrot.lane.b32.xlu0 %v6085, 4
  %v6297 = vpop.permute.xlu0 %6296
  %6298 = vrot.lane.b32.xlu0 %v6086, 4
  %v6299 = vpop.permute.xlu0 %6298
  %6300 = vrot.lane.b32.xlu0 %v6087, 4
  %v6301 = vpop.permute.xlu0 %6300
  %6302 = vrot.lane.b32.xlu0 %v6088, 4
  %v6303 = vpop.permute.xlu0 %6302
  %6304 = vrot.lane.b32.xlu0 %v6089, 4
  %v6305 = vpop.permute.xlu0 %6304
  %6306 = vrot.lane.b32.xlu0 %v6090, 4
  %v6307 = vpop.permute.xlu0 %6306
  %6308 = vrot.lane.b32.xlu0 %v6091, 4
  %v6309 = vpop.permute.xlu0 %6308
  %6310 = vrot.lane.b32.xlu0 %v6092, 4
  %v6311 = vpop.permute.xlu0 %6310
  %6312 = vrot.lane.b32.xlu0 %v6093, 4
  %v6313 = vpop.permute.xlu0 %6312
  %6314 = vrot.lane.b32.xlu0 %v6094, 4
  %v6315 = vpop.permute.xlu0 %6314
  %6316 = vrot.lane.b32.xlu0 %v6095, 4
  %v6317 = vpop.permute.xlu0 %6316
  %6318 = vrot.lane.b32.xlu0 %v6096, 4
  %v6319 = vpop.permute.xlu0 %6318
  %6320 = vrot.lane.b32.xlu0 %v6097, 4
  %v6321 = vpop.permute.xlu0 %6320
  %6322 = vrot.lane.b32.xlu0 %v6098, 4
  %v6323 = vpop.permute.xlu0 %6322
  %6324 = vrot.lane.b32.xlu0 %v6099, 4
  %v6325 = vpop.permute.xlu0 %6324
  %6326 = vrot.lane.b32.xlu0 %v6100, 4
  %v6327 = vpop.permute.xlu0 %6326
  %6328 = vrot.lane.b32.xlu0 %v6101, 4
  %v6329 = vpop.permute.xlu0 %6328
  %6330 = vrot.lane.b32.xlu0 %v6102, 4
  %v6331 = vpop.permute.xlu0 %6330
  %6332 = vrot.lane.b32.xlu0 %v6103, 4
  %v6333 = vpop.permute.xlu0 %6332
  %6334 = vrot.lane.b32.xlu0 %v6104, 4
  %v6335 = vpop.permute.xlu0 %6334
  %6336 = vrot.lane.b32.xlu0 %v6105, 4
  %v6337 = vpop.permute.xlu0 %6336
  %6338 = vrot.lane.b32.xlu0 %v6106, 4
  %v6339 = vpop.permute.xlu0 %6338
  %6340 = vrot.lane.b32.xlu0 %v6107, 4
  %v6341 = vpop.permute.xlu0 %6340
  %6342 = vrot.lane.b32.xlu0 %v6108, 4
  %v6343 = vpop.permute.xlu0 %6342
  %6344 = vrot.lane.b32.xlu0 %v6109, 4
  %v6345 = vpop.permute.xlu0 %6344
  %6346 = vrot.lane.b32.xlu0 %v6110, 4
  %v6347 = vpop.permute.xlu0 %6346
  %6348 = vrot.lane.b32.xlu0 %v6111, 4
  %v6349 = vpop.permute.xlu0 %6348
  %6350 = vrot.lane.b32.xlu0 %v6112, 4
  %v6351 = vpop.permute.xlu0 %6350
  %6352 = vrot.lane.b32.xlu0 %v6113, 4
  %v6353 = vpop.permute.xlu0 %6352
  %6354 = vrot.lane.b32.xlu0 %v6114, 4
  %v6355 = vpop.permute.xlu0 %6354
  %6356 = vrot.lane.b32.xlu0 %v6115, 4
  %v6357 = vpop.permute.xlu0 %6356
  %6358 = vrot.lane.b32.xlu0 %v6116, 4
  %v6359 = vpop.permute.xlu0 %6358
  %6441 = vst.msk [vmem:[#allocation3] sm:$0xff] %vm675, %v6199
  %6442 = vst.msk [vmem:[#allocation3 + $0x8] sm:$0xff] %vm675, %v6201
  %6443 = vst.msk [vmem:[#allocation3 + $0x10] sm:$0xff] %vm675, %v6203
  %6444 = vst.msk [vmem:[#allocation3 + $0x18] sm:$0xff] %vm675, %v6205
  %6445 = vst.msk [vmem:[#allocation3 + $0x20] sm:$0xff] %vm675, %v6207
  %6446 = vst.msk [vmem:[#allocation3 + $0x28] sm:$0xff] %vm675, %v6209
  %6447 = vst.msk [vmem:[#allocation3 + $0x30] sm:$0xff] %vm675, %v6211
  %6448 = vst.msk [vmem:[#allocation3 + $0x38] sm:$0xff] %vm675, %v6213
  %6449 = vst.msk [vmem:[#allocation3 + $0x40] sm:$0xff] %vm675, %v6215
  %6450 = vst.msk [vmem:[#allocation3 + $0x48] sm:$0xff] %vm675, %v6217
  %6451 = vst.msk [vmem:[#allocation3 + $0x50] sm:$0xff] %vm675, %v6219
  %6452 = vst.msk [vmem:[#allocation3 + $0x58] sm:$0xff] %vm675, %v6221
  %6453 = vst.msk [vmem:[#allocation3 + $0x60] sm:$0xff] %vm675, %v6223
  %6454 = vst.msk [vmem:[#allocation3 + $0x68] sm:$0xff] %vm675, %v6225
  %6455 = vst.msk [vmem:[#allocation3 + $0x70] sm:$0xff] %vm675, %v6227
  %6456 = vst.msk [vmem:[#allocation3 + $0x78] sm:$0xff] %vm675, %v6229
  %6457 = vst.msk [vmem:[#allocation3 + $0x80] sm:$0xff] %vm675, %v6231
  %6458 = vst.msk [vmem:[#allocation3 + $0x88] sm:$0xff] %vm675, %v6233
  %6459 = vst.msk [vmem:[#allocation3 + $0x90] sm:$0xff] %vm675, %v6235
  %6460 = vst.msk [vmem:[#allocation3 + $0x98] sm:$0xff] %vm675, %v6237
  %6461 = vst.msk [vmem:[#allocation3 + $0xa0] sm:$0xff] %vm675, %v6239
  %6462 = vst.msk [vmem:[#allocation3 + $0xa8] sm:$0xff] %vm675, %v6241
  %6463 = vst.msk [vmem:[#allocation3 + $0xb0] sm:$0xff] %vm675, %v6243
  %6464 = vst.msk [vmem:[#allocation3 + $0xb8] sm:$0xff] %vm675, %v6245
  %6465 = vst.msk [vmem:[#allocation3 + $0xc0] sm:$0xff] %vm675, %v6247
  %6466 = vst.msk [vmem:[#allocation3 + $0xc8] sm:$0xff] %vm675, %v6249
  %6467 = vst.msk [vmem:[#allocation3 + $0xd0] sm:$0xff] %vm675, %v6251
  %6468 = vst.msk [vmem:[#allocation3 + $0xd8] sm:$0xff] %vm675, %v6253
  %6469 = vst.msk [vmem:[#allocation3 + $0xe0] sm:$0xff] %vm675, %v6255
  %6470 = vst.msk [vmem:[#allocation3 + $0xe8] sm:$0xff] %vm675, %v6257
  %6471 = vst.msk [vmem:[#allocation3 + $0xf0] sm:$0xff] %vm675, %v6259
  %6472 = vst.msk [vmem:[#allocation3 + $0xf8] sm:$0xff] %vm675, %v6261
  %6473 = vst.msk [vmem:[#allocation3 + $0x100] sm:$0xff] %vm675, %v6263
  %6474 = vst.msk [vmem:[#allocation3 + $0x108] sm:$0xff] %vm675, %v6265
  %6475 = vst.msk [vmem:[#allocation3 + $0x110] sm:$0xff] %vm675, %v6267
  %6476 = vst.msk [vmem:[#allocation3 + $0x118] sm:$0xff] %vm675, %v6269
  %6477 = vst.msk [vmem:[#allocation3 + $0x120] sm:$0xff] %vm675, %v6271
  %6478 = vst.msk [vmem:[#allocation3 + $0x128] sm:$0xff] %vm675, %v6273
  %6479 = vst.msk [vmem:[#allocation3 + $0x130] sm:$0xff] %vm675, %v6275
  %6480 = vst.msk [vmem:[#allocation3 + $0x138] sm:$0xff] %vm675, %v6277
  %6481 = vst.msk [vmem:[#allocation3 + $0x140] sm:$0xff] %vm675, %v6279
  %6482 = vst.msk [vmem:[#allocation3 + $0x148] sm:$0xff] %vm675, %v6281
  %6483 = vst.msk [vmem:[#allocation3 + $0x150] sm:$0xff] %vm675, %v6283
  %6484 = vst.msk [vmem:[#allocation3 + $0x158] sm:$0xff] %vm675, %v6285
  %6485 = vst.msk [vmem:[#allocation3 + $0x160] sm:$0xff] %vm675, %v6287
  %6486 = vst.msk [vmem:[#allocation3 + $0x168] sm:$0xff] %vm675, %v6289
  %6487 = vst.msk [vmem:[#allocation3 + $0x170] sm:$0xff] %vm675, %v6291
  %6488 = vst.msk [vmem:[#allocation3 + $0x178] sm:$0xff] %vm675, %v6293
  %6489 = vst.msk [vmem:[#allocation3 + $0x180] sm:$0xff] %vm675, %v6295
  %6490 = vst.msk [vmem:[#allocation3 + $0x188] sm:$0xff] %vm675, %v6297
  %6491 = vst.msk [vmem:[#allocation3 + $0x190] sm:$0xff] %vm675, %v6299
  %6492 = vst.msk [vmem:[#allocation3 + $0x198] sm:$0xff] %vm675, %v6301
  %6493 = vst.msk [vmem:[#allocation3 + $0x1a0] sm:$0xff] %vm675, %v6303
  %6494 = vst.msk [vmem:[#allocation3 + $0x1a8] sm:$0xff] %vm675, %v6305
  %6495 = vst.msk [vmem:[#allocation3 + $0x1b0] sm:$0xff] %vm675, %v6307
  %6496 = vst.msk [vmem:[#allocation3 + $0x1b8] sm:$0xff] %vm675, %v6309
  %6497 = vst.msk [vmem:[#allocation3 + $0x1c0] sm:$0xff] %vm675, %v6311
  %6498 = vst.msk [vmem:[#allocation3 + $0x1c8] sm:$0xff] %vm675, %v6313
  %6499 = vst.msk [vmem:[#allocation3 + $0x1d0] sm:$0xff] %vm675, %v6315
  %6500 = vst.msk [vmem:[#allocation3 + $0x1d8] sm:$0xff] %vm675, %v6317
  %6501 = vst.msk [vmem:[#allocation3 + $0x1e0] sm:$0xff] %vm675, %v6319
  %6502 = vst.msk [vmem:[#allocation3 + $0x1e8] sm:$0xff] %vm675, %v6321
  %6503 = vst.msk [vmem:[#allocation3 + $0x1f0] sm:$0xff] %vm675, %v6323
  %6504 = vst.msk [vmem:[#allocation3 + $0x1f8] sm:$0xff] %vm675, %v6325
  %6505 = vst.msk [vmem:[#allocation3 + $0x200] sm:$0xff] %vm675, %v6327
  %6506 = vst.msk [vmem:[#allocation3 + $0x208] sm:$0xff] %vm675, %v6329
  %6507 = vst.msk [vmem:[#allocation3 + $0x210] sm:$0xff] %vm675, %v6331
  %6508 = vst.msk [vmem:[#allocation3 + $0x218] sm:$0xff] %vm675, %v6333
  %6509 = vst.msk [vmem:[#allocation3 + $0x220] sm:$0xff] %vm675, %v6335
  %6510 = vst.msk [vmem:[#allocation3 + $0x228] sm:$0xff] %vm675, %v6337
  %6511 = vst.msk [vmem:[#allocation3 + $0x230] sm:$0xff] %vm675, %v6339
  %6512 = vst.msk [vmem:[#allocation3 + $0x238] sm:$0xff] %vm675, %v6341
  %6513 = vst.msk [vmem:[#allocation3 + $0x240] sm:$0xff] %vm675, %v6343
  %6514 = vst.msk [vmem:[#allocation3 + $0x248] sm:$0xff] %vm675, %v6345
  %6515 = vst.msk [vmem:[#allocation3 + $0x250] sm:$0xff] %vm675, %v6347
  %6516 = vst.msk [vmem:[#allocation3 + $0x258] sm:$0xff] %vm675, %v6349
  %6517 = vst.msk [vmem:[#allocation3 + $0x260] sm:$0xff] %vm675, %v6351
  %6518 = vst.msk [vmem:[#allocation3 + $0x268] sm:$0xff] %vm675, %v6353
  %6519 = vst.msk [vmem:[#allocation3 + $0x270] sm:$0xff] %vm675, %v6355
  %6520 = vst.msk [vmem:[#allocation3 + $0x278] sm:$0xff] %vm675, %v6357
  %6521 = vst.msk [vmem:[#allocation3 + $0x280] sm:$0xff] %vm675, %v6359
  %v6522 = vld [vmem:[#allocation2 + $0x7] sm:$0xff]
  %v6523 = vld [vmem:[#allocation2 + $0xf] sm:$0xff]
  %v6524 = vld [vmem:[#allocation2 + $0x17] sm:$0xff]
  %v6525 = vld [vmem:[#allocation2 + $0x1f] sm:$0xff]
  %v6526 = vld [vmem:[#allocation2 + $0x27] sm:$0xff]
  %v6527 = vld [vmem:[#allocation2 + $0x2f] sm:$0xff]
  %v6528 = vld [vmem:[#allocation2 + $0x37] sm:$0xff]
  %v6529 = vld [vmem:[#allocation2 + $0x3f] sm:$0xff]
  %v6530 = vld [vmem:[#allocation2 + $0x47] sm:$0xff]
  %v6531 = vld [vmem:[#allocation2 + $0x4f] sm:$0xff]
  %v6532 = vld [vmem:[#allocation2 + $0x57] sm:$0xff]
  %v6533 = vld [vmem:[#allocation2 + $0x5f] sm:$0xff]
  %v6534 = vld [vmem:[#allocation2 + $0x67] sm:$0xff]
  %v6535 = vld [vmem:[#allocation2 + $0x6f] sm:$0xff]
  %v6536 = vld [vmem:[#allocation2 + $0x77] sm:$0xff]
  %v6537 = vld [vmem:[#allocation2 + $0x7f] sm:$0xff]
  %v6538 = vld [vmem:[#allocation2 + $0x87] sm:$0xff]
  %v6539 = vld [vmem:[#allocation2 + $0x8f] sm:$0xff]
  %v6540 = vld [vmem:[#allocation2 + $0x97] sm:$0xff]
  %v6541 = vld [vmem:[#allocation2 + $0x9f] sm:$0xff]
  %v6542 = vld [vmem:[#allocation2 + $0xa7] sm:$0xff]
  %v6543 = vld [vmem:[#allocation2 + $0xaf] sm:$0xff]
  %v6544 = vld [vmem:[#allocation2 + $0xb7] sm:$0xff]
  %v6545 = vld [vmem:[#allocation2 + $0xbf] sm:$0xff]
  %v6546 = vld [vmem:[#allocation2 + $0xc7] sm:$0xff]
  %v6547 = vld [vmem:[#allocation2 + $0xcf] sm:$0xff]
  %v6548 = vld [vmem:[#allocation2 + $0xd7] sm:$0xff]
  %v6549 = vld [vmem:[#allocation2 + $0xdf] sm:$0xff]
  %v6550 = vld [vmem:[#allocation2 + $0xe7] sm:$0xff]
  %v6551 = vld [vmem:[#allocation2 + $0xef] sm:$0xff]
  %v6552 = vld [vmem:[#allocation2 + $0xf7] sm:$0xff]
  %v6553 = vld [vmem:[#allocation2 + $0xff] sm:$0xff]
  %v6554 = vld [vmem:[#allocation2 + $0x107] sm:$0xff]
  %v6555 = vld [vmem:[#allocation2 + $0x10f] sm:$0xff]
  %v6556 = vld [vmem:[#allocation2 + $0x117] sm:$0xff]
  %v6557 = vld [vmem:[#allocation2 + $0x11f] sm:$0xff]
  %v6558 = vld [vmem:[#allocation2 + $0x127] sm:$0xff]
  %v6559 = vld [vmem:[#allocation2 + $0x12f] sm:$0xff]
  %v6560 = vld [vmem:[#allocation2 + $0x137] sm:$0xff]
  %v6561 = vld [vmem:[#allocation2 + $0x13f] sm:$0xff]
  %v6562 = vld [vmem:[#allocation2 + $0x147] sm:$0xff]
  %v6563 = vld [vmem:[#allocation2 + $0x14f] sm:$0xff]
  %v6564 = vld [vmem:[#allocation2 + $0x157] sm:$0xff]
  %v6565 = vld [vmem:[#allocation2 + $0x15f] sm:$0xff]
  %v6566 = vld [vmem:[#allocation2 + $0x167] sm:$0xff]
  %v6567 = vld [vmem:[#allocation2 + $0x16f] sm:$0xff]
  %v6568 = vld [vmem:[#allocation2 + $0x177] sm:$0xff]
  %v6569 = vld [vmem:[#allocation2 + $0x17f] sm:$0xff]
  %v6570 = vld [vmem:[#allocation2 + $0x187] sm:$0xff]
  %v6571 = vld [vmem:[#allocation2 + $0x18f] sm:$0xff]
  %v6572 = vld [vmem:[#allocation2 + $0x197] sm:$0xff]
  %v6573 = vld [vmem:[#allocation2 + $0x19f] sm:$0xff]
  %v6574 = vld [vmem:[#allocation2 + $0x1a7] sm:$0xff]
  %v6575 = vld [vmem:[#allocation2 + $0x1af] sm:$0xff]
  %v6576 = vld [vmem:[#allocation2 + $0x1b7] sm:$0xff]
  %v6577 = vld [vmem:[#allocation2 + $0x1bf] sm:$0xff]
  %v6578 = vld [vmem:[#allocation2 + $0x1c7] sm:$0xff]
  %v6579 = vld [vmem:[#allocation2 + $0x1cf] sm:$0xff]
  %v6580 = vld [vmem:[#allocation2 + $0x1d7] sm:$0xff]
  %v6581 = vld [vmem:[#allocation2 + $0x1df] sm:$0xff]
  %v6582 = vld [vmem:[#allocation2 + $0x1e7] sm:$0xff]
  %v6583 = vld [vmem:[#allocation2 + $0x1ef] sm:$0xff]
  %v6584 = vld [vmem:[#allocation2 + $0x1f7] sm:$0xff]
  %v6585 = vld [vmem:[#allocation2 + $0x1ff] sm:$0xff]
  %v6586 = vld [vmem:[#allocation2 + $0x207] sm:$0xff]
  %v6587 = vld [vmem:[#allocation2 + $0x20f] sm:$0xff]
  %v6588 = vld [vmem:[#allocation2 + $0x217] sm:$0xff]
  %v6589 = vld [vmem:[#allocation2 + $0x21f] sm:$0xff]
  %v6590 = vld [vmem:[#allocation2 + $0x227] sm:$0xff]
  %v6591 = vld [vmem:[#allocation2 + $0x22f] sm:$0xff]
  %v6592 = vld [vmem:[#allocation2 + $0x237] sm:$0xff]
  %v6593 = vld [vmem:[#allocation2 + $0x23f] sm:$0xff]
  %v6594 = vld [vmem:[#allocation2 + $0x247] sm:$0xff]
  %v6595 = vld [vmem:[#allocation2 + $0x24f] sm:$0xff]
  %v6596 = vld [vmem:[#allocation2 + $0x257] sm:$0xff]
  %v6597 = vld [vmem:[#allocation2 + $0x25f] sm:$0xff]
  %v6598 = vld [vmem:[#allocation2 + $0x267] sm:$0xff]
  %v6599 = vld [vmem:[#allocation2 + $0x26f] sm:$0xff]
  %v6600 = vld [vmem:[#allocation2 + $0x277] sm:$0xff]
  %v6601 = vld [vmem:[#allocation2 + $0x27f] sm:$0xff]
  %v6602 = vld [vmem:[#allocation2 + $0x287] sm:$0xff]
  %6684 = vrot.lane.b32.xlu0 %v6522, 8
  %v6685 = vpop.permute.xlu0 %6684
  %6686 = vrot.lane.b32.xlu0 %v6523, 8
  %v6687 = vpop.permute.xlu0 %6686
  %6688 = vrot.lane.b32.xlu0 %v6524, 8
  %v6689 = vpop.permute.xlu0 %6688
  %6690 = vrot.lane.b32.xlu0 %v6525, 8
  %v6691 = vpop.permute.xlu0 %6690
  %6692 = vrot.lane.b32.xlu0 %v6526, 8
  %v6693 = vpop.permute.xlu0 %6692
  %6694 = vrot.lane.b32.xlu0 %v6527, 8
  %v6695 = vpop.permute.xlu0 %6694
  %6696 = vrot.lane.b32.xlu0 %v6528, 8
  %v6697 = vpop.permute.xlu0 %6696
  %6698 = vrot.lane.b32.xlu0 %v6529, 8
  %v6699 = vpop.permute.xlu0 %6698
  %6700 = vrot.lane.b32.xlu0 %v6530, 8
  %v6701 = vpop.permute.xlu0 %6700
  %6702 = vrot.lane.b32.xlu0 %v6531, 8
  %v6703 = vpop.permute.xlu0 %6702
  %6704 = vrot.lane.b32.xlu0 %v6532, 8
  %v6705 = vpop.permute.xlu0 %6704
  %6706 = vrot.lane.b32.xlu0 %v6533, 8
  %v6707 = vpop.permute.xlu0 %6706
  %6708 = vrot.lane.b32.xlu0 %v6534, 8
  %v6709 = vpop.permute.xlu0 %6708
  %6710 = vrot.lane.b32.xlu0 %v6535, 8
  %v6711 = vpop.permute.xlu0 %6710
  %6712 = vrot.lane.b32.xlu0 %v6536, 8
  %v6713 = vpop.permute.xlu0 %6712
  %6714 = vrot.lane.b32.xlu0 %v6537, 8
  %v6715 = vpop.permute.xlu0 %6714
  %6716 = vrot.lane.b32.xlu0 %v6538, 8
  %v6717 = vpop.permute.xlu0 %6716
  %6718 = vrot.lane.b32.xlu0 %v6539, 8
  %v6719 = vpop.permute.xlu0 %6718
  %6720 = vrot.lane.b32.xlu0 %v6540, 8
  %v6721 = vpop.permute.xlu0 %6720
  %6722 = vrot.lane.b32.xlu0 %v6541, 8
  %v6723 = vpop.permute.xlu0 %6722
  %6724 = vrot.lane.b32.xlu0 %v6542, 8
  %v6725 = vpop.permute.xlu0 %6724
  %6726 = vrot.lane.b32.xlu0 %v6543, 8
  %v6727 = vpop.permute.xlu0 %6726
  %6728 = vrot.lane.b32.xlu0 %v6544, 8
  %v6729 = vpop.permute.xlu0 %6728
  %6730 = vrot.lane.b32.xlu0 %v6545, 8
  %v6731 = vpop.permute.xlu0 %6730
  %6732 = vrot.lane.b32.xlu0 %v6546, 8
  %v6733 = vpop.permute.xlu0 %6732
  %6734 = vrot.lane.b32.xlu0 %v6547, 8
  %v6735 = vpop.permute.xlu0 %6734
  %6736 = vrot.lane.b32.xlu0 %v6548, 8
  %v6737 = vpop.permute.xlu0 %6736
  %6738 = vrot.lane.b32.xlu0 %v6549, 8
  %v6739 = vpop.permute.xlu0 %6738
  %6740 = vrot.lane.b32.xlu0 %v6550, 8
  %v6741 = vpop.permute.xlu0 %6740
  %6742 = vrot.lane.b32.xlu0 %v6551, 8
  %v6743 = vpop.permute.xlu0 %6742
  %6744 = vrot.lane.b32.xlu0 %v6552, 8
  %v6745 = vpop.permute.xlu0 %6744
  %6746 = vrot.lane.b32.xlu0 %v6553, 8
  %v6747 = vpop.permute.xlu0 %6746
  %6748 = vrot.lane.b32.xlu0 %v6554, 8
  %v6749 = vpop.permute.xlu0 %6748
  %6750 = vrot.lane.b32.xlu0 %v6555, 8
  %v6751 = vpop.permute.xlu0 %6750
  %6752 = vrot.lane.b32.xlu0 %v6556, 8
  %v6753 = vpop.permute.xlu0 %6752
  %6754 = vrot.lane.b32.xlu0 %v6557, 8
  %v6755 = vpop.permute.xlu0 %6754
  %6756 = vrot.lane.b32.xlu0 %v6558, 8
  %v6757 = vpop.permute.xlu0 %6756
  %6758 = vrot.lane.b32.xlu0 %v6559, 8
  %v6759 = vpop.permute.xlu0 %6758
  %6760 = vrot.lane.b32.xlu0 %v6560, 8
  %v6761 = vpop.permute.xlu0 %6760
  %6762 = vrot.lane.b32.xlu0 %v6561, 8
  %v6763 = vpop.permute.xlu0 %6762
  %6764 = vrot.lane.b32.xlu0 %v6562, 8
  %v6765 = vpop.permute.xlu0 %6764
  %6766 = vrot.lane.b32.xlu0 %v6563, 8
  %v6767 = vpop.permute.xlu0 %6766
  %6768 = vrot.lane.b32.xlu0 %v6564, 8
  %v6769 = vpop.permute.xlu0 %6768
  %6770 = vrot.lane.b32.xlu0 %v6565, 8
  %v6771 = vpop.permute.xlu0 %6770
  %6772 = vrot.lane.b32.xlu0 %v6566, 8
  %v6773 = vpop.permute.xlu0 %6772
  %6774 = vrot.lane.b32.xlu0 %v6567, 8
  %v6775 = vpop.permute.xlu0 %6774
  %6776 = vrot.lane.b32.xlu0 %v6568, 8
  %v6777 = vpop.permute.xlu0 %6776
  %6778 = vrot.lane.b32.xlu0 %v6569, 8
  %v6779 = vpop.permute.xlu0 %6778
  %6780 = vrot.lane.b32.xlu0 %v6570, 8
  %v6781 = vpop.permute.xlu0 %6780
  %6782 = vrot.lane.b32.xlu0 %v6571, 8
  %v6783 = vpop.permute.xlu0 %6782
  %6784 = vrot.lane.b32.xlu0 %v6572, 8
  %v6785 = vpop.permute.xlu0 %6784
  %6786 = vrot.lane.b32.xlu0 %v6573, 8
  %v6787 = vpop.permute.xlu0 %6786
  %6788 = vrot.lane.b32.xlu0 %v6574, 8
  %v6789 = vpop.permute.xlu0 %6788
  %6790 = vrot.lane.b32.xlu0 %v6575, 8
  %v6791 = vpop.permute.xlu0 %6790
  %6792 = vrot.lane.b32.xlu0 %v6576, 8
  %v6793 = vpop.permute.xlu0 %6792
  %6794 = vrot.lane.b32.xlu0 %v6577, 8
  %v6795 = vpop.permute.xlu0 %6794
  %6796 = vrot.lane.b32.xlu0 %v6578, 8
  %v6797 = vpop.permute.xlu0 %6796
  %6798 = vrot.lane.b32.xlu0 %v6579, 8
  %v6799 = vpop.permute.xlu0 %6798
  %6800 = vrot.lane.b32.xlu0 %v6580, 8
  %v6801 = vpop.permute.xlu0 %6800
  %6802 = vrot.lane.b32.xlu0 %v6581, 8
  %v6803 = vpop.permute.xlu0 %6802
  %6804 = vrot.lane.b32.xlu0 %v6582, 8
  %v6805 = vpop.permute.xlu0 %6804
  %6806 = vrot.lane.b32.xlu0 %v6583, 8
  %v6807 = vpop.permute.xlu0 %6806
  %6808 = vrot.lane.b32.xlu0 %v6584, 8
  %v6809 = vpop.permute.xlu0 %6808
  %6810 = vrot.lane.b32.xlu0 %v6585, 8
  %v6811 = vpop.permute.xlu0 %6810
  %6812 = vrot.lane.b32.xlu0 %v6586, 8
  %v6813 = vpop.permute.xlu0 %6812
  %6814 = vrot.lane.b32.xlu0 %v6587, 8
  %v6815 = vpop.permute.xlu0 %6814
  %6816 = vrot.lane.b32.xlu0 %v6588, 8
  %v6817 = vpop.permute.xlu0 %6816
  %6818 = vrot.lane.b32.xlu0 %v6589, 8
  %v6819 = vpop.permute.xlu0 %6818
  %6820 = vrot.lane.b32.xlu0 %v6590, 8
  %v6821 = vpop.permute.xlu0 %6820
  %6822 = vrot.lane.b32.xlu0 %v6591, 8
  %v6823 = vpop.permute.xlu0 %6822
  %6824 = vrot.lane.b32.xlu0 %v6592, 8
  %v6825 = vpop.permute.xlu0 %6824
  %6826 = vrot.lane.b32.xlu0 %v6593, 8
  %v6827 = vpop.permute.xlu0 %6826
  %6828 = vrot.lane.b32.xlu0 %v6594, 8
  %v6829 = vpop.permute.xlu0 %6828
  %6830 = vrot.lane.b32.xlu0 %v6595, 8
  %v6831 = vpop.permute.xlu0 %6830
  %6832 = vrot.lane.b32.xlu0 %v6596, 8
  %v6833 = vpop.permute.xlu0 %6832
  %6834 = vrot.lane.b32.xlu0 %v6597, 8
  %v6835 = vpop.permute.xlu0 %6834
  %6836 = vrot.lane.b32.xlu0 %v6598, 8
  %v6837 = vpop.permute.xlu0 %6836
  %6838 = vrot.lane.b32.xlu0 %v6599, 8
  %v6839 = vpop.permute.xlu0 %6838
  %6840 = vrot.lane.b32.xlu0 %v6600, 8
  %v6841 = vpop.permute.xlu0 %6840
  %6842 = vrot.lane.b32.xlu0 %v6601, 8
  %v6843 = vpop.permute.xlu0 %6842
  %6844 = vrot.lane.b32.xlu0 %v6602, 8
  %v6845 = vpop.permute.xlu0 %6844
  %6927 = vst.msk [vmem:[#allocation3] sm:$0xff] %vm1162, %v6685
  %6928 = vst.msk [vmem:[#allocation3 + $0x8] sm:$0xff] %vm1162, %v6687
  %6929 = vst.msk [vmem:[#allocation3 + $0x10] sm:$0xff] %vm1162, %v6689
  %6930 = vst.msk [vmem:[#allocation3 + $0x18] sm:$0xff] %vm1162, %v6691
  %6931 = vst.msk [vmem:[#allocation3 + $0x20] sm:$0xff] %vm1162, %v6693
  %6932 = vst.msk [vmem:[#allocation3 + $0x28] sm:$0xff] %vm1162, %v6695
  %6933 = vst.msk [vmem:[#allocation3 + $0x30] sm:$0xff] %vm1162, %v6697
  %6934 = vst.msk [vmem:[#allocation3 + $0x38] sm:$0xff] %vm1162, %v6699
  %6935 = vst.msk [vmem:[#allocation3 + $0x40] sm:$0xff] %vm1162, %v6701
  %6936 = vst.msk [vmem:[#allocation3 + $0x48] sm:$0xff] %vm1162, %v6703
  %6937 = vst.msk [vmem:[#allocation3 + $0x50] sm:$0xff] %vm1162, %v6705
  %6938 = vst.msk [vmem:[#allocation3 + $0x58] sm:$0xff] %vm1162, %v6707
  %6939 = vst.msk [vmem:[#allocation3 + $0x60] sm:$0xff] %vm1162, %v6709
  %6940 = vst.msk [vmem:[#allocation3 + $0x68] sm:$0xff] %vm1162, %v6711
  %6941 = vst.msk [vmem:[#allocation3 + $0x70] sm:$0xff] %vm1162, %v6713
  %6942 = vst.msk [vmem:[#allocation3 + $0x78] sm:$0xff] %vm1162, %v6715
  %6943 = vst.msk [vmem:[#allocation3 + $0x80] sm:$0xff] %vm1162, %v6717
  %6944 = vst.msk [vmem:[#allocation3 + $0x88] sm:$0xff] %vm1162, %v6719
  %6945 = vst.msk [vmem:[#allocation3 + $0x90] sm:$0xff] %vm1162, %v6721
  %6946 = vst.msk [vmem:[#allocation3 + $0x98] sm:$0xff] %vm1162, %v6723
  %6947 = vst.msk [vmem:[#allocation3 + $0xa0] sm:$0xff] %vm1162, %v6725
  %6948 = vst.msk [vmem:[#allocation3 + $0xa8] sm:$0xff] %vm1162, %v6727
  %6949 = vst.msk [vmem:[#allocation3 + $0xb0] sm:$0xff] %vm1162, %v6729
  %6950 = vst.msk [vmem:[#allocation3 + $0xb8] sm:$0xff] %vm1162, %v6731
  %6951 = vst.msk [vmem:[#allocation3 + $0xc0] sm:$0xff] %vm1162, %v6733
  %6952 = vst.msk [vmem:[#allocation3 + $0xc8] sm:$0xff] %vm1162, %v6735
  %6953 = vst.msk [vmem:[#allocation3 + $0xd0] sm:$0xff] %vm1162, %v6737
  %6954 = vst.msk [vmem:[#allocation3 + $0xd8] sm:$0xff] %vm1162, %v6739
  %6955 = vst.msk [vmem:[#allocation3 + $0xe0] sm:$0xff] %vm1162, %v6741
  %6956 = vst.msk [vmem:[#allocation3 + $0xe8] sm:$0xff] %vm1162, %v6743
  %6957 = vst.msk [vmem:[#allocation3 + $0xf0] sm:$0xff] %vm1162, %v6745
  %6958 = vst.msk [vmem:[#allocation3 + $0xf8] sm:$0xff] %vm1162, %v6747
  %6959 = vst.msk [vmem:[#allocation3 + $0x100] sm:$0xff] %vm1162, %v6749
  %6960 = vst.msk [vmem:[#allocation3 + $0x108] sm:$0xff] %vm1162, %v6751
  %6961 = vst.msk [vmem:[#allocation3 + $0x110] sm:$0xff] %vm1162, %v6753
  %6962 = vst.msk [vmem:[#allocation3 + $0x118] sm:$0xff] %vm1162, %v6755
  %6963 = vst.msk [vmem:[#allocation3 + $0x120] sm:$0xff] %vm1162, %v6757
  %6964 = vst.msk [vmem:[#allocation3 + $0x128] sm:$0xff] %vm1162, %v6759
  %6965 = vst.msk [vmem:[#allocation3 + $0x130] sm:$0xff] %vm1162, %v6761
  %6966 = vst.msk [vmem:[#allocation3 + $0x138] sm:$0xff] %vm1162, %v6763
  %6967 = vst.msk [vmem:[#allocation3 + $0x140] sm:$0xff] %vm1162, %v6765
  %6968 = vst.msk [vmem:[#allocation3 + $0x148] sm:$0xff] %vm1162, %v6767
  %6969 = vst.msk [vmem:[#allocation3 + $0x150] sm:$0xff] %vm1162, %v6769
  %6970 = vst.msk [vmem:[#allocation3 + $0x158] sm:$0xff] %vm1162, %v6771
  %6971 = vst.msk [vmem:[#allocation3 + $0x160] sm:$0xff] %vm1162, %v6773
  %6972 = vst.msk [vmem:[#allocation3 + $0x168] sm:$0xff] %vm1162, %v6775
  %6973 = vst.msk [vmem:[#allocation3 + $0x170] sm:$0xff] %vm1162, %v6777
  %6974 = vst.msk [vmem:[#allocation3 + $0x178] sm:$0xff] %vm1162, %v6779
  %6975 = vst.msk [vmem:[#allocation3 + $0x180] sm:$0xff] %vm1162, %v6781
  %6976 = vst.msk [vmem:[#allocation3 + $0x188] sm:$0xff] %vm1162, %v6783
  %6977 = vst.msk [vmem:[#allocation3 + $0x190] sm:$0xff] %vm1162, %v6785
  %6978 = vst.msk [vmem:[#allocation3 + $0x198] sm:$0xff] %vm1162, %v6787
  %6979 = vst.msk [vmem:[#allocation3 + $0x1a0] sm:$0xff] %vm1162, %v6789
  %6980 = vst.msk [vmem:[#allocation3 + $0x1a8] sm:$0xff] %vm1162, %v6791
  %6981 = vst.msk [vmem:[#allocation3 + $0x1b0] sm:$0xff] %vm1162, %v6793
  %6982 = vst.msk [vmem:[#allocation3 + $0x1b8] sm:$0xff] %vm1162, %v6795
  %6983 = vst.msk [vmem:[#allocation3 + $0x1c0] sm:$0xff] %vm1162, %v6797
  %6984 = vst.msk [vmem:[#allocation3 + $0x1c8] sm:$0xff] %vm1162, %v6799
  %6985 = vst.msk [vmem:[#allocation3 + $0x1d0] sm:$0xff] %vm1162, %v6801
  %6986 = vst.msk [vmem:[#allocation3 + $0x1d8] sm:$0xff] %vm1162, %v6803
  %6987 = vst.msk [vmem:[#allocation3 + $0x1e0] sm:$0xff] %vm1162, %v6805
  %6988 = vst.msk [vmem:[#allocation3 + $0x1e8] sm:$0xff] %vm1162, %v6807
  %6989 = vst.msk [vmem:[#allocation3 + $0x1f0] sm:$0xff] %vm1162, %v6809
  %6990 = vst.msk [vmem:[#allocation3 + $0x1f8] sm:$0xff] %vm1162, %v6811
  %6991 = vst.msk [vmem:[#allocation3 + $0x200] sm:$0xff] %vm1162, %v6813
  %6992 = vst.msk [vmem:[#allocation3 + $0x208] sm:$0xff] %vm1162, %v6815
  %6993 = vst.msk [vmem:[#allocation3 + $0x210] sm:$0xff] %vm1162, %v6817
  %6994 = vst.msk [vmem:[#allocation3 + $0x218] sm:$0xff] %vm1162, %v6819
  %6995 = vst.msk [vmem:[#allocation3 + $0x220] sm:$0xff] %vm1162, %v6821
  %6996 = vst.msk [vmem:[#allocation3 + $0x228] sm:$0xff] %vm1162, %v6823
  %6997 = vst.msk [vmem:[#allocation3 + $0x230] sm:$0xff] %vm1162, %v6825
  %6998 = vst.msk [vmem:[#allocation3 + $0x238] sm:$0xff] %vm1162, %v6827
  %6999 = vst.msk [vmem:[#allocation3 + $0x240] sm:$0xff] %vm1162, %v6829
  %7000 = vst.msk [vmem:[#allocation3 + $0x248] sm:$0xff] %vm1162, %v6831
  %7001 = vst.msk [vmem:[#allocation3 + $0x250] sm:$0xff] %vm1162, %v6833
  %7002 = vst.msk [vmem:[#allocation3 + $0x258] sm:$0xff] %vm1162, %v6835
  %7003 = vst.msk [vmem:[#allocation3 + $0x260] sm:$0xff] %vm1162, %v6837
  %7004 = vst.msk [vmem:[#allocation3 + $0x268] sm:$0xff] %vm1162, %v6839
  %7005 = vst.msk [vmem:[#allocation3 + $0x270] sm:$0xff] %vm1162, %v6841
  %7006 = vst.msk [vmem:[#allocation3 + $0x278] sm:$0xff] %vm1162, %v6843
  %7007 = vst.msk [vmem:[#allocation3 + $0x280] sm:$0xff] %vm1162, %v6845
  %v7008 = vld [vmem:[#allocation2 + $0x17] sm:$0xff]
  %v7009 = vld [vmem:[#allocation2 + $0x1f] sm:$0xff]
  %v7010 = vld [vmem:[#allocation2 + $0x27] sm:$0xff]
  %v7011 = vld [vmem:[#allocation2 + $0x2f] sm:$0xff]
  %v7012 = vld [vmem:[#allocation2 + $0x37] sm:$0xff]
  %v7013 = vld [vmem:[#allocation2 + $0x3f] sm:$0xff]
  %v7014 = vld [vmem:[#allocation2 + $0x47] sm:$0xff]
  %v7015 = vld [vmem:[#allocation2 + $0x4f] sm:$0xff]
  %v7016 = vld [vmem:[#allocation2 + $0x57] sm:$0xff]
  %v7017 = vld [vmem:[#allocation2 + $0x5f] sm:$0xff]
  %v7018 = vld [vmem:[#allocation2 + $0x67] sm:$0xff]
  %v7019 = vld [vmem:[#allocation2 + $0x6f] sm:$0xff]
  %v7020 = vld [vmem:[#allocation2 + $0x77] sm:$0xff]
  %v7021 = vld [vmem:[#allocation2 + $0x7f] sm:$0xff]
  %v7022 = vld [vmem:[#allocation2 + $0x87] sm:$0xff]
  %v7023 = vld [vmem:[#allocation2 + $0x8f] sm:$0xff]
  %v7024 = vld [vmem:[#allocation2 + $0x97] sm:$0xff]
  %v7025 = vld [vmem:[#allocation2 + $0x9f] sm:$0xff]
  %v7026 = vld [vmem:[#allocation2 + $0xa7] sm:$0xff]
  %v7027 = vld [vmem:[#allocation2 + $0xaf] sm:$0xff]
  %v7028 = vld [vmem:[#allocation2 + $0xb7] sm:$0xff]
  %v7029 = vld [vmem:[#allocation2 + $0xbf] sm:$0xff]
  %v7030 = vld [vmem:[#allocation2 + $0xc7] sm:$0xff]
  %v7031 = vld [vmem:[#allocation2 + $0xcf] sm:$0xff]
  %v7032 = vld [vmem:[#allocation2 + $0xd7] sm:$0xff]
  %v7033 = vld [vmem:[#allocation2 + $0xdf] sm:$0xff]
  %v7034 = vld [vmem:[#allocation2 + $0xe7] sm:$0xff]
  %v7035 = vld [vmem:[#allocation2 + $0xef] sm:$0xff]
  %v7036 = vld [vmem:[#allocation2 + $0xf7] sm:$0xff]
  %v7037 = vld [vmem:[#allocation2 + $0xff] sm:$0xff]
  %v7038 = vld [vmem:[#allocation2 + $0x107] sm:$0xff]
  %v7039 = vld [vmem:[#allocation2 + $0x10f] sm:$0xff]
  %v7040 = vld [vmem:[#allocation2 + $0x117] sm:$0xff]
  %v7041 = vld [vmem:[#allocation2 + $0x11f] sm:$0xff]
  %v7042 = vld [vmem:[#allocation2 + $0x127] sm:$0xff]
  %v7043 = vld [vmem:[#allocation2 + $0x12f] sm:$0xff]
  %v7044 = vld [vmem:[#allocation2 + $0x137] sm:$0xff]
  %v7045 = vld [vmem:[#allocation2 + $0x13f] sm:$0xff]
  %v7046 = vld [vmem:[#allocation2 + $0x147] sm:$0xff]
  %v7047 = vld [vmem:[#allocation2 + $0x14f] sm:$0xff]
  %v7048 = vld [vmem:[#allocation2 + $0x157] sm:$0xff]
  %v7049 = vld [vmem:[#allocation2 + $0x15f] sm:$0xff]
  %v7050 = vld [vmem:[#allocation2 + $0x167] sm:$0xff]
  %v7051 = vld [vmem:[#allocation2 + $0x16f] sm:$0xff]
  %v7052 = vld [vmem:[#allocation2 + $0x177] sm:$0xff]
  %v7053 = vld [vmem:[#allocation2 + $0x17f] sm:$0xff]
  %v7054 = vld [vmem:[#allocation2 + $0x187] sm:$0xff]
  %v7055 = vld [vmem:[#allocation2 + $0x18f] sm:$0xff]
  %v7056 = vld [vmem:[#allocation2 + $0x197] sm:$0xff]
  %v7057 = vld [vmem:[#allocation2 + $0x19f] sm:$0xff]
  %v7058 = vld [vmem:[#allocation2 + $0x1a7] sm:$0xff]
  %v7059 = vld [vmem:[#allocation2 + $0x1af] sm:$0xff]
  %v7060 = vld [vmem:[#allocation2 + $0x1b7] sm:$0xff]
  %v7061 = vld [vmem:[#allocation2 + $0x1bf] sm:$0xff]
  %v7062 = vld [vmem:[#allocation2 + $0x1c7] sm:$0xff]
  %v7063 = vld [vmem:[#allocation2 + $0x1cf] sm:$0xff]
  %v7064 = vld [vmem:[#allocation2 + $0x1d7] sm:$0xff]
  %v7065 = vld [vmem:[#allocation2 + $0x1df] sm:$0xff]
  %v7066 = vld [vmem:[#allocation2 + $0x1e7] sm:$0xff]
  %v7067 = vld [vmem:[#allocation2 + $0x1ef] sm:$0xff]
  %v7068 = vld [vmem:[#allocation2 + $0x1f7] sm:$0xff]
  %v7069 = vld [vmem:[#allocation2 + $0x1ff] sm:$0xff]
  %v7070 = vld [vmem:[#allocation2 + $0x207] sm:$0xff]
  %v7071 = vld [vmem:[#allocation2 + $0x20f] sm:$0xff]
  %v7072 = vld [vmem:[#allocation2 + $0x217] sm:$0xff]
  %v7073 = vld [vmem:[#allocation2 + $0x21f] sm:$0xff]
  %v7074 = vld [vmem:[#allocation2 + $0x227] sm:$0xff]
  %v7075 = vld [vmem:[#allocation2 + $0x22f] sm:$0xff]
  %v7076 = vld [vmem:[#allocation2 + $0x237] sm:$0xff]
  %v7077 = vld [vmem:[#allocation2 + $0x23f] sm:$0xff]
  %v7078 = vld [vmem:[#allocation2 + $0x247] sm:$0xff]
  %v7079 = vld [vmem:[#allocation2 + $0x24f] sm:$0xff]
  %v7080 = vld [vmem:[#allocation2 + $0x257] sm:$0xff]
  %v7081 = vld [vmem:[#allocation2 + $0x25f] sm:$0xff]
  %v7082 = vld [vmem:[#allocation2 + $0x267] sm:$0xff]
  %v7083 = vld [vmem:[#allocation2 + $0x26f] sm:$0xff]
  %v7084 = vld [vmem:[#allocation2 + $0x277] sm:$0xff]
  %v7085 = vld [vmem:[#allocation2 + $0x27f] sm:$0xff]
  %v7086 = vld [vmem:[#allocation2 + $0x287] sm:$0xff]
  %v7087 = vld [vmem:[#allocation2 + $0x28f] sm:$0xff]
  %v7088 = vld [vmem:[#allocation2 + $0x297] sm:$0xff]
  %7170 = vrot.lane.b32.xlu0 %v7008, 12
  %v7171 = vpop.permute.xlu0 %7170
  %7172 = vrot.lane.b32.xlu0 %v7009, 12
  %v7173 = vpop.permute.xlu0 %7172
  %7174 = vrot.lane.b32.xlu0 %v7010, 12
  %v7175 = vpop.permute.xlu0 %7174
  %7176 = vrot.lane.b32.xlu0 %v7011, 12
  %v7177 = vpop.permute.xlu0 %7176
  %7178 = vrot.lane.b32.xlu0 %v7012, 12
  %v7179 = vpop.permute.xlu0 %7178
  %7180 = vrot.lane.b32.xlu0 %v7013, 12
  %v7181 = vpop.permute.xlu0 %7180
  %7182 = vrot.lane.b32.xlu0 %v7014, 12
  %v7183 = vpop.permute.xlu0 %7182
  %7184 = vrot.lane.b32.xlu0 %v7015, 12
  %v7185 = vpop.permute.xlu0 %7184
  %7186 = vrot.lane.b32.xlu0 %v7016, 12
  %v7187 = vpop.permute.xlu0 %7186
  %7188 = vrot.lane.b32.xlu0 %v7017, 12
  %v7189 = vpop.permute.xlu0 %7188
  %7190 = vrot.lane.b32.xlu0 %v7018, 12
  %v7191 = vpop.permute.xlu0 %7190
  %7192 = vrot.lane.b32.xlu0 %v7019, 12
  %v7193 = vpop.permute.xlu0 %7192
  %7194 = vrot.lane.b32.xlu0 %v7020, 12
  %v7195 = vpop.permute.xlu0 %7194
  %7196 = vrot.lane.b32.xlu0 %v7021, 12
  %v7197 = vpop.permute.xlu0 %7196
  %7198 = vrot.lane.b32.xlu0 %v7022, 12
  %v7199 = vpop.permute.xlu0 %7198
  %7200 = vrot.lane.b32.xlu0 %v7023, 12
  %v7201 = vpop.permute.xlu0 %7200
  %7202 = vrot.lane.b32.xlu0 %v7024, 12
  %v7203 = vpop.permute.xlu0 %7202
  %7204 = vrot.lane.b32.xlu0 %v7025, 12
  %v7205 = vpop.permute.xlu0 %7204
  %7206 = vrot.lane.b32.xlu0 %v7026, 12
  %v7207 = vpop.permute.xlu0 %7206
  %7208 = vrot.lane.b32.xlu0 %v7027, 12
  %v7209 = vpop.permute.xlu0 %7208
  %7210 = vrot.lane.b32.xlu0 %v7028, 12
  %v7211 = vpop.permute.xlu0 %7210
  %7212 = vrot.lane.b32.xlu0 %v7029, 12
  %v7213 = vpop.permute.xlu0 %7212
  %7214 = vrot.lane.b32.xlu0 %v7030, 12
  %v7215 = vpop.permute.xlu0 %7214
  %7216 = vrot.lane.b32.xlu0 %v7031, 12
  %v7217 = vpop.permute.xlu0 %7216
  %7218 = vrot.lane.b32.xlu0 %v7032, 12
  %v7219 = vpop.permute.xlu0 %7218
  %7220 = vrot.lane.b32.xlu0 %v7033, 12
  %v7221 = vpop.permute.xlu0 %7220
  %7222 = vrot.lane.b32.xlu0 %v7034, 12
  %v7223 = vpop.permute.xlu0 %7222
  %7224 = vrot.lane.b32.xlu0 %v7035, 12
  %v7225 = vpop.permute.xlu0 %7224
  %7226 = vrot.lane.b32.xlu0 %v7036, 12
  %v7227 = vpop.permute.xlu0 %7226
  %7228 = vrot.lane.b32.xlu0 %v7037, 12
  %v7229 = vpop.permute.xlu0 %7228
  %7230 = vrot.lane.b32.xlu0 %v7038, 12
  %v7231 = vpop.permute.xlu0 %7230
  %7232 = vrot.lane.b32.xlu0 %v7039, 12
  %v7233 = vpop.permute.xlu0 %7232
  %7234 = vrot.lane.b32.xlu0 %v7040, 12
  %v7235 = vpop.permute.xlu0 %7234
  %7236 = vrot.lane.b32.xlu0 %v7041, 12
  %v7237 = vpop.permute.xlu0 %7236
  %7238 = vrot.lane.b32.xlu0 %v7042, 12
  %v7239 = vpop.permute.xlu0 %7238
  %7240 = vrot.lane.b32.xlu0 %v7043, 12
  %v7241 = vpop.permute.xlu0 %7240
  %7242 = vrot.lane.b32.xlu0 %v7044, 12
  %v7243 = vpop.permute.xlu0 %7242
  %7244 = vrot.lane.b32.xlu0 %v7045, 12
  %v7245 = vpop.permute.xlu0 %7244
  %7246 = vrot.lane.b32.xlu0 %v7046, 12
  %v7247 = vpop.permute.xlu0 %7246
  %7248 = vrot.lane.b32.xlu0 %v7047, 12
  %v7249 = vpop.permute.xlu0 %7248
  %7250 = vrot.lane.b32.xlu0 %v7048, 12
  %v7251 = vpop.permute.xlu0 %7250
  %7252 = vrot.lane.b32.xlu0 %v7049, 12
  %v7253 = vpop.permute.xlu0 %7252
  %7254 = vrot.lane.b32.xlu0 %v7050, 12
  %v7255 = vpop.permute.xlu0 %7254
  %7256 = vrot.lane.b32.xlu0 %v7051, 12
  %v7257 = vpop.permute.xlu0 %7256
  %7258 = vrot.lane.b32.xlu0 %v7052, 12
  %v7259 = vpop.permute.xlu0 %7258
  %7260 = vrot.lane.b32.xlu0 %v7053, 12
  %v7261 = vpop.permute.xlu0 %7260
  %7262 = vrot.lane.b32.xlu0 %v7054, 12
  %v7263 = vpop.permute.xlu0 %7262
  %7264 = vrot.lane.b32.xlu0 %v7055, 12
  %v7265 = vpop.permute.xlu0 %7264
  %7266 = vrot.lane.b32.xlu0 %v7056, 12
  %v7267 = vpop.permute.xlu0 %7266
  %7268 = vrot.lane.b32.xlu0 %v7057, 12
  %v7269 = vpop.permute.xlu0 %7268
  %7270 = vrot.lane.b32.xlu0 %v7058, 12
  %v7271 = vpop.permute.xlu0 %7270
  %7272 = vrot.lane.b32.xlu0 %v7059, 12
  %v7273 = vpop.permute.xlu0 %7272
  %7274 = vrot.lane.b32.xlu0 %v7060, 12
  %v7275 = vpop.permute.xlu0 %7274
  %7276 = vrot.lane.b32.xlu0 %v7061, 12
  %v7277 = vpop.permute.xlu0 %7276
  %7278 = vrot.lane.b32.xlu0 %v7062, 12
  %v7279 = vpop.permute.xlu0 %7278
  %7280 = vrot.lane.b32.xlu0 %v7063, 12
  %v7281 = vpop.permute.xlu0 %7280
  %7282 = vrot.lane.b32.xlu0 %v7064, 12
  %v7283 = vpop.permute.xlu0 %7282
  %7284 = vrot.lane.b32.xlu0 %v7065, 12
  %v7285 = vpop.permute.xlu0 %7284
  %7286 = vrot.lane.b32.xlu0 %v7066, 12
  %v7287 = vpop.permute.xlu0 %7286
  %7288 = vrot.lane.b32.xlu0 %v7067, 12
  %v7289 = vpop.permute.xlu0 %7288
  %7290 = vrot.lane.b32.xlu0 %v7068, 12
  %v7291 = vpop.permute.xlu0 %7290
  %7292 = vrot.lane.b32.xlu0 %v7069, 12
  %v7293 = vpop.permute.xlu0 %7292
  %7294 = vrot.lane.b32.xlu0 %v7070, 12
  %v7295 = vpop.permute.xlu0 %7294
  %7296 = vrot.lane.b32.xlu0 %v7071, 12
  %v7297 = vpop.permute.xlu0 %7296
  %7298 = vrot.lane.b32.xlu0 %v7072, 12
  %v7299 = vpop.permute.xlu0 %7298
  %7300 = vrot.lane.b32.xlu0 %v7073, 12
  %v7301 = vpop.permute.xlu0 %7300
  %7302 = vrot.lane.b32.xlu0 %v7074, 12
  %v7303 = vpop.permute.xlu0 %7302
  %7304 = vrot.lane.b32.xlu0 %v7075, 12
  %v7305 = vpop.permute.xlu0 %7304
  %7306 = vrot.lane.b32.xlu0 %v7076, 12
  %v7307 = vpop.permute.xlu0 %7306
  %7308 = vrot.lane.b32.xlu0 %v7077, 12
  %v7309 = vpop.permute.xlu0 %7308
  %7310 = vrot.lane.b32.xlu0 %v7078, 12
  %v7311 = vpop.permute.xlu0 %7310
  %7312 = vrot.lane.b32.xlu0 %v7079, 12
  %v7313 = vpop.permute.xlu0 %7312
  %7314 = vrot.lane.b32.xlu0 %v7080, 12
  %v7315 = vpop.permute.xlu0 %7314
  %7316 = vrot.lane.b32.xlu0 %v7081, 12
  %v7317 = vpop.permute.xlu0 %7316
  %7318 = vrot.lane.b32.xlu0 %v7082, 12
  %v7319 = vpop.permute.xlu0 %7318
  %7320 = vrot.lane.b32.xlu0 %v7083, 12
  %v7321 = vpop.permute.xlu0 %7320
  %7322 = vrot.lane.b32.xlu0 %v7084, 12
  %v7323 = vpop.permute.xlu0 %7322
  %7324 = vrot.lane.b32.xlu0 %v7085, 12
  %v7325 = vpop.permute.xlu0 %7324
  %7326 = vrot.lane.b32.xlu0 %v7086, 12
  %v7327 = vpop.permute.xlu0 %7326
  %7328 = vrot.lane.b32.xlu0 %v7087, 12
  %v7329 = vpop.permute.xlu0 %7328
  %7330 = vrot.lane.b32.xlu0 %v7088, 12
  %v7331 = vpop.permute.xlu0 %7330
  %7413 = vst.msk [vmem:[#allocation3] sm:$0xff] %vm1649, %v7171
  %7414 = vst.msk [vmem:[#allocation3 + $0x8] sm:$0xff] %vm1649, %v7173
  %7415 = vst.msk [vmem:[#allocation3 + $0x10] sm:$0xff] %vm1649, %v7175
  %7416 = vst.msk [vmem:[#allocation3 + $0x18] sm:$0xff] %vm1649, %v7177
  %7417 = vst.msk [vmem:[#allocation3 + $0x20] sm:$0xff] %vm1649, %v7179
  %7418 = vst.msk [vmem:[#allocation3 + $0x28] sm:$0xff] %vm1649, %v7181
  %7419 = vst.msk [vmem:[#allocation3 + $0x30] sm:$0xff] %vm1649, %v7183
  %7420 = vst.msk [vmem:[#allocation3 + $0x38] sm:$0xff] %vm1649, %v7185
  %7421 = vst.msk [vmem:[#allocation3 + $0x40] sm:$0xff] %vm1649, %v7187
  %7422 = vst.msk [vmem:[#allocation3 + $0x48] sm:$0xff] %vm1649, %v7189
  %7423 = vst.msk [vmem:[#allocation3 + $0x50] sm:$0xff] %vm1649, %v7191
  %7424 = vst.msk [vmem:[#allocation3 + $0x58] sm:$0xff] %vm1649, %v7193
  %7425 = vst.msk [vmem:[#allocation3 + $0x60] sm:$0xff] %vm1649, %v7195
  %7426 = vst.msk [vmem:[#allocation3 + $0x68] sm:$0xff] %vm1649, %v7197
  %7427 = vst.msk [vmem:[#allocation3 + $0x70] sm:$0xff] %vm1649, %v7199
  %7428 = vst.msk [vmem:[#allocation3 + $0x78] sm:$0xff] %vm1649, %v7201
  %7429 = vst.msk [vmem:[#allocation3 + $0x80] sm:$0xff] %vm1649, %v7203
  %7430 = vst.msk [vmem:[#allocation3 + $0x88] sm:$0xff] %vm1649, %v7205
  %7431 = vst.msk [vmem:[#allocation3 + $0x90] sm:$0xff] %vm1649, %v7207
  %7432 = vst.msk [vmem:[#allocation3 + $0x98] sm:$0xff] %vm1649, %v7209
  %7433 = vst.msk [vmem:[#allocation3 + $0xa0] sm:$0xff] %vm1649, %v7211
  %7434 = vst.msk [vmem:[#allocation3 + $0xa8] sm:$0xff] %vm1649, %v7213
  %7435 = vst.msk [vmem:[#allocation3 + $0xb0] sm:$0xff] %vm1649, %v7215
  %7436 = vst.msk [vmem:[#allocation3 + $0xb8] sm:$0xff] %vm1649, %v7217
  %7437 = vst.msk [vmem:[#allocation3 + $0xc0] sm:$0xff] %vm1649, %v7219
  %7438 = vst.msk [vmem:[#allocation3 + $0xc8] sm:$0xff] %vm1649, %v7221
  %7439 = vst.msk [vmem:[#allocation3 + $0xd0] sm:$0xff] %vm1649, %v7223
  %7440 = vst.msk [vmem:[#allocation3 + $0xd8] sm:$0xff] %vm1649, %v7225
  %7441 = vst.msk [vmem:[#allocation3 + $0xe0] sm:$0xff] %vm1649, %v7227
  %7442 = vst.msk [vmem:[#allocation3 + $0xe8] sm:$0xff] %vm1649, %v7229
  %7443 = vst.msk [vmem:[#allocation3 + $0xf0] sm:$0xff] %vm1649, %v7231
  %7444 = vst.msk [vmem:[#allocation3 + $0xf8] sm:$0xff] %vm1649, %v7233
  %7445 = vst.msk [vmem:[#allocation3 + $0x100] sm:$0xff] %vm1649, %v7235
  %7446 = vst.msk [vmem:[#allocation3 + $0x108] sm:$0xff] %vm1649, %v7237
  %7447 = vst.msk [vmem:[#allocation3 + $0x110] sm:$0xff] %vm1649, %v7239
  %7448 = vst.msk [vmem:[#allocation3 + $0x118] sm:$0xff] %vm1649, %v7241
  %7449 = vst.msk [vmem:[#allocation3 + $0x120] sm:$0xff] %vm1649, %v7243
  %7450 = vst.msk [vmem:[#allocation3 + $0x128] sm:$0xff] %vm1649, %v7245
  %7451 = vst.msk [vmem:[#allocation3 + $0x130] sm:$0xff] %vm1649, %v7247
  %7452 = vst.msk [vmem:[#allocation3 + $0x138] sm:$0xff] %vm1649, %v7249
  %7453 = vst.msk [vmem:[#allocation3 + $0x140] sm:$0xff] %vm1649, %v7251
  %7454 = vst.msk [vmem:[#allocation3 + $0x148] sm:$0xff] %vm1649, %v7253
  %7455 = vst.msk [vmem:[#allocation3 + $0x150] sm:$0xff] %vm1649, %v7255
  %7456 = vst.msk [vmem:[#allocation3 + $0x158] sm:$0xff] %vm1649, %v7257
  %7457 = vst.msk [vmem:[#allocation3 + $0x160] sm:$0xff] %vm1649, %v7259
  %7458 = vst.msk [vmem:[#allocation3 + $0x168] sm:$0xff] %vm1649, %v7261
  %7459 = vst.msk [vmem:[#allocation3 + $0x170] sm:$0xff] %vm1649, %v7263
  %7460 = vst.msk [vmem:[#allocation3 + $0x178] sm:$0xff] %vm1649, %v7265
  %7461 = vst.msk [vmem:[#allocation3 + $0x180] sm:$0xff] %vm1649, %v7267
  %7462 = vst.msk [vmem:[#allocation3 + $0x188] sm:$0xff] %vm1649, %v7269
  %7463 = vst.msk [vmem:[#allocation3 + $0x190] sm:$0xff] %vm1649, %v7271
  %7464 = vst.msk [vmem:[#allocation3 + $0x198] sm:$0xff] %vm1649, %v7273
  %7465 = vst.msk [vmem:[#allocation3 + $0x1a0] sm:$0xff] %vm1649, %v7275
  %7466 = vst.msk [vmem:[#allocation3 + $0x1a8] sm:$0xff] %vm1649, %v7277
  %7467 = vst.msk [vmem:[#allocation3 + $0x1b0] sm:$0xff] %vm1649, %v7279
  %7468 = vst.msk [vmem:[#allocation3 + $0x1b8] sm:$0xff] %vm1649, %v7281
  %7469 = vst.msk [vmem:[#allocation3 + $0x1c0] sm:$0xff] %vm1649, %v7283
  %7470 = vst.msk [vmem:[#allocation3 + $0x1c8] sm:$0xff] %vm1649, %v7285
  %7471 = vst.msk [vmem:[#allocation3 + $0x1d0] sm:$0xff] %vm1649, %v7287
  %7472 = vst.msk [vmem:[#allocation3 + $0x1d8] sm:$0xff] %vm1649, %v7289
  %7473 = vst.msk [vmem:[#allocation3 + $0x1e0] sm:$0xff] %vm1649, %v7291
  %7474 = vst.msk [vmem:[#allocation3 + $0x1e8] sm:$0xff] %vm1649, %v7293
  %7475 = vst.msk [vmem:[#allocation3 + $0x1f0] sm:$0xff] %vm1649, %v7295
  %7476 = vst.msk [vmem:[#allocation3 + $0x1f8] sm:$0xff] %vm1649, %v7297
  %7477 = vst.msk [vmem:[#allocation3 + $0x200] sm:$0xff] %vm1649, %v7299
  %7478 = vst.msk [vmem:[#allocation3 + $0x208] sm:$0xff] %vm1649, %v7301
  %7479 = vst.msk [vmem:[#allocation3 + $0x210] sm:$0xff] %vm1649, %v7303
  %7480 = vst.msk [vmem:[#allocation3 + $0x218] sm:$0xff] %vm1649, %v7305
  %7481 = vst.msk [vmem:[#allocation3 + $0x220] sm:$0xff] %vm1649, %v7307
  %7482 = vst.msk [vmem:[#allocation3 + $0x228] sm:$0xff] %vm1649, %v7309
  %7483 = vst.msk [vmem:[#allocation3 + $0x230] sm:$0xff] %vm1649, %v7311
  %7484 = vst.msk [vmem:[#allocation3 + $0x238] sm:$0xff] %vm1649, %v7313
  %7485 = vst.msk [vmem:[#allocation3 + $0x240] sm:$0xff] %vm1649, %v7315
  %7486 = vst.msk [vmem:[#allocation3 + $0x248] sm:$0xff] %vm1649, %v7317
  %7487 = vst.msk [vmem:[#allocation3 + $0x250] sm:$0xff] %vm1649, %v7319
  %7488 = vst.msk [vmem:[#allocation3 + $0x258] sm:$0xff] %vm1649, %v7321
  %7489 = vst.msk [vmem:[#allocation3 + $0x260] sm:$0xff] %vm1649, %v7323
  %7490 = vst.msk [vmem:[#allocation3 + $0x268] sm:$0xff] %vm1649, %v7325
  %7491 = vst.msk [vmem:[#allocation3 + $0x270] sm:$0xff] %vm1649, %v7327
  %7492 = vst.msk [vmem:[#allocation3 + $0x278] sm:$0xff] %vm1649, %v7329
  %7493 = vst.msk [vmem:[#allocation3 + $0x280] sm:$0xff] %vm1649, %v7331
  %v7494 = vld [vmem:[#allocation2 + $0x18] sm:$0xff]
  %v7495 = vld [vmem:[#allocation2 + $0x20] sm:$0xff]
  %v7496 = vld [vmem:[#allocation2 + $0x28] sm:$0xff]
  %v7497 = vld [vmem:[#allocation2 + $0x30] sm:$0xff]
  %v7498 = vld [vmem:[#allocation2 + $0x38] sm:$0xff]
  %v7499 = vld [vmem:[#allocation2 + $0x40] sm:$0xff]
  %v7500 = vld [vmem:[#allocation2 + $0x48] sm:$0xff]
  %v7501 = vld [vmem:[#allocation2 + $0x50] sm:$0xff]
  %v7502 = vld [vmem:[#allocation2 + $0x58] sm:$0xff]
  %v7503 = vld [vmem:[#allocation2 + $0x60] sm:$0xff]
  %v7504 = vld [vmem:[#allocation2 + $0x68] sm:$0xff]
  %v7505 = vld [vmem:[#allocation2 + $0x70] sm:$0xff]
  %v7506 = vld [vmem:[#allocation2 + $0x78] sm:$0xff]
  %v7507 = vld [vmem:[#allocation2 + $0x80] sm:$0xff]
  %v7508 = vld [vmem:[#allocation2 + $0x88] sm:$0xff]
  %v7509 = vld [vmem:[#allocation2 + $0x90] sm:$0xff]
  %v7510 = vld [vmem:[#allocation2 + $0x98] sm:$0xff]
  %v7511 = vld [vmem:[#allocation2 + $0xa0] sm:$0xff]
  %v7512 = vld [vmem:[#allocation2 + $0xa8] sm:$0xff]
  %v7513 = vld [vmem:[#allocation2 + $0xb0] sm:$0xff]
  %v7514 = vld [vmem:[#allocation2 + $0xb8] sm:$0xff]
  %v7515 = vld [vmem:[#allocation2 + $0xc0] sm:$0xff]
  %v7516 = vld [vmem:[#allocation2 + $0xc8] sm:$0xff]
  %v7517 = vld [vmem:[#allocation2 + $0xd0] sm:$0xff]
  %v7518 = vld [vmem:[#allocation2 + $0xd8] sm:$0xff]
  %v7519 = vld [vmem:[#allocation2 + $0xe0] sm:$0xff]
  %v7520 = vld [vmem:[#allocation2 + $0xe8] sm:$0xff]
  %v7521 = vld [vmem:[#allocation2 + $0xf0] sm:$0xff]
  %v7522 = vld [vmem:[#allocation2 + $0xf8] sm:$0xff]
  %v7523 = vld [vmem:[#allocation2 + $0x100] sm:$0xff]
  %v7524 = vld [vmem:[#allocation2 + $0x108] sm:$0xff]
  %v7525 = vld [vmem:[#allocation2 + $0x110] sm:$0xff]
  %v7526 = vld [vmem:[#allocation2 + $0x118] sm:$0xff]
  %v7527 = vld [vmem:[#allocation2 + $0x120] sm:$0xff]
  %v7528 = vld [vmem:[#allocation2 + $0x128] sm:$0xff]
  %v7529 = vld [vmem:[#allocation2 + $0x130] sm:$0xff]
  %v7530 = vld [vmem:[#allocation2 + $0x138] sm:$0xff]
  %v7531 = vld [vmem:[#allocation2 + $0x140] sm:$0xff]
  %v7532 = vld [vmem:[#allocation2 + $0x148] sm:$0xff]
  %v7533 = vld [vmem:[#allocation2 + $0x150] sm:$0xff]
  %v7534 = vld [vmem:[#allocation2 + $0x158] sm:$0xff]
  %v7535 = vld [vmem:[#allocation2 + $0x160] sm:$0xff]
  %v7536 = vld [vmem:[#allocation2 + $0x168] sm:$0xff]
  %v7537 = vld [vmem:[#allocation2 + $0x170] sm:$0xff]
  %v7538 = vld [vmem:[#allocation2 + $0x178] sm:$0xff]
  %v7539 = vld [vmem:[#allocation2 + $0x180] sm:$0xff]
  %v7540 = vld [vmem:[#allocation2 + $0x188] sm:$0xff]
  %v7541 = vld [vmem:[#allocation2 + $0x190] sm:$0xff]
  %v7542 = vld [vmem:[#allocation2 + $0x198] sm:$0xff]
  %v7543 = vld [vmem:[#allocation2 + $0x1a0] sm:$0xff]
  %v7544 = vld [vmem:[#allocation2 + $0x1a8] sm:$0xff]
  %v7545 = vld [vmem:[#allocation2 + $0x1b0] sm:$0xff]
  %v7546 = vld [vmem:[#allocation2 + $0x1b8] sm:$0xff]
  %v7547 = vld [vmem:[#allocation2 + $0x1c0] sm:$0xff]
  %v7548 = vld [vmem:[#allocation2 + $0x1c8] sm:$0xff]
  %v7549 = vld [vmem:[#allocation2 + $0x1d0] sm:$0xff]
  %v7550 = vld [vmem:[#allocation2 + $0x1d8] sm:$0xff]
  %v7551 = vld [vmem:[#allocation2 + $0x1e0] sm:$0xff]
  %v7552 = vld [vmem:[#allocation2 + $0x1e8] sm:$0xff]
  %v7553 = vld [vmem:[#allocation2 + $0x1f0] sm:$0xff]
  %v7554 = vld [vmem:[#allocation2 + $0x1f8] sm:$0xff]
  %v7555 = vld [vmem:[#allocation2 + $0x200] sm:$0xff]
  %v7556 = vld [vmem:[#allocation2 + $0x208] sm:$0xff]
  %v7557 = vld [vmem:[#allocation2 + $0x210] sm:$0xff]
  %v7558 = vld [vmem:[#allocation2 + $0x218] sm:$0xff]
  %v7559 = vld [vmem:[#allocation2 + $0x220] sm:$0xff]
  %v7560 = vld [vmem:[#allocation2 + $0x228] sm:$0xff]
  %v7561 = vld [vmem:[#allocation2 + $0x230] sm:$0xff]
  %v7562 = vld [vmem:[#allocation2 + $0x238] sm:$0xff]
  %v7563 = vld [vmem:[#allocation2 + $0x240] sm:$0xff]
  %v7564 = vld [vmem:[#allocation2 + $0x248] sm:$0xff]
  %v7565 = vld [vmem:[#allocation2 + $0x250] sm:$0xff]
  %v7566 = vld [vmem:[#allocation2 + $0x258] sm:$0xff]
  %v7567 = vld [vmem:[#allocation2 + $0x260] sm:$0xff]
  %v7568 = vld [vmem:[#allocation2 + $0x268] sm:$0xff]
  %v7569 = vld [vmem:[#allocation2 + $0x270] sm:$0xff]
  %v7570 = vld [vmem:[#allocation2 + $0x278] sm:$0xff]
  %v7571 = vld [vmem:[#allocation2 + $0x280] sm:$0xff]
  %v7572 = vld [vmem:[#allocation2 + $0x288] sm:$0xff]
  %v7573 = vld [vmem:[#allocation2 + $0x290] sm:$0xff]
  %v7574 = vld [vmem:[#allocation2 + $0x298] sm:$0xff]
  %7656 = vrot.lane.b32.xlu0 %v7494, 16
  %v7657 = vpop.permute.xlu0 %7656
  %7658 = vrot.lane.b32.xlu0 %v7495, 16
  %v7659 = vpop.permute.xlu0 %7658
  %7660 = vrot.lane.b32.xlu0 %v7496, 16
  %v7661 = vpop.permute.xlu0 %7660
  %7662 = vrot.lane.b32.xlu0 %v7497, 16
  %v7663 = vpop.permute.xlu0 %7662
  %7664 = vrot.lane.b32.xlu0 %v7498, 16
  %v7665 = vpop.permute.xlu0 %7664
  %7666 = vrot.lane.b32.xlu0 %v7499, 16
  %v7667 = vpop.permute.xlu0 %7666
  %7668 = vrot.lane.b32.xlu0 %v7500, 16
  %v7669 = vpop.permute.xlu0 %7668
  %7670 = vrot.lane.b32.xlu0 %v7501, 16
  %v7671 = vpop.permute.xlu0 %7670
  %7672 = vrot.lane.b32.xlu0 %v7502, 16
  %v7673 = vpop.permute.xlu0 %7672
  %7674 = vrot.lane.b32.xlu0 %v7503, 16
  %v7675 = vpop.permute.xlu0 %7674
  %7676 = vrot.lane.b32.xlu0 %v7504, 16
  %v7677 = vpop.permute.xlu0 %7676
  %7678 = vrot.lane.b32.xlu0 %v7505, 16
  %v7679 = vpop.permute.xlu0 %7678
  %7680 = vrot.lane.b32.xlu0 %v7506, 16
  %v7681 = vpop.permute.xlu0 %7680
  %7682 = vrot.lane.b32.xlu0 %v7507, 16
  %v7683 = vpop.permute.xlu0 %7682
  %7684 = vrot.lane.b32.xlu0 %v7508, 16
  %v7685 = vpop.permute.xlu0 %7684
  %7686 = vrot.lane.b32.xlu0 %v7509, 16
  %v7687 = vpop.permute.xlu0 %7686
  %7688 = vrot.lane.b32.xlu0 %v7510, 16
  %v7689 = vpop.permute.xlu0 %7688
  %7690 = vrot.lane.b32.xlu0 %v7511, 16
  %v7691 = vpop.permute.xlu0 %7690
  %7692 = vrot.lane.b32.xlu0 %v7512, 16
  %v7693 = vpop.permute.xlu0 %7692
  %7694 = vrot.lane.b32.xlu0 %v7513, 16
  %v7695 = vpop.permute.xlu0 %7694
  %7696 = vrot.lane.b32.xlu0 %v7514, 16
  %v7697 = vpop.permute.xlu0 %7696
  %7698 = vrot.lane.b32.xlu0 %v7515, 16
  %v7699 = vpop.permute.xlu0 %7698
  %7700 = vrot.lane.b32.xlu0 %v7516, 16
  %v7701 = vpop.permute.xlu0 %7700
  %7702 = vrot.lane.b32.xlu0 %v7517, 16
  %v7703 = vpop.permute.xlu0 %7702
  %7704 = vrot.lane.b32.xlu0 %v7518, 16
  %v7705 = vpop.permute.xlu0 %7704
  %7706 = vrot.lane.b32.xlu0 %v7519, 16
  %v7707 = vpop.permute.xlu0 %7706
  %7708 = vrot.lane.b32.xlu0 %v7520, 16
  %v7709 = vpop.permute.xlu0 %7708
  %7710 = vrot.lane.b32.xlu0 %v7521, 16
  %v7711 = vpop.permute.xlu0 %7710
  %7712 = vrot.lane.b32.xlu0 %v7522, 16
  %v7713 = vpop.permute.xlu0 %7712
  %7714 = vrot.lane.b32.xlu0 %v7523, 16
  %v7715 = vpop.permute.xlu0 %7714
  %7716 = vrot.lane.b32.xlu0 %v7524, 16
  %v7717 = vpop.permute.xlu0 %7716
  %7718 = vrot.lane.b32.xlu0 %v7525, 16
  %v7719 = vpop.permute.xlu0 %7718
  %7720 = vrot.lane.b32.xlu0 %v7526, 16
  %v7721 = vpop.permute.xlu0 %7720
  %7722 = vrot.lane.b32.xlu0 %v7527, 16
  %v7723 = vpop.permute.xlu0 %7722
  %7724 = vrot.lane.b32.xlu0 %v7528, 16
  %v7725 = vpop.permute.xlu0 %7724
  %7726 = vrot.lane.b32.xlu0 %v7529, 16
  %v7727 = vpop.permute.xlu0 %7726
  %7728 = vrot.lane.b32.xlu0 %v7530, 16
  %v7729 = vpop.permute.xlu0 %7728
  %7730 = vrot.lane.b32.xlu0 %v7531, 16
  %v7731 = vpop.permute.xlu0 %7730
  %7732 = vrot.lane.b32.xlu0 %v7532, 16
  %v7733 = vpop.permute.xlu0 %7732
  %7734 = vrot.lane.b32.xlu0 %v7533, 16
  %v7735 = vpop.permute.xlu0 %7734
  %7736 = vrot.lane.b32.xlu0 %v7534, 16
  %v7737 = vpop.permute.xlu0 %7736
  %7738 = vrot.lane.b32.xlu0 %v7535, 16
  %v7739 = vpop.permute.xlu0 %7738
  %7740 = vrot.lane.b32.xlu0 %v7536, 16
  %v7741 = vpop.permute.xlu0 %7740
  %7742 = vrot.lane.b32.xlu0 %v7537, 16
  %v7743 = vpop.permute.xlu0 %7742
  %7744 = vrot.lane.b32.xlu0 %v7538, 16
  %v7745 = vpop.permute.xlu0 %7744
  %7746 = vrot.lane.b32.xlu0 %v7539, 16
  %v7747 = vpop.permute.xlu0 %7746
  %7748 = vrot.lane.b32.xlu0 %v7540, 16
  %v7749 = vpop.permute.xlu0 %7748
  %7750 = vrot.lane.b32.xlu0 %v7541, 16
  %v7751 = vpop.permute.xlu0 %7750
  %7752 = vrot.lane.b32.xlu0 %v7542, 16
  %v7753 = vpop.permute.xlu0 %7752
  %7754 = vrot.lane.b32.xlu0 %v7543, 16
  %v7755 = vpop.permute.xlu0 %7754
  %7756 = vrot.lane.b32.xlu0 %v7544, 16
  %v7757 = vpop.permute.xlu0 %7756
  %7758 = vrot.lane.b32.xlu0 %v7545, 16
  %v7759 = vpop.permute.xlu0 %7758
  %7760 = vrot.lane.b32.xlu0 %v7546, 16
  %v7761 = vpop.permute.xlu0 %7760
  %7762 = vrot.lane.b32.xlu0 %v7547, 16
  %v7763 = vpop.permute.xlu0 %7762
  %7764 = vrot.lane.b32.xlu0 %v7548, 16
  %v7765 = vpop.permute.xlu0 %7764
  %7766 = vrot.lane.b32.xlu0 %v7549, 16
  %v7767 = vpop.permute.xlu0 %7766
  %7768 = vrot.lane.b32.xlu0 %v7550, 16
  %v7769 = vpop.permute.xlu0 %7768
  %7770 = vrot.lane.b32.xlu0 %v7551, 16
  %v7771 = vpop.permute.xlu0 %7770
  %7772 = vrot.lane.b32.xlu0 %v7552, 16
  %v7773 = vpop.permute.xlu0 %7772
  %7774 = vrot.lane.b32.xlu0 %v7553, 16
  %v7775 = vpop.permute.xlu0 %7774
  %7776 = vrot.lane.b32.xlu0 %v7554, 16
  %v7777 = vpop.permute.xlu0 %7776
  %7778 = vrot.lane.b32.xlu0 %v7555, 16
  %v7779 = vpop.permute.xlu0 %7778
  %7780 = vrot.lane.b32.xlu0 %v7556, 16
  %v7781 = vpop.permute.xlu0 %7780
  %7782 = vrot.lane.b32.xlu0 %v7557, 16
  %v7783 = vpop.permute.xlu0 %7782
  %7784 = vrot.lane.b32.xlu0 %v7558, 16
  %v7785 = vpop.permute.xlu0 %7784
  %7786 = vrot.lane.b32.xlu0 %v7559, 16
  %v7787 = vpop.permute.xlu0 %7786
  %7788 = vrot.lane.b32.xlu0 %v7560, 16
  %v7789 = vpop.permute.xlu0 %7788
  %7790 = vrot.lane.b32.xlu0 %v7561, 16
  %v7791 = vpop.permute.xlu0 %7790
  %7792 = vrot.lane.b32.xlu0 %v7562, 16
  %v7793 = vpop.permute.xlu0 %7792
  %7794 = vrot.lane.b32.xlu0 %v7563, 16
  %v7795 = vpop.permute.xlu0 %7794
  %7796 = vrot.lane.b32.xlu0 %v7564, 16
  %v7797 = vpop.permute.xlu0 %7796
  %7798 = vrot.lane.b32.xlu0 %v7565, 16
  %v7799 = vpop.permute.xlu0 %7798
  %7800 = vrot.lane.b32.xlu0 %v7566, 16
  %v7801 = vpop.permute.xlu0 %7800
  %7802 = vrot.lane.b32.xlu0 %v7567, 16
  %v7803 = vpop.permute.xlu0 %7802
  %7804 = vrot.lane.b32.xlu0 %v7568, 16
  %v7805 = vpop.permute.xlu0 %7804
  %7806 = vrot.lane.b32.xlu0 %v7569, 16
  %v7807 = vpop.permute.xlu0 %7806
  %7808 = vrot.lane.b32.xlu0 %v7570, 16
  %v7809 = vpop.permute.xlu0 %7808
  %7810 = vrot.lane.b32.xlu0 %v7571, 16
  %v7811 = vpop.permute.xlu0 %7810
  %7812 = vrot.lane.b32.xlu0 %v7572, 16
  %v7813 = vpop.permute.xlu0 %7812
  %7814 = vrot.lane.b32.xlu0 %v7573, 16
  %v7815 = vpop.permute.xlu0 %7814
  %7816 = vrot.lane.b32.xlu0 %v7574, 16
  %v7817 = vpop.permute.xlu0 %7816
  %7899 = vst.msk [vmem:[#allocation3] sm:$0xff] %vm2136, %v7657
  %7900 = vst.msk [vmem:[#allocation3 + $0x8] sm:$0xff] %vm2136, %v7659
  %7901 = vst.msk [vmem:[#allocation3 + $0x10] sm:$0xff] %vm2136, %v7661
  %7902 = vst.msk [vmem:[#allocation3 + $0x18] sm:$0xff] %vm2136, %v7663
  %7903 = vst.msk [vmem:[#allocation3 + $0x20] sm:$0xff] %vm2136, %v7665
  %7904 = vst.msk [vmem:[#allocation3 + $0x28] sm:$0xff] %vm2136, %v7667
  %7905 = vst.msk [vmem:[#allocation3 + $0x30] sm:$0xff] %vm2136, %v7669
  %7906 = vst.msk [vmem:[#allocation3 + $0x38] sm:$0xff] %vm2136, %v7671
  %7907 = vst.msk [vmem:[#allocation3 + $0x40] sm:$0xff] %vm2136, %v7673
  %7908 = vst.msk [vmem:[#allocation3 + $0x48] sm:$0xff] %vm2136, %v7675
  %7909 = vst.msk [vmem:[#allocation3 + $0x50] sm:$0xff] %vm2136, %v7677
  %7910 = vst.msk [vmem:[#allocation3 + $0x58] sm:$0xff] %vm2136, %v7679
  %7911 = vst.msk [vmem:[#allocation3 + $0x60] sm:$0xff] %vm2136, %v7681
  %7912 = vst.msk [vmem:[#allocation3 + $0x68] sm:$0xff] %vm2136, %v7683
  %7913 = vst.msk [vmem:[#allocation3 + $0x70] sm:$0xff] %vm2136, %v7685
  %7914 = vst.msk [vmem:[#allocation3 + $0x78] sm:$0xff] %vm2136, %v7687
  %7915 = vst.msk [vmem:[#allocation3 + $0x80] sm:$0xff] %vm2136, %v7689
  %7916 = vst.msk [vmem:[#allocation3 + $0x88] sm:$0xff] %vm2136, %v7691
  %7917 = vst.msk [vmem:[#allocation3 + $0x90] sm:$0xff] %vm2136, %v7693
  %7918 = vst.msk [vmem:[#allocation3 + $0x98] sm:$0xff] %vm2136, %v7695
  %7919 = vst.msk [vmem:[#allocation3 + $0xa0] sm:$0xff] %vm2136, %v7697
  %7920 = vst.msk [vmem:[#allocation3 + $0xa8] sm:$0xff] %vm2136, %v7699
  %7921 = vst.msk [vmem:[#allocation3 + $0xb0] sm:$0xff] %vm2136, %v7701
  %7922 = vst.msk [vmem:[#allocation3 + $0xb8] sm:$0xff] %vm2136, %v7703
  %7923 = vst.msk [vmem:[#allocation3 + $0xc0] sm:$0xff] %vm2136, %v7705
  %7924 = vst.msk [vmem:[#allocation3 + $0xc8] sm:$0xff] %vm2136, %v7707
  %7925 = vst.msk [vmem:[#allocation3 + $0xd0] sm:$0xff] %vm2136, %v7709
  %7926 = vst.msk [vmem:[#allocation3 + $0xd8] sm:$0xff] %vm2136, %v7711
  %7927 = vst.msk [vmem:[#allocation3 + $0xe0] sm:$0xff] %vm2136, %v7713
  %7928 = vst.msk [vmem:[#allocation3 + $0xe8] sm:$0xff] %vm2136, %v7715
  %7929 = vst.msk [vmem:[#allocation3 + $0xf0] sm:$0xff] %vm2136, %v7717
  %7930 = vst.msk [vmem:[#allocation3 + $0xf8] sm:$0xff] %vm2136, %v7719
  %7931 = vst.msk [vmem:[#allocation3 + $0x100] sm:$0xff] %vm2136, %v7721
  %7932 = vst.msk [vmem:[#allocation3 + $0x108] sm:$0xff] %vm2136, %v7723
  %7933 = vst.msk [vmem:[#allocation3 + $0x110] sm:$0xff] %vm2136, %v7725
  %7934 = vst.msk [vmem:[#allocation3 + $0x118] sm:$0xff] %vm2136, %v7727
  %7935 = vst.msk [vmem:[#allocation3 + $0x120] sm:$0xff] %vm2136, %v7729
  %7936 = vst.msk [vmem:[#allocation3 + $0x128] sm:$0xff] %vm2136, %v7731
  %7937 = vst.msk [vmem:[#allocation3 + $0x130] sm:$0xff] %vm2136, %v7733
  %7938 = vst.msk [vmem:[#allocation3 + $0x138] sm:$0xff] %vm2136, %v7735
  %7939 = vst.msk [vmem:[#allocation3 + $0x140] sm:$0xff] %vm2136, %v7737
  %7940 = vst.msk [vmem:[#allocation3 + $0x148] sm:$0xff] %vm2136, %v7739
  %7941 = vst.msk [vmem:[#allocation3 + $0x150] sm:$0xff] %vm2136, %v7741
  %7942 = vst.msk [vmem:[#allocation3 + $0x158] sm:$0xff] %vm2136, %v7743
  %7943 = vst.msk [vmem:[#allocation3 + $0x160] sm:$0xff] %vm2136, %v7745
  %7944 = vst.msk [vmem:[#allocation3 + $0x168] sm:$0xff] %vm2136, %v7747
  %7945 = vst.msk [vmem:[#allocation3 + $0x170] sm:$0xff] %vm2136, %v7749
  %7946 = vst.msk [vmem:[#allocation3 + $0x178] sm:$0xff] %vm2136, %v7751
  %7947 = vst.msk [vmem:[#allocation3 + $0x180] sm:$0xff] %vm2136, %v7753
  %7948 = vst.msk [vmem:[#allocation3 + $0x188] sm:$0xff] %vm2136, %v7755
  %7949 = vst.msk [vmem:[#allocation3 + $0x190] sm:$0xff] %vm2136, %v7757
  %7950 = vst.msk [vmem:[#allocation3 + $0x198] sm:$0xff] %vm2136, %v7759
  %7951 = vst.msk [vmem:[#allocation3 + $0x1a0] sm:$0xff] %vm2136, %v7761
  %7952 = vst.msk [vmem:[#allocation3 + $0x1a8] sm:$0xff] %vm2136, %v7763
  %7953 = vst.msk [vmem:[#allocation3 + $0x1b0] sm:$0xff] %vm2136, %v7765
  %7954 = vst.msk [vmem:[#allocation3 + $0x1b8] sm:$0xff] %vm2136, %v7767
  %7955 = vst.msk [vmem:[#allocation3 + $0x1c0] sm:$0xff] %vm2136, %v7769
  %7956 = vst.msk [vmem:[#allocation3 + $0x1c8] sm:$0xff] %vm2136, %v7771
  %7957 = vst.msk [vmem:[#allocation3 + $0x1d0] sm:$0xff] %vm2136, %v7773
  %7958 = vst.msk [vmem:[#allocation3 + $0x1d8] sm:$0xff] %vm2136, %v7775
  %7959 = vst.msk [vmem:[#allocation3 + $0x1e0] sm:$0xff] %vm2136, %v7777
  %7960 = vst.msk [vmem:[#allocation3 + $0x1e8] sm:$0xff] %vm2136, %v7779
  %7961 = vst.msk [vmem:[#allocation3 + $0x1f0] sm:$0xff] %vm2136, %v7781
  %7962 = vst.msk [vmem:[#allocation3 + $0x1f8] sm:$0xff] %vm2136, %v7783
  %7963 = vst.msk [vmem:[#allocation3 + $0x200] sm:$0xff] %vm2136, %v7785
  %7964 = vst.msk [vmem:[#allocation3 + $0x208] sm:$0xff] %vm2136, %v7787
  %7965 = vst.msk [vmem:[#allocation3 + $0x210] sm:$0xff] %vm2136, %v7789
  %7966 = vst.msk [vmem:[#allocation3 + $0x218] sm:$0xff] %vm2136, %v7791
  %7967 = vst.msk [vmem:[#allocation3 + $0x220] sm:$0xff] %vm2136, %v7793
  %7968 = vst.msk [vmem:[#allocation3 + $0x228] sm:$0xff] %vm2136, %v7795
  %7969 = vst.msk [vmem:[#allocation3 + $0x230] sm:$0xff] %vm2136, %v7797
  %7970 = vst.msk [vmem:[#allocation3 + $0x238] sm:$0xff] %vm2136, %v7799
  %7971 = vst.msk [vmem:[#allocation3 + $0x240] sm:$0xff] %vm2136, %v7801
  %7972 = vst.msk [vmem:[#allocation3 + $0x248] sm:$0xff] %vm2136, %v7803
  %7973 = vst.msk [vmem:[#allocation3 + $0x250] sm:$0xff] %vm2136, %v7805
  %7974 = vst.msk [vmem:[#allocation3 + $0x258] sm:$0xff] %vm2136, %v7807
  %7975 = vst.msk [vmem:[#allocation3 + $0x260] sm:$0xff] %vm2136, %v7809
  %7976 = vst.msk [vmem:[#allocation3 + $0x268] sm:$0xff] %vm2136, %v7811
  %7977 = vst.msk [vmem:[#allocation3 + $0x270] sm:$0xff] %vm2136, %v7813
  %7978 = vst.msk [vmem:[#allocation3 + $0x278] sm:$0xff] %vm2136, %v7815
  %7979 = vst.msk [vmem:[#allocation3 + $0x280] sm:$0xff] %vm2136, %v7817
  %v7980 = vld [vmem:[#allocation2 + $0x19] sm:$0xff]
  %v7981 = vld [vmem:[#allocation2 + $0x21] sm:$0xff]
  %v7982 = vld [vmem:[#allocation2 + $0x29] sm:$0xff]
  %v7983 = vld [vmem:[#allocation2 + $0x31] sm:$0xff]
  %v7984 = vld [vmem:[#allocation2 + $0x39] sm:$0xff]
  %v7985 = vld [vmem:[#allocation2 + $0x41] sm:$0xff]
  %v7986 = vld [vmem:[#allocation2 + $0x49] sm:$0xff]
  %v7987 = vld [vmem:[#allocation2 + $0x51] sm:$0xff]
  %v7988 = vld [vmem:[#allocation2 + $0x59] sm:$0xff]
  %v7989 = vld [vmem:[#allocation2 + $0x61] sm:$0xff]
  %v7990 = vld [vmem:[#allocation2 + $0x69] sm:$0xff]
  %v7991 = vld [vmem:[#allocation2 + $0x71] sm:$0xff]
  %v7992 = vld [vmem:[#allocation2 + $0x79] sm:$0xff]
  %v7993 = vld [vmem:[#allocation2 + $0x81] sm:$0xff]
  %v7994 = vld [vmem:[#allocation2 + $0x89] sm:$0xff]
  %v7995 = vld [vmem:[#allocation2 + $0x91] sm:$0xff]
  %v7996 = vld [vmem:[#allocation2 + $0x99] sm:$0xff]
  %v7997 = vld [vmem:[#allocation2 + $0xa1] sm:$0xff]
  %v7998 = vld [vmem:[#allocation2 + $0xa9] sm:$0xff]
  %v7999 = vld [vmem:[#allocation2 + $0xb1] sm:$0xff]
  %v8000 = vld [vmem:[#allocation2 + $0xb9] sm:$0xff]
  %v8001 = vld [vmem:[#allocation2 + $0xc1] sm:$0xff]
  %v8002 = vld [vmem:[#allocation2 + $0xc9] sm:$0xff]
  %v8003 = vld [vmem:[#allocation2 + $0xd1] sm:$0xff]
  %v8004 = vld [vmem:[#allocation2 + $0xd9] sm:$0xff]
  %v8005 = vld [vmem:[#allocation2 + $0xe1] sm:$0xff]
  %v8006 = vld [vmem:[#allocation2 + $0xe9] sm:$0xff]
  %v8007 = vld [vmem:[#allocation2 + $0xf1] sm:$0xff]
  %v8008 = vld [vmem:[#allocation2 + $0xf9] sm:$0xff]
  %v8009 = vld [vmem:[#allocation2 + $0x101] sm:$0xff]
  %v8010 = vld [vmem:[#allocation2 + $0x109] sm:$0xff]
  %v8011 = vld [vmem:[#allocation2 + $0x111] sm:$0xff]
  %v8012 = vld [vmem:[#allocation2 + $0x119] sm:$0xff]
  %v8013 = vld [vmem:[#allocation2 + $0x121] sm:$0xff]
  %v8014 = vld [vmem:[#allocation2 + $0x129] sm:$0xff]
  %v8015 = vld [vmem:[#allocation2 + $0x131] sm:$0xff]
  %v8016 = vld [vmem:[#allocation2 + $0x139] sm:$0xff]
  %v8017 = vld [vmem:[#allocation2 + $0x141] sm:$0xff]
  %v8018 = vld [vmem:[#allocation2 + $0x149] sm:$0xff]
  %v8019 = vld [vmem:[#allocation2 + $0x151] sm:$0xff]
  %v8020 = vld [vmem:[#allocation2 + $0x159] sm:$0xff]
  %v8021 = vld [vmem:[#allocation2 + $0x161] sm:$0xff]
  %v8022 = vld [vmem:[#allocation2 + $0x169] sm:$0xff]
  %v8023 = vld [vmem:[#allocation2 + $0x171] sm:$0xff]
  %v8024 = vld [vmem:[#allocation2 + $0x179] sm:$0xff]
  %v8025 = vld [vmem:[#allocation2 + $0x181] sm:$0xff]
  %v8026 = vld [vmem:[#allocation2 + $0x189] sm:$0xff]
  %v8027 = vld [vmem:[#allocation2 + $0x191] sm:$0xff]
  %v8028 = vld [vmem:[#allocation2 + $0x199] sm:$0xff]
  %v8029 = vld [vmem:[#allocation2 + $0x1a1] sm:$0xff]
  %v8030 = vld [vmem:[#allocation2 + $0x1a9] sm:$0xff]
  %v8031 = vld [vmem:[#allocation2 + $0x1b1] sm:$0xff]
  %v8032 = vld [vmem:[#allocation2 + $0x1b9] sm:$0xff]
  %v8033 = vld [vmem:[#allocation2 + $0x1c1] sm:$0xff]
  %v8034 = vld [vmem:[#allocation2 + $0x1c9] sm:$0xff]
  %v8035 = vld [vmem:[#allocation2 + $0x1d1] sm:$0xff]
  %v8036 = vld [vmem:[#allocation2 + $0x1d9] sm:$0xff]
  %v8037 = vld [vmem:[#allocation2 + $0x1e1] sm:$0xff]
  %v8038 = vld [vmem:[#allocation2 + $0x1e9] sm:$0xff]
  %v8039 = vld [vmem:[#allocation2 + $0x1f1] sm:$0xff]
  %v8040 = vld [vmem:[#allocation2 + $0x1f9] sm:$0xff]
  %v8041 = vld [vmem:[#allocation2 + $0x201] sm:$0xff]
  %v8042 = vld [vmem:[#allocation2 + $0x209] sm:$0xff]
  %v8043 = vld [vmem:[#allocation2 + $0x211] sm:$0xff]
  %v8044 = vld [vmem:[#allocation2 + $0x219] sm:$0xff]
  %v8045 = vld [vmem:[#allocation2 + $0x221] sm:$0xff]
  %v8046 = vld [vmem:[#allocation2 + $0x229] sm:$0xff]
  %v8047 = vld [vmem:[#allocation2 + $0x231] sm:$0xff]
  %v8048 = vld [vmem:[#allocation2 + $0x239] sm:$0xff]
  %v8049 = vld [vmem:[#allocation2 + $0x241] sm:$0xff]
  %v8050 = vld [vmem:[#allocation2 + $0x249] sm:$0xff]
  %v8051 = vld [vmem:[#allocation2 + $0x251] sm:$0xff]
  %v8052 = vld [vmem:[#allocation2 + $0x259] sm:$0xff]
  %v8053 = vld [vmem:[#allocation2 + $0x261] sm:$0xff]
  %v8054 = vld [vmem:[#allocation2 + $0x269] sm:$0xff]
  %v8055 = vld [vmem:[#allocation2 + $0x271] sm:$0xff]
  %v8056 = vld [vmem:[#allocation2 + $0x279] sm:$0xff]
  %v8057 = vld [vmem:[#allocation2 + $0x281] sm:$0xff]
  %v8058 = vld [vmem:[#allocation2 + $0x289] sm:$0xff]
  %v8059 = vld [vmem:[#allocation2 + $0x291] sm:$0xff]
  %v8060 = vld [vmem:[#allocation2 + $0x299] sm:$0xff]
  %8142 = vrot.lane.b32.xlu0 %v7980, 20
  %v8143 = vpop.permute.xlu0 %8142
  %8144 = vrot.lane.b32.xlu0 %v7981, 20
  %v8145 = vpop.permute.xlu0 %8144
  %8146 = vrot.lane.b32.xlu0 %v7982, 20
  %v8147 = vpop.permute.xlu0 %8146
  %8148 = vrot.lane.b32.xlu0 %v7983, 20
  %v8149 = vpop.permute.xlu0 %8148
  %8150 = vrot.lane.b32.xlu0 %v7984, 20
  %v8151 = vpop.permute.xlu0 %8150
  %8152 = vrot.lane.b32.xlu0 %v7985, 20
  %v8153 = vpop.permute.xlu0 %8152
  %8154 = vrot.lane.b32.xlu0 %v7986, 20
  %v8155 = vpop.permute.xlu0 %8154
  %8156 = vrot.lane.b32.xlu0 %v7987, 20
  %v8157 = vpop.permute.xlu0 %8156
  %8158 = vrot.lane.b32.xlu0 %v7988, 20
  %v8159 = vpop.permute.xlu0 %8158
  %8160 = vrot.lane.b32.xlu0 %v7989, 20
  %v8161 = vpop.permute.xlu0 %8160
  %8162 = vrot.lane.b32.xlu0 %v7990, 20
  %v8163 = vpop.permute.xlu0 %8162
  %8164 = vrot.lane.b32.xlu0 %v7991, 20
  %v8165 = vpop.permute.xlu0 %8164
  %8166 = vrot.lane.b32.xlu0 %v7992, 20
  %v8167 = vpop.permute.xlu0 %8166
  %8168 = vrot.lane.b32.xlu0 %v7993, 20
  %v8169 = vpop.permute.xlu0 %8168
  %8170 = vrot.lane.b32.xlu0 %v7994, 20
  %v8171 = vpop.permute.xlu0 %8170
  %8172 = vrot.lane.b32.xlu0 %v7995, 20
  %v8173 = vpop.permute.xlu0 %8172
  %8174 = vrot.lane.b32.xlu0 %v7996, 20
  %v8175 = vpop.permute.xlu0 %8174
  %8176 = vrot.lane.b32.xlu0 %v7997, 20
  %v8177 = vpop.permute.xlu0 %8176
  %8178 = vrot.lane.b32.xlu0 %v7998, 20
  %v8179 = vpop.permute.xlu0 %8178
  %8180 = vrot.lane.b32.xlu0 %v7999, 20
  %v8181 = vpop.permute.xlu0 %8180
  %8182 = vrot.lane.b32.xlu0 %v8000, 20
  %v8183 = vpop.permute.xlu0 %8182
  %8184 = vrot.lane.b32.xlu0 %v8001, 20
  %v8185 = vpop.permute.xlu0 %8184
  %8186 = vrot.lane.b32.xlu0 %v8002, 20
  %v8187 = vpop.permute.xlu0 %8186
  %8188 = vrot.lane.b32.xlu0 %v8003, 20
  %v8189 = vpop.permute.xlu0 %8188
  %8190 = vrot.lane.b32.xlu0 %v8004, 20
  %v8191 = vpop.permute.xlu0 %8190
  %8192 = vrot.lane.b32.xlu0 %v8005, 20
  %v8193 = vpop.permute.xlu0 %8192
  %8194 = vrot.lane.b32.xlu0 %v8006, 20
  %v8195 = vpop.permute.xlu0 %8194
  %8196 = vrot.lane.b32.xlu0 %v8007, 20
  %v8197 = vpop.permute.xlu0 %8196
  %8198 = vrot.lane.b32.xlu0 %v8008, 20
  %v8199 = vpop.permute.xlu0 %8198
  %8200 = vrot.lane.b32.xlu0 %v8009, 20
  %v8201 = vpop.permute.xlu0 %8200
  %8202 = vrot.lane.b32.xlu0 %v8010, 20
  %v8203 = vpop.permute.xlu0 %8202
  %8204 = vrot.lane.b32.xlu0 %v8011, 20
  %v8205 = vpop.permute.xlu0 %8204
  %8206 = vrot.lane.b32.xlu0 %v8012, 20
  %v8207 = vpop.permute.xlu0 %8206
  %8208 = vrot.lane.b32.xlu0 %v8013, 20
  %v8209 = vpop.permute.xlu0 %8208
  %8210 = vrot.lane.b32.xlu0 %v8014, 20
  %v8211 = vpop.permute.xlu0 %8210
  %8212 = vrot.lane.b32.xlu0 %v8015, 20
  %v8213 = vpop.permute.xlu0 %8212
  %8214 = vrot.lane.b32.xlu0 %v8016, 20
  %v8215 = vpop.permute.xlu0 %8214
  %8216 = vrot.lane.b32.xlu0 %v8017, 20
  %v8217 = vpop.permute.xlu0 %8216
  %8218 = vrot.lane.b32.xlu0 %v8018, 20
  %v8219 = vpop.permute.xlu0 %8218
  %8220 = vrot.lane.b32.xlu0 %v8019, 20
  %v8221 = vpop.permute.xlu0 %8220
  %8222 = vrot.lane.b32.xlu0 %v8020, 20
  %v8223 = vpop.permute.xlu0 %8222
  %8224 = vrot.lane.b32.xlu0 %v8021, 20
  %v8225 = vpop.permute.xlu0 %8224
  %8226 = vrot.lane.b32.xlu0 %v8022, 20
  %v8227 = vpop.permute.xlu0 %8226
  %8228 = vrot.lane.b32.xlu0 %v8023, 20
  %v8229 = vpop.permute.xlu0 %8228
  %8230 = vrot.lane.b32.xlu0 %v8024, 20
  %v8231 = vpop.permute.xlu0 %8230
  %8232 = vrot.lane.b32.xlu0 %v8025, 20
  %v8233 = vpop.permute.xlu0 %8232
  %8234 = vrot.lane.b32.xlu0 %v8026, 20
  %v8235 = vpop.permute.xlu0 %8234
  %8236 = vrot.lane.b32.xlu0 %v8027, 20
  %v8237 = vpop.permute.xlu0 %8236
  %8238 = vrot.lane.b32.xlu0 %v8028, 20
  %v8239 = vpop.permute.xlu0 %8238
  %8240 = vrot.lane.b32.xlu0 %v8029, 20
  %v8241 = vpop.permute.xlu0 %8240
  %8242 = vrot.lane.b32.xlu0 %v8030, 20
  %v8243 = vpop.permute.xlu0 %8242
  %8244 = vrot.lane.b32.xlu0 %v8031, 20
  %v8245 = vpop.permute.xlu0 %8244
  %8246 = vrot.lane.b32.xlu0 %v8032, 20
  %v8247 = vpop.permute.xlu0 %8246
  %8248 = vrot.lane.b32.xlu0 %v8033, 20
  %v8249 = vpop.permute.xlu0 %8248
  %8250 = vrot.lane.b32.xlu0 %v8034, 20
  %v8251 = vpop.permute.xlu0 %8250
  %8252 = vrot.lane.b32.xlu0 %v8035, 20
  %v8253 = vpop.permute.xlu0 %8252
  %8254 = vrot.lane.b32.xlu0 %v8036, 20
  %v8255 = vpop.permute.xlu0 %8254
  %8256 = vrot.lane.b32.xlu0 %v8037, 20
  %v8257 = vpop.permute.xlu0 %8256
  %8258 = vrot.lane.b32.xlu0 %v8038, 20
  %v8259 = vpop.permute.xlu0 %8258
  %8260 = vrot.lane.b32.xlu0 %v8039, 20
  %v8261 = vpop.permute.xlu0 %8260
  %8262 = vrot.lane.b32.xlu0 %v8040, 20
  %v8263 = vpop.permute.xlu0 %8262
  %8264 = vrot.lane.b32.xlu0 %v8041, 20
  %v8265 = vpop.permute.xlu0 %8264
  %8266 = vrot.lane.b32.xlu0 %v8042, 20
  %v8267 = vpop.permute.xlu0 %8266
  %8268 = vrot.lane.b32.xlu0 %v8043, 20
  %v8269 = vpop.permute.xlu0 %8268
  %8270 = vrot.lane.b32.xlu0 %v8044, 20
  %v8271 = vpop.permute.xlu0 %8270
  %8272 = vrot.lane.b32.xlu0 %v8045, 20
  %v8273 = vpop.permute.xlu0 %8272
  %8274 = vrot.lane.b32.xlu0 %v8046, 20
  %v8275 = vpop.permute.xlu0 %8274
  %8276 = vrot.lane.b32.xlu0 %v8047, 20
  %v8277 = vpop.permute.xlu0 %8276
  %8278 = vrot.lane.b32.xlu0 %v8048, 20
  %v8279 = vpop.permute.xlu0 %8278
  %8280 = vrot.lane.b32.xlu0 %v8049, 20
  %v8281 = vpop.permute.xlu0 %8280
  %8282 = vrot.lane.b32.xlu0 %v8050, 20
  %v8283 = vpop.permute.xlu0 %8282
  %8284 = vrot.lane.b32.xlu0 %v8051, 20
  %v8285 = vpop.permute.xlu0 %8284
  %8286 = vrot.lane.b32.xlu0 %v8052, 20
  %v8287 = vpop.permute.xlu0 %8286
  %8288 = vrot.lane.b32.xlu0 %v8053, 20
  %v8289 = vpop.permute.xlu0 %8288
  %8290 = vrot.lane.b32.xlu0 %v8054, 20
  %v8291 = vpop.permute.xlu0 %8290
  %8292 = vrot.lane.b32.xlu0 %v8055, 20
  %v8293 = vpop.permute.xlu0 %8292
  %8294 = vrot.lane.b32.xlu0 %v8056, 20
  %v8295 = vpop.permute.xlu0 %8294
  %8296 = vrot.lane.b32.xlu0 %v8057, 20
  %v8297 = vpop.permute.xlu0 %8296
  %8298 = vrot.lane.b32.xlu0 %v8058, 20
  %v8299 = vpop.permute.xlu0 %8298
  %8300 = vrot.lane.b32.xlu0 %v8059, 20
  %v8301 = vpop.permute.xlu0 %8300
  %8302 = vrot.lane.b32.xlu0 %v8060, 20
  %v8303 = vpop.permute.xlu0 %8302
  %8385 = vst.msk [vmem:[#allocation3] sm:$0xff] %vm2623, %v8143
  %8386 = vst.msk [vmem:[#allocation3 + $0x8] sm:$0xff] %vm2623, %v8145
  %8387 = vst.msk [vmem:[#allocation3 + $0x10] sm:$0xff] %vm2623, %v8147
  %8388 = vst.msk [vmem:[#allocation3 + $0x18] sm:$0xff] %vm2623, %v8149
  %8389 = vst.msk [vmem:[#allocation3 + $0x20] sm:$0xff] %vm2623, %v8151
  %8390 = vst.msk [vmem:[#allocation3 + $0x28] sm:$0xff] %vm2623, %v8153
  %8391 = vst.msk [vmem:[#allocation3 + $0x30] sm:$0xff] %vm2623, %v8155
  %8392 = vst.msk [vmem:[#allocation3 + $0x38] sm:$0xff] %vm2623, %v8157
  %8393 = vst.msk [vmem:[#allocation3 + $0x40] sm:$0xff] %vm2623, %v8159
  %8394 = vst.msk [vmem:[#allocation3 + $0x48] sm:$0xff] %vm2623, %v8161
  %8395 = vst.msk [vmem:[#allocation3 + $0x50] sm:$0xff] %vm2623, %v8163
  %8396 = vst.msk [vmem:[#allocation3 + $0x58] sm:$0xff] %vm2623, %v8165
  %8397 = vst.msk [vmem:[#allocation3 + $0x60] sm:$0xff] %vm2623, %v8167
  %8398 = vst.msk [vmem:[#allocation3 + $0x68] sm:$0xff] %vm2623, %v8169
  %8399 = vst.msk [vmem:[#allocation3 + $0x70] sm:$0xff] %vm2623, %v8171
  %8400 = vst.msk [vmem:[#allocation3 + $0x78] sm:$0xff] %vm2623, %v8173
  %8401 = vst.msk [vmem:[#allocation3 + $0x80] sm:$0xff] %vm2623, %v8175
  %8402 = vst.msk [vmem:[#allocation3 + $0x88] sm:$0xff] %vm2623, %v8177
  %8403 = vst.msk [vmem:[#allocation3 + $0x90] sm:$0xff] %vm2623, %v8179
  %8404 = vst.msk [vmem:[#allocation3 + $0x98] sm:$0xff] %vm2623, %v8181
  %8405 = vst.msk [vmem:[#allocation3 + $0xa0] sm:$0xff] %vm2623, %v8183
  %8406 = vst.msk [vmem:[#allocation3 + $0xa8] sm:$0xff] %vm2623, %v8185
  %8407 = vst.msk [vmem:[#allocation3 + $0xb0] sm:$0xff] %vm2623, %v8187
  %8408 = vst.msk [vmem:[#allocation3 + $0xb8] sm:$0xff] %vm2623, %v8189
  %8409 = vst.msk [vmem:[#allocation3 + $0xc0] sm:$0xff] %vm2623, %v8191
  %8410 = vst.msk [vmem:[#allocation3 + $0xc8] sm:$0xff] %vm2623, %v8193
  %8411 = vst.msk [vmem:[#allocation3 + $0xd0] sm:$0xff] %vm2623, %v8195
  %8412 = vst.msk [vmem:[#allocation3 + $0xd8] sm:$0xff] %vm2623, %v8197
  %8413 = vst.msk [vmem:[#allocation3 + $0xe0] sm:$0xff] %vm2623, %v8199
  %8414 = vst.msk [vmem:[#allocation3 + $0xe8] sm:$0xff] %vm2623, %v8201
  %8415 = vst.msk [vmem:[#allocation3 + $0xf0] sm:$0xff] %vm2623, %v8203
  %8416 = vst.msk [vmem:[#allocation3 + $0xf8] sm:$0xff] %vm2623, %v8205
  %8417 = vst.msk [vmem:[#allocation3 + $0x100] sm:$0xff] %vm2623, %v8207
  %8418 = vst.msk [vmem:[#allocation3 + $0x108] sm:$0xff] %vm2623, %v8209
  %8419 = vst.msk [vmem:[#allocation3 + $0x110] sm:$0xff] %vm2623, %v8211
  %8420 = vst.msk [vmem:[#allocation3 + $0x118] sm:$0xff] %vm2623, %v8213
  %8421 = vst.msk [vmem:[#allocation3 + $0x120] sm:$0xff] %vm2623, %v8215
  %8422 = vst.msk [vmem:[#allocation3 + $0x128] sm:$0xff] %vm2623, %v8217
  %8423 = vst.msk [vmem:[#allocation3 + $0x130] sm:$0xff] %vm2623, %v8219
  %8424 = vst.msk [vmem:[#allocation3 + $0x138] sm:$0xff] %vm2623, %v8221
  %8425 = vst.msk [vmem:[#allocation3 + $0x140] sm:$0xff] %vm2623, %v8223
  %8426 = vst.msk [vmem:[#allocation3 + $0x148] sm:$0xff] %vm2623, %v8225
  %8427 = vst.msk [vmem:[#allocation3 + $0x150] sm:$0xff] %vm2623, %v8227
  %8428 = vst.msk [vmem:[#allocation3 + $0x158] sm:$0xff] %vm2623, %v8229
  %8429 = vst.msk [vmem:[#allocation3 + $0x160] sm:$0xff] %vm2623, %v8231
  %8430 = vst.msk [vmem:[#allocation3 + $0x168] sm:$0xff] %vm2623, %v8233
  %8431 = vst.msk [vmem:[#allocation3 + $0x170] sm:$0xff] %vm2623, %v8235
  %8432 = vst.msk [vmem:[#allocation3 + $0x178] sm:$0xff] %vm2623, %v8237
  %8433 = vst.msk [vmem:[#allocation3 + $0x180] sm:$0xff] %vm2623, %v8239
  %8434 = vst.msk [vmem:[#allocation3 + $0x188] sm:$0xff] %vm2623, %v8241
  %8435 = vst.msk [vmem:[#allocation3 + $0x190] sm:$0xff] %vm2623, %v8243
  %8436 = vst.msk [vmem:[#allocation3 + $0x198] sm:$0xff] %vm2623, %v8245
  %8437 = vst.msk [vmem:[#allocation3 + $0x1a0] sm:$0xff] %vm2623, %v8247
  %8438 = vst.msk [vmem:[#allocation3 + $0x1a8] sm:$0xff] %vm2623, %v8249
  %8439 = vst.msk [vmem:[#allocation3 + $0x1b0] sm:$0xff] %vm2623, %v8251
  %8440 = vst.msk [vmem:[#allocation3 + $0x1b8] sm:$0xff] %vm2623, %v8253
  %8441 = vst.msk [vmem:[#allocation3 + $0x1c0] sm:$0xff] %vm2623, %v8255
  %8442 = vst.msk [vmem:[#allocation3 + $0x1c8] sm:$0xff] %vm2623, %v8257
  %8443 = vst.msk [vmem:[#allocation3 + $0x1d0] sm:$0xff] %vm2623, %v8259
  %8444 = vst.msk [vmem:[#allocation3 + $0x1d8] sm:$0xff] %vm2623, %v8261
  %8445 = vst.msk [vmem:[#allocation3 + $0x1e0] sm:$0xff] %vm2623, %v8263
  %8446 = vst.msk [vmem:[#allocation3 + $0x1e8] sm:$0xff] %vm2623, %v8265
  %8447 = vst.msk [vmem:[#allocation3 + $0x1f0] sm:$0xff] %vm2623, %v8267
  %8448 = vst.msk [vmem:[#allocation3 + $0x1f8] sm:$0xff] %vm2623, %v8269
  %8449 = vst.msk [vmem:[#allocation3 + $0x200] sm:$0xff] %vm2623, %v8271
  %8450 = vst.msk [vmem:[#allocation3 + $0x208] sm:$0xff] %vm2623, %v8273
  %8451 = vst.msk [vmem:[#allocation3 + $0x210] sm:$0xff] %vm2623, %v8275
  %8452 = vst.msk [vmem:[#allocation3 + $0x218] sm:$0xff] %vm2623, %v8277
  %8453 = vst.msk [vmem:[#allocation3 + $0x220] sm:$0xff] %vm2623, %v8279
  %8454 = vst.msk [vmem:[#allocation3 + $0x228] sm:$0xff] %vm2623, %v8281
  %8455 = vst.msk [vmem:[#allocation3 + $0x230] sm:$0xff] %vm2623, %v8283
  %8456 = vst.msk [vmem:[#allocation3 + $0x238] sm:$0xff] %vm2623, %v8285
  %8457 = vst.msk [vmem:[#allocation3 + $0x240] sm:$0xff] %vm2623, %v8287
  %8458 = vst.msk [vmem:[#allocation3 + $0x248] sm:$0xff] %vm2623, %v8289
  %8459 = vst.msk [vmem:[#allocation3 + $0x250] sm:$0xff] %vm2623, %v8291
  %8460 = vst.msk [vmem:[#allocation3 + $0x258] sm:$0xff] %vm2623, %v8293
  %8461 = vst.msk [vmem:[#allocation3 + $0x260] sm:$0xff] %vm2623, %v8295
  %8462 = vst.msk [vmem:[#allocation3 + $0x268] sm:$0xff] %vm2623, %v8297
  %8463 = vst.msk [vmem:[#allocation3 + $0x270] sm:$0xff] %vm2623, %v8299
  %8464 = vst.msk [vmem:[#allocation3 + $0x278] sm:$0xff] %vm2623, %v8301
  %8465 = vst.msk [vmem:[#allocation3 + $0x280] sm:$0xff] %vm2623, %v8303
  %v8466 = vld [vmem:[#allocation2 + $0x29] sm:$0xff]
  %v8467 = vld [vmem:[#allocation2 + $0x31] sm:$0xff]
  %v8468 = vld [vmem:[#allocation2 + $0x39] sm:$0xff]
  %v8469 = vld [vmem:[#allocation2 + $0x41] sm:$0xff]
  %v8470 = vld [vmem:[#allocation2 + $0x49] sm:$0xff]
  %v8471 = vld [vmem:[#allocation2 + $0x51] sm:$0xff]
  %v8472 = vld [vmem:[#allocation2 + $0x59] sm:$0xff]
  %v8473 = vld [vmem:[#allocation2 + $0x61] sm:$0xff]
  %v8474 = vld [vmem:[#allocation2 + $0x69] sm:$0xff]
  %v8475 = vld [vmem:[#allocation2 + $0x71] sm:$0xff]
  %v8476 = vld [vmem:[#allocation2 + $0x79] sm:$0xff]
  %v8477 = vld [vmem:[#allocation2 + $0x81] sm:$0xff]
  %v8478 = vld [vmem:[#allocation2 + $0x89] sm:$0xff]
  %v8479 = vld [vmem:[#allocation2 + $0x91] sm:$0xff]
  %v8480 = vld [vmem:[#allocation2 + $0x99] sm:$0xff]
  %v8481 = vld [vmem:[#allocation2 + $0xa1] sm:$0xff]
  %v8482 = vld [vmem:[#allocation2 + $0xa9] sm:$0xff]
  %v8483 = vld [vmem:[#allocation2 + $0xb1] sm:$0xff]
  %v8484 = vld [vmem:[#allocation2 + $0xb9] sm:$0xff]
  %v8485 = vld [vmem:[#allocation2 + $0xc1] sm:$0xff]
  %v8486 = vld [vmem:[#allocation2 + $0xc9] sm:$0xff]
  %v8487 = vld [vmem:[#allocation2 + $0xd1] sm:$0xff]
  %v8488 = vld [vmem:[#allocation2 + $0xd9] sm:$0xff]
  %v8489 = vld [vmem:[#allocation2 + $0xe1] sm:$0xff]
  %v8490 = vld [vmem:[#allocation2 + $0xe9] sm:$0xff]
  %v8491 = vld [vmem:[#allocation2 + $0xf1] sm:$0xff]
  %v8492 = vld [vmem:[#allocation2 + $0xf9] sm:$0xff]
  %v8493 = vld [vmem:[#allocation2 + $0x101] sm:$0xff]
  %v8494 = vld [vmem:[#allocation2 + $0x109] sm:$0xff]
  %v8495 = vld [vmem:[#allocation2 + $0x111] sm:$0xff]
  %v8496 = vld [vmem:[#allocation2 + $0x119] sm:$0xff]
  %v8497 = vld [vmem:[#allocation2 + $0x121] sm:$0xff]
  %v8498 = vld [vmem:[#allocation2 + $0x129] sm:$0xff]
  %v8499 = vld [vmem:[#allocation2 + $0x131] sm:$0xff]
  %v8500 = vld [vmem:[#allocation2 + $0x139] sm:$0xff]
  %v8501 = vld [vmem:[#allocation2 + $0x141] sm:$0xff]
  %v8502 = vld [vmem:[#allocation2 + $0x149] sm:$0xff]
  %v8503 = vld [vmem:[#allocation2 + $0x151] sm:$0xff]
  %v8504 = vld [vmem:[#allocation2 + $0x159] sm:$0xff]
  %v8505 = vld [vmem:[#allocation2 + $0x161] sm:$0xff]
  %v8506 = vld [vmem:[#allocation2 + $0x169] sm:$0xff]
  %v8507 = vld [vmem:[#allocation2 + $0x171] sm:$0xff]
  %v8508 = vld [vmem:[#allocation2 + $0x179] sm:$0xff]
  %v8509 = vld [vmem:[#allocation2 + $0x181] sm:$0xff]
  %v8510 = vld [vmem:[#allocation2 + $0x189] sm:$0xff]
  %v8511 = vld [vmem:[#allocation2 + $0x191] sm:$0xff]
  %v8512 = vld [vmem:[#allocation2 + $0x199] sm:$0xff]
  %v8513 = vld [vmem:[#allocation2 + $0x1a1] sm:$0xff]
  %v8514 = vld [vmem:[#allocation2 + $0x1a9] sm:$0xff]
  %v8515 = vld [vmem:[#allocation2 + $0x1b1] sm:$0xff]
  %v8516 = vld [vmem:[#allocation2 + $0x1b9] sm:$0xff]
  %v8517 = vld [vmem:[#allocation2 + $0x1c1] sm:$0xff]
  %v8518 = vld [vmem:[#allocation2 + $0x1c9] sm:$0xff]
  %v8519 = vld [vmem:[#allocation2 + $0x1d1] sm:$0xff]
  %v8520 = vld [vmem:[#allocation2 + $0x1d9] sm:$0xff]
  %v8521 = vld [vmem:[#allocation2 + $0x1e1] sm:$0xff]
  %v8522 = vld [vmem:[#allocation2 + $0x1e9] sm:$0xff]
  %v8523 = vld [vmem:[#allocation2 + $0x1f1] sm:$0xff]
  %v8524 = vld [vmem:[#allocation2 + $0x1f9] sm:$0xff]
  %v8525 = vld [vmem:[#allocation2 + $0x201] sm:$0xff]
  %v8526 = vld [vmem:[#allocation2 + $0x209] sm:$0xff]
  %v8527 = vld [vmem:[#allocation2 + $0x211] sm:$0xff]
  %v8528 = vld [vmem:[#allocation2 + $0x219] sm:$0xff]
  %v8529 = vld [vmem:[#allocation2 + $0x221] sm:$0xff]
  %v8530 = vld [vmem:[#allocation2 + $0x229] sm:$0xff]
  %v8531 = vld [vmem:[#allocation2 + $0x231] sm:$0xff]
  %v8532 = vld [vmem:[#allocation2 + $0x239] sm:$0xff]
  %v8533 = vld [vmem:[#allocation2 + $0x241] sm:$0xff]
  %v8534 = vld [vmem:[#allocation2 + $0x249] sm:$0xff]
  %v8535 = vld [vmem:[#allocation2 + $0x251] sm:$0xff]
  %v8536 = vld [vmem:[#allocation2 + $0x259] sm:$0xff]
  %v8537 = vld [vmem:[#allocation2 + $0x261] sm:$0xff]
  %v8538 = vld [vmem:[#allocation2 + $0x269] sm:$0xff]
  %v8539 = vld [vmem:[#allocation2 + $0x271] sm:$0xff]
  %v8540 = vld [vmem:[#allocation2 + $0x279] sm:$0xff]
  %v8541 = vld [vmem:[#allocation2 + $0x281] sm:$0xff]
  %v8542 = vld [vmem:[#allocation2 + $0x289] sm:$0xff]
  %v8543 = vld [vmem:[#allocation2 + $0x291] sm:$0xff]
  %v8544 = vld [vmem:[#allocation2 + $0x299] sm:$0xff]
  %v8545 = vld [vmem:[#allocation2 + $0x2a1] sm:$0xff]
  %v8546 = vld [vmem:[#allocation2 + $0x2a9] sm:$0xff]
  %8628 = vrot.lane.b32.xlu0 %v8466, 24
  %v8629 = vpop.permute.xlu0 %8628
  %8630 = vrot.lane.b32.xlu0 %v8467, 24
  %v8631 = vpop.permute.xlu0 %8630
  %8632 = vrot.lane.b32.xlu0 %v8468, 24
  %v8633 = vpop.permute.xlu0 %8632
  %8634 = vrot.lane.b32.xlu0 %v8469, 24
  %v8635 = vpop.permute.xlu0 %8634
  %8636 = vrot.lane.b32.xlu0 %v8470, 24
  %v8637 = vpop.permute.xlu0 %8636
  %8638 = vrot.lane.b32.xlu0 %v8471, 24
  %v8639 = vpop.permute.xlu0 %8638
  %8640 = vrot.lane.b32.xlu0 %v8472, 24
  %v8641 = vpop.permute.xlu0 %8640
  %8642 = vrot.lane.b32.xlu0 %v8473, 24
  %v8643 = vpop.permute.xlu0 %8642
  %8644 = vrot.lane.b32.xlu0 %v8474, 24
  %v8645 = vpop.permute.xlu0 %8644
  %8646 = vrot.lane.b32.xlu0 %v8475, 24
  %v8647 = vpop.permute.xlu0 %8646
  %8648 = vrot.lane.b32.xlu0 %v8476, 24
  %v8649 = vpop.permute.xlu0 %8648
  %8650 = vrot.lane.b32.xlu0 %v8477, 24
  %v8651 = vpop.permute.xlu0 %8650
  %8652 = vrot.lane.b32.xlu0 %v8478, 24
  %v8653 = vpop.permute.xlu0 %8652
  %8654 = vrot.lane.b32.xlu0 %v8479, 24
  %v8655 = vpop.permute.xlu0 %8654
  %8656 = vrot.lane.b32.xlu0 %v8480, 24
  %v8657 = vpop.permute.xlu0 %8656
  %8658 = vrot.lane.b32.xlu0 %v8481, 24
  %v8659 = vpop.permute.xlu0 %8658
  %8660 = vrot.lane.b32.xlu0 %v8482, 24
  %v8661 = vpop.permute.xlu0 %8660
  %8662 = vrot.lane.b32.xlu0 %v8483, 24
  %v8663 = vpop.permute.xlu0 %8662
  %8664 = vrot.lane.b32.xlu0 %v8484, 24
  %v8665 = vpop.permute.xlu0 %8664
  %8666 = vrot.lane.b32.xlu0 %v8485, 24
  %v8667 = vpop.permute.xlu0 %8666
  %8668 = vrot.lane.b32.xlu0 %v8486, 24
  %v8669 = vpop.permute.xlu0 %8668
  %8670 = vrot.lane.b32.xlu0 %v8487, 24
  %v8671 = vpop.permute.xlu0 %8670
  %8672 = vrot.lane.b32.xlu0 %v8488, 24
  %v8673 = vpop.permute.xlu0 %8672
  %8674 = vrot.lane.b32.xlu0 %v8489, 24
  %v8675 = vpop.permute.xlu0 %8674
  %8676 = vrot.lane.b32.xlu0 %v8490, 24
  %v8677 = vpop.permute.xlu0 %8676
  %8678 = vrot.lane.b32.xlu0 %v8491, 24
  %v8679 = vpop.permute.xlu0 %8678
  %8680 = vrot.lane.b32.xlu0 %v8492, 24
  %v8681 = vpop.permute.xlu0 %8680
  %8682 = vrot.lane.b32.xlu0 %v8493, 24
  %v8683 = vpop.permute.xlu0 %8682
  %8684 = vrot.lane.b32.xlu0 %v8494, 24
  %v8685 = vpop.permute.xlu0 %8684
  %8686 = vrot.lane.b32.xlu0 %v8495, 24
  %v8687 = vpop.permute.xlu0 %8686
  %8688 = vrot.lane.b32.xlu0 %v8496, 24
  %v8689 = vpop.permute.xlu0 %8688
  %8690 = vrot.lane.b32.xlu0 %v8497, 24
  %v8691 = vpop.permute.xlu0 %8690
  %8692 = vrot.lane.b32.xlu0 %v8498, 24
  %v8693 = vpop.permute.xlu0 %8692
  %8694 = vrot.lane.b32.xlu0 %v8499, 24
  %v8695 = vpop.permute.xlu0 %8694
  %8696 = vrot.lane.b32.xlu0 %v8500, 24
  %v8697 = vpop.permute.xlu0 %8696
  %8698 = vrot.lane.b32.xlu0 %v8501, 24
  %v8699 = vpop.permute.xlu0 %8698
  %8700 = vrot.lane.b32.xlu0 %v8502, 24
  %v8701 = vpop.permute.xlu0 %8700
  %8702 = vrot.lane.b32.xlu0 %v8503, 24
  %v8703 = vpop.permute.xlu0 %8702
  %8704 = vrot.lane.b32.xlu0 %v8504, 24
  %v8705 = vpop.permute.xlu0 %8704
  %8706 = vrot.lane.b32.xlu0 %v8505, 24
  %v8707 = vpop.permute.xlu0 %8706
  %8708 = vrot.lane.b32.xlu0 %v8506, 24
  %v8709 = vpop.permute.xlu0 %8708
  %8710 = vrot.lane.b32.xlu0 %v8507, 24
  %v8711 = vpop.permute.xlu0 %8710
  %8712 = vrot.lane.b32.xlu0 %v8508, 24
  %v8713 = vpop.permute.xlu0 %8712
  %8714 = vrot.lane.b32.xlu0 %v8509, 24
  %v8715 = vpop.permute.xlu0 %8714
  %8716 = vrot.lane.b32.xlu0 %v8510, 24
  %v8717 = vpop.permute.xlu0 %8716
  %8718 = vrot.lane.b32.xlu0 %v8511, 24
  %v8719 = vpop.permute.xlu0 %8718
  %8720 = vrot.lane.b32.xlu0 %v8512, 24
  %v8721 = vpop.permute.xlu0 %8720
  %8722 = vrot.lane.b32.xlu0 %v8513, 24
  %v8723 = vpop.permute.xlu0 %8722
  %8724 = vrot.lane.b32.xlu0 %v8514, 24
  %v8725 = vpop.permute.xlu0 %8724
  %8726 = vrot.lane.b32.xlu0 %v8515, 24
  %v8727 = vpop.permute.xlu0 %8726
  %8728 = vrot.lane.b32.xlu0 %v8516, 24
  %v8729 = vpop.permute.xlu0 %8728
  %8730 = vrot.lane.b32.xlu0 %v8517, 24
  %v8731 = vpop.permute.xlu0 %8730
  %8732 = vrot.lane.b32.xlu0 %v8518, 24
  %v8733 = vpop.permute.xlu0 %8732
  %8734 = vrot.lane.b32.xlu0 %v8519, 24
  %v8735 = vpop.permute.xlu0 %8734
  %8736 = vrot.lane.b32.xlu0 %v8520, 24
  %v8737 = vpop.permute.xlu0 %8736
  %8738 = vrot.lane.b32.xlu0 %v8521, 24
  %v8739 = vpop.permute.xlu0 %8738
  %8740 = vrot.lane.b32.xlu0 %v8522, 24
  %v8741 = vpop.permute.xlu0 %8740
  %8742 = vrot.lane.b32.xlu0 %v8523, 24
  %v8743 = vpop.permute.xlu0 %8742
  %8744 = vrot.lane.b32.xlu0 %v8524, 24
  %v8745 = vpop.permute.xlu0 %8744
  %8746 = vrot.lane.b32.xlu0 %v8525, 24
  %v8747 = vpop.permute.xlu0 %8746
  %8748 = vrot.lane.b32.xlu0 %v8526, 24
  %v8749 = vpop.permute.xlu0 %8748
  %8750 = vrot.lane.b32.xlu0 %v8527, 24
  %v8751 = vpop.permute.xlu0 %8750
  %8752 = vrot.lane.b32.xlu0 %v8528, 24
  %v8753 = vpop.permute.xlu0 %8752
  %8754 = vrot.lane.b32.xlu0 %v8529, 24
  %v8755 = vpop.permute.xlu0 %8754
  %8756 = vrot.lane.b32.xlu0 %v8530, 24
  %v8757 = vpop.permute.xlu0 %8756
  %8758 = vrot.lane.b32.xlu0 %v8531, 24
  %v8759 = vpop.permute.xlu0 %8758
  %8760 = vrot.lane.b32.xlu0 %v8532, 24
  %v8761 = vpop.permute.xlu0 %8760
  %8762 = vrot.lane.b32.xlu0 %v8533, 24
  %v8763 = vpop.permute.xlu0 %8762
  %8764 = vrot.lane.b32.xlu0 %v8534, 24
  %v8765 = vpop.permute.xlu0 %8764
  %8766 = vrot.lane.b32.xlu0 %v8535, 24
  %v8767 = vpop.permute.xlu0 %8766
  %8768 = vrot.lane.b32.xlu0 %v8536, 24
  %v8769 = vpop.permute.xlu0 %8768
  %8770 = vrot.lane.b32.xlu0 %v8537, 24
  %v8771 = vpop.permute.xlu0 %8770
  %8772 = vrot.lane.b32.xlu0 %v8538, 24
  %v8773 = vpop.permute.xlu0 %8772
  %8774 = vrot.lane.b32.xlu0 %v8539, 24
  %v8775 = vpop.permute.xlu0 %8774
  %8776 = vrot.lane.b32.xlu0 %v8540, 24
  %v8777 = vpop.permute.xlu0 %8776
  %8778 = vrot.lane.b32.xlu0 %v8541, 24
  %v8779 = vpop.permute.xlu0 %8778
  %8780 = vrot.lane.b32.xlu0 %v8542, 24
  %v8781 = vpop.permute.xlu0 %8780
  %8782 = vrot.lane.b32.xlu0 %v8543, 24
  %v8783 = vpop.permute.xlu0 %8782
  %8784 = vrot.lane.b32.xlu0 %v8544, 24
  %v8785 = vpop.permute.xlu0 %8784
  %8786 = vrot.lane.b32.xlu0 %v8545, 24
  %v8787 = vpop.permute.xlu0 %8786
  %8788 = vrot.lane.b32.xlu0 %v8546, 24
  %v8789 = vpop.permute.xlu0 %8788
  %8871 = vst.msk [vmem:[#allocation3] sm:$0xff] %vm3110, %v8629
  %8872 = vst.msk [vmem:[#allocation3 + $0x8] sm:$0xff] %vm3110, %v8631
  %8873 = vst.msk [vmem:[#allocation3 + $0x10] sm:$0xff] %vm3110, %v8633
  %8874 = vst.msk [vmem:[#allocation3 + $0x18] sm:$0xff] %vm3110, %v8635
  %8875 = vst.msk [vmem:[#allocation3 + $0x20] sm:$0xff] %vm3110, %v8637
  %8876 = vst.msk [vmem:[#allocation3 + $0x28] sm:$0xff] %vm3110, %v8639
  %8877 = vst.msk [vmem:[#allocation3 + $0x30] sm:$0xff] %vm3110, %v8641
  %8878 = vst.msk [vmem:[#allocation3 + $0x38] sm:$0xff] %vm3110, %v8643
  %8879 = vst.msk [vmem:[#allocation3 + $0x40] sm:$0xff] %vm3110, %v8645
  %8880 = vst.msk [vmem:[#allocation3 + $0x48] sm:$0xff] %vm3110, %v8647
  %8881 = vst.msk [vmem:[#allocation3 + $0x50] sm:$0xff] %vm3110, %v8649
  %8882 = vst.msk [vmem:[#allocation3 + $0x58] sm:$0xff] %vm3110, %v8651
  %8883 = vst.msk [vmem:[#allocation3 + $0x60] sm:$0xff] %vm3110, %v8653
  %8884 = vst.msk [vmem:[#allocation3 + $0x68] sm:$0xff] %vm3110, %v8655
  %8885 = vst.msk [vmem:[#allocation3 + $0x70] sm:$0xff] %vm3110, %v8657
  %8886 = vst.msk [vmem:[#allocation3 + $0x78] sm:$0xff] %vm3110, %v8659
  %8887 = vst.msk [vmem:[#allocation3 + $0x80] sm:$0xff] %vm3110, %v8661
  %8888 = vst.msk [vmem:[#allocation3 + $0x88] sm:$0xff] %vm3110, %v8663
  %8889 = vst.msk [vmem:[#allocation3 + $0x90] sm:$0xff] %vm3110, %v8665
  %8890 = vst.msk [vmem:[#allocation3 + $0x98] sm:$0xff] %vm3110, %v8667
  %8891 = vst.msk [vmem:[#allocation3 + $0xa0] sm:$0xff] %vm3110, %v8669
  %8892 = vst.msk [vmem:[#allocation3 + $0xa8] sm:$0xff] %vm3110, %v8671
  %8893 = vst.msk [vmem:[#allocation3 + $0xb0] sm:$0xff] %vm3110, %v8673
  %8894 = vst.msk [vmem:[#allocation3 + $0xb8] sm:$0xff] %vm3110, %v8675
  %8895 = vst.msk [vmem:[#allocation3 + $0xc0] sm:$0xff] %vm3110, %v8677
  %8896 = vst.msk [vmem:[#allocation3 + $0xc8] sm:$0xff] %vm3110, %v8679
  %8897 = vst.msk [vmem:[#allocation3 + $0xd0] sm:$0xff] %vm3110, %v8681
  %8898 = vst.msk [vmem:[#allocation3 + $0xd8] sm:$0xff] %vm3110, %v8683
  %8899 = vst.msk [vmem:[#allocation3 + $0xe0] sm:$0xff] %vm3110, %v8685
  %8900 = vst.msk [vmem:[#allocation3 + $0xe8] sm:$0xff] %vm3110, %v8687
  %8901 = vst.msk [vmem:[#allocation3 + $0xf0] sm:$0xff] %vm3110, %v8689
  %8902 = vst.msk [vmem:[#allocation3 + $0xf8] sm:$0xff] %vm3110, %v8691
  %8903 = vst.msk [vmem:[#allocation3 + $0x100] sm:$0xff] %vm3110, %v8693
  %8904 = vst.msk [vmem:[#allocation3 + $0x108] sm:$0xff] %vm3110, %v8695
  %8905 = vst.msk [vmem:[#allocation3 + $0x110] sm:$0xff] %vm3110, %v8697
  %8906 = vst.msk [vmem:[#allocation3 + $0x118] sm:$0xff] %vm3110, %v8699
  %8907 = vst.msk [vmem:[#allocation3 + $0x120] sm:$0xff] %vm3110, %v8701
  %8908 = vst.msk [vmem:[#allocation3 + $0x128] sm:$0xff] %vm3110, %v8703
  %8909 = vst.msk [vmem:[#allocation3 + $0x130] sm:$0xff] %vm3110, %v8705
  %8910 = vst.msk [vmem:[#allocation3 + $0x138] sm:$0xff] %vm3110, %v8707
  %8911 = vst.msk [vmem:[#allocation3 + $0x140] sm:$0xff] %vm3110, %v8709
  %8912 = vst.msk [vmem:[#allocation3 + $0x148] sm:$0xff] %vm3110, %v8711
  %8913 = vst.msk [vmem:[#allocation3 + $0x150] sm:$0xff] %vm3110, %v8713
  %8914 = vst.msk [vmem:[#allocation3 + $0x158] sm:$0xff] %vm3110, %v8715
  %8915 = vst.msk [vmem:[#allocation3 + $0x160] sm:$0xff] %vm3110, %v8717
  %8916 = vst.msk [vmem:[#allocation3 + $0x168] sm:$0xff] %vm3110, %v8719
  %8917 = vst.msk [vmem:[#allocation3 + $0x170] sm:$0xff] %vm3110, %v8721
  %8918 = vst.msk [vmem:[#allocation3 + $0x178] sm:$0xff] %vm3110, %v8723
  %8919 = vst.msk [vmem:[#allocation3 + $0x180] sm:$0xff] %vm3110, %v8725
  %8920 = vst.msk [vmem:[#allocation3 + $0x188] sm:$0xff] %vm3110, %v8727
  %8921 = vst.msk [vmem:[#allocation3 + $0x190] sm:$0xff] %vm3110, %v8729
  %8922 = vst.msk [vmem:[#allocation3 + $0x198] sm:$0xff] %vm3110, %v8731
  %8923 = vst.msk [vmem:[#allocation3 + $0x1a0] sm:$0xff] %vm3110, %v8733
  %8924 = vst.msk [vmem:[#allocation3 + $0x1a8] sm:$0xff] %vm3110, %v8735
  %8925 = vst.msk [vmem:[#allocation3 + $0x1b0] sm:$0xff] %vm3110, %v8737
  %8926 = vst.msk [vmem:[#allocation3 + $0x1b8] sm:$0xff] %vm3110, %v8739
  %8927 = vst.msk [vmem:[#allocation3 + $0x1c0] sm:$0xff] %vm3110, %v8741
  %8928 = vst.msk [vmem:[#allocation3 + $0x1c8] sm:$0xff] %vm3110, %v8743
  %8929 = vst.msk [vmem:[#allocation3 + $0x1d0] sm:$0xff] %vm3110, %v8745
  %8930 = vst.msk [vmem:[#allocation3 + $0x1d8] sm:$0xff] %vm3110, %v8747
  %8931 = vst.msk [vmem:[#allocation3 + $0x1e0] sm:$0xff] %vm3110, %v8749
  %8932 = vst.msk [vmem:[#allocation3 + $0x1e8] sm:$0xff] %vm3110, %v8751
  %8933 = vst.msk [vmem:[#allocation3 + $0x1f0] sm:$0xff] %vm3110, %v8753
  %8934 = vst.msk [vmem:[#allocation3 + $0x1f8] sm:$0xff] %vm3110, %v8755
  %8935 = vst.msk [vmem:[#allocation3 + $0x200] sm:$0xff] %vm3110, %v8757
  %8936 = vst.msk [vmem:[#allocation3 + $0x208] sm:$0xff] %vm3110, %v8759
  %8937 = vst.msk [vmem:[#allocation3 + $0x210] sm:$0xff] %vm3110, %v8761
  %8938 = vst.msk [vmem:[#allocation3 + $0x218] sm:$0xff] %vm3110, %v8763
  %8939 = vst.msk [vmem:[#allocation3 + $0x220] sm:$0xff] %vm3110, %v8765
  %8940 = vst.msk [vmem:[#allocation3 + $0x228] sm:$0xff] %vm3110, %v8767
  %8941 = vst.msk [vmem:[#allocation3 + $0x230] sm:$0xff] %vm3110, %v8769
  %8942 = vst.msk [vmem:[#allocation3 + $0x238] sm:$0xff] %vm3110, %v8771
  %8943 = vst.msk [vmem:[#allocation3 + $0x240] sm:$0xff] %vm3110, %v8773
  %8944 = vst.msk [vmem:[#allocation3 + $0x248] sm:$0xff] %vm3110, %v8775
  %8945 = vst.msk [vmem:[#allocation3 + $0x250] sm:$0xff] %vm3110, %v8777
  %8946 = vst.msk [vmem:[#allocation3 + $0x258] sm:$0xff] %vm3110, %v8779
  %8947 = vst.msk [vmem:[#allocation3 + $0x260] sm:$0xff] %vm3110, %v8781
  %8948 = vst.msk [vmem:[#allocation3 + $0x268] sm:$0xff] %vm3110, %v8783
  %8949 = vst.msk [vmem:[#allocation3 + $0x270] sm:$0xff] %vm3110, %v8785
  %8950 = vst.msk [vmem:[#allocation3 + $0x278] sm:$0xff] %vm3110, %v8787
  %8951 = vst.msk [vmem:[#allocation3 + $0x280] sm:$0xff] %vm3110, %v8789
  %v8952 = vld [vmem:[#allocation2 + $0x2a] sm:$0xff]
  %v8953 = vld [vmem:[#allocation2 + $0x32] sm:$0xff]
  %v8954 = vld [vmem:[#allocation2 + $0x3a] sm:$0xff]
  %v8955 = vld [vmem:[#allocation2 + $0x42] sm:$0xff]
  %v8956 = vld [vmem:[#allocation2 + $0x4a] sm:$0xff]
  %v8957 = vld [vmem:[#allocation2 + $0x52] sm:$0xff]
  %v8958 = vld [vmem:[#allocation2 + $0x5a] sm:$0xff]
  %v8959 = vld [vmem:[#allocation2 + $0x62] sm:$0xff]
  %v8960 = vld [vmem:[#allocation2 + $0x6a] sm:$0xff]
  %v8961 = vld [vmem:[#allocation2 + $0x72] sm:$0xff]
  %v8962 = vld [vmem:[#allocation2 + $0x7a] sm:$0xff]
  %v8963 = vld [vmem:[#allocation2 + $0x82] sm:$0xff]
  %v8964 = vld [vmem:[#allocation2 + $0x8a] sm:$0xff]
  %v8965 = vld [vmem:[#allocation2 + $0x92] sm:$0xff]
  %v8966 = vld [vmem:[#allocation2 + $0x9a] sm:$0xff]
  %v8967 = vld [vmem:[#allocation2 + $0xa2] sm:$0xff]
  %v8968 = vld [vmem:[#allocation2 + $0xaa] sm:$0xff]
  %v8969 = vld [vmem:[#allocation2 + $0xb2] sm:$0xff]
  %v8970 = vld [vmem:[#allocation2 + $0xba] sm:$0xff]
  %v8971 = vld [vmem:[#allocation2 + $0xc2] sm:$0xff]
  %v8972 = vld [vmem:[#allocation2 + $0xca] sm:$0xff]
  %v8973 = vld [vmem:[#allocation2 + $0xd2] sm:$0xff]
  %v8974 = vld [vmem:[#allocation2 + $0xda] sm:$0xff]
  %v8975 = vld [vmem:[#allocation2 + $0xe2] sm:$0xff]
  %v8976 = vld [vmem:[#allocation2 + $0xea] sm:$0xff]
  %v8977 = vld [vmem:[#allocation2 + $0xf2] sm:$0xff]
  %v8978 = vld [vmem:[#allocation2 + $0xfa] sm:$0xff]
  %v8979 = vld [vmem:[#allocation2 + $0x102] sm:$0xff]
  %v8980 = vld [vmem:[#allocation2 + $0x10a] sm:$0xff]
  %v8981 = vld [vmem:[#allocation2 + $0x112] sm:$0xff]
  %v8982 = vld [vmem:[#allocation2 + $0x11a] sm:$0xff]
  %v8983 = vld [vmem:[#allocation2 + $0x122] sm:$0xff]
  %v8984 = vld [vmem:[#allocation2 + $0x12a] sm:$0xff]
  %v8985 = vld [vmem:[#allocation2 + $0x132] sm:$0xff]
  %v8986 = vld [vmem:[#allocation2 + $0x13a] sm:$0xff]
  %v8987 = vld [vmem:[#allocation2 + $0x142] sm:$0xff]
  %v8988 = vld [vmem:[#allocation2 + $0x14a] sm:$0xff]
  %v8989 = vld [vmem:[#allocation2 + $0x152] sm:$0xff]
  %v8990 = vld [vmem:[#allocation2 + $0x15a] sm:$0xff]
  %v8991 = vld [vmem:[#allocation2 + $0x162] sm:$0xff]
  %v8992 = vld [vmem:[#allocation2 + $0x16a] sm:$0xff]
  %v8993 = vld [vmem:[#allocation2 + $0x172] sm:$0xff]
  %v8994 = vld [vmem:[#allocation2 + $0x17a] sm:$0xff]
  %v8995 = vld [vmem:[#allocation2 + $0x182] sm:$0xff]
  %v8996 = vld [vmem:[#allocation2 + $0x18a] sm:$0xff]
  %v8997 = vld [vmem:[#allocation2 + $0x192] sm:$0xff]
  %v8998 = vld [vmem:[#allocation2 + $0x19a] sm:$0xff]
  %v8999 = vld [vmem:[#allocation2 + $0x1a2] sm:$0xff]
  %v9000 = vld [vmem:[#allocation2 + $0x1aa] sm:$0xff]
  %v9001 = vld [vmem:[#allocation2 + $0x1b2] sm:$0xff]
  %v9002 = vld [vmem:[#allocation2 + $0x1ba] sm:$0xff]
  %v9003 = vld [vmem:[#allocation2 + $0x1c2] sm:$0xff]
  %v9004 = vld [vmem:[#allocation2 + $0x1ca] sm:$0xff]
  %v9005 = vld [vmem:[#allocation2 + $0x1d2] sm:$0xff]
  %v9006 = vld [vmem:[#allocation2 + $0x1da] sm:$0xff]
  %v9007 = vld [vmem:[#allocation2 + $0x1e2] sm:$0xff]
  %v9008 = vld [vmem:[#allocation2 + $0x1ea] sm:$0xff]
  %v9009 = vld [vmem:[#allocation2 + $0x1f2] sm:$0xff]
  %v9010 = vld [vmem:[#allocation2 + $0x1fa] sm:$0xff]
  %v9011 = vld [vmem:[#allocation2 + $0x202] sm:$0xff]
  %v9012 = vld [vmem:[#allocation2 + $0x20a] sm:$0xff]
  %v9013 = vld [vmem:[#allocation2 + $0x212] sm:$0xff]
  %v9014 = vld [vmem:[#allocation2 + $0x21a] sm:$0xff]
  %v9015 = vld [vmem:[#allocation2 + $0x222] sm:$0xff]
  %v9016 = vld [vmem:[#allocation2 + $0x22a] sm:$0xff]
  %v9017 = vld [vmem:[#allocation2 + $0x232] sm:$0xff]
  %v9018 = vld [vmem:[#allocation2 + $0x23a] sm:$0xff]
  %v9019 = vld [vmem:[#allocation2 + $0x242] sm:$0xff]
  %v9020 = vld [vmem:[#allocation2 + $0x24a] sm:$0xff]
  %v9021 = vld [vmem:[#allocation2 + $0x252] sm:$0xff]
  %v9022 = vld [vmem:[#allocation2 + $0x25a] sm:$0xff]
  %v9023 = vld [vmem:[#allocation2 + $0x262] sm:$0xff]
  %v9024 = vld [vmem:[#allocation2 + $0x26a] sm:$0xff]
  %v9025 = vld [vmem:[#allocation2 + $0x272] sm:$0xff]
  %v9026 = vld [vmem:[#allocation2 + $0x27a] sm:$0xff]
  %v9027 = vld [vmem:[#allocation2 + $0x282] sm:$0xff]
  %v9028 = vld [vmem:[#allocation2 + $0x28a] sm:$0xff]
  %v9029 = vld [vmem:[#allocation2 + $0x292] sm:$0xff]
  %v9030 = vld [vmem:[#allocation2 + $0x29a] sm:$0xff]
  %v9031 = vld [vmem:[#allocation2 + $0x2a2] sm:$0xff]
  %v9032 = vld [vmem:[#allocation2 + $0x2aa] sm:$0xff]
  %9114 = vrot.lane.b32.xlu0 %v8952, 28
  %v9115 = vpop.permute.xlu0 %9114
  %9116 = vrot.lane.b32.xlu0 %v8953, 28
  %v9117 = vpop.permute.xlu0 %9116
  %9118 = vrot.lane.b32.xlu0 %v8954, 28
  %v9119 = vpop.permute.xlu0 %9118
  %9120 = vrot.lane.b32.xlu0 %v8955, 28
  %v9121 = vpop.permute.xlu0 %9120
  %9122 = vrot.lane.b32.xlu0 %v8956, 28
  %v9123 = vpop.permute.xlu0 %9122
  %9124 = vrot.lane.b32.xlu0 %v8957, 28
  %v9125 = vpop.permute.xlu0 %9124
  %9126 = vrot.lane.b32.xlu0 %v8958, 28
  %v9127 = vpop.permute.xlu0 %9126
  %9128 = vrot.lane.b32.xlu0 %v8959, 28
  %v9129 = vpop.permute.xlu0 %9128
  %9130 = vrot.lane.b32.xlu0 %v8960, 28
  %v9131 = vpop.permute.xlu0 %9130
  %9132 = vrot.lane.b32.xlu0 %v8961, 28
  %v9133 = vpop.permute.xlu0 %9132
  %9134 = vrot.lane.b32.xlu0 %v8962, 28
  %v9135 = vpop.permute.xlu0 %9134
  %9136 = vrot.lane.b32.xlu0 %v8963, 28
  %v9137 = vpop.permute.xlu0 %9136
  %9138 = vrot.lane.b32.xlu0 %v8964, 28
  %v9139 = vpop.permute.xlu0 %9138
  %9140 = vrot.lane.b32.xlu0 %v8965, 28
  %v9141 = vpop.permute.xlu0 %9140
  %9142 = vrot.lane.b32.xlu0 %v8966, 28
  %v9143 = vpop.permute.xlu0 %9142
  %9144 = vrot.lane.b32.xlu0 %v8967, 28
  %v9145 = vpop.permute.xlu0 %9144
  %9146 = vrot.lane.b32.xlu0 %v8968, 28
  %v9147 = vpop.permute.xlu0 %9146
  %9148 = vrot.lane.b32.xlu0 %v8969, 28
  %v9149 = vpop.permute.xlu0 %9148
  %9150 = vrot.lane.b32.xlu0 %v8970, 28
  %v9151 = vpop.permute.xlu0 %9150
  %9152 = vrot.lane.b32.xlu0 %v8971, 28
  %v9153 = vpop.permute.xlu0 %9152
  %9154 = vrot.lane.b32.xlu0 %v8972, 28
  %v9155 = vpop.permute.xlu0 %9154
  %9156 = vrot.lane.b32.xlu0 %v8973, 28
  %v9157 = vpop.permute.xlu0 %9156
  %9158 = vrot.lane.b32.xlu0 %v8974, 28
  %v9159 = vpop.permute.xlu0 %9158
  %9160 = vrot.lane.b32.xlu0 %v8975, 28
  %v9161 = vpop.permute.xlu0 %9160
  %9162 = vrot.lane.b32.xlu0 %v8976, 28
  %v9163 = vpop.permute.xlu0 %9162
  %9164 = vrot.lane.b32.xlu0 %v8977, 28
  %v9165 = vpop.permute.xlu0 %9164
  %9166 = vrot.lane.b32.xlu0 %v8978, 28
  %v9167 = vpop.permute.xlu0 %9166
  %9168 = vrot.lane.b32.xlu0 %v8979, 28
  %v9169 = vpop.permute.xlu0 %9168
  %9170 = vrot.lane.b32.xlu0 %v8980, 28
  %v9171 = vpop.permute.xlu0 %9170
  %9172 = vrot.lane.b32.xlu0 %v8981, 28
  %v9173 = vpop.permute.xlu0 %9172
  %9174 = vrot.lane.b32.xlu0 %v8982, 28
  %v9175 = vpop.permute.xlu0 %9174
  %9176 = vrot.lane.b32.xlu0 %v8983, 28
  %v9177 = vpop.permute.xlu0 %9176
  %9178 = vrot.lane.b32.xlu0 %v8984, 28
  %v9179 = vpop.permute.xlu0 %9178
  %9180 = vrot.lane.b32.xlu0 %v8985, 28
  %v9181 = vpop.permute.xlu0 %9180
  %9182 = vrot.lane.b32.xlu0 %v8986, 28
  %v9183 = vpop.permute.xlu0 %9182
  %9184 = vrot.lane.b32.xlu0 %v8987, 28
  %v9185 = vpop.permute.xlu0 %9184
  %9186 = vrot.lane.b32.xlu0 %v8988, 28
  %v9187 = vpop.permute.xlu0 %9186
  %9188 = vrot.lane.b32.xlu0 %v8989, 28
  %v9189 = vpop.permute.xlu0 %9188
  %9190 = vrot.lane.b32.xlu0 %v8990, 28
  %v9191 = vpop.permute.xlu0 %9190
  %9192 = vrot.lane.b32.xlu0 %v8991, 28
  %v9193 = vpop.permute.xlu0 %9192
  %9194 = vrot.lane.b32.xlu0 %v8992, 28
  %v9195 = vpop.permute.xlu0 %9194
  %9196 = vrot.lane.b32.xlu0 %v8993, 28
  %v9197 = vpop.permute.xlu0 %9196
  %9198 = vrot.lane.b32.xlu0 %v8994, 28
  %v9199 = vpop.permute.xlu0 %9198
  %9200 = vrot.lane.b32.xlu0 %v8995, 28
  %v9201 = vpop.permute.xlu0 %9200
  %9202 = vrot.lane.b32.xlu0 %v8996, 28
  %v9203 = vpop.permute.xlu0 %9202
  %9204 = vrot.lane.b32.xlu0 %v8997, 28
  %v9205 = vpop.permute.xlu0 %9204
  %9206 = vrot.lane.b32.xlu0 %v8998, 28
  %v9207 = vpop.permute.xlu0 %9206
  %9208 = vrot.lane.b32.xlu0 %v8999, 28
  %v9209 = vpop.permute.xlu0 %9208
  %9210 = vrot.lane.b32.xlu0 %v9000, 28
  %v9211 = vpop.permute.xlu0 %9210
  %9212 = vrot.lane.b32.xlu0 %v9001, 28
  %v9213 = vpop.permute.xlu0 %9212
  %9214 = vrot.lane.b32.xlu0 %v9002, 28
  %v9215 = vpop.permute.xlu0 %9214
  %9216 = vrot.lane.b32.xlu0 %v9003, 28
  %v9217 = vpop.permute.xlu0 %9216
  %9218 = vrot.lane.b32.xlu0 %v9004, 28
  %v9219 = vpop.permute.xlu0 %9218
  %9220 = vrot.lane.b32.xlu0 %v9005, 28
  %v9221 = vpop.permute.xlu0 %9220
  %9222 = vrot.lane.b32.xlu0 %v9006, 28
  %v9223 = vpop.permute.xlu0 %9222
  %9224 = vrot.lane.b32.xlu0 %v9007, 28
  %v9225 = vpop.permute.xlu0 %9224
  %9226 = vrot.lane.b32.xlu0 %v9008, 28
  %v9227 = vpop.permute.xlu0 %9226
  %9228 = vrot.lane.b32.xlu0 %v9009, 28
  %v9229 = vpop.permute.xlu0 %9228
  %9230 = vrot.lane.b32.xlu0 %v9010, 28
  %v9231 = vpop.permute.xlu0 %9230
  %9232 = vrot.lane.b32.xlu0 %v9011, 28
  %v9233 = vpop.permute.xlu0 %9232
  %9234 = vrot.lane.b32.xlu0 %v9012, 28
  %v9235 = vpop.permute.xlu0 %9234
  %9236 = vrot.lane.b32.xlu0 %v9013, 28
  %v9237 = vpop.permute.xlu0 %9236
  %9238 = vrot.lane.b32.xlu0 %v9014, 28
  %v9239 = vpop.permute.xlu0 %9238
  %9240 = vrot.lane.b32.xlu0 %v9015, 28
  %v9241 = vpop.permute.xlu0 %9240
  %9242 = vrot.lane.b32.xlu0 %v9016, 28
  %v9243 = vpop.permute.xlu0 %9242
  %9244 = vrot.lane.b32.xlu0 %v9017, 28
  %v9245 = vpop.permute.xlu0 %9244
  %9246 = vrot.lane.b32.xlu0 %v9018, 28
  %v9247 = vpop.permute.xlu0 %9246
  %9248 = vrot.lane.b32.xlu0 %v9019, 28
  %v9249 = vpop.permute.xlu0 %9248
  %9250 = vrot.lane.b32.xlu0 %v9020, 28
  %v9251 = vpop.permute.xlu0 %9250
  %9252 = vrot.lane.b32.xlu0 %v9021, 28
  %v9253 = vpop.permute.xlu0 %9252
  %9254 = vrot.lane.b32.xlu0 %v9022, 28
  %v9255 = vpop.permute.xlu0 %9254
  %9256 = vrot.lane.b32.xlu0 %v9023, 28
  %v9257 = vpop.permute.xlu0 %9256
  %9258 = vrot.lane.b32.xlu0 %v9024, 28
  %v9259 = vpop.permute.xlu0 %9258
  %9260 = vrot.lane.b32.xlu0 %v9025, 28
  %v9261 = vpop.permute.xlu0 %9260
  %9262 = vrot.lane.b32.xlu0 %v9026, 28
  %v9263 = vpop.permute.xlu0 %9262
  %9264 = vrot.lane.b32.xlu0 %v9027, 28
  %v9265 = vpop.permute.xlu0 %9264
  %9266 = vrot.lane.b32.xlu0 %v9028, 28
  %v9267 = vpop.permute.xlu0 %9266
  %9268 = vrot.lane.b32.xlu0 %v9029, 28
  %v9269 = vpop.permute.xlu0 %9268
  %9270 = vrot.lane.b32.xlu0 %v9030, 28
  %v9271 = vpop.permute.xlu0 %9270
  %9272 = vrot.lane.b32.xlu0 %v9031, 28
  %v9273 = vpop.permute.xlu0 %9272
  %9274 = vrot.lane.b32.xlu0 %v9032, 28
  %v9275 = vpop.permute.xlu0 %9274
  %9357 = vst.msk [vmem:[#allocation3] sm:$0xff] %vm3597, %v9115
  %9358 = vst.msk [vmem:[#allocation3 + $0x8] sm:$0xff] %vm3597, %v9117
  %9359 = vst.msk [vmem:[#allocation3 + $0x10] sm:$0xff] %vm3597, %v9119
  %9360 = vst.msk [vmem:[#allocation3 + $0x18] sm:$0xff] %vm3597, %v9121
  %9361 = vst.msk [vmem:[#allocation3 + $0x20] sm:$0xff] %vm3597, %v9123
  %9362 = vst.msk [vmem:[#allocation3 + $0x28] sm:$0xff] %vm3597, %v9125
  %9363 = vst.msk [vmem:[#allocation3 + $0x30] sm:$0xff] %vm3597, %v9127
  %9364 = vst.msk [vmem:[#allocation3 + $0x38] sm:$0xff] %vm3597, %v9129
  %9365 = vst.msk [vmem:[#allocation3 + $0x40] sm:$0xff] %vm3597, %v9131
  %9366 = vst.msk [vmem:[#allocation3 + $0x48] sm:$0xff] %vm3597, %v9133
  %9367 = vst.msk [vmem:[#allocation3 + $0x50] sm:$0xff] %vm3597, %v9135
  %9368 = vst.msk [vmem:[#allocation3 + $0x58] sm:$0xff] %vm3597, %v9137
  %9369 = vst.msk [vmem:[#allocation3 + $0x60] sm:$0xff] %vm3597, %v9139
  %9370 = vst.msk [vmem:[#allocation3 + $0x68] sm:$0xff] %vm3597, %v9141
  %9371 = vst.msk [vmem:[#allocation3 + $0x70] sm:$0xff] %vm3597, %v9143
  %9372 = vst.msk [vmem:[#allocation3 + $0x78] sm:$0xff] %vm3597, %v9145
  %9373 = vst.msk [vmem:[#allocation3 + $0x80] sm:$0xff] %vm3597, %v9147
  %9374 = vst.msk [vmem:[#allocation3 + $0x88] sm:$0xff] %vm3597, %v9149
  %9375 = vst.msk [vmem:[#allocation3 + $0x90] sm:$0xff] %vm3597, %v9151
  %9376 = vst.msk [vmem:[#allocation3 + $0x98] sm:$0xff] %vm3597, %v9153
  %9377 = vst.msk [vmem:[#allocation3 + $0xa0] sm:$0xff] %vm3597, %v9155
  %9378 = vst.msk [vmem:[#allocation3 + $0xa8] sm:$0xff] %vm3597, %v9157
  %9379 = vst.msk [vmem:[#allocation3 + $0xb0] sm:$0xff] %vm3597, %v9159
  %9380 = vst.msk [vmem:[#allocation3 + $0xb8] sm:$0xff] %vm3597, %v9161
  %9381 = vst.msk [vmem:[#allocation3 + $0xc0] sm:$0xff] %vm3597, %v9163
  %9382 = vst.msk [vmem:[#allocation3 + $0xc8] sm:$0xff] %vm3597, %v9165
  %9383 = vst.msk [vmem:[#allocation3 + $0xd0] sm:$0xff] %vm3597, %v9167
  %9384 = vst.msk [vmem:[#allocation3 + $0xd8] sm:$0xff] %vm3597, %v9169
  %9385 = vst.msk [vmem:[#allocation3 + $0xe0] sm:$0xff] %vm3597, %v9171
  %9386 = vst.msk [vmem:[#allocation3 + $0xe8] sm:$0xff] %vm3597, %v9173
  %9387 = vst.msk [vmem:[#allocation3 + $0xf0] sm:$0xff] %vm3597, %v9175
  %9388 = vst.msk [vmem:[#allocation3 + $0xf8] sm:$0xff] %vm3597, %v9177
  %9389 = vst.msk [vmem:[#allocation3 + $0x100] sm:$0xff] %vm3597, %v9179
  %9390 = vst.msk [vmem:[#allocation3 + $0x108] sm:$0xff] %vm3597, %v9181
  %9391 = vst.msk [vmem:[#allocation3 + $0x110] sm:$0xff] %vm3597, %v9183
  %9392 = vst.msk [vmem:[#allocation3 + $0x118] sm:$0xff] %vm3597, %v9185
  %9393 = vst.msk [vmem:[#allocation3 + $0x120] sm:$0xff] %vm3597, %v9187
  %9394 = vst.msk [vmem:[#allocation3 + $0x128] sm:$0xff] %vm3597, %v9189
  %9395 = vst.msk [vmem:[#allocation3 + $0x130] sm:$0xff] %vm3597, %v9191
  %9396 = vst.msk [vmem:[#allocation3 + $0x138] sm:$0xff] %vm3597, %v9193
  %9397 = vst.msk [vmem:[#allocation3 + $0x140] sm:$0xff] %vm3597, %v9195
  %9398 = vst.msk [vmem:[#allocation3 + $0x148] sm:$0xff] %vm3597, %v9197
  %9399 = vst.msk [vmem:[#allocation3 + $0x150] sm:$0xff] %vm3597, %v9199
  %9400 = vst.msk [vmem:[#allocation3 + $0x158] sm:$0xff] %vm3597, %v9201
  %9401 = vst.msk [vmem:[#allocation3 + $0x160] sm:$0xff] %vm3597, %v9203
  %9402 = vst.msk [vmem:[#allocation3 + $0x168] sm:$0xff] %vm3597, %v9205
  %9403 = vst.msk [vmem:[#allocation3 + $0x170] sm:$0xff] %vm3597, %v9207
  %9404 = vst.msk [vmem:[#allocation3 + $0x178] sm:$0xff] %vm3597, %v9209
  %9405 = vst.msk [vmem:[#allocation3 + $0x180] sm:$0xff] %vm3597, %v9211
  %9406 = vst.msk [vmem:[#allocation3 + $0x188] sm:$0xff] %vm3597, %v9213
  %9407 = vst.msk [vmem:[#allocation3 + $0x190] sm:$0xff] %vm3597, %v9215
  %9408 = vst.msk [vmem:[#allocation3 + $0x198] sm:$0xff] %vm3597, %v9217
  %9409 = vst.msk [vmem:[#allocation3 + $0x1a0] sm:$0xff] %vm3597, %v9219
  %9410 = vst.msk [vmem:[#allocation3 + $0x1a8] sm:$0xff] %vm3597, %v9221
  %9411 = vst.msk [vmem:[#allocation3 + $0x1b0] sm:$0xff] %vm3597, %v9223
  %9412 = vst.msk [vmem:[#allocation3 + $0x1b8] sm:$0xff] %vm3597, %v9225
  %9413 = vst.msk [vmem:[#allocation3 + $0x1c0] sm:$0xff] %vm3597, %v9227
  %9414 = vst.msk [vmem:[#allocation3 + $0x1c8] sm:$0xff] %vm3597, %v9229
  %9415 = vst.msk [vmem:[#allocation3 + $0x1d0] sm:$0xff] %vm3597, %v9231
  %9416 = vst.msk [vmem:[#allocation3 + $0x1d8] sm:$0xff] %vm3597, %v9233
  %9417 = vst.msk [vmem:[#allocation3 + $0x1e0] sm:$0xff] %vm3597, %v9235
  %9418 = vst.msk [vmem:[#allocation3 + $0x1e8] sm:$0xff] %vm3597, %v9237
  %9419 = vst.msk [vmem:[#allocation3 + $0x1f0] sm:$0xff] %vm3597, %v9239
  %9420 = vst.msk [vmem:[#allocation3 + $0x1f8] sm:$0xff] %vm3597, %v9241
  %9421 = vst.msk [vmem:[#allocation3 + $0x200] sm:$0xff] %vm3597, %v9243
  %9422 = vst.msk [vmem:[#allocation3 + $0x208] sm:$0xff] %vm3597, %v9245
  %9423 = vst.msk [vmem:[#allocation3 + $0x210] sm:$0xff] %vm3597, %v9247
  %9424 = vst.msk [vmem:[#allocation3 + $0x218] sm:$0xff] %vm3597, %v9249
  %9425 = vst.msk [vmem:[#allocation3 + $0x220] sm:$0xff] %vm3597, %v9251
  %9426 = vst.msk [vmem:[#allocation3 + $0x228] sm:$0xff] %vm3597, %v9253
  %9427 = vst.msk [vmem:[#allocation3 + $0x230] sm:$0xff] %vm3597, %v9255
  %9428 = vst.msk [vmem:[#allocation3 + $0x238] sm:$0xff] %vm3597, %v9257
  %9429 = vst.msk [vmem:[#allocation3 + $0x240] sm:$0xff] %vm3597, %v9259
  %9430 = vst.msk [vmem:[#allocation3 + $0x248] sm:$0xff] %vm3597, %v9261
  %9431 = vst.msk [vmem:[#allocation3 + $0x250] sm:$0xff] %vm3597, %v9263
  %9432 = vst.msk [vmem:[#allocation3 + $0x258] sm:$0xff] %vm3597, %v9265
  %9433 = vst.msk [vmem:[#allocation3 + $0x260] sm:$0xff] %vm3597, %v9267
  %9434 = vst.msk [vmem:[#allocation3 + $0x268] sm:$0xff] %vm3597, %v9269
  %9435 = vst.msk [vmem:[#allocation3 + $0x270] sm:$0xff] %vm3597, %v9271
  %9436 = vst.msk [vmem:[#allocation3 + $0x278] sm:$0xff] %vm3597, %v9273
  %9437 = vst.msk [vmem:[#allocation3 + $0x280] sm:$0xff] %vm3597, %v9275
  %v9438 = vld [vmem:[#allocation2 + $0x2b] sm:$0xff]
  %v9439 = vld [vmem:[#allocation2 + $0x33] sm:$0xff]
  %v9440 = vld [vmem:[#allocation2 + $0x3b] sm:$0xff]
  %v9441 = vld [vmem:[#allocation2 + $0x43] sm:$0xff]
  %v9442 = vld [vmem:[#allocation2 + $0x4b] sm:$0xff]
  %v9443 = vld [vmem:[#allocation2 + $0x53] sm:$0xff]
  %v9444 = vld [vmem:[#allocation2 + $0x5b] sm:$0xff]
  %v9445 = vld [vmem:[#allocation2 + $0x63] sm:$0xff]
  %v9446 = vld [vmem:[#allocation2 + $0x6b] sm:$0xff]
  %v9447 = vld [vmem:[#allocation2 + $0x73] sm:$0xff]
  %v9448 = vld [vmem:[#allocation2 + $0x7b] sm:$0xff]
  %v9449 = vld [vmem:[#allocation2 + $0x83] sm:$0xff]
  %v9450 = vld [vmem:[#allocation2 + $0x8b] sm:$0xff]
  %v9451 = vld [vmem:[#allocation2 + $0x93] sm:$0xff]
  %v9452 = vld [vmem:[#allocation2 + $0x9b] sm:$0xff]
  %v9453 = vld [vmem:[#allocation2 + $0xa3] sm:$0xff]
  %v9454 = vld [vmem:[#allocation2 + $0xab] sm:$0xff]
  %v9455 = vld [vmem:[#allocation2 + $0xb3] sm:$0xff]
  %v9456 = vld [vmem:[#allocation2 + $0xbb] sm:$0xff]
  %v9457 = vld [vmem:[#allocation2 + $0xc3] sm:$0xff]
  %v9458 = vld [vmem:[#allocation2 + $0xcb] sm:$0xff]
  %v9459 = vld [vmem:[#allocation2 + $0xd3] sm:$0xff]
  %v9460 = vld [vmem:[#allocation2 + $0xdb] sm:$0xff]
  %v9461 = vld [vmem:[#allocation2 + $0xe3] sm:$0xff]
  %v9462 = vld [vmem:[#allocation2 + $0xeb] sm:$0xff]
  %v9463 = vld [vmem:[#allocation2 + $0xf3] sm:$0xff]
  %v9464 = vld [vmem:[#allocation2 + $0xfb] sm:$0xff]
  %v9465 = vld [vmem:[#allocation2 + $0x103] sm:$0xff]
  %v9466 = vld [vmem:[#allocation2 + $0x10b] sm:$0xff]
  %v9467 = vld [vmem:[#allocation2 + $0x113] sm:$0xff]
  %v9468 = vld [vmem:[#allocation2 + $0x11b] sm:$0xff]
  %v9469 = vld [vmem:[#allocation2 + $0x123] sm:$0xff]
  %v9470 = vld [vmem:[#allocation2 + $0x12b] sm:$0xff]
  %v9471 = vld [vmem:[#allocation2 + $0x133] sm:$0xff]
  %v9472 = vld [vmem:[#allocation2 + $0x13b] sm:$0xff]
  %v9473 = vld [vmem:[#allocation2 + $0x143] sm:$0xff]
  %v9474 = vld [vmem:[#allocation2 + $0x14b] sm:$0xff]
  %v9475 = vld [vmem:[#allocation2 + $0x153] sm:$0xff]
  %v9476 = vld [vmem:[#allocation2 + $0x15b] sm:$0xff]
  %v9477 = vld [vmem:[#allocation2 + $0x163] sm:$0xff]
  %v9478 = vld [vmem:[#allocation2 + $0x16b] sm:$0xff]
  %v9479 = vld [vmem:[#allocation2 + $0x173] sm:$0xff]
  %v9480 = vld [vmem:[#allocation2 + $0x17b] sm:$0xff]
  %v9481 = vld [vmem:[#allocation2 + $0x183] sm:$0xff]
  %v9482 = vld [vmem:[#allocation2 + $0x18b] sm:$0xff]
  %v9483 = vld [vmem:[#allocation2 + $0x193] sm:$0xff]
  %v9484 = vld [vmem:[#allocation2 + $0x19b] sm:$0xff]
  %v9485 = vld [vmem:[#allocation2 + $0x1a3] sm:$0xff]
  %v9486 = vld [vmem:[#allocation2 + $0x1ab] sm:$0xff]
  %v9487 = vld [vmem:[#allocation2 + $0x1b3] sm:$0xff]
  %v9488 = vld [vmem:[#allocation2 + $0x1bb] sm:$0xff]
  %v9489 = vld [vmem:[#allocation2 + $0x1c3] sm:$0xff]
  %v9490 = vld [vmem:[#allocation2 + $0x1cb] sm:$0xff]
  %v9491 = vld [vmem:[#allocation2 + $0x1d3] sm:$0xff]
  %v9492 = vld [vmem:[#allocation2 + $0x1db] sm:$0xff]
  %v9493 = vld [vmem:[#allocation2 + $0x1e3] sm:$0xff]
  %v9494 = vld [vmem:[#allocation2 + $0x1eb] sm:$0xff]
  %v9495 = vld [vmem:[#allocation2 + $0x1f3] sm:$0xff]
  %v9496 = vld [vmem:[#allocation2 + $0x1fb] sm:$0xff]
  %v9497 = vld [vmem:[#allocation2 + $0x203] sm:$0xff]
  %v9498 = vld [vmem:[#allocation2 + $0x20b] sm:$0xff]
  %v9499 = vld [vmem:[#allocation2 + $0x213] sm:$0xff]
  %v9500 = vld [vmem:[#allocation2 + $0x21b] sm:$0xff]
  %v9501 = vld [vmem:[#allocation2 + $0x223] sm:$0xff]
  %v9502 = vld [vmem:[#allocation2 + $0x22b] sm:$0xff]
  %v9503 = vld [vmem:[#allocation2 + $0x233] sm:$0xff]
  %v9504 = vld [vmem:[#allocation2 + $0x23b] sm:$0xff]
  %v9505 = vld [vmem:[#allocation2 + $0x243] sm:$0xff]
  %v9506 = vld [vmem:[#allocation2 + $0x24b] sm:$0xff]
  %v9507 = vld [vmem:[#allocation2 + $0x253] sm:$0xff]
  %v9508 = vld [vmem:[#allocation2 + $0x25b] sm:$0xff]
  %v9509 = vld [vmem:[#allocation2 + $0x263] sm:$0xff]
  %v9510 = vld [vmem:[#allocation2 + $0x26b] sm:$0xff]
  %v9511 = vld [vmem:[#allocation2 + $0x273] sm:$0xff]
  %v9512 = vld [vmem:[#allocation2 + $0x27b] sm:$0xff]
  %v9513 = vld [vmem:[#allocation2 + $0x283] sm:$0xff]
  %v9514 = vld [vmem:[#allocation2 + $0x28b] sm:$0xff]
  %v9515 = vld [vmem:[#allocation2 + $0x293] sm:$0xff]
  %v9516 = vld [vmem:[#allocation2 + $0x29b] sm:$0xff]
  %v9517 = vld [vmem:[#allocation2 + $0x2a3] sm:$0xff]
  %v9518 = vld [vmem:[#allocation2 + $0x2ab] sm:$0xff]
  %9600 = vrot.lane.b32.xlu0 %v9438, 32
  %v9601 = vpop.permute.xlu0 %9600
  %9602 = vrot.lane.b32.xlu0 %v9439, 32
  %v9603 = vpop.permute.xlu0 %9602
  %9604 = vrot.lane.b32.xlu0 %v9440, 32
  %v9605 = vpop.permute.xlu0 %9604
  %9606 = vrot.lane.b32.xlu0 %v9441, 32
  %v9607 = vpop.permute.xlu0 %9606
  %9608 = vrot.lane.b32.xlu0 %v9442, 32
  %v9609 = vpop.permute.xlu0 %9608
  %9610 = vrot.lane.b32.xlu0 %v9443, 32
  %v9611 = vpop.permute.xlu0 %9610
  %9612 = vrot.lane.b32.xlu0 %v9444, 32
  %v9613 = vpop.permute.xlu0 %9612
  %9614 = vrot.lane.b32.xlu0 %v9445, 32
  %v9615 = vpop.permute.xlu0 %9614
  %9616 = vrot.lane.b32.xlu0 %v9446, 32
  %v9617 = vpop.permute.xlu0 %9616
  %9618 = vrot.lane.b32.xlu0 %v9447, 32
  %v9619 = vpop.permute.xlu0 %9618
  %9620 = vrot.lane.b32.xlu0 %v9448, 32
  %v9621 = vpop.permute.xlu0 %9620
  %9622 = vrot.lane.b32.xlu0 %v9449, 32
  %v9623 = vpop.permute.xlu0 %9622
  %9624 = vrot.lane.b32.xlu0 %v9450, 32
  %v9625 = vpop.permute.xlu0 %9624
  %9626 = vrot.lane.b32.xlu0 %v9451, 32
  %v9627 = vpop.permute.xlu0 %9626
  %9628 = vrot.lane.b32.xlu0 %v9452, 32
  %v9629 = vpop.permute.xlu0 %9628
  %9630 = vrot.lane.b32.xlu0 %v9453, 32
  %v9631 = vpop.permute.xlu0 %9630
  %9632 = vrot.lane.b32.xlu0 %v9454, 32
  %v9633 = vpop.permute.xlu0 %9632
  %9634 = vrot.lane.b32.xlu0 %v9455, 32
  %v9635 = vpop.permute.xlu0 %9634
  %9636 = vrot.lane.b32.xlu0 %v9456, 32
  %v9637 = vpop.permute.xlu0 %9636
  %9638 = vrot.lane.b32.xlu0 %v9457, 32
  %v9639 = vpop.permute.xlu0 %9638
  %9640 = vrot.lane.b32.xlu0 %v9458, 32
  %v9641 = vpop.permute.xlu0 %9640
  %9642 = vrot.lane.b32.xlu0 %v9459, 32
  %v9643 = vpop.permute.xlu0 %9642
  %9644 = vrot.lane.b32.xlu0 %v9460, 32
  %v9645 = vpop.permute.xlu0 %9644
  %9646 = vrot.lane.b32.xlu0 %v9461, 32
  %v9647 = vpop.permute.xlu0 %9646
  %9648 = vrot.lane.b32.xlu0 %v9462, 32
  %v9649 = vpop.permute.xlu0 %9648
  %9650 = vrot.lane.b32.xlu0 %v9463, 32
  %v9651 = vpop.permute.xlu0 %9650
  %9652 = vrot.lane.b32.xlu0 %v9464, 32
  %v9653 = vpop.permute.xlu0 %9652
  %9654 = vrot.lane.b32.xlu0 %v9465, 32
  %v9655 = vpop.permute.xlu0 %9654
  %9656 = vrot.lane.b32.xlu0 %v9466, 32
  %v9657 = vpop.permute.xlu0 %9656
  %9658 = vrot.lane.b32.xlu0 %v9467, 32
  %v9659 = vpop.permute.xlu0 %9658
  %9660 = vrot.lane.b32.xlu0 %v9468, 32
  %v9661 = vpop.permute.xlu0 %9660
  %9662 = vrot.lane.b32.xlu0 %v9469, 32
  %v9663 = vpop.permute.xlu0 %9662
  %9664 = vrot.lane.b32.xlu0 %v9470, 32
  %v9665 = vpop.permute.xlu0 %9664
  %9666 = vrot.lane.b32.xlu0 %v9471, 32
  %v9667 = vpop.permute.xlu0 %9666
  %9668 = vrot.lane.b32.xlu0 %v9472, 32
  %v9669 = vpop.permute.xlu0 %9668
  %9670 = vrot.lane.b32.xlu0 %v9473, 32
  %v9671 = vpop.permute.xlu0 %9670
  %9672 = vrot.lane.b32.xlu0 %v9474, 32
  %v9673 = vpop.permute.xlu0 %9672
  %9674 = vrot.lane.b32.xlu0 %v9475, 32
  %v9675 = vpop.permute.xlu0 %9674
  %9676 = vrot.lane.b32.xlu0 %v9476, 32
  %v9677 = vpop.permute.xlu0 %9676
  %9678 = vrot.lane.b32.xlu0 %v9477, 32
  %v9679 = vpop.permute.xlu0 %9678
  %9680 = vrot.lane.b32.xlu0 %v9478, 32
  %v9681 = vpop.permute.xlu0 %9680
  %9682 = vrot.lane.b32.xlu0 %v9479, 32
  %v9683 = vpop.permute.xlu0 %9682
  %9684 = vrot.lane.b32.xlu0 %v9480, 32
  %v9685 = vpop.permute.xlu0 %9684
  %9686 = vrot.lane.b32.xlu0 %v9481, 32
  %v9687 = vpop.permute.xlu0 %9686
  %9688 = vrot.lane.b32.xlu0 %v9482, 32
  %v9689 = vpop.permute.xlu0 %9688
  %9690 = vrot.lane.b32.xlu0 %v9483, 32
  %v9691 = vpop.permute.xlu0 %9690
  %9692 = vrot.lane.b32.xlu0 %v9484, 32
  %v9693 = vpop.permute.xlu0 %9692
  %9694 = vrot.lane.b32.xlu0 %v9485, 32
  %v9695 = vpop.permute.xlu0 %9694
  %9696 = vrot.lane.b32.xlu0 %v9486, 32
  %v9697 = vpop.permute.xlu0 %9696
  %9698 = vrot.lane.b32.xlu0 %v9487, 32
  %v9699 = vpop.permute.xlu0 %9698
  %9700 = vrot.lane.b32.xlu0 %v9488, 32
  %v9701 = vpop.permute.xlu0 %9700
  %9702 = vrot.lane.b32.xlu0 %v9489, 32
  %v9703 = vpop.permute.xlu0 %9702
  %9704 = vrot.lane.b32.xlu0 %v9490, 32
  %v9705 = vpop.permute.xlu0 %9704
  %9706 = vrot.lane.b32.xlu0 %v9491, 32
  %v9707 = vpop.permute.xlu0 %9706
  %9708 = vrot.lane.b32.xlu0 %v9492, 32
  %v9709 = vpop.permute.xlu0 %9708
  %9710 = vrot.lane.b32.xlu0 %v9493, 32
  %v9711 = vpop.permute.xlu0 %9710
  %9712 = vrot.lane.b32.xlu0 %v9494, 32
  %v9713 = vpop.permute.xlu0 %9712
  %9714 = vrot.lane.b32.xlu0 %v9495, 32
  %v9715 = vpop.permute.xlu0 %9714
  %9716 = vrot.lane.b32.xlu0 %v9496, 32
  %v9717 = vpop.permute.xlu0 %9716
  %9718 = vrot.lane.b32.xlu0 %v9497, 32
  %v9719 = vpop.permute.xlu0 %9718
  %9720 = vrot.lane.b32.xlu0 %v9498, 32
  %v9721 = vpop.permute.xlu0 %9720
  %9722 = vrot.lane.b32.xlu0 %v9499, 32
  %v9723 = vpop.permute.xlu0 %9722
  %9724 = vrot.lane.b32.xlu0 %v9500, 32
  %v9725 = vpop.permute.xlu0 %9724
  %9726 = vrot.lane.b32.xlu0 %v9501, 32
  %v9727 = vpop.permute.xlu0 %9726
  %9728 = vrot.lane.b32.xlu0 %v9502, 32
  %v9729 = vpop.permute.xlu0 %9728
  %9730 = vrot.lane.b32.xlu0 %v9503, 32
  %v9731 = vpop.permute.xlu0 %9730
  %9732 = vrot.lane.b32.xlu0 %v9504, 32
  %v9733 = vpop.permute.xlu0 %9732
  %9734 = vrot.lane.b32.xlu0 %v9505, 32
  %v9735 = vpop.permute.xlu0 %9734
  %9736 = vrot.lane.b32.xlu0 %v9506, 32
  %v9737 = vpop.permute.xlu0 %9736
  %9738 = vrot.lane.b32.xlu0 %v9507, 32
  %v9739 = vpop.permute.xlu0 %9738
  %9740 = vrot.lane.b32.xlu0 %v9508, 32
  %v9741 = vpop.permute.xlu0 %9740
  %9742 = vrot.lane.b32.xlu0 %v9509, 32
  %v9743 = vpop.permute.xlu0 %9742
  %9744 = vrot.lane.b32.xlu0 %v9510, 32
  %v9745 = vpop.permute.xlu0 %9744
  %9746 = vrot.lane.b32.xlu0 %v9511, 32
  %v9747 = vpop.permute.xlu0 %9746
  %9748 = vrot.lane.b32.xlu0 %v9512, 32
  %v9749 = vpop.permute.xlu0 %9748
  %9750 = vrot.lane.b32.xlu0 %v9513, 32
  %v9751 = vpop.permute.xlu0 %9750
  %9752 = vrot.lane.b32.xlu0 %v9514, 32
  %v9753 = vpop.permute.xlu0 %9752
  %9754 = vrot.lane.b32.xlu0 %v9515, 32
  %v9755 = vpop.permute.xlu0 %9754
  %9756 = vrot.lane.b32.xlu0 %v9516, 32
  %v9757 = vpop.permute.xlu0 %9756
  %9758 = vrot.lane.b32.xlu0 %v9517, 32
  %v9759 = vpop.permute.xlu0 %9758
  %9760 = vrot.lane.b32.xlu0 %v9518, 32
  %v9761 = vpop.permute.xlu0 %9760
  %9843 = vst.msk [vmem:[#allocation3] sm:$0xff] %vm4084, %v9601
  %9844 = vst.msk [vmem:[#allocation3 + $0x8] sm:$0xff] %vm4084, %v9603
  %9845 = vst.msk [vmem:[#allocation3 + $0x10] sm:$0xff] %vm4084, %v9605
  %9846 = vst.msk [vmem:[#allocation3 + $0x18] sm:$0xff] %vm4084, %v9607
  %9847 = vst.msk [vmem:[#allocation3 + $0x20] sm:$0xff] %vm4084, %v9609
  %9848 = vst.msk [vmem:[#allocation3 + $0x28] sm:$0xff] %vm4084, %v9611
  %9849 = vst.msk [vmem:[#allocation3 + $0x30] sm:$0xff] %vm4084, %v9613
  %9850 = vst.msk [vmem:[#allocation3 + $0x38] sm:$0xff] %vm4084, %v9615
  %9851 = vst.msk [vmem:[#allocation3 + $0x40] sm:$0xff] %vm4084, %v9617
  %9852 = vst.msk [vmem:[#allocation3 + $0x48] sm:$0xff] %vm4084, %v9619
  %9853 = vst.msk [vmem:[#allocation3 + $0x50] sm:$0xff] %vm4084, %v9621
  %9854 = vst.msk [vmem:[#allocation3 + $0x58] sm:$0xff] %vm4084, %v9623
  %9855 = vst.msk [vmem:[#allocation3 + $0x60] sm:$0xff] %vm4084, %v9625
  %9856 = vst.msk [vmem:[#allocation3 + $0x68] sm:$0xff] %vm4084, %v9627
  %9857 = vst.msk [vmem:[#allocation3 + $0x70] sm:$0xff] %vm4084, %v9629
  %9858 = vst.msk [vmem:[#allocation3 + $0x78] sm:$0xff] %vm4084, %v9631
  %9859 = vst.msk [vmem:[#allocation3 + $0x80] sm:$0xff] %vm4084, %v9633
  %9860 = vst.msk [vmem:[#allocation3 + $0x88] sm:$0xff] %vm4084, %v9635
  %9861 = vst.msk [vmem:[#allocation3 + $0x90] sm:$0xff] %vm4084, %v9637
  %9862 = vst.msk [vmem:[#allocation3 + $0x98] sm:$0xff] %vm4084, %v9639
  %9863 = vst.msk [vmem:[#allocation3 + $0xa0] sm:$0xff] %vm4084, %v9641
  %9864 = vst.msk [vmem:[#allocation3 + $0xa8] sm:$0xff] %vm4084, %v9643
  %9865 = vst.msk [vmem:[#allocation3 + $0xb0] sm:$0xff] %vm4084, %v9645
  %9866 = vst.msk [vmem:[#allocation3 + $0xb8] sm:$0xff] %vm4084, %v9647
  %9867 = vst.msk [vmem:[#allocation3 + $0xc0] sm:$0xff] %vm4084, %v9649
  %9868 = vst.msk [vmem:[#allocation3 + $0xc8] sm:$0xff] %vm4084, %v9651
  %9869 = vst.msk [vmem:[#allocation3 + $0xd0] sm:$0xff] %vm4084, %v9653
  %9870 = vst.msk [vmem:[#allocation3 + $0xd8] sm:$0xff] %vm4084, %v9655
  %9871 = vst.msk [vmem:[#allocation3 + $0xe0] sm:$0xff] %vm4084, %v9657
  %9872 = vst.msk [vmem:[#allocation3 + $0xe8] sm:$0xff] %vm4084, %v9659
  %9873 = vst.msk [vmem:[#allocation3 + $0xf0] sm:$0xff] %vm4084, %v9661
  %9874 = vst.msk [vmem:[#allocation3 + $0xf8] sm:$0xff] %vm4084, %v9663
  %9875 = vst.msk [vmem:[#allocation3 + $0x100] sm:$0xff] %vm4084, %v9665
  %9876 = vst.msk [vmem:[#allocation3 + $0x108] sm:$0xff] %vm4084, %v9667
  %9877 = vst.msk [vmem:[#allocation3 + $0x110] sm:$0xff] %vm4084, %v9669
  %9878 = vst.msk [vmem:[#allocation3 + $0x118] sm:$0xff] %vm4084, %v9671
  %9879 = vst.msk [vmem:[#allocation3 + $0x120] sm:$0xff] %vm4084, %v9673
  %9880 = vst.msk [vmem:[#allocation3 + $0x128] sm:$0xff] %vm4084, %v9675
  %9881 = vst.msk [vmem:[#allocation3 + $0x130] sm:$0xff] %vm4084, %v9677
  %9882 = vst.msk [vmem:[#allocation3 + $0x138] sm:$0xff] %vm4084, %v9679
  %9883 = vst.msk [vmem:[#allocation3 + $0x140] sm:$0xff] %vm4084, %v9681
  %9884 = vst.msk [vmem:[#allocation3 + $0x148] sm:$0xff] %vm4084, %v9683
  %9885 = vst.msk [vmem:[#allocation3 + $0x150] sm:$0xff] %vm4084, %v9685
  %9886 = vst.msk [vmem:[#allocation3 + $0x158] sm:$0xff] %vm4084, %v9687
  %9887 = vst.msk [vmem:[#allocation3 + $0x160] sm:$0xff] %vm4084, %v9689
  %9888 = vst.msk [vmem:[#allocation3 + $0x168] sm:$0xff] %vm4084, %v9691
  %9889 = vst.msk [vmem:[#allocation3 + $0x170] sm:$0xff] %vm4084, %v9693
  %9890 = vst.msk [vmem:[#allocation3 + $0x178] sm:$0xff] %vm4084, %v9695
  %9891 = vst.msk [vmem:[#allocation3 + $0x180] sm:$0xff] %vm4084, %v9697
  %9892 = vst.msk [vmem:[#allocation3 + $0x188] sm:$0xff] %vm4084, %v9699
  %9893 = vst.msk [vmem:[#allocation3 + $0x190] sm:$0xff] %vm4084, %v9701
  %9894 = vst.msk [vmem:[#allocation3 + $0x198] sm:$0xff] %vm4084, %v9703
  %9895 = vst.msk [vmem:[#allocation3 + $0x1a0] sm:$0xff] %vm4084, %v9705
  %9896 = vst.msk [vmem:[#allocation3 + $0x1a8] sm:$0xff] %vm4084, %v9707
  %9897 = vst.msk [vmem:[#allocation3 + $0x1b0] sm:$0xff] %vm4084, %v9709
  %9898 = vst.msk [vmem:[#allocation3 + $0x1b8] sm:$0xff] %vm4084, %v9711
  %9899 = vst.msk [vmem:[#allocation3 + $0x1c0] sm:$0xff] %vm4084, %v9713
  %9900 = vst.msk [vmem:[#allocation3 + $0x1c8] sm:$0xff] %vm4084, %v9715
  %9901 = vst.msk [vmem:[#allocation3 + $0x1d0] sm:$0xff] %vm4084, %v9717
  %9902 = vst.msk [vmem:[#allocation3 + $0x1d8] sm:$0xff] %vm4084, %v9719
  %9903 = vst.msk [vmem:[#allocation3 + $0x1e0] sm:$0xff] %vm4084, %v9721
  %9904 = vst.msk [vmem:[#allocation3 + $0x1e8] sm:$0xff] %vm4084, %v9723
  %9905 = vst.msk [vmem:[#allocation3 + $0x1f0] sm:$0xff] %vm4084, %v9725
  %9906 = vst.msk [vmem:[#allocation3 + $0x1f8] sm:$0xff] %vm4084, %v9727
  %9907 = vst.msk [vmem:[#allocation3 + $0x200] sm:$0xff] %vm4084, %v9729
  %9908 = vst.msk [vmem:[#allocation3 + $0x208] sm:$0xff] %vm4084, %v9731
  %9909 = vst.msk [vmem:[#allocation3 + $0x210] sm:$0xff] %vm4084, %v9733
  %9910 = vst.msk [vmem:[#allocation3 + $0x218] sm:$0xff] %vm4084, %v9735
  %9911 = vst.msk [vmem:[#allocation3 + $0x220] sm:$0xff] %vm4084, %v9737
  %9912 = vst.msk [vmem:[#allocation3 + $0x228] sm:$0xff] %vm4084, %v9739
  %9913 = vst.msk [vmem:[#allocation3 + $0x230] sm:$0xff] %vm4084, %v9741
  %9914 = vst.msk [vmem:[#allocation3 + $0x238] sm:$0xff] %vm4084, %v9743
  %9915 = vst.msk [vmem:[#allocation3 + $0x240] sm:$0xff] %vm4084, %v9745
  %9916 = vst.msk [vmem:[#allocation3 + $0x248] sm:$0xff] %vm4084, %v9747
  %9917 = vst.msk [vmem:[#allocation3 + $0x250] sm:$0xff] %vm4084, %v9749
  %9918 = vst.msk [vmem:[#allocation3 + $0x258] sm:$0xff] %vm4084, %v9751
  %9919 = vst.msk [vmem:[#allocation3 + $0x260] sm:$0xff] %vm4084, %v9753
  %9920 = vst.msk [vmem:[#allocation3 + $0x268] sm:$0xff] %vm4084, %v9755
  %9921 = vst.msk [vmem:[#allocation3 + $0x270] sm:$0xff] %vm4084, %v9757
  %9922 = vst.msk [vmem:[#allocation3 + $0x278] sm:$0xff] %vm4084, %v9759
  %9923 = vst.msk [vmem:[#allocation3 + $0x280] sm:$0xff] %vm4084, %v9761
  %v9924 = vld [vmem:[#allocation3] sm:$0xff]
  %v9925 = vld [vmem:[#allocation3 + $0x8] sm:$0xff]
  %v9926 = vld [vmem:[#allocation3 + $0x10] sm:$0xff]
  %v9927 = vld [vmem:[#allocation3 + $0x18] sm:$0xff]
  %v9928 = vld [vmem:[#allocation3 + $0x20] sm:$0xff]
  %v9929 = vld [vmem:[#allocation3 + $0x28] sm:$0xff]
  %v9930 = vld [vmem:[#allocation3 + $0x30] sm:$0xff]
  %v9931 = vld [vmem:[#allocation3 + $0x38] sm:$0xff]
  %v9932 = vld [vmem:[#allocation3 + $0x40] sm:$0xff]
  %v9933 = vld [vmem:[#allocation3 + $0x48] sm:$0xff]
  %v9934 = vld [vmem:[#allocation3 + $0x50] sm:$0xff]
  %v9935 = vld [vmem:[#allocation3 + $0x58] sm:$0xff]
  %v9936 = vld [vmem:[#allocation3 + $0x60] sm:$0xff]
  %v9937 = vld [vmem:[#allocation3 + $0x68] sm:$0xff]
  %v9938 = vld [vmem:[#allocation3 + $0x70] sm:$0xff]
  %v9939 = vld [vmem:[#allocation3 + $0x78] sm:$0xff]
  %v9940 = vld [vmem:[#allocation3 + $0x80] sm:$0xff]
  %v9941 = vld [vmem:[#allocation3 + $0x88] sm:$0xff]
  %v9942 = vld [vmem:[#allocation3 + $0x90] sm:$0xff]
  %v9943 = vld [vmem:[#allocation3 + $0x98] sm:$0xff]
  %v9944 = vld [vmem:[#allocation3 + $0xa0] sm:$0xff]
  %v9945 = vld [vmem:[#allocation3 + $0xa8] sm:$0xff]
  %v9946 = vld [vmem:[#allocation3 + $0xb0] sm:$0xff]
  %v9947 = vld [vmem:[#allocation3 + $0xb8] sm:$0xff]
  %v9948 = vld [vmem:[#allocation3 + $0xc0] sm:$0xff]
  %v9949 = vld [vmem:[#allocation3 + $0xc8] sm:$0xff]
  %v9950 = vld [vmem:[#allocation3 + $0xd0] sm:$0xff]
  %v9951 = vld [vmem:[#allocation3 + $0xd8] sm:$0xff]
  %v9952 = vld [vmem:[#allocation3 + $0xe0] sm:$0xff]
  %v9953 = vld [vmem:[#allocation3 + $0xe8] sm:$0xff]
  %v9954 = vld [vmem:[#allocation3 + $0xf0] sm:$0xff]
  %v9955 = vld [vmem:[#allocation3 + $0xf8] sm:$0xff]
  %v9956 = vld [vmem:[#allocation3 + $0x100] sm:$0xff]
  %v9957 = vld [vmem:[#allocation3 + $0x108] sm:$0xff]
  %v9958 = vld [vmem:[#allocation3 + $0x110] sm:$0xff]
  %v9959 = vld [vmem:[#allocation3 + $0x118] sm:$0xff]
  %v9960 = vld [vmem:[#allocation3 + $0x120] sm:$0xff]
  %v9961 = vld [vmem:[#allocation3 + $0x128] sm:$0xff]
  %v9962 = vld [vmem:[#allocation3 + $0x130] sm:$0xff]
  %v9963 = vld [vmem:[#allocation3 + $0x138] sm:$0xff]
  %v9964 = vld [vmem:[#allocation3 + $0x140] sm:$0xff]
  %v9965 = vld [vmem:[#allocation3 + $0x148] sm:$0xff]
  %v9966 = vld [vmem:[#allocation3 + $0x150] sm:$0xff]
  %v9967 = vld [vmem:[#allocation3 + $0x158] sm:$0xff]
  %v9968 = vld [vmem:[#allocation3 + $0x160] sm:$0xff]
  %v9969 = vld [vmem:[#allocation3 + $0x168] sm:$0xff]
  %v9970 = vld [vmem:[#allocation3 + $0x170] sm:$0xff]
  %v9971 = vld [vmem:[#allocation3 + $0x178] sm:$0xff]
  %v9972 = vld [vmem:[#allocation3 + $0x180] sm:$0xff]
  %v9973 = vld [vmem:[#allocation3 + $0x188] sm:$0xff]
  %v9974 = vld [vmem:[#allocation3 + $0x190] sm:$0xff]
  %v9975 = vld [vmem:[#allocation3 + $0x198] sm:$0xff]
  %v9976 = vld [vmem:[#allocation3 + $0x1a0] sm:$0xff]
  %v9977 = vld [vmem:[#allocation3 + $0x1a8] sm:$0xff]
  %v9978 = vld [vmem:[#allocation3 + $0x1b0] sm:$0xff]
  %v9979 = vld [vmem:[#allocation3 + $0x1b8] sm:$0xff]
  %v9980 = vld [vmem:[#allocation3 + $0x1c0] sm:$0xff]
  %v9981 = vld [vmem:[#allocation3 + $0x1c8] sm:$0xff]
  %v9982 = vld [vmem:[#allocation3 + $0x1d0] sm:$0xff]
  %v9983 = vld [vmem:[#allocation3 + $0x1d8] sm:$0xff]
  %v9984 = vld [vmem:[#allocation3 + $0x1e0] sm:$0xff]
  %v9985 = vld [vmem:[#allocation3 + $0x1e8] sm:$0xff]
  %v9986 = vld [vmem:[#allocation3 + $0x1f0] sm:$0xff]
  %v9987 = vld [vmem:[#allocation3 + $0x1f8] sm:$0xff]
  %v9988 = vld [vmem:[#allocation3 + $0x200] sm:$0xff]
  %v9989 = vld [vmem:[#allocation3 + $0x208] sm:$0xff]
  %v9990 = vld [vmem:[#allocation3 + $0x210] sm:$0xff]
  %v9991 = vld [vmem:[#allocation3 + $0x218] sm:$0xff]
  %v9992 = vld [vmem:[#allocation3 + $0x220] sm:$0xff]
  %v9993 = vld [vmem:[#allocation3 + $0x228] sm:$0xff]
  %v9994 = vld [vmem:[#allocation3 + $0x230] sm:$0xff]
  %v9995 = vld [vmem:[#allocation3 + $0x238] sm:$0xff]
  %v9996 = vld [vmem:[#allocation3 + $0x240] sm:$0xff]
  %v9997 = vld [vmem:[#allocation3 + $0x248] sm:$0xff]
  %v9998 = vld [vmem:[#allocation3 + $0x250] sm:$0xff]
  %v9999 = vld [vmem:[#allocation3 + $0x258] sm:$0xff]
  %v10000 = vld [vmem:[#allocation3 + $0x260] sm:$0xff]
  %v10001 = vld [vmem:[#allocation3 + $0x268] sm:$0xff]
  %v10002 = vld [vmem:[#allocation3 + $0x270] sm:$0xff]
  %v10003 = vld [vmem:[#allocation3 + $0x278] sm:$0xff]
  %v10004 = vld [vmem:[#allocation3 + $0x280] sm:$0xff]
  %v10005 = vld [vmem:[%s3] sm:$0xff]
  %v10006 = vld [vmem:[%s3 + $0x8] sm:$0xff]
  %v10007 = vld [vmem:[%s3 + $0x10] sm:$0xff]
  %v10008 = vld [vmem:[%s3 + $0x18] sm:$0xff]
  %v10009 = vld [vmem:[%s3 + $0x20] sm:$0xf]
  %v10010 = vld [vmem:[%s4] sm:$0x1]
  %v10012 = vlaneseq
  %v10013 = vshrl.u32 %v10012, 7
  %v10014 = vsub.s32 0, %v10013
  %v10015 = vrot.slane %v10010, %v10014
  %v10018 = vsel %vm4259, %v9924, 0
  %v10021 = vsel %vm4259, %v9925, 0
  %v10024 = vsel %vm4259, %v9926, 0
  %v10027 = vsel %vm4259, %v9927, 0
  %v10030 = vsel %vm4259, %v9928, 0
  %v10033 = vsel %vm4259, %v9929, 0
  %v10036 = vsel %vm4259, %v9930, 0
  %v10039 = vsel %vm4259, %v9931, 0
  %v10042 = vsel %vm4259, %v9932, 0
  %v10045 = vsel %vm4259, %v9933, 0
  %v10048 = vsel %vm4259, %v9934, 0
  %v10051 = vsel %vm4259, %v9935, 0
  %v10054 = vsel %vm4259, %v9936, 0
  %v10057 = vsel %vm4259, %v9937, 0
  %v10060 = vsel %vm4259, %v9938, 0
  %v10063 = vsel %vm4259, %v9939, 0
  %v10066 = vsel %vm4259, %v9940, 0
  %v10069 = vsel %vm4259, %v9941, 0
  %v10072 = vsel %vm4259, %v9942, 0
  %v10075 = vsel %vm4259, %v9943, 0
  %v10078 = vsel %vm4259, %v9944, 0
  %v10081 = vsel %vm4259, %v9945, 0
  %v10084 = vsel %vm4259, %v9946, 0
  %v10087 = vsel %vm4259, %v9947, 0
  %v10090 = vsel %vm4259, %v9948, 0
  %v10093 = vsel %vm4259, %v9949, 0
  %v10096 = vsel %vm4259, %v9950, 0
  %v10099 = vsel %vm4259, %v9951, 0
  %v10102 = vsel %vm4259, %v9952, 0
  %v10105 = vsel %vm4259, %v9953, 0
  %v10108 = vsel %vm4259, %v9954, 0
  %v10111 = vsel %vm4259, %v9955, 0
  %v10114 = vsel %vm4259, %v9956, 0
  %v10117 = vsel %vm4259, %v9957, 0
  %v10120 = vsel %vm4259, %v9958, 0
  %v10123 = vsel %vm4259, %v9959, 0
  %v10126 = vsel %vm4259, %v9960, 0
  %v10129 = vsel %vm4259, %v9961, 0
  %v10132 = vsel %vm4259, %v9962, 0
  %v10135 = vsel %vm4259, %v9963, 0
  %v10138 = vsel %vm4259, %v9964, 0
  %v10141 = vsel %vm4259, %v9965, 0
  %v10144 = vsel %vm4259, %v9966, 0
  %v10147 = vsel %vm4259, %v9967, 0
  %v10150 = vsel %vm4259, %v9968, 0
  %v10153 = vsel %vm4259, %v9969, 0
  %v10156 = vsel %vm4259, %v9970, 0
  %v10159 = vsel %vm4259, %v9971, 0
  %v10162 = vsel %vm4259, %v9972, 0
  %v10165 = vsel %vm4259, %v9973, 0
  %v10168 = vsel %vm4259, %v9974, 0
  %v10171 = vsel %vm4259, %v9975, 0
  %v10174 = vsel %vm4259, %v9976, 0
  %v10177 = vsel %vm4259, %v9977, 0
  %v10180 = vsel %vm4259, %v9978, 0
  %v10183 = vsel %vm4259, %v9979, 0
  %v10186 = vsel %vm4259, %v9980, 0
  %v10189 = vsel %vm4259, %v9981, 0
  %v10192 = vsel %vm4259, %v9982, 0
  %v10195 = vsel %vm4259, %v9983, 0
  %v10198 = vsel %vm4259, %v9984, 0
  %v10201 = vsel %vm4259, %v9985, 0
  %v10204 = vsel %vm4259, %v9986, 0
  %v10207 = vsel %vm4259, %v9987, 0
  %v10210 = vsel %vm4259, %v9988, 0
  %v10213 = vsel %vm4259, %v9989, 0
  %v10216 = vsel %vm4259, %v9990, 0
  %v10219 = vsel %vm4259, %v9991, 0
  %v10222 = vsel %vm4259, %v9992, 0
  %v10225 = vsel %vm4259, %v9993, 0
  %v10228 = vsel %vm4259, %v9994, 0
  %v10231 = vsel %vm4259, %v9995, 0
  %v10234 = vsel %vm4259, %v9996, 0
  %v10237 = vsel %vm4259, %v9997, 0
  %v10240 = vsel %vm4259, %v9998, 0
  %v10243 = vsel %vm4259, %v9999, 0
  %v10246 = vsel %vm4259, %v10000, 0
  %v10249 = vsel %vm4259, %v10001, 0
  %v10252 = vsel %vm4259, %v10002, 0
  %v10255 = vsel %vm4259, %v10003, 0
  %v10258 = vsel %vm4259, %v10004, 0
  %v10261 = vsel %vm4503, %v10009, 0
  %10263 = vmatprep.subr.mxu0 0.0
  %10264 = vmatpush1.msra.mxu0 %v10005
  %10265 = vmatprep.subr.mxu0 0.0
  %10266 = vmatpush1.msra.mxu0 %v10006
  %10267 = vmatprep.subr.mxu0 0.0
  %10268 = vmatpush1.msra.mxu0 %v10007
  %10269 = vmatprep.subr.mxu0 0.0
  %10270 = vmatpush1.msra.mxu0 %v10008
  %10271 = vmatprep.subr.mxu0 0.0
  %10272 = vmatpush1.msra.mxu0 %v10261
  %10273 = vmatprep.subr.mxu0 0.0
  %10274 = vmatpush1.msra.mxu0 0.0
  %10275 = vmatprep.subr.mxu0 0.0
  %10276 = vmatpush1.msra.mxu0 0.0
  %10277 = vmatprep.subr.mxu0 0.0
  %10278 = vmatpush1.msra.mxu0 0.0
  %10279 = vmatprep.subr.mxu0 0.0
  %10280 = vmatpush1.msra.mxu0 0.0
  %10281 = vmatprep.subr.mxu0 0.0
  %10282 = vmatpush1.msra.mxu0 0.0
  %10283 = vmatprep.subr.mxu0 0.0
  %10284 = vmatpush1.msra.mxu0 0.0
  %10285 = vmatprep.subr.mxu0 0.0
  %10286 = vmatpush1.msra.mxu0 0.0
  %10287 = vmatprep.subr.mxu0 0.0
  %10288 = vmatpush1.msra.mxu0 0.0
  %10289 = vmatprep.subr.mxu0 0.0
  %10290 = vmatpush1.msra.mxu0 0.0
  %10291 = vmatprep.subr.mxu0 0.0
  %10292 = vmatpush1.msra.mxu0 0.0
  %10293 = vmatprep.subr.mxu0 0.0
  %10294 = vmatpush1.msra.mxu0 0.0
  %10295 = vmatprep.subr.mxu0 0.0
  %10296 = vmatpush1.msra.mxu0 0.0
  %10297 = vmatprep.subr.mxu0 0.0
  %10298 = vmatpush1.msra.mxu0 0.0
  %10299 = vmatprep.subr.mxu0 0.0
  %10300 = vmatpush1.msra.mxu0 0.0
  %10301 = vmatprep.subr.mxu0 0.0
  %10302 = vmatpush1.msra.mxu0 0.0
  %10303 = vmatprep.subr.mxu0 0.0
  %10304 = vmatpush1.msra.mxu0 0.0
  %10305 = vmatprep.subr.mxu0 0.0
  %10306 = vmatpush1.msra.mxu0 0.0
  %10307 = vmatprep.subr.mxu0 0.0
  %10308 = vmatpush1.msra.mxu0 0.0
  %10309 = vmatprep.subr.mxu0 0.0
  %10310 = vmatpush1.msra.mxu0 0.0
  %10311 = vmatprep.subr.mxu0 0.0
  %10312 = vmatpush1.msra.mxu0 0.0
  %10313 = vmatprep.subr.mxu0 0.0
  %10314 = vmatpush1.msra.mxu0 0.0
  %10315 = vmatprep.subr.mxu0 0.0
  %10316 = vmatpush1.msra.mxu0 0.0
  %10317 = vmatprep.subr.mxu0 0.0
  %10318 = vmatpush1.msra.mxu0 0.0
  %10319 = vmatprep.subr.mxu0 0.0
  %10320 = vmatpush1.msra.mxu0 0.0
  %10321 = vmatprep.subr.mxu0 0.0
  %10322 = vmatpush1.msra.mxu0 0.0
  %10323 = vmatprep.subr.mxu0 0.0
  %10324 = vmatpush1.msra.mxu0 0.0
  %10325 = vmatprep.subr.mxu0 0.0
  %10326 = vmatpush1.msra.mxu0 0.0
  %10327 = vmatprep.mubr.f32.mxu0 0.0
  %10328 = vmatmul.mubr.f32.gmra.mrb[0].mxu0 %v10018
  %v10329 = vpop.f32.mrb[0].mxu0
  %v10330 = vadd.f32 %v10015, %v10329
  %v10331 = vpop.f32.mrb[0].mxu0
  %10332 = vmatprep.mubr.f32.mxu0 0.0
  %10333 = vmatmul.mubr.f32.gmra.mrb[0].mxu0 %v10021
  %v10334 = vpop.f32.mrb[0].mxu0
  %v10335 = vadd.f32 %v10015, %v10334
  %v10336 = vpop.f32.mrb[0].mxu0
  %10337 = vmatprep.mubr.f32.mxu0 0.0
  %10338 = vmatmul.mubr.f32.gmra.mrb[0].mxu0 %v10024
  %v10339 = vpop.f32.mrb[0].mxu0
  %v10340 = vadd.f32 %v10015, %v10339
  %v10341 = vpop.f32.mrb[0].mxu0
  %10342 = vmatprep.mubr.f32.mxu0 0.0
  %10343 = vmatmul.mubr.f32.gmra.mrb[0].mxu0 %v10027
  %v10344 = vpop.f32.mrb[0].mxu0
  %v10345 = vadd.f32 %v10015, %v10344
  %v10346 = vpop.f32.mrb[0].mxu0
  %10347 = vmatprep.mubr.f32.mxu0 0.0
  %10348 = vmatmul.mubr.f32.gmra.mrb[0].mxu0 %v10030
  %v10349 = vpop.f32.mrb[0].mxu0
  %v10350 = vadd.f32 %v10015, %v10349
  %v10351 = vpop.f32.mrb[0].mxu0
  %10352 = vmatprep.mubr.f32.mxu0 0.0
  %10353 = vmatmul.mubr.f32.gmra.mrb[0].mxu0 %v10033
  %v10354 = vpop.f32.mrb[0].mxu0
  %v10355 = vadd.f32 %v10015, %v10354
  %v10356 = vpop.f32.mrb[0].mxu0
  %10357 = vmatprep.mubr.f32.mxu0 0.0
  %10358 = vmatmul.mubr.f32.gmra.mrb[0].mxu0 %v10036
  %v10359 = vpop.f32.mrb[0].mxu0
  %v10360 = vadd.f32 %v10015, %v10359
  %v10361 = vpop.f32.mrb[0].mxu0
  %10362 = vmatprep.mubr.f32.mxu0 0.0
  %10363 = vmatmul.mubr.f32.gmra.mrb[0].mxu0 %v10039
  %v10364 = vpop.f32.mrb[0].mxu0
  %v10365 = vadd.f32 %v10015, %v10364
  %v10366 = vpop.f32.mrb[0].mxu0
  %10367 = vmatprep.mubr.f32.mxu0 0.0
  %10368 = vmatmul.mubr.f32.gmra.mrb[0].mxu0 %v10042
  %v10369 = vpop.f32.mrb[0].mxu0
  %v10370 = vadd.f32 %v10015, %v10369
  %v10371 = vpop.f32.mrb[0].mxu0
  %10372 = vmatprep.mubr.f32.mxu0 0.0
  %10373 = vmatmul.mubr.f32.gmra.mrb[0].mxu0 %v10045
  %v10374 = vpop.f32.mrb[0].mxu0
  %v10375 = vadd.f32 %v10015, %v10374
  %v10376 = vpop.f32.mrb[0].mxu0
  %10377 = vmatprep.mubr.f32.mxu0 0.0
  %10378 = vmatmul.mubr.f32.gmra.mrb[0].mxu0 %v10048
  %v10379 = vpop.f32.mrb[0].mxu0
  %v10380 = vadd.f32 %v10015, %v10379
  %v10381 = vpop.f32.mrb[0].mxu0
  %10382 = vmatprep.mubr.f32.mxu0 0.0
  %10383 = vmatmul.mubr.f32.gmra.mrb[0].mxu0 %v10051
  %v10384 = vpop.f32.mrb[0].mxu0
  %v10385 = vadd.f32 %v10015, %v10384
  %v10386 = vpop.f32.mrb[0].mxu0
  %10387 = vmatprep.mubr.f32.mxu0 0.0
  %10388 = vmatmul.mubr.f32.gmra.mrb[0].mxu0 %v10054
  %v10389 = vpop.f32.mrb[0].mxu0
  %v10390 = vadd.f32 %v10015, %v10389
  %v10391 = vpop.f32.mrb[0].mxu0
  %10392 = vmatprep.mubr.f32.mxu0 0.0
  %10393 = vmatmul.mubr.f32.gmra.mrb[0].mxu0 %v10057
  %v10394 = vpop.f32.mrb[0].mxu0
  %v10395 = vadd.f32 %v10015, %v10394
  %v10396 = vpop.f32.mrb[0].mxu0
  %10397 = vmatprep.mubr.f32.mxu0 0.0
  %10398 = vmatmul.mubr.f32.gmra.mrb[0].mxu0 %v10060
  %v10399 = vpop.f32.mrb[0].mxu0
  %v10400 = vadd.f32 %v10015, %v10399
  %v10401 = vpop.f32.mrb[0].mxu0
  %10402 = vmatprep.mubr.f32.mxu0 0.0
  %10403 = vmatmul.mubr.f32.gmra.mrb[0].mxu0 %v10063
  %v10404 = vpop.f32.mrb[0].mxu0
  %v10405 = vadd.f32 %v10015, %v10404
  %v10406 = vpop.f32.mrb[0].mxu0
  %10407 = vmatprep.mubr.f32.mxu0 0.0
  %10408 = vmatmul.mubr.f32.gmra.mrb[0].mxu0 %v10066
  %v10409 = vpop.f32.mrb[0].mxu0
  %v10410 = vadd.f32 %v10015, %v10409
  %v10411 = vpop.f32.mrb[0].mxu0
  %10412 = vmatprep.mubr.f32.mxu0 0.0
  %10413 = vmatmul.mubr.f32.gmra.mrb[0].mxu0 %v10069
  %v10414 = vpop.f32.mrb[0].mxu0
  %v10415 = vadd.f32 %v10015, %v10414
  %v10416 = vpop.f32.mrb[0].mxu0
  %10417 = vmatprep.mubr.f32.mxu0 0.0
  %10418 = vmatmul.mubr.f32.gmra.mrb[0].mxu0 %v10072
  %v10419 = vpop.f32.mrb[0].mxu0
  %v10420 = vadd.f32 %v10015, %v10419
  %v10421 = vpop.f32.mrb[0].mxu0
  %10422 = vmatprep.mubr.f32.mxu0 0.0
  %10423 = vmatmul.mubr.f32.gmra.mrb[0].mxu0 %v10075
  %v10424 = vpop.f32.mrb[0].mxu0
  %v10425 = vadd.f32 %v10015, %v10424
  %v10426 = vpop.f32.mrb[0].mxu0
  %10427 = vmatprep.mubr.f32.mxu0 0.0
  %10428 = vmatmul.mubr.f32.gmra.mrb[0].mxu0 %v10078
  %v10429 = vpop.f32.mrb[0].mxu0
  %v10430 = vadd.f32 %v10015, %v10429
  %v10431 = vpop.f32.mrb[0].mxu0
  %10432 = vmatprep.mubr.f32.mxu0 0.0
  %10433 = vmatmul.mubr.f32.gmra.mrb[0].mxu0 %v10081
  %v10434 = vpop.f32.mrb[0].mxu0
  %v10435 = vadd.f32 %v10015, %v10434
  %v10436 = vpop.f32.mrb[0].mxu0
  %10437 = vmatprep.mubr.f32.mxu0 0.0
  %10438 = vmatmul.mubr.f32.gmra.mrb[0].mxu0 %v10084
  %v10439 = vpop.f32.mrb[0].mxu0
  %v10440 = vadd.f32 %v10015, %v10439
  %v10441 = vpop.f32.mrb[0].mxu0
  %10442 = vmatprep.mubr.f32.mxu0 0.0
  %10443 = vmatmul.mubr.f32.gmra.mrb[0].mxu0 %v10087
  %v10444 = vpop.f32.mrb[0].mxu0
  %v10445 = vadd.f32 %v10015, %v10444
  %v10446 = vpop.f32.mrb[0].mxu0
  %10447 = vmatprep.mubr.f32.mxu0 0.0
  %10448 = vmatmul.mubr.f32.gmra.mrb[0].mxu0 %v10090
  %v10449 = vpop.f32.mrb[0].mxu0
  %v10450 = vadd.f32 %v10015, %v10449
  %v10451 = vpop.f32.mrb[0].mxu0
  %10452 = vmatprep.mubr.f32.mxu0 0.0
  %10453 = vmatmul.mubr.f32.gmra.mrb[0].mxu0 %v10093
  %v10454 = vpop.f32.mrb[0].mxu0
  %v10455 = vadd.f32 %v10015, %v10454
  %v10456 = vpop.f32.mrb[0].mxu0
  %10457 = vmatprep.mubr.f32.mxu0 0.0
  %10458 = vmatmul.mubr.f32.gmra.mrb[0].mxu0 %v10096
  %v10459 = vpop.f32.mrb[0].mxu0
  %v10460 = vadd.f32 %v10015, %v10459
  %v10461 = vpop.f32.mrb[0].mxu0
  %10462 = vmatprep.mubr.f32.mxu0 0.0
  %10463 = vmatmul.mubr.f32.gmra.mrb[0].mxu0 %v10099
  %v10464 = vpop.f32.mrb[0].mxu0
  %v10465 = vadd.f32 %v10015, %v10464
  %v10466 = vpop.f32.mrb[0].mxu0
  %10467 = vmatprep.mubr.f32.mxu0 0.0
  %10468 = vmatmul.mubr.f32.gmra.mrb[0].mxu0 %v10102
  %v10469 = vpop.f32.mrb[0].mxu0
  %v10470 = vadd.f32 %v10015, %v10469
  %v10471 = vpop.f32.mrb[0].mxu0
  %10472 = vmatprep.mubr.f32.mxu0 0.0
  %10473 = vmatmul.mubr.f32.gmra.mrb[0].mxu0 %v10105
  %v10474 = vpop.f32.mrb[0].mxu0
  %v10475 = vadd.f32 %v10015, %v10474
  %v10476 = vpop.f32.mrb[0].mxu0
  %10477 = vmatprep.mubr.f32.mxu0 0.0
  %10478 = vmatmul.mubr.f32.gmra.mrb[0].mxu0 %v10108
  %v10479 = vpop.f32.mrb[0].mxu0
  %v10480 = vadd.f32 %v10015, %v10479
  %v10481 = vpop.f32.mrb[0].mxu0
  %10482 = vmatprep.mubr.f32.mxu0 0.0
  %10483 = vmatmul.mubr.f32.gmra.mrb[0].mxu0 %v10111
  %v10484 = vpop.f32.mrb[0].mxu0
  %v10485 = vadd.f32 %v10015, %v10484
  %v10486 = vpop.f32.mrb[0].mxu0
  %10487 = vmatprep.mubr.f32.mxu0 0.0
  %10488 = vmatmul.mubr.f32.gmra.mrb[0].mxu0 %v10114
  %v10489 = vpop.f32.mrb[0].mxu0
  %v10490 = vadd.f32 %v10015, %v10489
  %v10491 = vpop.f32.mrb[0].mxu0
  %10492 = vmatprep.mubr.f32.mxu0 0.0
  %10493 = vmatmul.mubr.f32.gmra.mrb[0].mxu0 %v10117
  %v10494 = vpop.f32.mrb[0].mxu0
  %v10495 = vadd.f32 %v10015, %v10494
  %v10496 = vpop.f32.mrb[0].mxu0
  %10497 = vmatprep.mubr.f32.mxu0 0.0
  %10498 = vmatmul.mubr.f32.gmra.mrb[0].mxu0 %v10120
  %v10499 = vpop.f32.mrb[0].mxu0
  %v10500 = vadd.f32 %v10015, %v10499
  %v10501 = vpop.f32.mrb[0].mxu0
  %10502 = vmatprep.mubr.f32.mxu0 0.0
  %10503 = vmatmul.mubr.f32.gmra.mrb[0].mxu0 %v10123
  %v10504 = vpop.f32.mrb[0].mxu0
  %v10505 = vadd.f32 %v10015, %v10504
  %v10506 = vpop.f32.mrb[0].mxu0
  %10507 = vmatprep.mubr.f32.mxu0 0.0
  %10508 = vmatmul.mubr.f32.gmra.mrb[0].mxu0 %v10126
  %v10509 = vpop.f32.mrb[0].mxu0
  %v10510 = vadd.f32 %v10015, %v10509
  %v10511 = vpop.f32.mrb[0].mxu0
  %10512 = vmatprep.mubr.f32.mxu0 0.0
  %10513 = vmatmul.mubr.f32.gmra.mrb[0].mxu0 %v10129
  %v10514 = vpop.f32.mrb[0].mxu0
  %v10515 = vadd.f32 %v10015, %v10514
  %v10516 = vpop.f32.mrb[0].mxu0
  %10517 = vmatprep.mubr.f32.mxu0 0.0
  %10518 = vmatmul.mubr.f32.gmra.mrb[0].mxu0 %v10132
  %v10519 = vpop.f32.mrb[0].mxu0
  %v10520 = vadd.f32 %v10015, %v10519
  %v10521 = vpop.f32.mrb[0].mxu0
  %10522 = vmatprep.mubr.f32.mxu0 0.0
  %10523 = vmatmul.mubr.f32.gmra.mrb[0].mxu0 %v10135
  %v10524 = vpop.f32.mrb[0].mxu0
  %v10525 = vadd.f32 %v10015, %v10524
  %v10526 = vpop.f32.mrb[0].mxu0
  %10527 = vmatprep.mubr.f32.mxu0 0.0
  %10528 = vmatmul.mubr.f32.gmra.mrb[0].mxu0 %v10138
  %v10529 = vpop.f32.mrb[0].mxu0
  %v10530 = vadd.f32 %v10015, %v10529
  %v10531 = vpop.f32.mrb[0].mxu0
  %10532 = vmatprep.mubr.f32.mxu0 0.0
  %10533 = vmatmul.mubr.f32.gmra.mrb[0].mxu0 %v10141
  %v10534 = vpop.f32.mrb[0].mxu0
  %v10535 = vadd.f32 %v10015, %v10534
  %v10536 = vpop.f32.mrb[0].mxu0
  %10537 = vmatprep.mubr.f32.mxu0 0.0
  %10538 = vmatmul.mubr.f32.gmra.mrb[0].mxu0 %v10144
  %v10539 = vpop.f32.mrb[0].mxu0
  %v10540 = vadd.f32 %v10015, %v10539
  %v10541 = vpop.f32.mrb[0].mxu0
  %10542 = vmatprep.mubr.f32.mxu0 0.0
  %10543 = vmatmul.mubr.f32.gmra.mrb[0].mxu0 %v10147
  %v10544 = vpop.f32.mrb[0].mxu0
  %v10545 = vadd.f32 %v10015, %v10544
  %v10546 = vpop.f32.mrb[0].mxu0
  %10547 = vmatprep.mubr.f32.mxu0 0.0
  %10548 = vmatmul.mubr.f32.gmra.mrb[0].mxu0 %v10150
  %v10549 = vpop.f32.mrb[0].mxu0
  %v10550 = vadd.f32 %v10015, %v10549
  %v10551 = vpop.f32.mrb[0].mxu0
  %10552 = vmatprep.mubr.f32.mxu0 0.0
  %10553 = vmatmul.mubr.f32.gmra.mrb[0].mxu0 %v10153
  %v10554 = vpop.f32.mrb[0].mxu0
  %v10555 = vadd.f32 %v10015, %v10554
  %v10556 = vpop.f32.mrb[0].mxu0
  %10557 = vmatprep.mubr.f32.mxu0 0.0
  %10558 = vmatmul.mubr.f32.gmra.mrb[0].mxu0 %v10156
  %v10559 = vpop.f32.mrb[0].mxu0
  %v10560 = vadd.f32 %v10015, %v10559
  %v10561 = vpop.f32.mrb[0].mxu0
  %10562 = vmatprep.mubr.f32.mxu0 0.0
  %10563 = vmatmul.mubr.f32.gmra.mrb[0].mxu0 %v10159
  %v10564 = vpop.f32.mrb[0].mxu0
  %v10565 = vadd.f32 %v10015, %v10564
  %v10566 = vpop.f32.mrb[0].mxu0
  %10567 = vmatprep.mubr.f32.mxu0 0.0
  %10568 = vmatmul.mubr.f32.gmra.mrb[0].mxu0 %v10162
  %v10569 = vpop.f32.mrb[0].mxu0
  %v10570 = vadd.f32 %v10015, %v10569
  %v10571 = vpop.f32.mrb[0].mxu0
  %10572 = vmatprep.mubr.f32.mxu0 0.0
  %10573 = vmatmul.mubr.f32.gmra.mrb[0].mxu0 %v10165
  %v10574 = vpop.f32.mrb[0].mxu0
  %v10575 = vadd.f32 %v10015, %v10574
  %v10576 = vpop.f32.mrb[0].mxu0
  %10577 = vmatprep.mubr.f32.mxu0 0.0
  %10578 = vmatmul.mubr.f32.gmra.mrb[0].mxu0 %v10168
  %v10579 = vpop.f32.mrb[0].mxu0
  %v10580 = vadd.f32 %v10015, %v10579
  %v10581 = vpop.f32.mrb[0].mxu0
  %10582 = vmatprep.mubr.f32.mxu0 0.0
  %10583 = vmatmul.mubr.f32.gmra.mrb[0].mxu0 %v10171
  %v10584 = vpop.f32.mrb[0].mxu0
  %v10585 = vadd.f32 %v10015, %v10584
  %v10586 = vpop.f32.mrb[0].mxu0
  %10587 = vmatprep.mubr.f32.mxu0 0.0
  %10588 = vmatmul.mubr.f32.gmra.mrb[0].mxu0 %v10174
  %v10589 = vpop.f32.mrb[0].mxu0
  %v10590 = vadd.f32 %v10015, %v10589
  %v10591 = vpop.f32.mrb[0].mxu0
  %10592 = vmatprep.mubr.f32.mxu0 0.0
  %10593 = vmatmul.mubr.f32.gmra.mrb[0].mxu0 %v10177
  %v10594 = vpop.f32.mrb[0].mxu0
  %v10595 = vadd.f32 %v10015, %v10594
  %v10596 = vpop.f32.mrb[0].mxu0
  %10597 = vmatprep.mubr.f32.mxu0 0.0
  %10598 = vmatmul.mubr.f32.gmra.mrb[0].mxu0 %v10180
  %v10599 = vpop.f32.mrb[0].mxu0
  %v10600 = vadd.f32 %v10015, %v10599
  %v10601 = vpop.f32.mrb[0].mxu0
  %10602 = vmatprep.mubr.f32.mxu0 0.0
  %10603 = vmatmul.mubr.f32.gmra.mrb[0].mxu0 %v10183
  %v10604 = vpop.f32.mrb[0].mxu0
  %v10605 = vadd.f32 %v10015, %v10604
  %v10606 = vpop.f32.mrb[0].mxu0
  %10607 = vmatprep.mubr.f32.mxu0 0.0
  %10608 = vmatmul.mubr.f32.gmra.mrb[0].mxu0 %v10186
  %v10609 = vpop.f32.mrb[0].mxu0
  %v10610 = vadd.f32 %v10015, %v10609
  %v10611 = vpop.f32.mrb[0].mxu0
  %10612 = vmatprep.mubr.f32.mxu0 0.0
  %10613 = vmatmul.mubr.f32.gmra.mrb[0].mxu0 %v10189
  %v10614 = vpop.f32.mrb[0].mxu0
  %v10615 = vadd.f32 %v10015, %v10614
  %v10616 = vpop.f32.mrb[0].mxu0
  %10617 = vmatprep.mubr.f32.mxu0 0.0
  %10618 = vmatmul.mubr.f32.gmra.mrb[0].mxu0 %v10192
  %v10619 = vpop.f32.mrb[0].mxu0
  %v10620 = vadd.f32 %v10015, %v10619
  %v10621 = vpop.f32.mrb[0].mxu0
  %10622 = vmatprep.mubr.f32.mxu0 0.0
  %10623 = vmatmul.mubr.f32.gmra.mrb[0].mxu0 %v10195
  %v10624 = vpop.f32.mrb[0].mxu0
  %v10625 = vadd.f32 %v10015, %v10624
  %v10626 = vpop.f32.mrb[0].mxu0
  %10627 = vmatprep.mubr.f32.mxu0 0.0
  %10628 = vmatmul.mubr.f32.gmra.mrb[0].mxu0 %v10198
  %v10629 = vpop.f32.mrb[0].mxu0
  %v10630 = vadd.f32 %v10015, %v10629
  %v10631 = vpop.f32.mrb[0].mxu0
  %10632 = vmatprep.mubr.f32.mxu0 0.0
  %10633 = vmatmul.mubr.f32.gmra.mrb[0].mxu0 %v10201
  %v10634 = vpop.f32.mrb[0].mxu0
  %v10635 = vadd.f32 %v10015, %v10634
  %v10636 = vpop.f32.mrb[0].mxu0
  %10637 = vmatprep.mubr.f32.mxu0 0.0
  %10638 = vmatmul.mubr.f32.gmra.mrb[0].mxu0 %v10204
  %v10639 = vpop.f32.mrb[0].mxu0
  %v10640 = vadd.f32 %v10015, %v10639
  %v10641 = vpop.f32.mrb[0].mxu0
  %10642 = vmatprep.mubr.f32.mxu0 0.0
  %10643 = vmatmul.mubr.f32.gmra.mrb[0].mxu0 %v10207
  %v10644 = vpop.f32.mrb[0].mxu0
  %v10645 = vadd.f32 %v10015, %v10644
  %v10646 = vpop.f32.mrb[0].mxu0
  %10647 = vmatprep.mubr.f32.mxu0 0.0
  %10648 = vmatmul.mubr.f32.gmra.mrb[0].mxu0 %v10210
  %v10649 = vpop.f32.mrb[0].mxu0
  %v10650 = vadd.f32 %v10015, %v10649
  %v10651 = vpop.f32.mrb[0].mxu0
  %10652 = vmatprep.mubr.f32.mxu0 0.0
  %10653 = vmatmul.mubr.f32.gmra.mrb[0].mxu0 %v10213
  %v10654 = vpop.f32.mrb[0].mxu0
  %v10655 = vadd.f32 %v10015, %v10654
  %v10656 = vpop.f32.mrb[0].mxu0
  %10657 = vmatprep.mubr.f32.mxu0 0.0
  %10658 = vmatmul.mubr.f32.gmra.mrb[0].mxu0 %v10216
  %v10659 = vpop.f32.mrb[0].mxu0
  %v10660 = vadd.f32 %v10015, %v10659
  %v10661 = vpop.f32.mrb[0].mxu0
  %10662 = vmatprep.mubr.f32.mxu0 0.0
  %10663 = vmatmul.mubr.f32.gmra.mrb[0].mxu0 %v10219
  %v10664 = vpop.f32.mrb[0].mxu0
  %v10665 = vadd.f32 %v10015, %v10664
  %v10666 = vpop.f32.mrb[0].mxu0
  %10667 = vmatprep.mubr.f32.mxu0 0.0
  %10668 = vmatmul.mubr.f32.gmra.mrb[0].mxu0 %v10222
  %v10669 = vpop.f32.mrb[0].mxu0
  %v10670 = vadd.f32 %v10015, %v10669
  %v10671 = vpop.f32.mrb[0].mxu0
  %10672 = vmatprep.mubr.f32.mxu0 0.0
  %10673 = vmatmul.mubr.f32.gmra.mrb[0].mxu0 %v10225
  %v10674 = vpop.f32.mrb[0].mxu0
  %v10675 = vadd.f32 %v10015, %v10674
  %v10676 = vpop.f32.mrb[0].mxu0
  %10677 = vmatprep.mubr.f32.mxu0 0.0
  %10678 = vmatmul.mubr.f32.gmra.mrb[0].mxu0 %v10228
  %v10679 = vpop.f32.mrb[0].mxu0
  %v10680 = vadd.f32 %v10015, %v10679
  %v10681 = vpop.f32.mrb[0].mxu0
  %10682 = vmatprep.mubr.f32.mxu0 0.0
  %10683 = vmatmul.mubr.f32.gmra.mrb[0].mxu0 %v10231
  %v10684 = vpop.f32.mrb[0].mxu0
  %v10685 = vadd.f32 %v10015, %v10684
  %v10686 = vpop.f32.mrb[0].mxu0
  %10687 = vmatprep.mubr.f32.mxu0 0.0
  %10688 = vmatmul.mubr.f32.gmra.mrb[0].mxu0 %v10234
  %v10689 = vpop.f32.mrb[0].mxu0
  %v10690 = vadd.f32 %v10015, %v10689
  %v10691 = vpop.f32.mrb[0].mxu0
  %10692 = vmatprep.mubr.f32.mxu0 0.0
  %10693 = vmatmul.mubr.f32.gmra.mrb[0].mxu0 %v10237
  %v10694 = vpop.f32.mrb[0].mxu0
  %v10695 = vadd.f32 %v10015, %v10694
  %v10696 = vpop.f32.mrb[0].mxu0
  %10697 = vmatprep.mubr.f32.mxu0 0.0
  %10698 = vmatmul.mubr.f32.gmra.mrb[0].mxu0 %v10240
  %v10699 = vpop.f32.mrb[0].mxu0
  %v10700 = vadd.f32 %v10015, %v10699
  %v10701 = vpop.f32.mrb[0].mxu0
  %10702 = vmatprep.mubr.f32.mxu0 0.0
  %10703 = vmatmul.mubr.f32.gmra.mrb[0].mxu0 %v10243
  %v10704 = vpop.f32.mrb[0].mxu0
  %v10705 = vadd.f32 %v10015, %v10704
  %v10706 = vpop.f32.mrb[0].mxu0
  %10707 = vmatprep.mubr.f32.mxu0 0.0
  %10708 = vmatmul.mubr.f32.gmra.mrb[0].mxu0 %v10246
  %v10709 = vpop.f32.mrb[0].mxu0
  %v10710 = vadd.f32 %v10015, %v10709
  %v10711 = vpop.f32.mrb[0].mxu0
  %10712 = vmatprep.mubr.f32.mxu0 0.0
  %10713 = vmatmul.mubr.f32.gmra.mrb[0].mxu0 %v10249
  %v10714 = vpop.f32.mrb[0].mxu0
  %v10715 = vadd.f32 %v10015, %v10714
  %v10716 = vpop.f32.mrb[0].mxu0
  %10717 = vmatprep.mubr.f32.mxu0 0.0
  %10718 = vmatmul.mubr.f32.gmra.mrb[0].mxu0 %v10252
  %v10719 = vpop.f32.mrb[0].mxu0
  %v10720 = vadd.f32 %v10015, %v10719
  %v10721 = vpop.f32.mrb[0].mxu0
  %10722 = vmatprep.mubr.f32.mxu0 0.0
  %10723 = vmatmul.mubr.f32.gmra.mrb[0].mxu0 %v10255
  %v10724 = vpop.f32.mrb[0].mxu0
  %v10725 = vadd.f32 %v10015, %v10724
  %v10726 = vpop.f32.mrb[0].mxu0
  %10727 = vmatprep.mubr.f32.mxu0 0.0
  %10728 = vmatmul.mubr.f32.gmra.mrb[0].mxu0 %v10258
  %v10729 = vpop.f32.mrb[0].mxu0
  %v10730 = vadd.f32 %v10015, %v10729
  %v10731 = vpop.f32.mrb[0].mxu0
  %10732 = vdwg.mxu0
  %vm10733 = vcmp.ge.f32.partialorder %v10330, 0.0
  %vm10734 = vcmp.ge.f32.partialorder %v10335, 0.0
  %vm10735 = vcmp.ge.f32.partialorder %v10340, 0.0
  %vm10736 = vcmp.ge.f32.partialorder %v10345, 0.0
  %vm10737 = vcmp.ge.f32.partialorder %v10350, 0.0
  %vm10738 = vcmp.ge.f32.partialorder %v10355, 0.0
  %vm10739 = vcmp.ge.f32.partialorder %v10360, 0.0
  %vm10740 = vcmp.ge.f32.partialorder %v10365, 0.0
  %vm10741 = vcmp.ge.f32.partialorder %v10370, 0.0
  %vm10742 = vcmp.ge.f32.partialorder %v10375, 0.0
  %vm10743 = vcmp.ge.f32.partialorder %v10380, 0.0
  %vm10744 = vcmp.ge.f32.partialorder %v10385, 0.0
  %vm10745 = vcmp.ge.f32.partialorder %v10390, 0.0
  %vm10746 = vcmp.ge.f32.partialorder %v10395, 0.0
  %vm10747 = vcmp.ge.f32.partialorder %v10400, 0.0
  %vm10748 = vcmp.ge.f32.partialorder %v10405, 0.0
  %vm10749 = vcmp.ge.f32.partialorder %v10410, 0.0
  %vm10750 = vcmp.ge.f32.partialorder %v10415, 0.0
  %vm10751 = vcmp.ge.f32.partialorder %v10420, 0.0
  %vm10752 = vcmp.ge.f32.partialorder %v10425, 0.0
  %vm10753 = vcmp.ge.f32.partialorder %v10430, 0.0
  %vm10754 = vcmp.ge.f32.partialorder %v10435, 0.0
  %vm10755 = vcmp.ge.f32.partialorder %v10440, 0.0
  %vm10756 = vcmp.ge.f32.partialorder %v10445, 0.0
  %vm10757 = vcmp.ge.f32.partialorder %v10450, 0.0
  %vm10758 = vcmp.ge.f32.partialorder %v10455, 0.0
  %vm10759 = vcmp.ge.f32.partialorder %v10460, 0.0
  %vm10760 = vcmp.ge.f32.partialorder %v10465, 0.0
  %vm10761 = vcmp.ge.f32.partialorder %v10470, 0.0
  %vm10762 = vcmp.ge.f32.partialorder %v10475, 0.0
  %vm10763 = vcmp.ge.f32.partialorder %v10480, 0.0
  %vm10764 = vcmp.ge.f32.partialorder %v10485, 0.0
  %vm10765 = vcmp.ge.f32.partialorder %v10490, 0.0
  %vm10766 = vcmp.ge.f32.partialorder %v10495, 0.0
  %vm10767 = vcmp.ge.f32.partialorder %v10500, 0.0
  %vm10768 = vcmp.ge.f32.partialorder %v10505, 0.0
  %vm10769 = vcmp.ge.f32.partialorder %v10510, 0.0
  %vm10770 = vcmp.ge.f32.partialorder %v10515, 0.0
  %vm10771 = vcmp.ge.f32.partialorder %v10520, 0.0
  %vm10772 = vcmp.ge.f32.partialorder %v10525, 0.0
  %vm10773 = vcmp.ge.f32.partialorder %v10530, 0.0
  %vm10774 = vcmp.ge.f32.partialorder %v10535, 0.0
  %vm10775 = vcmp.ge.f32.partialorder %v10540, 0.0
  %vm10776 = vcmp.ge.f32.partialorder %v10545, 0.0
  %vm10777 = vcmp.ge.f32.partialorder %v10550, 0.0
  %vm10778 = vcmp.ge.f32.partialorder %v10555, 0.0
  %vm10779 = vcmp.ge.f32.partialorder %v10560, 0.0
  %vm10780 = vcmp.ge.f32.partialorder %v10565, 0.0
  %vm10781 = vcmp.ge.f32.partialorder %v10570, 0.0
  %vm10782 = vcmp.ge.f32.partialorder %v10575, 0.0
  %vm10783 = vcmp.ge.f32.partialorder %v10580, 0.0
  %vm10784 = vcmp.ge.f32.partialorder %v10585, 0.0
  %vm10785 = vcmp.ge.f32.partialorder %v10590, 0.0
  %vm10786 = vcmp.ge.f32.partialorder %v10595, 0.0
  %vm10787 = vcmp.ge.f32.partialorder %v10600, 0.0
  %vm10788 = vcmp.ge.f32.partialorder %v10605, 0.0
  %vm10789 = vcmp.ge.f32.partialorder %v10610, 0.0
  %vm10790 = vcmp.ge.f32.partialorder %v10615, 0.0
  %vm10791 = vcmp.ge.f32.partialorder %v10620, 0.0
  %vm10792 = vcmp.ge.f32.partialorder %v10625, 0.0
  %vm10793 = vcmp.ge.f32.partialorder %v10630, 0.0
  %vm10794 = vcmp.ge.f32.partialorder %v10635, 0.0
  %vm10795 = vcmp.ge.f32.partialorder %v10640, 0.0
  %vm10796 = vcmp.ge.f32.partialorder %v10645, 0.0
  %vm10797 = vcmp.ge.f32.partialorder %v10650, 0.0
  %vm10798 = vcmp.ge.f32.partialorder %v10655, 0.0
  %vm10799 = vcmp.ge.f32.partialorder %v10660, 0.0
  %vm10800 = vcmp.ge.f32.partialorder %v10665, 0.0
  %vm10801 = vcmp.ge.f32.partialorder %v10670, 0.0
  %vm10802 = vcmp.ge.f32.partialorder %v10675, 0.0
  %vm10803 = vcmp.ge.f32.partialorder %v10680, 0.0
  %vm10804 = vcmp.ge.f32.partialorder %v10685, 0.0
  %vm10805 = vcmp.ge.f32.partialorder %v10690, 0.0
  %vm10806 = vcmp.ge.f32.partialorder %v10695, 0.0
  %vm10807 = vcmp.ge.f32.partialorder %v10700, 0.0
  %vm10808 = vcmp.ge.f32.partialorder %v10705, 0.0
  %vm10809 = vcmp.ge.f32.partialorder %v10710, 0.0
  %vm10810 = vcmp.ge.f32.partialorder %v10715, 0.0
  %vm10811 = vcmp.ge.f32.partialorder %v10720, 0.0
  %vm10812 = vcmp.ge.f32.partialorder %v10725, 0.0
  %vm10813 = vcmp.ge.f32.partialorder %v10730, 0.0
  %v10814 = vmul.f32 %v10330, 0.2
  %v10815 = vmul.f32 %v10335, 0.2
  %v10816 = vmul.f32 %v10340, 0.2
  %v10817 = vmul.f32 %v10345, 0.2
  %v10818 = vmul.f32 %v10350, 0.2
  %v10819 = vmul.f32 %v10355, 0.2
  %v10820 = vmul.f32 %v10360, 0.2
  %v10821 = vmul.f32 %v10365, 0.2
  %v10822 = vmul.f32 %v10370, 0.2
  %v10823 = vmul.f32 %v10375, 0.2
  %v10824 = vmul.f32 %v10380, 0.2
  %v10825 = vmul.f32 %v10385, 0.2
  %v10826 = vmul.f32 %v10390, 0.2
  %v10827 = vmul.f32 %v10395, 0.2
  %v10828 = vmul.f32 %v10400, 0.2
  %v10829 = vmul.f32 %v10405, 0.2
  %v10830 = vmul.f32 %v10410, 0.2
  %v10831 = vmul.f32 %v10415, 0.2
  %v10832 = vmul.f32 %v10420, 0.2
  %v10833 = vmul.f32 %v10425, 0.2
  %v10834 = vmul.f32 %v10430, 0.2
  %v10835 = vmul.f32 %v10435, 0.2
  %v10836 = vmul.f32 %v10440, 0.2
  %v10837 = vmul.f32 %v10445, 0.2
  %v10838 = vmul.f32 %v10450, 0.2
  %v10839 = vmul.f32 %v10455, 0.2
  %v10840 = vmul.f32 %v10460, 0.2
  %v10841 = vmul.f32 %v10465, 0.2
  %v10842 = vmul.f32 %v10470, 0.2
  %v10843 = vmul.f32 %v10475, 0.2
  %v10844 = vmul.f32 %v10480, 0.2
  %v10845 = vmul.f32 %v10485, 0.2
  %v10846 = vmul.f32 %v10490, 0.2
  %v10847 = vmul.f32 %v10495, 0.2
  %v10848 = vmul.f32 %v10500, 0.2
  %v10849 = vmul.f32 %v10505, 0.2
  %v10850 = vmul.f32 %v10510, 0.2
  %v10851 = vmul.f32 %v10515, 0.2
  %v10852 = vmul.f32 %v10520, 0.2
  %v10853 = vmul.f32 %v10525, 0.2
  %v10854 = vmul.f32 %v10530, 0.2
  %v10855 = vmul.f32 %v10535, 0.2
  %v10856 = vmul.f32 %v10540, 0.2
  %v10857 = vmul.f32 %v10545, 0.2
  %v10858 = vmul.f32 %v10550, 0.2
  %v10859 = vmul.f32 %v10555, 0.2
  %v10860 = vmul.f32 %v10560, 0.2
  %v10861 = vmul.f32 %v10565, 0.2
  %v10862 = vmul.f32 %v10570, 0.2
  %v10863 = vmul.f32 %v10575, 0.2
  %v10864 = vmul.f32 %v10580, 0.2
  %v10865 = vmul.f32 %v10585, 0.2
  %v10866 = vmul.f32 %v10590, 0.2
  %v10867 = vmul.f32 %v10595, 0.2
  %v10868 = vmul.f32 %v10600, 0.2
  %v10869 = vmul.f32 %v10605, 0.2
  %v10870 = vmul.f32 %v10610, 0.2
  %v10871 = vmul.f32 %v10615, 0.2
  %v10872 = vmul.f32 %v10620, 0.2
  %v10873 = vmul.f32 %v10625, 0.2
  %v10874 = vmul.f32 %v10630, 0.2
  %v10875 = vmul.f32 %v10635, 0.2
  %v10876 = vmul.f32 %v10640, 0.2
  %v10877 = vmul.f32 %v10645, 0.2
  %v10878 = vmul.f32 %v10650, 0.2
  %v10879 = vmul.f32 %v10655, 0.2
  %v10880 = vmul.f32 %v10660, 0.2
  %v10881 = vmul.f32 %v10665, 0.2
  %v10882 = vmul.f32 %v10670, 0.2
  %v10883 = vmul.f32 %v10675, 0.2
  %v10884 = vmul.f32 %v10680, 0.2
  %v10885 = vmul.f32 %v10685, 0.2
  %v10886 = vmul.f32 %v10690, 0.2
  %v10887 = vmul.f32 %v10695, 0.2
  %v10888 = vmul.f32 %v10700, 0.2
  %v10889 = vmul.f32 %v10705, 0.2
  %v10890 = vmul.f32 %v10710, 0.2
  %v10891 = vmul.f32 %v10715, 0.2
  %v10892 = vmul.f32 %v10720, 0.2
  %v10893 = vmul.f32 %v10725, 0.2
  %v10894 = vmul.f32 %v10730, 0.2
  %v10895 = vsel %vm10733, %v10330, %v10814
  %v10896 = vsel %vm10734, %v10335, %v10815
  %v10897 = vsel %vm10735, %v10340, %v10816
  %v10898 = vsel %vm10736, %v10345, %v10817
  %v10899 = vsel %vm10737, %v10350, %v10818
  %v10900 = vsel %vm10738, %v10355, %v10819
  %v10901 = vsel %vm10739, %v10360, %v10820
  %v10902 = vsel %vm10740, %v10365, %v10821
  %v10903 = vsel %vm10741, %v10370, %v10822
  %v10904 = vsel %vm10742, %v10375, %v10823
  %v10905 = vsel %vm10743, %v10380, %v10824
  %v10906 = vsel %vm10744, %v10385, %v10825
  %v10907 = vsel %vm10745, %v10390, %v10826
  %v10908 = vsel %vm10746, %v10395, %v10827
  %v10909 = vsel %vm10747, %v10400, %v10828
  %v10910 = vsel %vm10748, %v10405, %v10829
  %v10911 = vsel %vm10749, %v10410, %v10830
  %v10912 = vsel %vm10750, %v10415, %v10831
  %v10913 = vsel %vm10751, %v10420, %v10832
  %v10914 = vsel %vm10752, %v10425, %v10833
  %v10915 = vsel %vm10753, %v10430, %v10834
  %v10916 = vsel %vm10754, %v10435, %v10835
  %v10917 = vsel %vm10755, %v10440, %v10836
  %v10918 = vsel %vm10756, %v10445, %v10837
  %v10919 = vsel %vm10757, %v10450, %v10838
  %v10920 = vsel %vm10758, %v10455, %v10839
  %v10921 = vsel %vm10759, %v10460, %v10840
  %v10922 = vsel %vm10760, %v10465, %v10841
  %v10923 = vsel %vm10761, %v10470, %v10842
  %v10924 = vsel %vm10762, %v10475, %v10843
  %v10925 = vsel %vm10763, %v10480, %v10844
  %v10926 = vsel %vm10764, %v10485, %v10845
  %v10927 = vsel %vm10765, %v10490, %v10846
  %v10928 = vsel %vm10766, %v10495, %v10847
  %v10929 = vsel %vm10767, %v10500, %v10848
  %v10930 = vsel %vm10768, %v10505, %v10849
  %v10931 = vsel %vm10769, %v10510, %v10850
  %v10932 = vsel %vm10770, %v10515, %v10851
  %v10933 = vsel %vm10771, %v10520, %v10852
  %v10934 = vsel %vm10772, %v10525, %v10853
  %v10935 = vsel %vm10773, %v10530, %v10854
  %v10936 = vsel %vm10774, %v10535, %v10855
  %v10937 = vsel %vm10775, %v10540, %v10856
  %v10938 = vsel %vm10776, %v10545, %v10857
  %v10939 = vsel %vm10777, %v10550, %v10858
  %v10940 = vsel %vm10778, %v10555, %v10859
  %v10941 = vsel %vm10779, %v10560, %v10860
  %v10942 = vsel %vm10780, %v10565, %v10861
  %v10943 = vsel %vm10781, %v10570, %v10862
  %v10944 = vsel %vm10782, %v10575, %v10863
  %v10945 = vsel %vm10783, %v10580, %v10864
  %v10946 = vsel %vm10784, %v10585, %v10865
  %v10947 = vsel %vm10785, %v10590, %v10866
  %v10948 = vsel %vm10786, %v10595, %v10867
  %v10949 = vsel %vm10787, %v10600, %v10868
  %v10950 = vsel %vm10788, %v10605, %v10869
  %v10951 = vsel %vm10789, %v10610, %v10870
  %v10952 = vsel %vm10790, %v10615, %v10871
  %v10953 = vsel %vm10791, %v10620, %v10872
  %v10954 = vsel %vm10792, %v10625, %v10873
  %v10955 = vsel %vm10793, %v10630, %v10874
  %v10956 = vsel %vm10794, %v10635, %v10875
  %v10957 = vsel %vm10795, %v10640, %v10876
  %v10958 = vsel %vm10796, %v10645, %v10877
  %v10959 = vsel %vm10797, %v10650, %v10878
  %v10960 = vsel %vm10798, %v10655, %v10879
  %v10961 = vsel %vm10799, %v10660, %v10880
  %v10962 = vsel %vm10800, %v10665, %v10881
  %v10963 = vsel %vm10801, %v10670, %v10882
  %v10964 = vsel %vm10802, %v10675, %v10883
  %v10965 = vsel %vm10803, %v10680, %v10884
  %v10966 = vsel %vm10804, %v10685, %v10885
  %v10967 = vsel %vm10805, %v10690, %v10886
  %v10968 = vsel %vm10806, %v10695, %v10887
  %v10969 = vsel %vm10807, %v10700, %v10888
  %v10970 = vsel %vm10808, %v10705, %v10889
  %v10971 = vsel %vm10809, %v10710, %v10890
  %v10972 = vsel %vm10810, %v10715, %v10891
  %v10973 = vsel %vm10811, %v10720, %v10892
  %v10974 = vsel %vm10812, %v10725, %v10893
  %v10975 = vsel %vm10813, %v10730, %v10894
  %v10976 = vmul.f32 %v10895, 1.4142135
  %v10977 = vmul.f32 %v10896, 1.4142135
  %v10978 = vmul.f32 %v10897, 1.4142135
  %v10979 = vmul.f32 %v10898, 1.4142135
  %v10980 = vmul.f32 %v10899, 1.4142135
  %v10981 = vmul.f32 %v10900, 1.4142135
  %v10982 = vmul.f32 %v10901, 1.4142135
  %v10983 = vmul.f32 %v10902, 1.4142135
  %v10984 = vmul.f32 %v10903, 1.4142135
  %v10985 = vmul.f32 %v10904, 1.4142135
  %v10986 = vmul.f32 %v10905, 1.4142135
  %v10987 = vmul.f32 %v10906, 1.4142135
  %v10988 = vmul.f32 %v10907, 1.4142135
  %v10989 = vmul.f32 %v10908, 1.4142135
  %v10990 = vmul.f32 %v10909, 1.4142135
  %v10991 = vmul.f32 %v10910, 1.4142135
  %v10992 = vmul.f32 %v10911, 1.4142135
  %v10993 = vmul.f32 %v10912, 1.4142135
  %v10994 = vmul.f32 %v10913, 1.4142135
  %v10995 = vmul.f32 %v10914, 1.4142135
  %v10996 = vmul.f32 %v10915, 1.4142135
  %v10997 = vmul.f32 %v10916, 1.4142135
  %v10998 = vmul.f32 %v10917, 1.4142135
  %v10999 = vmul.f32 %v10918, 1.4142135
  %v11000 = vmul.f32 %v10919, 1.4142135
  %v11001 = vmul.f32 %v10920, 1.4142135
  %v11002 = vmul.f32 %v10921, 1.4142135
  %v11003 = vmul.f32 %v10922, 1.4142135
  %v11004 = vmul.f32 %v10923, 1.4142135
  %v11005 = vmul.f32 %v10924, 1.4142135
  %v11006 = vmul.f32 %v10925, 1.4142135
  %v11007 = vmul.f32 %v10926, 1.4142135
  %v11008 = vmul.f32 %v10927, 1.4142135
  %v11009 = vmul.f32 %v10928, 1.4142135
  %v11010 = vmul.f32 %v10929, 1.4142135
  %v11011 = vmul.f32 %v10930, 1.4142135
  %v11012 = vmul.f32 %v10931, 1.4142135
  %v11013 = vmul.f32 %v10932, 1.4142135
  %v11014 = vmul.f32 %v10933, 1.4142135
  %v11015 = vmul.f32 %v10934, 1.4142135
  %v11016 = vmul.f32 %v10935, 1.4142135
  %v11017 = vmul.f32 %v10936, 1.4142135
  %v11018 = vmul.f32 %v10937, 1.4142135
  %v11019 = vmul.f32 %v10938, 1.4142135
  %v11020 = vmul.f32 %v10939, 1.4142135
  %v11021 = vmul.f32 %v10940, 1.4142135
  %v11022 = vmul.f32 %v10941, 1.4142135
  %v11023 = vmul.f32 %v10942, 1.4142135
  %v11024 = vmul.f32 %v10943, 1.4142135
  %v11025 = vmul.f32 %v10944, 1.4142135
  %v11026 = vmul.f32 %v10945, 1.4142135
  %v11027 = vmul.f32 %v10946, 1.4142135
  %v11028 = vmul.f32 %v10947, 1.4142135
  %v11029 = vmul.f32 %v10948, 1.4142135
  %v11030 = vmul.f32 %v10949, 1.4142135
  %v11031 = vmul.f32 %v10950, 1.4142135
  %v11032 = vmul.f32 %v10951, 1.4142135
  %v11033 = vmul.f32 %v10952, 1.4142135
  %v11034 = vmul.f32 %v10953, 1.4142135
  %v11035 = vmul.f32 %v10954, 1.4142135
  %v11036 = vmul.f32 %v10955, 1.4142135
  %v11037 = vmul.f32 %v10956, 1.4142135
  %v11038 = vmul.f32 %v10957, 1.4142135
  %v11039 = vmul.f32 %v10958, 1.4142135
  %v11040 = vmul.f32 %v10959, 1.4142135
  %v11041 = vmul.f32 %v10960, 1.4142135
  %v11042 = vmul.f32 %v10961, 1.4142135
  %v11043 = vmul.f32 %v10962, 1.4142135
  %v11044 = vmul.f32 %v10963, 1.4142135
  %v11045 = vmul.f32 %v10964, 1.4142135
  %v11046 = vmul.f32 %v10965, 1.4142135
  %v11047 = vmul.f32 %v10966, 1.4142135
  %v11048 = vmul.f32 %v10967, 1.4142135
  %v11049 = vmul.f32 %v10968, 1.4142135
  %v11050 = vmul.f32 %v10969, 1.4142135
  %v11051 = vmul.f32 %v10970, 1.4142135
  %v11052 = vmul.f32 %v10971, 1.4142135
  %v11053 = vmul.f32 %v10972, 1.4142135
  %v11054 = vmul.f32 %v10973, 1.4142135
  %v11055 = vmul.f32 %v10974, 1.4142135
  %v11056 = vmul.f32 %v10975, 1.4142135
  %v11057 = vld [vmem:[%s0 + $0x18] sm:$0xff]
  %v11058 = vld [vmem:[%s0 + $0x20] sm:$0xff]
  %v11059 = vld [vmem:[%s0 + $0x28] sm:$0xff]
  %v11060 = vld [vmem:[%s0 + $0x30] sm:$0xff]
  %v11061 = vld [vmem:[%s0 + $0x38] sm:$0xff]
  %v11062 = vld [vmem:[%s0 + $0x40] sm:$0xff]
  %v11063 = vld [vmem:[%s0 + $0x48] sm:$0xff]
  %v11064 = vld [vmem:[%s0 + $0x50] sm:$0xff]
  %v11065 = vld [vmem:[%s0 + $0x58] sm:$0xff]
  %v11066 = vld [vmem:[%s0 + $0x60] sm:$0xff]
  %v11067 = vld [vmem:[%s0 + $0x68] sm:$0xff]
  %v11068 = vld [vmem:[%s0 + $0x70] sm:$0xff]
  %v11069 = vld [vmem:[%s0 + $0x78] sm:$0xff]
  %v11070 = vld [vmem:[%s0 + $0x80] sm:$0xff]
  %v11071 = vld [vmem:[%s0 + $0x88] sm:$0xff]
  %v11072 = vld [vmem:[%s0 + $0x90] sm:$0xff]
  %v11073 = vld [vmem:[%s0 + $0x98] sm:$0xff]
  %v11074 = vld [vmem:[%s0 + $0xa0] sm:$0xff]
  %v11075 = vld [vmem:[%s0 + $0xa8] sm:$0xff]
  %v11076 = vld [vmem:[%s0 + $0xb0] sm:$0xff]
  %v11077 = vld [vmem:[%s0 + $0xb8] sm:$0xff]
  %v11078 = vld [vmem:[%s0 + $0xc0] sm:$0xff]
  %v11079 = vld [vmem:[%s0 + $0xc8] sm:$0xff]
  %v11080 = vld [vmem:[%s0 + $0xd0] sm:$0xff]
  %v11081 = vld [vmem:[%s0 + $0xd8] sm:$0xff]
  %v11082 = vld [vmem:[%s0 + $0xe0] sm:$0xff]
  %v11083 = vld [vmem:[%s0 + $0xe8] sm:$0xff]
  %v11084 = vld [vmem:[%s0 + $0xf0] sm:$0xff]
  %v11085 = vld [vmem:[%s0 + $0xf8] sm:$0xff]
  %v11086 = vld [vmem:[%s0 + $0x100] sm:$0xff]
  %v11087 = vld [vmem:[%s0 + $0x108] sm:$0xff]
  %v11088 = vld [vmem:[%s0 + $0x110] sm:$0xff]
  %v11089 = vld [vmem:[%s0 + $0x118] sm:$0xff]
  %v11090 = vld [vmem:[%s0 + $0x120] sm:$0xff]
  %v11091 = vld [vmem:[%s0 + $0x128] sm:$0xff]
  %v11092 = vld [vmem:[%s0 + $0x130] sm:$0xff]
  %v11093 = vld [vmem:[%s0 + $0x138] sm:$0xff]
  %v11094 = vld [vmem:[%s0 + $0x140] sm:$0xff]
  %v11095 = vld [vmem:[%s0 + $0x148] sm:$0xff]
  %v11096 = vld [vmem:[%s0 + $0x150] sm:$0xff]
  %v11097 = vld [vmem:[%s0 + $0x158] sm:$0xff]
  %v11098 = vld [vmem:[%s0 + $0x160] sm:$0xff]
  %v11099 = vld [vmem:[%s0 + $0x168] sm:$0xff]
  %v11100 = vld [vmem:[%s0 + $0x170] sm:$0xff]
  %v11101 = vld [vmem:[%s0 + $0x178] sm:$0xff]
  %v11102 = vld [vmem:[%s0 + $0x180] sm:$0xff]
  %v11103 = vld [vmem:[%s0 + $0x188] sm:$0xff]
  %v11104 = vld [vmem:[%s0 + $0x190] sm:$0xff]
  %v11105 = vld [vmem:[%s0 + $0x198] sm:$0xff]
  %v11106 = vld [vmem:[%s0 + $0x1a0] sm:$0xff]
  %v11107 = vld [vmem:[%s0 + $0x1a8] sm:$0xff]
  %v11108 = vld [vmem:[%s0 + $0x1b0] sm:$0xff]
  %v11109 = vld [vmem:[%s0 + $0x1b8] sm:$0xff]
  %v11110 = vld [vmem:[%s0 + $0x1c0] sm:$0xff]
  %v11111 = vld [vmem:[%s0 + $0x1c8] sm:$0xff]
  %v11112 = vld [vmem:[%s0 + $0x1d0] sm:$0xff]
  %v11113 = vld [vmem:[%s0 + $0x1d8] sm:$0xff]
  %v11114 = vld [vmem:[%s0 + $0x1e0] sm:$0xff]
  %v11115 = vld [vmem:[%s0 + $0x1e8] sm:$0xff]
  %v11116 = vld [vmem:[%s0 + $0x1f0] sm:$0xff]
  %v11117 = vld [vmem:[%s0 + $0x1f8] sm:$0xff]
  %v11118 = vld [vmem:[%s0 + $0x200] sm:$0xff]
  %v11119 = vld [vmem:[%s0 + $0x208] sm:$0xff]
  %v11120 = vld [vmem:[%s0 + $0x210] sm:$0xff]
  %v11121 = vld [vmem:[%s0 + $0x218] sm:$0xff]
  %v11122 = vld [vmem:[%s0 + $0x220] sm:$0xff]
  %v11123 = vld [vmem:[%s0 + $0x228] sm:$0xff]
  %v11124 = vld [vmem:[%s0 + $0x230] sm:$0xff]
  %v11125 = vld [vmem:[%s0 + $0x238] sm:$0xff]
  %v11126 = vld [vmem:[%s0 + $0x240] sm:$0xff]
  %v11127 = vld [vmem:[%s0 + $0x248] sm:$0xff]
  %v11128 = vld [vmem:[%s0 + $0x250] sm:$0xff]
  %v11129 = vld [vmem:[%s0 + $0x258] sm:$0xff]
  %v11130 = vld [vmem:[%s0 + $0x260] sm:$0xff]
  %v11131 = vld [vmem:[%s0 + $0x268] sm:$0xff]
  %v11132 = vld [vmem:[%s0 + $0x270] sm:$0xff]
  %v11133 = vld [vmem:[%s0 + $0x278] sm:$0xff]
  %v11134 = vld [vmem:[%s0 + $0x280] sm:$0xff]
  %v11135 = vld [vmem:[%s0 + $0x288] sm:$0xff]
  %v11136 = vld [vmem:[%s0 + $0x290] sm:$0xff]
  %v11137 = vld [vmem:[%s0 + $0x298] sm:$0xff]
  %v11138 = vld [vmem:[%s5] sm:$0xf]
  %v11140 = vsel %vm188, %v11057, 0
  %v11143 = vsel %vm188, %v11058, 0
  %v11146 = vsel %vm188, %v11059, 0
  %v11149 = vsel %vm188, %v11060, 0
  %v11152 = vsel %vm188, %v11061, 0
  %v11155 = vsel %vm188, %v11062, 0
  %v11158 = vsel %vm188, %v11063, 0
  %v11161 = vsel %vm188, %v11064, 0
  %v11164 = vsel %vm188, %v11065, 0
  %v11167 = vsel %vm188, %v11066, 0
  %v11170 = vsel %vm188, %v11067, 0
  %v11173 = vsel %vm188, %v11068, 0
  %v11176 = vsel %vm188, %v11069, 0
  %v11179 = vsel %vm188, %v11070, 0
  %v11182 = vsel %vm188, %v11071, 0
  %v11185 = vsel %vm188, %v11072, 0
  %v11188 = vsel %vm188, %v11073, 0
  %v11191 = vsel %vm188, %v11074, 0
  %v11194 = vsel %vm188, %v11075, 0
  %v11197 = vsel %vm188, %v11076, 0
  %v11200 = vsel %vm188, %v11077, 0
  %v11203 = vsel %vm188, %v11078, 0
  %v11206 = vsel %vm188, %v11079, 0
  %v11209 = vsel %vm188, %v11080, 0
  %v11212 = vsel %vm188, %v11081, 0
  %v11215 = vsel %vm188, %v11082, 0
  %v11218 = vsel %vm188, %v11083, 0
  %v11221 = vsel %vm188, %v11084, 0
  %v11224 = vsel %vm188, %v11085, 0
  %v11227 = vsel %vm188, %v11086, 0
  %v11230 = vsel %vm188, %v11087, 0
  %v11233 = vsel %vm188, %v11088, 0
  %v11236 = vsel %vm188, %v11089, 0
  %v11239 = vsel %vm188, %v11090, 0
  %v11242 = vsel %vm188, %v11091, 0
  %v11245 = vsel %vm188, %v11092, 0
  %v11248 = vsel %vm188, %v11093, 0
  %v11251 = vsel %vm188, %v11094, 0
  %v11254 = vsel %vm188, %v11095, 0
  %v11257 = vsel %vm188, %v11096, 0
  %v11260 = vsel %vm188, %v11097, 0
  %v11263 = vsel %vm188, %v11098, 0
  %v11266 = vsel %vm188, %v11099, 0
  %v11269 = vsel %vm188, %v11100, 0
  %v11272 = vsel %vm188, %v11101, 0
  %v11275 = vsel %vm188, %v11102, 0
  %v11278 = vsel %vm188, %v11103, 0
  %v11281 = vsel %vm188, %v11104, 0
  %v11284 = vsel %vm188, %v11105, 0
  %v11287 = vsel %vm188, %v11106, 0
  %v11290 = vsel %vm188, %v11107, 0
  %v11293 = vsel %vm188, %v11108, 0
  %v11296 = vsel %vm188, %v11109, 0
  %v11299 = vsel %vm188, %v11110, 0
  %v11302 = vsel %vm188, %v11111, 0
  %v11305 = vsel %vm188, %v11112, 0
  %v11308 = vsel %vm188, %v11113, 0
  %v11311 = vsel %vm188, %v11114, 0
  %v11314 = vsel %vm188, %v11115, 0
  %v11317 = vsel %vm188, %v11116, 0
  %v11320 = vsel %vm188, %v11117, 0
  %v11323 = vsel %vm188, %v11118, 0
  %v11326 = vsel %vm188, %v11119, 0
  %v11329 = vsel %vm188, %v11120, 0
  %v11332 = vsel %vm188, %v11121, 0
  %v11335 = vsel %vm188, %v11122, 0
  %v11338 = vsel %vm188, %v11123, 0
  %v11341 = vsel %vm188, %v11124, 0
  %v11344 = vsel %vm188, %v11125, 0
  %v11347 = vsel %vm188, %v11126, 0
  %v11350 = vsel %vm188, %v11127, 0
  %v11353 = vsel %vm188, %v11128, 0
  %v11356 = vsel %vm188, %v11129, 0
  %v11359 = vsel %vm188, %v11130, 0
  %v11362 = vsel %vm188, %v11131, 0
  %v11365 = vsel %vm188, %v11132, 0
  %v11368 = vsel %vm188, %v11133, 0
  %v11371 = vsel %vm188, %v11134, 0
  %v11374 = vsel %vm188, %v11135, 0
  %v11377 = vsel %vm188, %v11136, 0
  %v11380 = vsel %vm188, %v11137, 0
  %v11383 = vsel %vm4503, %v11138, 0
  %11385 = vmatprep.subr.mxu0 0.0
  %11386 = vmatpush1.msra.mxu0 %v11383
  %11387 = vmatprep.subr.mxu0 0.0
  %11388 = vmatpush1.msra.mxu0 0.0
  %11389 = vmatprep.subr.mxu0 0.0
  %11390 = vmatpush1.msra.mxu0 0.0
  %11391 = vmatprep.subr.mxu0 0.0
  %11392 = vmatpush1.msra.mxu0 0.0
  %11393 = vmatprep.subr.mxu0 0.0
  %11394 = vmatpush1.msra.mxu0 0.0
  %11395 = vmatprep.subr.mxu0 0.0
  %11396 = vmatpush1.msra.mxu0 0.0
  %11397 = vmatprep.subr.mxu0 0.0
  %11398 = vmatpush1.msra.mxu0 0.0
  %11399 = vmatprep.subr.mxu0 0.0
  %11400 = vmatpush1.msra.mxu0 0.0
  %11401 = vmatprep.subr.mxu0 0.0
  %11402 = vmatpush1.msra.mxu0 0.0
  %11403 = vmatprep.subr.mxu0 0.0
  %11404 = vmatpush1.msra.mxu0 0.0
  %11405 = vmatprep.subr.mxu0 0.0
  %11406 = vmatpush1.msra.mxu0 0.0
  %11407 = vmatprep.subr.mxu0 0.0
  %11408 = vmatpush1.msra.mxu0 0.0
  %11409 = vmatprep.subr.mxu0 0.0
  %11410 = vmatpush1.msra.mxu0 0.0
  %11411 = vmatprep.subr.mxu0 0.0
  %11412 = vmatpush1.msra.mxu0 0.0
  %11413 = vmatprep.subr.mxu0 0.0
  %11414 = vmatpush1.msra.mxu0 0.0
  %11415 = vmatprep.subr.mxu0 0.0
  %11416 = vmatpush1.msra.mxu0 0.0
  %11417 = vmatprep.subr.mxu0 0.0
  %11418 = vmatpush1.msra.mxu0 0.0
  %11419 = vmatprep.subr.mxu0 0.0
  %11420 = vmatpush1.msra.mxu0 0.0
  %11421 = vmatprep.subr.mxu0 0.0
  %11422 = vmatpush1.msra.mxu0 0.0
  %11423 = vmatprep.subr.mxu0 0.0
  %11424 = vmatpush1.msra.mxu0 0.0
  %11425 = vmatprep.subr.mxu0 0.0
  %11426 = vmatpush1.msra.mxu0 0.0
  %11427 = vmatprep.subr.mxu0 0.0
  %11428 = vmatpush1.msra.mxu0 0.0
  %11429 = vmatprep.subr.mxu0 0.0
  %11430 = vmatpush1.msra.mxu0 0.0
  %11431 = vmatprep.subr.mxu0 0.0
  %11432 = vmatpush1.msra.mxu0 0.0
  %11433 = vmatprep.subr.mxu0 0.0
  %11434 = vmatpush1.msra.mxu0 0.0
  %11435 = vmatprep.subr.mxu0 0.0
  %11436 = vmatpush1.msra.mxu0 0.0
  %11437 = vmatprep.subr.mxu0 0.0
  %11438 = vmatpush1.msra.mxu0 0.0
  %11439 = vmatprep.subr.mxu0 0.0
  %11440 = vmatpush1.msra.mxu0 0.0
  %11441 = vmatprep.subr.mxu0 0.0
  %11442 = vmatpush1.msra.mxu0 0.0
  %11443 = vmatprep.subr.mxu0 0.0
  %11444 = vmatpush1.msra.mxu0 0.0
  %11445 = vmatprep.subr.mxu0 0.0
  %11446 = vmatpush1.msra.mxu0 0.0
  %11447 = vmatprep.subr.mxu0 0.0
  %11448 = vmatpush1.msra.mxu0 0.0
  %11449 = vmatprep.mubr.f32.mxu0 0.0
  %11450 = vmatmul.mubr.f32.gmra.mrb[0].mxu0 %v11140
  %v11451 = vpop.f32.mrb[0].mxu0
  %v11452 = vadd.f32 0.0, %v11451
  %v11453 = vpop.f32.mrb[0].mxu0
  %11454 = vmatprep.mubr.f32.mxu0 0.0
  %11455 = vmatmul.mubr.f32.gmra.mrb[0].mxu0 %v11143
  %v11456 = vpop.f32.mrb[0].mxu0
  %v11457 = vadd.f32 0.0, %v11456
  %v11458 = vpop.f32.mrb[0].mxu0
  %11459 = vmatprep.mubr.f32.mxu0 0.0
  %11460 = vmatmul.mubr.f32.gmra.mrb[0].mxu0 %v11146
  %v11461 = vpop.f32.mrb[0].mxu0
  %v11462 = vadd.f32 0.0, %v11461
  %v11463 = vpop.f32.mrb[0].mxu0
  %11464 = vmatprep.mubr.f32.mxu0 0.0
  %11465 = vmatmul.mubr.f32.gmra.mrb[0].mxu0 %v11149
  %v11466 = vpop.f32.mrb[0].mxu0
  %v11467 = vadd.f32 0.0, %v11466
  %v11468 = vpop.f32.mrb[0].mxu0
  %11469 = vmatprep.mubr.f32.mxu0 0.0
  %11470 = vmatmul.mubr.f32.gmra.mrb[0].mxu0 %v11152
  %v11471 = vpop.f32.mrb[0].mxu0
  %v11472 = vadd.f32 0.0, %v11471
  %v11473 = vpop.f32.mrb[0].mxu0
  %11474 = vmatprep.mubr.f32.mxu0 0.0
  %11475 = vmatmul.mubr.f32.gmra.mrb[0].mxu0 %v11155
  %v11476 = vpop.f32.mrb[0].mxu0
  %v11477 = vadd.f32 0.0, %v11476
  %v11478 = vpop.f32.mrb[0].mxu0
  %11479 = vmatprep.mubr.f32.mxu0 0.0
  %11480 = vmatmul.mubr.f32.gmra.mrb[0].mxu0 %v11158
  %v11481 = vpop.f32.mrb[0].mxu0
  %v11482 = vadd.f32 0.0, %v11481
  %v11483 = vpop.f32.mrb[0].mxu0
  %11484 = vmatprep.mubr.f32.mxu0 0.0
  %11485 = vmatmul.mubr.f32.gmra.mrb[0].mxu0 %v11161
  %v11486 = vpop.f32.mrb[0].mxu0
  %v11487 = vadd.f32 0.0, %v11486
  %v11488 = vpop.f32.mrb[0].mxu0
  %11489 = vmatprep.mubr.f32.mxu0 0.0
  %11490 = vmatmul.mubr.f32.gmra.mrb[0].mxu0 %v11164
  %v11491 = vpop.f32.mrb[0].mxu0
  %v11492 = vadd.f32 0.0, %v11491
  %v11493 = vpop.f32.mrb[0].mxu0
  %11494 = vmatprep.mubr.f32.mxu0 0.0
  %11495 = vmatmul.mubr.f32.gmra.mrb[0].mxu0 %v11167
  %v11496 = vpop.f32.mrb[0].mxu0
  %v11497 = vadd.f32 0.0, %v11496
  %v11498 = vpop.f32.mrb[0].mxu0
  %11499 = vmatprep.mubr.f32.mxu0 0.0
  %11500 = vmatmul.mubr.f32.gmra.mrb[0].mxu0 %v11170
  %v11501 = vpop.f32.mrb[0].mxu0
  %v11502 = vadd.f32 0.0, %v11501
  %v11503 = vpop.f32.mrb[0].mxu0
  %11504 = vmatprep.mubr.f32.mxu0 0.0
  %11505 = vmatmul.mubr.f32.gmra.mrb[0].mxu0 %v11173
  %v11506 = vpop.f32.mrb[0].mxu0
  %v11507 = vadd.f32 0.0, %v11506
  %v11508 = vpop.f32.mrb[0].mxu0
  %11509 = vmatprep.mubr.f32.mxu0 0.0
  %11510 = vmatmul.mubr.f32.gmra.mrb[0].mxu0 %v11176
  %v11511 = vpop.f32.mrb[0].mxu0
  %v11512 = vadd.f32 0.0, %v11511
  %v11513 = vpop.f32.mrb[0].mxu0
  %11514 = vmatprep.mubr.f32.mxu0 0.0
  %11515 = vmatmul.mubr.f32.gmra.mrb[0].mxu0 %v11179
  %v11516 = vpop.f32.mrb[0].mxu0
  %v11517 = vadd.f32 0.0, %v11516
  %v11518 = vpop.f32.mrb[0].mxu0
  %11519 = vmatprep.mubr.f32.mxu0 0.0
  %11520 = vmatmul.mubr.f32.gmra.mrb[0].mxu0 %v11182
  %v11521 = vpop.f32.mrb[0].mxu0
  %v11522 = vadd.f32 0.0, %v11521
  %v11523 = vpop.f32.mrb[0].mxu0
  %11524 = vmatprep.mubr.f32.mxu0 0.0
  %11525 = vmatmul.mubr.f32.gmra.mrb[0].mxu0 %v11185
  %v11526 = vpop.f32.mrb[0].mxu0
  %v11527 = vadd.f32 0.0, %v11526
  %v11528 = vpop.f32.mrb[0].mxu0
  %11529 = vmatprep.mubr.f32.mxu0 0.0
  %11530 = vmatmul.mubr.f32.gmra.mrb[0].mxu0 %v11188
  %v11531 = vpop.f32.mrb[0].mxu0
  %v11532 = vadd.f32 0.0, %v11531
  %v11533 = vpop.f32.mrb[0].mxu0
  %11534 = vmatprep.mubr.f32.mxu0 0.0
  %11535 = vmatmul.mubr.f32.gmra.mrb[0].mxu0 %v11191
  %v11536 = vpop.f32.mrb[0].mxu0
  %v11537 = vadd.f32 0.0, %v11536
  %v11538 = vpop.f32.mrb[0].mxu0
  %11539 = vmatprep.mubr.f32.mxu0 0.0
  %11540 = vmatmul.mubr.f32.gmra.mrb[0].mxu0 %v11194
  %v11541 = vpop.f32.mrb[0].mxu0
  %v11542 = vadd.f32 0.0, %v11541
  %v11543 = vpop.f32.mrb[0].mxu0
  %11544 = vmatprep.mubr.f32.mxu0 0.0
  %11545 = vmatmul.mubr.f32.gmra.mrb[0].mxu0 %v11197
  %v11546 = vpop.f32.mrb[0].mxu0
  %v11547 = vadd.f32 0.0, %v11546
  %v11548 = vpop.f32.mrb[0].mxu0
  %11549 = vmatprep.mubr.f32.mxu0 0.0
  %11550 = vmatmul.mubr.f32.gmra.mrb[0].mxu0 %v11200
  %v11551 = vpop.f32.mrb[0].mxu0
  %v11552 = vadd.f32 0.0, %v11551
  %v11553 = vpop.f32.mrb[0].mxu0
  %11554 = vmatprep.mubr.f32.mxu0 0.0
  %11555 = vmatmul.mubr.f32.gmra.mrb[0].mxu0 %v11203
  %v11556 = vpop.f32.mrb[0].mxu0
  %v11557 = vadd.f32 0.0, %v11556
  %v11558 = vpop.f32.mrb[0].mxu0
  %11559 = vmatprep.mubr.f32.mxu0 0.0
  %11560 = vmatmul.mubr.f32.gmra.mrb[0].mxu0 %v11206
  %v11561 = vpop.f32.mrb[0].mxu0
  %v11562 = vadd.f32 0.0, %v11561
  %v11563 = vpop.f32.mrb[0].mxu0
  %11564 = vmatprep.mubr.f32.mxu0 0.0
  %11565 = vmatmul.mubr.f32.gmra.mrb[0].mxu0 %v11209
  %v11566 = vpop.f32.mrb[0].mxu0
  %v11567 = vadd.f32 0.0, %v11566
  %v11568 = vpop.f32.mrb[0].mxu0
  %11569 = vmatprep.mubr.f32.mxu0 0.0
  %11570 = vmatmul.mubr.f32.gmra.mrb[0].mxu0 %v11212
  %v11571 = vpop.f32.mrb[0].mxu0
  %v11572 = vadd.f32 0.0, %v11571
  %v11573 = vpop.f32.mrb[0].mxu0
  %11574 = vmatprep.mubr.f32.mxu0 0.0
  %11575 = vmatmul.mubr.f32.gmra.mrb[0].mxu0 %v11215
  %v11576 = vpop.f32.mrb[0].mxu0
  %v11577 = vadd.f32 0.0, %v11576
  %v11578 = vpop.f32.mrb[0].mxu0
  %11579 = vmatprep.mubr.f32.mxu0 0.0
  %11580 = vmatmul.mubr.f32.gmra.mrb[0].mxu0 %v11218
  %v11581 = vpop.f32.mrb[0].mxu0
  %v11582 = vadd.f32 0.0, %v11581
  %v11583 = vpop.f32.mrb[0].mxu0
  %11584 = vmatprep.mubr.f32.mxu0 0.0
  %11585 = vmatmul.mubr.f32.gmra.mrb[0].mxu0 %v11221
  %v11586 = vpop.f32.mrb[0].mxu0
  %v11587 = vadd.f32 0.0, %v11586
  %v11588 = vpop.f32.mrb[0].mxu0
  %11589 = vmatprep.mubr.f32.mxu0 0.0
  %11590 = vmatmul.mubr.f32.gmra.mrb[0].mxu0 %v11224
  %v11591 = vpop.f32.mrb[0].mxu0
  %v11592 = vadd.f32 0.0, %v11591
  %v11593 = vpop.f32.mrb[0].mxu0
  %11594 = vmatprep.mubr.f32.mxu0 0.0
  %11595 = vmatmul.mubr.f32.gmra.mrb[0].mxu0 %v11227
  %v11596 = vpop.f32.mrb[0].mxu0
  %v11597 = vadd.f32 0.0, %v11596
  %v11598 = vpop.f32.mrb[0].mxu0
  %11599 = vmatprep.mubr.f32.mxu0 0.0
  %11600 = vmatmul.mubr.f32.gmra.mrb[0].mxu0 %v11230
  %v11601 = vpop.f32.mrb[0].mxu0
  %v11602 = vadd.f32 0.0, %v11601
  %v11603 = vpop.f32.mrb[0].mxu0
  %11604 = vmatprep.mubr.f32.mxu0 0.0
  %11605 = vmatmul.mubr.f32.gmra.mrb[0].mxu0 %v11233
  %v11606 = vpop.f32.mrb[0].mxu0
  %v11607 = vadd.f32 0.0, %v11606
  %v11608 = vpop.f32.mrb[0].mxu0
  %11609 = vmatprep.mubr.f32.mxu0 0.0
  %11610 = vmatmul.mubr.f32.gmra.mrb[0].mxu0 %v11236
  %v11611 = vpop.f32.mrb[0].mxu0
  %v11612 = vadd.f32 0.0, %v11611
  %v11613 = vpop.f32.mrb[0].mxu0
  %11614 = vmatprep.mubr.f32.mxu0 0.0
  %11615 = vmatmul.mubr.f32.gmra.mrb[0].mxu0 %v11239
  %v11616 = vpop.f32.mrb[0].mxu0
  %v11617 = vadd.f32 0.0, %v11616
  %v11618 = vpop.f32.mrb[0].mxu0
  %11619 = vmatprep.mubr.f32.mxu0 0.0
  %11620 = vmatmul.mubr.f32.gmra.mrb[0].mxu0 %v11242
  %v11621 = vpop.f32.mrb[0].mxu0
  %v11622 = vadd.f32 0.0, %v11621
  %v11623 = vpop.f32.mrb[0].mxu0
  %11624 = vmatprep.mubr.f32.mxu0 0.0
  %11625 = vmatmul.mubr.f32.gmra.mrb[0].mxu0 %v11245
  %v11626 = vpop.f32.mrb[0].mxu0
  %v11627 = vadd.f32 0.0, %v11626
  %v11628 = vpop.f32.mrb[0].mxu0
  %11629 = vmatprep.mubr.f32.mxu0 0.0
  %11630 = vmatmul.mubr.f32.gmra.mrb[0].mxu0 %v11248
  %v11631 = vpop.f32.mrb[0].mxu0
  %v11632 = vadd.f32 0.0, %v11631
  %v11633 = vpop.f32.mrb[0].mxu0
  %11634 = vmatprep.mubr.f32.mxu0 0.0
  %11635 = vmatmul.mubr.f32.gmra.mrb[0].mxu0 %v11251
  %v11636 = vpop.f32.mrb[0].mxu0
  %v11637 = vadd.f32 0.0, %v11636
  %v11638 = vpop.f32.mrb[0].mxu0
  %11639 = vmatprep.mubr.f32.mxu0 0.0
  %11640 = vmatmul.mubr.f32.gmra.mrb[0].mxu0 %v11254
  %v11641 = vpop.f32.mrb[0].mxu0
  %v11642 = vadd.f32 0.0, %v11641
  %v11643 = vpop.f32.mrb[0].mxu0
  %11644 = vmatprep.mubr.f32.mxu0 0.0
  %11645 = vmatmul.mubr.f32.gmra.mrb[0].mxu0 %v11257
  %v11646 = vpop.f32.mrb[0].mxu0
  %v11647 = vadd.f32 0.0, %v11646
  %v11648 = vpop.f32.mrb[0].mxu0
  %11649 = vmatprep.mubr.f32.mxu0 0.0
  %11650 = vmatmul.mubr.f32.gmra.mrb[0].mxu0 %v11260
  %v11651 = vpop.f32.mrb[0].mxu0
  %v11652 = vadd.f32 0.0, %v11651
  %v11653 = vpop.f32.mrb[0].mxu0
  %11654 = vmatprep.mubr.f32.mxu0 0.0
  %11655 = vmatmul.mubr.f32.gmra.mrb[0].mxu0 %v11263
  %v11656 = vpop.f32.mrb[0].mxu0
  %v11657 = vadd.f32 0.0, %v11656
  %v11658 = vpop.f32.mrb[0].mxu0
  %11659 = vmatprep.mubr.f32.mxu0 0.0
  %11660 = vmatmul.mubr.f32.gmra.mrb[0].mxu0 %v11266
  %v11661 = vpop.f32.mrb[0].mxu0
  %v11662 = vadd.f32 0.0, %v11661
  %v11663 = vpop.f32.mrb[0].mxu0
  %11664 = vmatprep.mubr.f32.mxu0 0.0
  %11665 = vmatmul.mubr.f32.gmra.mrb[0].mxu0 %v11269
  %v11666 = vpop.f32.mrb[0].mxu0
  %v11667 = vadd.f32 0.0, %v11666
  %v11668 = vpop.f32.mrb[0].mxu0
  %11669 = vmatprep.mubr.f32.mxu0 0.0
  %11670 = vmatmul.mubr.f32.gmra.mrb[0].mxu0 %v11272
  %v11671 = vpop.f32.mrb[0].mxu0
  %v11672 = vadd.f32 0.0, %v11671
  %v11673 = vpop.f32.mrb[0].mxu0
  %11674 = vmatprep.mubr.f32.mxu0 0.0
  %11675 = vmatmul.mubr.f32.gmra.mrb[0].mxu0 %v11275
  %v11676 = vpop.f32.mrb[0].mxu0
  %v11677 = vadd.f32 0.0, %v11676
  %v11678 = vpop.f32.mrb[0].mxu0
  %11679 = vmatprep.mubr.f32.mxu0 0.0
  %11680 = vmatmul.mubr.f32.gmra.mrb[0].mxu0 %v11278
  %v11681 = vpop.f32.mrb[0].mxu0
  %v11682 = vadd.f32 0.0, %v11681
  %v11683 = vpop.f32.mrb[0].mxu0
  %11684 = vmatprep.mubr.f32.mxu0 0.0
  %11685 = vmatmul.mubr.f32.gmra.mrb[0].mxu0 %v11281
  %v11686 = vpop.f32.mrb[0].mxu0
  %v11687 = vadd.f32 0.0, %v11686
  %v11688 = vpop.f32.mrb[0].mxu0
  %11689 = vmatprep.mubr.f32.mxu0 0.0
  %11690 = vmatmul.mubr.f32.gmra.mrb[0].mxu0 %v11284
  %v11691 = vpop.f32.mrb[0].mxu0
  %v11692 = vadd.f32 0.0, %v11691
  %v11693 = vpop.f32.mrb[0].mxu0
  %11694 = vmatprep.mubr.f32.mxu0 0.0
  %11695 = vmatmul.mubr.f32.gmra.mrb[0].mxu0 %v11287
  %v11696 = vpop.f32.mrb[0].mxu0
  %v11697 = vadd.f32 0.0, %v11696
  %v11698 = vpop.f32.mrb[0].mxu0
  %11699 = vmatprep.mubr.f32.mxu0 0.0
  %11700 = vmatmul.mubr.f32.gmra.mrb[0].mxu0 %v11290
  %v11701 = vpop.f32.mrb[0].mxu0
  %v11702 = vadd.f32 0.0, %v11701
  %v11703 = vpop.f32.mrb[0].mxu0
  %11704 = vmatprep.mubr.f32.mxu0 0.0
  %11705 = vmatmul.mubr.f32.gmra.mrb[0].mxu0 %v11293
  %v11706 = vpop.f32.mrb[0].mxu0
  %v11707 = vadd.f32 0.0, %v11706
  %v11708 = vpop.f32.mrb[0].mxu0
  %11709 = vmatprep.mubr.f32.mxu0 0.0
  %11710 = vmatmul.mubr.f32.gmra.mrb[0].mxu0 %v11296
  %v11711 = vpop.f32.mrb[0].mxu0
  %v11712 = vadd.f32 0.0, %v11711
  %v11713 = vpop.f32.mrb[0].mxu0
  %11714 = vmatprep.mubr.f32.mxu0 0.0
  %11715 = vmatmul.mubr.f32.gmra.mrb[0].mxu0 %v11299
  %v11716 = vpop.f32.mrb[0].mxu0
  %v11717 = vadd.f32 0.0, %v11716
  %v11718 = vpop.f32.mrb[0].mxu0
  %11719 = vmatprep.mubr.f32.mxu0 0.0
  %11720 = vmatmul.mubr.f32.gmra.mrb[0].mxu0 %v11302
  %v11721 = vpop.f32.mrb[0].mxu0
  %v11722 = vadd.f32 0.0, %v11721
  %v11723 = vpop.f32.mrb[0].mxu0
  %11724 = vmatprep.mubr.f32.mxu0 0.0
  %11725 = vmatmul.mubr.f32.gmra.mrb[0].mxu0 %v11305
  %v11726 = vpop.f32.mrb[0].mxu0
  %v11727 = vadd.f32 0.0, %v11726
  %v11728 = vpop.f32.mrb[0].mxu0
  %11729 = vmatprep.mubr.f32.mxu0 0.0
  %11730 = vmatmul.mubr.f32.gmra.mrb[0].mxu0 %v11308
  %v11731 = vpop.f32.mrb[0].mxu0
  %v11732 = vadd.f32 0.0, %v11731
  %v11733 = vpop.f32.mrb[0].mxu0
  %11734 = vmatprep.mubr.f32.mxu0 0.0
  %11735 = vmatmul.mubr.f32.gmra.mrb[0].mxu0 %v11311
  %v11736 = vpop.f32.mrb[0].mxu0
  %v11737 = vadd.f32 0.0, %v11736
  %v11738 = vpop.f32.mrb[0].mxu0
  %11739 = vmatprep.mubr.f32.mxu0 0.0
  %11740 = vmatmul.mubr.f32.gmra.mrb[0].mxu0 %v11314
  %v11741 = vpop.f32.mrb[0].mxu0
  %v11742 = vadd.f32 0.0, %v11741
  %v11743 = vpop.f32.mrb[0].mxu0
  %11744 = vmatprep.mubr.f32.mxu0 0.0
  %11745 = vmatmul.mubr.f32.gmra.mrb[0].mxu0 %v11317
  %v11746 = vpop.f32.mrb[0].mxu0
  %v11747 = vadd.f32 0.0, %v11746
  %v11748 = vpop.f32.mrb[0].mxu0
  %11749 = vmatprep.mubr.f32.mxu0 0.0
  %11750 = vmatmul.mubr.f32.gmra.mrb[0].mxu0 %v11320
  %v11751 = vpop.f32.mrb[0].mxu0
  %v11752 = vadd.f32 0.0, %v11751
  %v11753 = vpop.f32.mrb[0].mxu0
  %11754 = vmatprep.mubr.f32.mxu0 0.0
  %11755 = vmatmul.mubr.f32.gmra.mrb[0].mxu0 %v11323
  %v11756 = vpop.f32.mrb[0].mxu0
  %v11757 = vadd.f32 0.0, %v11756
  %v11758 = vpop.f32.mrb[0].mxu0
  %11759 = vmatprep.mubr.f32.mxu0 0.0
  %11760 = vmatmul.mubr.f32.gmra.mrb[0].mxu0 %v11326
  %v11761 = vpop.f32.mrb[0].mxu0
  %v11762 = vadd.f32 0.0, %v11761
  %v11763 = vpop.f32.mrb[0].mxu0
  %11764 = vmatprep.mubr.f32.mxu0 0.0
  %11765 = vmatmul.mubr.f32.gmra.mrb[0].mxu0 %v11329
  %v11766 = vpop.f32.mrb[0].mxu0
  %v11767 = vadd.f32 0.0, %v11766
  %v11768 = vpop.f32.mrb[0].mxu0
  %11769 = vmatprep.mubr.f32.mxu0 0.0
  %11770 = vmatmul.mubr.f32.gmra.mrb[0].mxu0 %v11332
  %v11771 = vpop.f32.mrb[0].mxu0
  %v11772 = vadd.f32 0.0, %v11771
  %v11773 = vpop.f32.mrb[0].mxu0
  %11774 = vmatprep.mubr.f32.mxu0 0.0
  %11775 = vmatmul.mubr.f32.gmra.mrb[0].mxu0 %v11335
  %v11776 = vpop.f32.mrb[0].mxu0
  %v11777 = vadd.f32 0.0, %v11776
  %v11778 = vpop.f32.mrb[0].mxu0
  %11779 = vmatprep.mubr.f32.mxu0 0.0
  %11780 = vmatmul.mubr.f32.gmra.mrb[0].mxu0 %v11338
  %v11781 = vpop.f32.mrb[0].mxu0
  %v11782 = vadd.f32 0.0, %v11781
  %v11783 = vpop.f32.mrb[0].mxu0
  %11784 = vmatprep.mubr.f32.mxu0 0.0
  %11785 = vmatmul.mubr.f32.gmra.mrb[0].mxu0 %v11341
  %v11786 = vpop.f32.mrb[0].mxu0
  %v11787 = vadd.f32 0.0, %v11786
  %v11788 = vpop.f32.mrb[0].mxu0
  %11789 = vmatprep.mubr.f32.mxu0 0.0
  %11790 = vmatmul.mubr.f32.gmra.mrb[0].mxu0 %v11344
  %v11791 = vpop.f32.mrb[0].mxu0
  %v11792 = vadd.f32 0.0, %v11791
  %v11793 = vpop.f32.mrb[0].mxu0
  %11794 = vmatprep.mubr.f32.mxu0 0.0
  %11795 = vmatmul.mubr.f32.gmra.mrb[0].mxu0 %v11347
  %v11796 = vpop.f32.mrb[0].mxu0
  %v11797 = vadd.f32 0.0, %v11796
  %v11798 = vpop.f32.mrb[0].mxu0
  %11799 = vmatprep.mubr.f32.mxu0 0.0
  %11800 = vmatmul.mubr.f32.gmra.mrb[0].mxu0 %v11350
  %v11801 = vpop.f32.mrb[0].mxu0
  %v11802 = vadd.f32 0.0, %v11801
  %v11803 = vpop.f32.mrb[0].mxu0
  %11804 = vmatprep.mubr.f32.mxu0 0.0
  %11805 = vmatmul.mubr.f32.gmra.mrb[0].mxu0 %v11353
  %v11806 = vpop.f32.mrb[0].mxu0
  %v11807 = vadd.f32 0.0, %v11806
  %v11808 = vpop.f32.mrb[0].mxu0
  %11809 = vmatprep.mubr.f32.mxu0 0.0
  %11810 = vmatmul.mubr.f32.gmra.mrb[0].mxu0 %v11356
  %v11811 = vpop.f32.mrb[0].mxu0
  %v11812 = vadd.f32 0.0, %v11811
  %v11813 = vpop.f32.mrb[0].mxu0
  %11814 = vmatprep.mubr.f32.mxu0 0.0
  %11815 = vmatmul.mubr.f32.gmra.mrb[0].mxu0 %v11359
  %v11816 = vpop.f32.mrb[0].mxu0
  %v11817 = vadd.f32 0.0, %v11816
  %v11818 = vpop.f32.mrb[0].mxu0
  %11819 = vmatprep.mubr.f32.mxu0 0.0
  %11820 = vmatmul.mubr.f32.gmra.mrb[0].mxu0 %v11362
  %v11821 = vpop.f32.mrb[0].mxu0
  %v11822 = vadd.f32 0.0, %v11821
  %v11823 = vpop.f32.mrb[0].mxu0
  %11824 = vmatprep.mubr.f32.mxu0 0.0
  %11825 = vmatmul.mubr.f32.gmra.mrb[0].mxu0 %v11365
  %v11826 = vpop.f32.mrb[0].mxu0
  %v11827 = vadd.f32 0.0, %v11826
  %v11828 = vpop.f32.mrb[0].mxu0
  %11829 = vmatprep.mubr.f32.mxu0 0.0
  %11830 = vmatmul.mubr.f32.gmra.mrb[0].mxu0 %v11368
  %v11831 = vpop.f32.mrb[0].mxu0
  %v11832 = vadd.f32 0.0, %v11831
  %v11833 = vpop.f32.mrb[0].mxu0
  %11834 = vmatprep.mubr.f32.mxu0 0.0
  %11835 = vmatmul.mubr.f32.gmra.mrb[0].mxu0 %v11371
  %v11836 = vpop.f32.mrb[0].mxu0
  %v11837 = vadd.f32 0.0, %v11836
  %v11838 = vpop.f32.mrb[0].mxu0
  %11839 = vmatprep.mubr.f32.mxu0 0.0
  %11840 = vmatmul.mubr.f32.gmra.mrb[0].mxu0 %v11374
  %v11841 = vpop.f32.mrb[0].mxu0
  %v11842 = vadd.f32 0.0, %v11841
  %v11843 = vpop.f32.mrb[0].mxu0
  %11844 = vmatprep.mubr.f32.mxu0 0.0
  %11845 = vmatmul.mubr.f32.gmra.mrb[0].mxu0 %v11377
  %v11846 = vpop.f32.mrb[0].mxu0
  %v11847 = vadd.f32 0.0, %v11846
  %v11848 = vpop.f32.mrb[0].mxu0
  %11849 = vmatprep.mubr.f32.mxu0 0.0
  %11850 = vmatmul.mubr.f32.gmra.mrb[0].mxu0 %v11380
  %v11851 = vpop.f32.mrb[0].mxu0
  %v11852 = vadd.f32 0.0, %v11851
  %v11853 = vpop.f32.mrb[0].mxu0
  %11854 = vdwg.mxu0
  %v11855 = vadd.f32 %v10976, %v11452
  %v11856 = vadd.f32 %v10977, %v11457
  %v11857 = vadd.f32 %v10978, %v11462
  %v11858 = vadd.f32 %v10979, %v11467
  %v11859 = vadd.f32 %v10980, %v11472
  %v11860 = vadd.f32 %v10981, %v11477
  %v11861 = vadd.f32 %v10982, %v11482
  %v11862 = vadd.f32 %v10983, %v11487
  %v11863 = vadd.f32 %v10984, %v11492
  %v11864 = vadd.f32 %v10985, %v11497
  %v11865 = vadd.f32 %v10986, %v11502
  %v11866 = vadd.f32 %v10987, %v11507
  %v11867 = vadd.f32 %v10988, %v11512
  %v11868 = vadd.f32 %v10989, %v11517
  %v11869 = vadd.f32 %v10990, %v11522
  %v11870 = vadd.f32 %v10991, %v11527
  %v11871 = vadd.f32 %v10992, %v11532
  %v11872 = vadd.f32 %v10993, %v11537
  %v11873 = vadd.f32 %v10994, %v11542
  %v11874 = vadd.f32 %v10995, %v11547
  %v11875 = vadd.f32 %v10996, %v11552
  %v11876 = vadd.f32 %v10997, %v11557
  %v11877 = vadd.f32 %v10998, %v11562
  %v11878 = vadd.f32 %v10999, %v11567
  %v11879 = vadd.f32 %v11000, %v11572
  %v11880 = vadd.f32 %v11001, %v11577
  %v11881 = vadd.f32 %v11002, %v11582
  %v11882 = vadd.f32 %v11003, %v11587
  %v11883 = vadd.f32 %v11004, %v11592
  %v11884 = vadd.f32 %v11005, %v11597
  %v11885 = vadd.f32 %v11006, %v11602
  %v11886 = vadd.f32 %v11007, %v11607
  %v11887 = vadd.f32 %v11008, %v11612
  %v11888 = vadd.f32 %v11009, %v11617
  %v11889 = vadd.f32 %v11010, %v11622
  %v11890 = vadd.f32 %v11011, %v11627
  %v11891 = vadd.f32 %v11012, %v11632
  %v11892 = vadd.f32 %v11013, %v11637
  %v11893 = vadd.f32 %v11014, %v11642
  %v11894 = vadd.f32 %v11015, %v11647
  %v11895 = vadd.f32 %v11016, %v11652
  %v11896 = vadd.f32 %v11017, %v11657
  %v11897 = vadd.f32 %v11018, %v11662
  %v11898 = vadd.f32 %v11019, %v11667
  %v11899 = vadd.f32 %v11020, %v11672
  %v11900 = vadd.f32 %v11021, %v11677
  %v11901 = vadd.f32 %v11022, %v11682
  %v11902 = vadd.f32 %v11023, %v11687
  %v11903 = vadd.f32 %v11024, %v11692
  %v11904 = vadd.f32 %v11025, %v11697
  %v11905 = vadd.f32 %v11026, %v11702
  %v11906 = vadd.f32 %v11027, %v11707
  %v11907 = vadd.f32 %v11028, %v11712
  %v11908 = vadd.f32 %v11029, %v11717
  %v11909 = vadd.f32 %v11030, %v11722
  %v11910 = vadd.f32 %v11031, %v11727
  %v11911 = vadd.f32 %v11032, %v11732
  %v11912 = vadd.f32 %v11033, %v11737
  %v11913 = vadd.f32 %v11034, %v11742
  %v11914 = vadd.f32 %v11035, %v11747
  %v11915 = vadd.f32 %v11036, %v11752
  %v11916 = vadd.f32 %v11037, %v11757
  %v11917 = vadd.f32 %v11038, %v11762
  %v11918 = vadd.f32 %v11039, %v11767
  %v11919 = vadd.f32 %v11040, %v11772
  %v11920 = vadd.f32 %v11041, %v11777
  %v11921 = vadd.f32 %v11042, %v11782
  %v11922 = vadd.f32 %v11043, %v11787
  %v11923 = vadd.f32 %v11044, %v11792
  %v11924 = vadd.f32 %v11045, %v11797
  %v11925 = vadd.f32 %v11046, %v11802
  %v11926 = vadd.f32 %v11047, %v11807
  %v11927 = vadd.f32 %v11048, %v11812
  %v11928 = vadd.f32 %v11049, %v11817
  %v11929 = vadd.f32 %v11050, %v11822
  %v11930 = vadd.f32 %v11051, %v11827
  %v11931 = vadd.f32 %v11052, %v11832
  %v11932 = vadd.f32 %v11053, %v11837
  %v11933 = vadd.f32 %v11054, %v11842
  %v11934 = vadd.f32 %v11055, %v11847
  %v11935 = vadd.f32 %v11056, %v11852
  %v11936 = vmul.f32 %v11855, 0.70710677
  %v11937 = vmul.f32 %v11856, 0.70710677
  %v11938 = vmul.f32 %v11857, 0.70710677
  %v11939 = vmul.f32 %v11858, 0.70710677
  %v11940 = vmul.f32 %v11859, 0.70710677
  %v11941 = vmul.f32 %v11860, 0.70710677
  %v11942 = vmul.f32 %v11861, 0.70710677
  %v11943 = vmul.f32 %v11862, 0.70710677
  %v11944 = vmul.f32 %v11863, 0.70710677
  %v11945 = vmul.f32 %v11864, 0.70710677
  %v11946 = vmul.f32 %v11865, 0.70710677
  %v11947 = vmul.f32 %v11866, 0.70710677
  %v11948 = vmul.f32 %v11867, 0.70710677
  %v11949 = vmul.f32 %v11868, 0.70710677
  %v11950 = vmul.f32 %v11869, 0.70710677
  %v11951 = vmul.f32 %v11870, 0.70710677
  %v11952 = vmul.f32 %v11871, 0.70710677
  %v11953 = vmul.f32 %v11872, 0.70710677
  %v11954 = vmul.f32 %v11873, 0.70710677
  %v11955 = vmul.f32 %v11874, 0.70710677
  %v11956 = vmul.f32 %v11875, 0.70710677
  %v11957 = vmul.f32 %v11876, 0.70710677
  %v11958 = vmul.f32 %v11877, 0.70710677
  %v11959 = vmul.f32 %v11878, 0.70710677
  %v11960 = vmul.f32 %v11879, 0.70710677
  %v11961 = vmul.f32 %v11880, 0.70710677
  %v11962 = vmul.f32 %v11881, 0.70710677
  %v11963 = vmul.f32 %v11882, 0.70710677
  %v11964 = vmul.f32 %v11883, 0.70710677
  %v11965 = vmul.f32 %v11884, 0.70710677
  %v11966 = vmul.f32 %v11885, 0.70710677
  %v11967 = vmul.f32 %v11886, 0.70710677
  %v11968 = vmul.f32 %v11887, 0.70710677
  %v11969 = vmul.f32 %v11888, 0.70710677
  %v11970 = vmul.f32 %v11889, 0.70710677
  %v11971 = vmul.f32 %v11890, 0.70710677
  %v11972 = vmul.f32 %v11891, 0.70710677
  %v11973 = vmul.f32 %v11892, 0.70710677
  %v11974 = vmul.f32 %v11893, 0.70710677
  %v11975 = vmul.f32 %v11894, 0.70710677
  %v11976 = vmul.f32 %v11895, 0.70710677
  %v11977 = vmul.f32 %v11896, 0.70710677
  %v11978 = vmul.f32 %v11897, 0.70710677
  %v11979 = vmul.f32 %v11898, 0.70710677
  %v11980 = vmul.f32 %v11899, 0.70710677
  %v11981 = vmul.f32 %v11900, 0.70710677
  %v11982 = vmul.f32 %v11901, 0.70710677
  %v11983 = vmul.f32 %v11902, 0.70710677
  %v11984 = vmul.f32 %v11903, 0.70710677
  %v11985 = vmul.f32 %v11904, 0.70710677
  %v11986 = vmul.f32 %v11905, 0.70710677
  %v11987 = vmul.f32 %v11906, 0.70710677
  %v11988 = vmul.f32 %v11907, 0.70710677
  %v11989 = vmul.f32 %v11908, 0.70710677
  %v11990 = vmul.f32 %v11909, 0.70710677
  %v11991 = vmul.f32 %v11910, 0.70710677
  %v11992 = vmul.f32 %v11911, 0.70710677
  %v11993 = vmul.f32 %v11912, 0.70710677
  %v11994 = vmul.f32 %v11913, 0.70710677
  %v11995 = vmul.f32 %v11914, 0.70710677
  %v11996 = vmul.f32 %v11915, 0.70710677
  %v11997 = vmul.f32 %v11916, 0.70710677
  %v11998 = vmul.f32 %v11917, 0.70710677
  %v11999 = vmul.f32 %v11918, 0.70710677
  %v12000 = vmul.f32 %v11919, 0.70710677
  %v12001 = vmul.f32 %v11920, 0.70710677
  %v12002 = vmul.f32 %v11921, 0.70710677
  %v12003 = vmul.f32 %v11922, 0.70710677
  %v12004 = vmul.f32 %v11923, 0.70710677
  %v12005 = vmul.f32 %v11924, 0.70710677
  %v12006 = vmul.f32 %v11925, 0.70710677
  %v12007 = vmul.f32 %v11926, 0.70710677
  %v12008 = vmul.f32 %v11927, 0.70710677
  %v12009 = vmul.f32 %v11928, 0.70710677
  %v12010 = vmul.f32 %v11929, 0.70710677
  %v12011 = vmul.f32 %v11930, 0.70710677
  %v12012 = vmul.f32 %v11931, 0.70710677
  %v12013 = vmul.f32 %v11932, 0.70710677
  %v12014 = vmul.f32 %v11933, 0.70710677
  %v12015 = vmul.f32 %v11934, 0.70710677
  %v12016 = vmul.f32 %v11935, 0.70710677
  %vm12017 = vcmask 64512
  %12018 = vst.msk [vmem:[#allocation4] sm:$0xff] %vm12017, %v11936
  %12019 = vst.msk [vmem:[#allocation4 + $0x8] sm:$0xff] %vm12017, %v11937
  %12020 = vst.msk [vmem:[#allocation4 + $0x10] sm:$0xff] %vm12017, %v11938
  %12021 = vst.msk [vmem:[#allocation4 + $0x18] sm:$0xff] %vm12017, %v11939
  %12022 = vst.msk [vmem:[#allocation4 + $0x20] sm:$0xff] %vm12017, %v11940
  %12023 = vst.msk [vmem:[#allocation4 + $0x28] sm:$0xff] %vm12017, %v11941
  %12024 = vst.msk [vmem:[#allocation4 + $0x30] sm:$0xff] %vm12017, %v11942
  %12025 = vst.msk [vmem:[#allocation4 + $0x38] sm:$0xff] %vm12017, %v11943
  %12026 = vst.msk [vmem:[#allocation4 + $0x40] sm:$0xff] %vm12017, %v11944
  %12027 = vst.msk [vmem:[#allocation4 + $0x48] sm:$0xff] %vm12017, %v11945
  %12028 = vst.msk [vmem:[#allocation4 + $0x50] sm:$0xff] %vm12017, %v11946
  %12029 = vst.msk [vmem:[#allocation4 + $0x58] sm:$0xff] %vm12017, %v11947
  %12030 = vst.msk [vmem:[#allocation4 + $0x60] sm:$0xff] %vm12017, %v11948
  %12031 = vst.msk [vmem:[#allocation4 + $0x68] sm:$0xff] %vm12017, %v11949
  %12032 = vst.msk [vmem:[#allocation4 + $0x70] sm:$0xff] %vm12017, %v11950
  %12033 = vst.msk [vmem:[#allocation4 + $0x78] sm:$0xff] %vm12017, %v11951
  %12034 = vst.msk [vmem:[#allocation4 + $0x80] sm:$0xff] %vm12017, %v11952
  %12035 = vst.msk [vmem:[#allocation4 + $0x88] sm:$0xff] %vm12017, %v11953
  %12036 = vst.msk [vmem:[#allocation4 + $0x90] sm:$0xff] %vm12017, %v11954
  %12037 = vst.msk [vmem:[#allocation4 + $0x98] sm:$0xff] %vm12017, %v11955
  %12038 = vst.msk [vmem:[#allocation4 + $0xa0] sm:$0xff] %vm12017, %v11956
  %12039 = vst.msk [vmem:[#allocation4 + $0xa8] sm:$0xff] %vm12017, %v11957
  %12040 = vst.msk [vmem:[#allocation4 + $0xb0] sm:$0xff] %vm12017, %v11958
  %12041 = vst.msk [vmem:[#allocation4 + $0xb8] sm:$0xff] %vm12017, %v11959
  %12042 = vst.msk [vmem:[#allocation4 + $0xc0] sm:$0xff] %vm12017, %v11960
  %12043 = vst.msk [vmem:[#allocation4 + $0xc8] sm:$0xff] %vm12017, %v11961
  %12044 = vst.msk [vmem:[#allocation4 + $0xd0] sm:$0xff] %vm12017, %v11962
  %12045 = vst.msk [vmem:[#allocation4 + $0xd8] sm:$0xff] %vm12017, %v11963
  %12046 = vst.msk [vmem:[#allocation4 + $0xe0] sm:$0xff] %vm12017, %v11964
  %12047 = vst.msk [vmem:[#allocation4 + $0xe8] sm:$0xff] %vm12017, %v11965
  %12048 = vst.msk [vmem:[#allocation4 + $0xf0] sm:$0xff] %vm12017, %v11966
  %12049 = vst.msk [vmem:[#allocation4 + $0xf8] sm:$0xff] %vm12017, %v11967
  %12050 = vst.msk [vmem:[#allocation4 + $0x100] sm:$0xff] %vm12017, %v11968
  %12051 = vst.msk [vmem:[#allocation4 + $0x108] sm:$0xff] %vm12017, %v11969
  %12052 = vst.msk [vmem:[#allocation4 + $0x110] sm:$0xff] %vm12017, %v11970
  %12053 = vst.msk [vmem:[#allocation4 + $0x118] sm:$0xff] %vm12017, %v11971
  %12054 = vst.msk [vmem:[#allocation4 + $0x120] sm:$0xff] %vm12017, %v11972
  %12055 = vst.msk [vmem:[#allocation4 + $0x128] sm:$0xff] %vm12017, %v11973
  %12056 = vst.msk [vmem:[#allocation4 + $0x130] sm:$0xff] %vm12017, %v11974
  %12057 = vst.msk [vmem:[#allocation4 + $0x138] sm:$0xff] %vm12017, %v11975
  %12058 = vst.msk [vmem:[#allocation4 + $0x140] sm:$0xff] %vm12017, %v11976
  %12059 = vst.msk [vmem:[#allocation4 + $0x148] sm:$0xff] %vm12017, %v11977
  %12060 = vst.msk [vmem:[#allocation4 + $0x150] sm:$0xff] %vm12017, %v11978
  %12061 = vst.msk [vmem:[#allocation4 + $0x158] sm:$0xff] %vm12017, %v11979
  %12062 = vst.msk [vmem:[#allocation4 + $0x160] sm:$0xff] %vm12017, %v11980
  %12063 = vst.msk [vmem:[#allocation4 + $0x168] sm:$0xff] %vm12017, %v11981
  %12064 = vst.msk [vmem:[#allocation4 + $0x170] sm:$0xff] %vm12017, %v11982
  %12065 = vst.msk [vmem:[#allocation4 + $0x178] sm:$0xff] %vm12017, %v11983
  %12066 = vst.msk [vmem:[#allocation4 + $0x180] sm:$0xff] %vm12017, %v11984
  %12067 = vst.msk [vmem:[#allocation4 + $0x188] sm:$0xff] %vm12017, %v11985
  %12068 = vst.msk [vmem:[#allocation4 + $0x190] sm:$0xff] %vm12017, %v11986
  %12069 = vst.msk [vmem:[#allocation4 + $0x198] sm:$0xff] %vm12017, %v11987
  %12070 = vst.msk [vmem:[#allocation4 + $0x1a0] sm:$0xff] %vm12017, %v11988
  %12071 = vst.msk [vmem:[#allocation4 + $0x1a8] sm:$0xff] %vm12017, %v11989
  %12072 = vst.msk [vmem:[#allocation4 + $0x1b0] sm:$0xff] %vm12017, %v11990
  %12073 = vst.msk [vmem:[#allocation4 + $0x1b8] sm:$0xff] %vm12017, %v11991
  %12074 = vst.msk [vmem:[#allocation4 + $0x1c0] sm:$0xff] %vm12017, %v11992
  %12075 = vst.msk [vmem:[#allocation4 + $0x1c8] sm:$0xff] %vm12017, %v11993
  %12076 = vst.msk [vmem:[#allocation4 + $0x1d0] sm:$0xff] %vm12017, %v11994
  %12077 = vst.msk [vmem:[#allocation4 + $0x1d8] sm:$0xff] %vm12017, %v11995
  %12078 = vst.msk [vmem:[#allocation4 + $0x1e0] sm:$0xff] %vm12017, %v11996
  %12079 = vst.msk [vmem:[#allocation4 + $0x1e8] sm:$0xff] %vm12017, %v11997
  %12080 = vst.msk [vmem:[#allocation4 + $0x1f0] sm:$0xff] %vm12017, %v11998
  %12081 = vst.msk [vmem:[#allocation4 + $0x1f8] sm:$0xff] %vm12017, %v11999
  %12082 = vst.msk [vmem:[#allocation4 + $0x200] sm:$0xff] %vm12017, %v12000
  %12083 = vst.msk [vmem:[#allocation4 + $0x208] sm:$0xff] %vm12017, %v12001
  %12084 = vst.msk [vmem:[#allocation4 + $0x210] sm:$0xff] %vm12017, %v12002
  %12085 = vst.msk [vmem:[#allocation4 + $0x218] sm:$0xff] %vm12017, %v12003
  %12086 = vst.msk [vmem:[#allocation4 + $0x220] sm:$0xff] %vm12017, %v12004
  %12087 = vst.msk [vmem:[#allocation4 + $0x228] sm:$0xff] %vm12017, %v12005
  %12088 = vst.msk [vmem:[#allocation4 + $0x230] sm:$0xff] %vm12017, %v12006
  %12089 = vst.msk [vmem:[#allocation4 + $0x238] sm:$0xff] %vm12017, %v12007
  %12090 = vst.msk [vmem:[#allocation4 + $0x240] sm:$0xff] %vm12017, %v12008
  %12091 = vst.msk [vmem:[#allocation4 + $0x248] sm:$0xff] %vm12017, %v12009
  %12092 = vst.msk [vmem:[#allocation4 + $0x250] sm:$0xff] %vm12017, %v12010
  %12093 = vst.msk [vmem:[#allocation4 + $0x258] sm:$0xff] %vm12017, %v12011
  %12094 = vst.msk [vmem:[#allocation4 + $0x260] sm:$0xff] %vm12017, %v12012
  %12095 = vst.msk [vmem:[#allocation4 + $0x268] sm:$0xff] %vm12017, %v12013
  %12096 = vst.msk [vmem:[#allocation4 + $0x270] sm:$0xff] %vm12017, %v12014
  %12097 = vst.msk [vmem:[#allocation4 + $0x278] sm:$0xff] %vm12017, %v12015
  %12098 = vst.msk [vmem:[#allocation4 + $0x280] sm:$0xff] %vm12017, %v12016
  %s12099 = scalar_lea.vmem [#allocation4], 19
  %v12100 = vld [vmem:[%s12099] ss:$2 sm:$0xff]
  %12101 = vst.msk [vmem:[%s7] sm:$0xff] %vm12017, %v12100
  %s12102 = scalar_lea.vmem [#allocation4], 55
  %v12103 = vld [vmem:[%s12102] ss:$2 sm:$0xff]
  %12104 = vst.msk [vmem:[%s7 + $0x8] sm:$0xff] %vm12017, %v12103
  %s12105 = scalar_lea.vmem [#allocation4], 91
  %v12106 = vld [vmem:[%s12105] ss:$2 sm:$0xff]
  %12107 = vst.msk [vmem:[%s7 + $0x10] sm:$0xff] %vm12017, %v12106
  %s12108 = scalar_lea.vmem [#allocation4], 127
  %v12109 = vld [vmem:[%s12108] ss:$2 sm:$0xff]
  %12110 = vst.msk [vmem:[%s7 + $0x18] sm:$0xff] %vm12017, %v12109
  %s12111 = scalar_lea.vmem [#allocation4], 163
  %v12112 = vld [vmem:[%s12111] ss:$2 sm:$0xff]
  %12113 = vst.msk [vmem:[%s7 + $0x20] sm:$0xff] %vm12017, %v12112
  %s12114 = scalar_lea.vmem [#allocation4], 199
  %v12115 = vld [vmem:[%s12114] ss:$2 sm:$0xff]
  %12116 = vst.msk [vmem:[%s7 + $0x28] sm:$0xff] %vm12017, %v12115
  %s12117 = scalar_lea.vmem [#allocation4], 235
  %v12118 = vld [vmem:[%s12117] ss:$2 sm:$0xff]
  %12119 = vst.msk [vmem:[%s7 + $0x30] sm:$0xff] %vm12017, %v12118
  %s12120 = scalar_lea.vmem [#allocation4], 271
  %v12121 = vld [vmem:[%s12120] ss:$2 sm:$0xff]
  %12122 = vst.msk [vmem:[%s7 + $0x38] sm:$0xff] %vm12017, %v12121
  %s12123 = scalar_lea.vmem [#allocation4], 343
  %v12124 = vld [vmem:[%s12123] ss:$2 sm:$0xff]
  %12125 = vst.msk [vmem:[%s7 + $0x40] sm:$0xff] %vm12017, %v12124
  %s12126 = scalar_lea.vmem [#allocation4], 379
  %v12127 = vld [vmem:[%s12126] ss:$2 sm:$0xff]
  %12128 = vst.msk [vmem:[%s7 + $0x48] sm:$0xff] %vm12017, %v12127
  %s12129 = scalar_lea.vmem [#allocation4], 415
  %v12130 = vld [vmem:[%s12129] ss:$2 sm:$0xff]
  %12131 = vst.msk [vmem:[%s7 + $0x50] sm:$0xff] %vm12017, %v12130
  %s12132 = scalar_lea.vmem [#allocation4], 451
  %v12133 = vld [vmem:[%s12132] ss:$2 sm:$0xff]
  %12134 = vst.msk [vmem:[%s7 + $0x58] sm:$0xff] %vm12017, %v12133
  %s12135 = scalar_lea.vmem [#allocation4], 487
  %v12136 = vld [vmem:[%s12135] ss:$2 sm:$0xff]
  %12137 = vst.msk [vmem:[%s7 + $0x60] sm:$0xff] %vm12017, %v12136
  %s12138 = scalar_lea.vmem [#allocation4], 523
  %v12139 = vld [vmem:[%s12138] ss:$2 sm:$0xff]
  %12140 = vst.msk [vmem:[%s7 + $0x68] sm:$0xff] %vm12017, %v12139
  %s12141 = scalar_lea.vmem [#allocation4], 559
  %v12142 = vld [vmem:[%s12141] ss:$2 sm:$0xff]
  %12143 = vst.msk [vmem:[%s7 + $0x70] sm:$0xff] %vm12017, %v12142
  %s12144 = scalar_lea.vmem [#allocation4], 595
  %v12145 = vld [vmem:[%s12144] ss:$2 sm:$0xff]
  %12146 = vst.msk [vmem:[%s7 + $0x78] sm:$0xff] %vm12017, %v12145
  // Predicated region
  $region30: #{resblock_forward.1} parent=0 // pred_check
    _
  $region31: #{resblock_forward.1} parent=0 // pred_check_branch
    %12148 = sbr.rel (0) target = $region33
  $region32: #{resblock_forward.1} parent=0 // pred_region
    _
  $region33: #{resblock_forward.1} parent=0 // pred_fallthru
    _
  // Predicated region
  $region34: #{resblock_forward.1} parent=0 // pred_check
    _
  $region35: #{resblock_forward.1} parent=0 // pred_check_branch
    %12150 = sbr.rel (0) target = $region37
  $region36: #{resblock_forward.1} parent=0 // pred_region
    _
  $region37: #{resblock_forward.1} parent=0 // pred_fallthru
    _

</llo_original>
